<compile_context>
chip_gen: v6e
topology: v6e:2x2x1
jax: 0.10.0
libtpu: 0.0.40
codegen_flags: <defaults>
</compile_context>

<pallas_src>
import functools

import jax
import jax.numpy as jnp
from jax.experimental import pallas as pl
from jax.experimental.pallas import tpu as pltpu


# ---------------------------------------------------------------------------
# Device-aware knobs
# ---------------------------------------------------------------------------

@functools.lru_cache(maxsize=None)
def _vmem_limit_bytes():
    """Generous scoped-VMEM budget with headroom below physical VMEM
    (128 MiB on v5e/v6e, 64 MiB on v7x)."""
    try:
        cap = int(pltpu.get_tpu_info().vmem_capacity_bytes)
        return int(min(96 * 2 ** 20, (cap * 3) // 4))
    except Exception:
        return 48 * 2 ** 20


@functools.lru_cache(maxsize=None)
def _single_buffer_kwargs():
    """Grid-invariant operands (weights / shifts) should not be double-buffered.
    Probe pl.Buffered(1) support once; fall back to default buffering."""
    try:
        mode = pl.Buffered(buffer_count=1)

        def _copy(x_ref, o_ref):
            o_ref[...] = x_ref[...]

        probe = pl.pallas_call(
            _copy,
            out_shape=jax.ShapeDtypeStruct((8, 128), jnp.float32),
            grid=(2,),
            in_specs=[pl.BlockSpec((8, 128), lambda i: (0, 0), pipeline_mode=mode)],
            out_specs=pl.BlockSpec((8, 128), lambda i: (0, 0)),
        )(jnp.ones((8, 128), jnp.float32))
        jax.block_until_ready(probe)
        return {"pipeline_mode": mode}
    except Exception:
        return {}


# ---------------------------------------------------------------------------
# Fused multi-branch tap-convolution kernel
# ---------------------------------------------------------------------------

def _make_fused_kernel(branch_descs, m_rows, relu):
    """out[b, do] = act( sum_branches sum_taps a_tap @ w_tap + shift[b] ).

    Activations / weights are bf16; accumulation is f32 on the MXU.
    Tap accumulation inside the kernel == the K reduction, so no (M, taps*K)
    im2col operand is ever materialized in HBM."""

    def kernel(*refs):
        out_ref = refs[-1]
        shift_ref = refs[-2]
        acc = None

        def accum(acc, a, w):
            d = jnp.dot(a, w, preferred_element_type=jnp.float32)
            return d if acc is None else acc + d

        for desc in branch_descs:
            kind = desc["kind"]
            w_ref = refs[desc["w_slot"]]
            wo = desc["wo"]
            if kind == "pw":                      # 1x1 conv (bypass / proj)
                a_ref = refs[desc["act_slots"][0]]
                acc = accum(acc, a_ref[0, 0], w_ref[...])
            elif kind == "s1":                    # 3x3 over (D,H), stride 1, pad 1
                for kd in range(3):
                    a_ref = refs[desc["act_slots"][kd]]
                    for kh in range(3):
                        v = a_ref[0, 0, kh * wo:kh * wo + m_rows]
                        acc = accum(acc, v, w_ref[kd * 3 + kh])
            else:                                 # "s2": 4x4 over (D,H), stride 2, pad 1
                for kd in range(4):
                    for kh in range(4):
                        slot = desc["act_slots"][(kd // 2) * 2 + (kh % 2)]
                        a_ref = refs[slot]
                        v = a_ref[0, kd % 2,
                                  (kh // 2) * wo:(kh // 2) * wo + m_rows]
                        acc = accum(acc, v, w_ref[kd * 4 + kh])

        acc = acc + shift_ref[0]
        if relu:
            acc = jnp.maximum(acc, 0.0)
        out_ref[0, 0] = acc.astype(out_ref.dtype)

    return kernel


def _fused_conv_call(branches, shift_rows, *, batch, d_out, m_rows, w_out,
                     c_out, relu=True, out_dtype=jnp.bfloat16):
    """One pallas_call computing a sum of convolution / pointwise branches over
    a (batch, d_out) grid; each grid step produces the (Ho*Wo, c_out) slab of
    one output D-row."""
    operands, in_specs, branch_descs = [], [], []
    sb = _single_buffer_kwargs()

    def add(arr, spec):
        operands.append(arr)
        in_specs.append(spec)
        return len(operands) - 1

    for br in branches:
        kind = br["kind"]
        if kind == "s2":
            # acts: H-parity-split, D/H-padded input, (H', W) flattened:
            #   each (B, 2*d_out + 2, (Ho+1)*Wo, Cin)
            a_h0, a_h1 = br["acts"]
            hw, cin = a_h0.shape[2], a_h0.shape[3]
            slots = []
            for d_off in (0, 1):
                for a in (a_h0, a_h1):
                    slots.append(add(a, pl.BlockSpec(
                        (1, 2, hw, cin),
                        lambda b, d, o=d_off: (b, d + o, 0, 0))))
        elif kind == "s1":
            # act: D/H-padded conv1 output, (B, d_out + 2, (Ho+2)*Wo, Cin)
            a = br["act"]
            hw, cin = a.shape[2], a.shape[3]
            slots = [add(a, pl.BlockSpec(
                (1, 1, hw, cin), lambda b, d, o=d_off: (b, d + o, 0, 0)))
                for d_off in (0, 1, 2)]
        else:                                     # "pw": (B, d_out, Ho*Wo, Cin)
            a = br["act"]
            cin = a.shape[3]
            slots = [add(a, pl.BlockSpec((1, 1, m_rows, cin),
                                         lambda b, d: (b, d, 0, 0)))]

        w = br["w"].astype(jnp.bfloat16)
        w_idx = (lambda b, d: (0, 0, 0)) if w.ndim == 3 else (lambda b, d: (0, 0))
        w_slot = add(w, pl.BlockSpec(w.shape, w_idx, **sb))
        branch_descs.append({"kind": kind, "act_slots": tuple(slots),
                             "w_slot": w_slot, "wo": w_out})

    shift = shift_rows.astype(jnp.float32).reshape(-1, 1, c_out)
    if shift.shape[0] == 1:
        add(shift, pl.BlockSpec((1, 1, c_out), lambda b, d: (0, 0, 0), **sb))
    else:
        add(shift, pl.BlockSpec((1, 1, c_out), lambda b, d: (b, 0, 0)))

    return pl.pallas_call(
        _make_fused_kernel(branch_descs, m_rows, relu),
        out_shape=jax.ShapeDtypeStruct((batch, d_out, m_rows, c_out), out_dtype),
        grid=(batch, d_out),
        in_specs=in_specs,
        out_specs=pl.BlockSpec((1, 1, m_rows, c_out), lambda b, d: (b, d, 0, 0)),
        compiler_params=pltpu.CompilerParams(
            dimension_semantics=("parallel", "parallel"),
            vmem_limit_bytes=_vmem_limit_bytes()),
    )(*operands)


# ---------------------------------------------------------------------------
# BN folding & weight-matrix prep (trace-time)
# ---------------------------------------------------------------------------

def _bn_scale_shift(bn, cout, bias=None):
    """Eval-mode BatchNorm3d (+ optional conv bias) -> per-channel (scale, shift)."""
    if bn is None:
        scale = jnp.ones((cout,), jnp.float32)
        shift = (jnp.zeros((cout,), jnp.float32) if bias is None
                 else bias.astype(jnp.float32))
    else:
        gamma, beta, mean, var = bn
        scale = gamma * jax.lax.rsqrt(var + 1e-5)
        shift = beta - mean * scale
        if bias is not None:
            shift = shift + bias * scale
    return scale, shift


def _tap_weights(w, scale):
    """(Cout, Cin, kd, kh, 1) conv weight -> (kd*kh, Cin, Cout), BN scale folded."""
    cout, cin, kd, kh, _ = w.shape
    wt = jnp.transpose(w[:, :, :, :, 0], (2, 3, 1, 0))        # (kd, kh, Cin, Cout)
    return (wt * scale[None, None, None, :]).reshape(kd * kh, cin, cout)


def _pw_weight(w, scale=None):
    """(Cout, Cin, 1, 1, 1) conv weight -> (Cin, Cout), optional BN scale folded."""
    wm = w[:, :, 0, 0, 0].T
    return wm if scale is None else wm * scale[None, :]


# ---------------------------------------------------------------------------
# DownLayerResidual / Enc forward
# ---------------------------------------------------------------------------

def down_layer_residual(x, p, x_proj=None, x_class=None,
                        tsm_nth_channel=4, tsm_n_shifts=2):
    """x: (B, D, H, W, Cin) bf16 NDHWC.  Returns (B, D/2, H/2, W/2, Cout) bf16."""
    B, D, H, W, Cin = x.shape
    Do, Ho, Wo = D // 2, H // 2, W // 2
    M = Ho * Wo
    Cmid = p["res_w1"].shape[0]          # conv1 maps Cin -> Cin
    Cout = p["res_w2"].shape[0]

    # -- XLA prep (cheap, linear passes; nothing is expanded K-fold) ---------
    # TemporalShift fused with conv1's stride-2 W subsampling: conv1 only reads
    # W positions 2*wo, so gather the +/-1-shifted columns directly.
    # TODO(synk): TemporalShift source is not in the provided module; standard
    # zero-padded TSM (+/-1 shift along W on c % nth channel groups) is assumed.
    x_even = x[:, :, :, 0::2, :]                                  # w = 2*wo
    x_odd = x[:, :, :, 1::2, :]                                   # w = 2*wo + 1
    x_odd_m1 = jnp.concatenate(                                   # w = 2*wo - 1
        [jnp.zeros_like(x_odd[:, :, :, :1, :]), x_odd[:, :, :, :-1, :]], axis=3)
    c_idx = (jnp.arange(Cin) % tsm_nth_channel)[None, None, None, None, :]
    x1 = x_even
    for s in range(tsm_n_shifts):
        x1 = jnp.where(c_idx == s, x_odd_m1 if s % 2 == 0 else x_odd, x1)

    # conv1 zero padding (D, H += 1 each side); split H parity so the stride-2
    # H taps become contiguous in-kernel slices; flatten (H', W) onto sublanes.
    x1p = jnp.pad(x1, ((0, 0), (1, 1), (1, 1), (0, 0), (0, 0)))
    a_h0 = x1p[:, :, 0::2].reshape(B, D + 2, (Ho + 1) * Wo, Cin)
    a_h1 = x1p[:, :, 1::2].reshape(B, D + 2, (Ho + 1) * Wo, Cin)

    # bypass AvgPool3d(2, 2): tiny (1/8-size) output computed in XLA; the 1x1
    # conv that follows it runs inside the merge kernel.
    xavg = x.astype(jnp.float32).reshape(B, Do, 2, Ho, 2, Wo, 2, Cin)
    xavg = xavg.mean(axis=(2, 4, 6)).reshape(B, Do, M, Cin).astype(jnp.bfloat16)

    # -- pallas_call 1: conv1 (4x4x1, stride 2) + bias + BN + ReLU -----------
    s1, sh1 = _bn_scale_shift(p["res_bn1"], Cmid, p["res_b1"])
    r = _fused_conv_call(
        [{"kind": "s2", "acts": (a_h0, a_h1), "w": _tap_weights(p["res_w1"], s1)}],
        sh1.reshape(1, Cmid),
        batch=B, d_out=Do, m_rows=M, w_out=Wo, c_out=Cmid, relu=True)

    # pad conv1 output for conv2's 3x3 window (one cheap pass over the small r)
    rp = jnp.pad(r.reshape(B, Do, Ho, Wo, Cmid),
                 ((0, 0), (1, 1), (1, 1), (0, 0), (0, 0)))
    rp = rp.reshape(B, Do + 2, (Ho + 2) * Wo, Cmid)

    # -- pallas_call 2: conv2 + bypass [+ proj] [+ class] + BN + ReLU --------
    s2, sh2 = _bn_scale_shift(p["res_bn2"], Cout, p["res_b2"])
    branches = [
        {"kind": "s1", "act": rp, "w": _tap_weights(p["res_w2"], s2)},
        {"kind": "pw", "act": xavg, "w": _pw_weight(p["bypass_w"])},
    ]
    shift_rows = sh2.reshape(1, Cout)
    if x_proj is not None:
        sp, shp = _bn_scale_shift(p["proj_bn"], Cout, None)
        branches.append({"kind": "pw",
                         "act": x_proj.reshape(B, Do, M, Cout),
                         "w": _pw_weight(p["proj_w"], sp)})
        shift_rows = shift_rows + shp.reshape(1, Cout)
    if x_class is not None:
        sc, shc = _bn_scale_shift(p["proj_class_bn"], Cout, None)
        wcls = _pw_weight(p["proj_class_w"], sc)                  # (n_cls, Cout)
        shift_rows = shift_rows + (x_class.astype(jnp.float32) @ wcls
                                   + shc[None, :])                # (B, Cout)

    out = _fused_conv_call(branches, shift_rows,
                           batch=B, d_out=Do, m_rows=M, w_out=Wo, c_out=Cout,
                           relu=True)
    return out.reshape(B, Do, Ho, Wo, Cout)


def enc_forward(params, x, x_class, ch_ref, ch_target,
                tsm_nth_channel=4, tsm_n_shifts=2):
    """Eval-mode forward (noise_std=0, BN running stats, spectral_norm folded)."""
    x = x.astype(jnp.bfloat16)
    # external NCDHW -> internal NDHWC (channels on TPU lanes)
    x_ref = jnp.transpose(x[:, jnp.array(ch_ref)], (0, 2, 3, 4, 1))
    x_tgt = jnp.transpose(x[:, jnp.array(ch_target)], (0, 2, 3, 4, 1))

    for p_ref, p_tgt in zip(params["ref_path"], params["target_path"]):
        x_ref = down_layer_residual(x_ref, p_ref,
                                    tsm_nth_channel=tsm_nth_channel,
                                    tsm_n_shifts=tsm_n_shifts)
        x_tgt = down_layer_residual(x_tgt, p_tgt, x_proj=x_ref, x_class=x_class,
                                    tsm_nth_channel=tsm_nth_channel,
                                    tsm_n_shifts=tsm_n_shifts)

    def flat(v):  # PyTorch .view(B, -1) on NCDHW
        return (jnp.transpose(v, (0, 4, 1, 2, 3))
                .reshape(v.shape[0], -1).astype(jnp.float32))

    xr, xt = flat(x_ref), flat(x_tgt)
    # Tiny (B x F)(F x n) heads: per-call overhead + weight DMA of a Pallas
    # kernel would dominate at B=2 -> leave them to XLA.
    mu_r = xr @ params["ref_out_mu"].T
    sig_r = xr @ params["ref_out_sigma"].T
    mu_l = xt @ params["latent_out_mu"].T
    sig_l = xt @ params["latent_out_sigma"].T
    return [[mu_r, sig_r], [mu_l, sig_l]]


# ---------------------------------------------------------------------------
# Deterministic parameter initialization (synthetic weights)
# ---------------------------------------------------------------------------

def _bn_init(key, c):
    k1, k2, k3, k4 = jax.random.split(key, 4)
    gamma = 1.0 + 0.1 * jax.random.normal(k1, (c,), jnp.float32)
    beta = 0.1 * jax.random.normal(k2, (c,), jnp.float32)
    mean = 0.1 * jax.random.normal(k3, (c,), jnp.float32)
    var = 1.0 + 0.1 * jnp.abs(jax.random.normal(k4, (c,), jnp.float32))
    return (gamma, beta, mean, var)


def _conv_init(key, cout, cin, kd, kh, kw):
    fan_in = cin * kd * kh * kw
    std = (2.0 / fan_in) ** 0.5
    return std * jax.random.normal(key, (cout, cin, kd, kh, kw), jnp.float32)


def init_down_layer(key, ch_in, ch_out, with_proj, n_classes):
    ks = jax.random.split(key, 12)
    p = {
        "bypass_w": _conv_init(ks[0], ch_out, ch_in, 1, 1, 1),
        "res_w1": _conv_init(ks[1], ch_in, ch_in, 4, 4, 1),
        "res_b1": 0.05 * jax.random.normal(ks[2], (ch_in,), jnp.float32),
        "res_bn1": _bn_init(ks[3], ch_in),
        "res_w2": _conv_init(ks[4], ch_out, ch_in, 3, 3, 1),
        "res_b2": 0.05 * jax.random.normal(ks[5], (ch_out,), jnp.float32),
        "res_bn2": _bn_init(ks[6], ch_out),
    }
    if with_proj:
        p["proj_w"] = _conv_init(ks[7], ch_out, ch_out, 1, 1, 1)
        p["proj_bn"] = _bn_init(ks[8], ch_out)
        p["proj_class_w"] = _conv_init(ks[9], ch_out, n_classes, 1, 1, 1)
        p["proj_class_bn"] = _bn_init(ks[10], ch_out)
    return p


def init_enc(key, n_channels, n_channels_target, n_classes,
             conv_channels_list, n_ref, n_latent_dim, in_features):
    n_levels = len(conv_channels_list)
    ks = jax.random.split(key, 2 * n_levels + 4)
    params = {"ref_path": [], "target_path": []}
    ref_ins = [n_channels] + conv_channels_list[:-1]
    tgt_ins = [n_channels_target] + conv_channels_list[:-1]
    for i, ch_out in enumerate(conv_channels_list):
        params["ref_path"].append(
            init_down_layer(ks[2 * i], ref_ins[i], ch_out, False, n_classes))
        params["target_path"].append(
            init_down_layer(ks[2 * i + 1], tgt_ins[i], ch_out, True, n_classes))
    lin_std = 1.0 / (in_features ** 0.5)
    params["ref_out_mu"] = lin_std * jax.random.normal(ks[-4], (n_ref, in_features), jnp.float32)
    params["ref_out_sigma"] = lin_std * jax.random.normal(ks[-3], (n_ref, in_features), jnp.float32)
    params["latent_out_mu"] = lin_std * jax.random.normal(ks[-2], (n_latent_dim, in_features), jnp.float32)
    params["latent_out_sigma"] = lin_std * jax.random.normal(ks[-1], (n_latent_dim, in_features), jnp.float32)
    return params


# ---------------------------------------------------------------------------
# Demo
# ---------------------------------------------------------------------------

if __name__ == "__main__":
    key = jax.random.PRNGKey(0)

    # Small configuration consistent with the module's constructor:
    B = 2
    n_classes = 3
    n_ref = 4
    n_latent_dim = 16
    ch_ref = [0, 2]
    ch_target = [1, 3]
    n_channels = len(ch_ref)            # 2
    n_channels_target = len(ch_target)  # 2
    conv_channels_list = [8, 16]        # two DownLayerResidual levels
    D, H, W = 16, 16, 8                 # spatial dims (W is the temporal axis)
    # after 2 down-layers spatial becomes (4, 4, 2) == imsize_compressed
    in_features = conv_channels_list[-1] * (D // 4) * (H // 4) * (W // 4)

    kx, kc, kp = jax.random.split(key, 3)
    x = jax.random.normal(kx, (B, 4, D, H, W), jnp.float32)        # NCDHW
    x_class = jax.random.normal(kc, (B, n_classes), jnp.float32)

    params = init_enc(kp, n_channels, n_channels_target, n_classes,
                      conv_channels_list, n_ref, n_latent_dim, in_features)

    _single_buffer_kwargs()   # probe pl.Buffered(1) support once, outside jit

    fwd = jax.jit(functools.partial(enc_forward, ch_ref=ch_ref,
                                    ch_target=ch_target,
                                    tsm_nth_channel=4, tsm_n_shifts=2))
    out = fwd(params, x, x_class)
    out = jax.tree_util.tree_map(jax.block_until_ready, out)

    # shapes: [[(B, n_ref), (B, n_ref)], [(B, n_latent), (B, n_latent)]]
    assert out[0][0].shape == (B, n_ref)
    assert out[0][1].shape == (B, n_ref)
    assert out[1][0].shape == (B, n_latent_dim)
    assert out[1][1].shape == (B, n_latent_dim)
    print("KERNEL_OK")
</pallas_src>

<mosaic_0001>
module attributes {stable_mosaic.version = 11 : i64} {
  func.func @_copy(%arg0: i32, %arg1: memref<8x128xf32, #tpu.memory_space<vmem>>, %arg2: memref<8x128xf32, #tpu.memory_space<vmem>>) attributes {dimension_semantics = [#tpu.dimension_semantics<arbitrary>], iteration_bounds = array<i64: 2>, scalar_prefetch = 0 : i64, scratch_operands = 0 : i64, tpu.core_type = #tpu.core_type<tc>, window_params = [{pipeline_mode = #tpu.pipeline_mode<synchronous>, transform_indices = @transform_0, window_bounds = array<i64: 8, 128>}, {pipeline_mode = #tpu.pipeline_mode<synchronous>, transform_indices = @transform_1, window_bounds = array<i64: 8, 128>}]} {
    %c0 = arith.constant 0 : index
    %c0_0 = arith.constant 0 : index
    %0 = vector.load %arg1[%c0, %c0_0] : memref<8x128xf32, #tpu.memory_space<vmem>>, vector<8x128xf32>
    %c0_1 = arith.constant 0 : index
    %c0_2 = arith.constant 0 : index
    %1 = vector.load %arg2[%c0_1, %c0_2] : memref<8x128xf32, #tpu.memory_space<vmem>>, vector<8x128xf32>
    tpu.vector_store %arg2[%c0_1, %c0_2], %0 {strides = array<i32>} : memref<8x128xf32, #tpu.memory_space<vmem>>, vector<8x128xf32>,
    return
  }
  func.func @transform_0(%arg0: i32) -> (i32, i32) {
    %c0_i32 = arith.constant 0 : i32
    %c0_i32_0 = arith.constant 0 : i32
    %c0_i32_1 = arith.constant 0 : i32
    return %c0_i32, %c0_i32_0 : i32, i32
  }
  func.func @transform_1(%arg0: i32) -> (i32, i32) {
    %c0_i32 = arith.constant 0 : i32
    %c0_i32_0 = arith.constant 0 : i32
    %c0_i32_1 = arith.constant 0 : i32
    return %c0_i32, %c0_i32_0 : i32, i32
  }
}

module attributes {stable_mosaic.version = 11 : i64} {
  func.func @kernel(%arg0: i32, %arg1: i32, %arg2: memref<1x2x36x2xbf16, #tpu.memory_space<vmem>>, %arg3: memref<1x2x36x2xbf16, #tpu.memory_space<vmem>>, %arg4: memref<1x2x36x2xbf16, #tpu.memory_space<vmem>>, %arg5: memref<1x2x36x2xbf16, #tpu.memory_space<vmem>>, %arg6: memref<16x2x2xbf16, #tpu.memory_space<vmem>>, %arg7: memref<1x1x2xf32, #tpu.memory_space<vmem>>, %arg8: memref<1x1x32x2xbf16, #tpu.memory_space<vmem>>) attributes {dimension_semantics = [#tpu.dimension_semantics<parallel>, #tpu.dimension_semantics<parallel>], iteration_bounds = array<i64: 2, 8>, scalar_prefetch = 0 : i64, scratch_operands = 0 : i64, tpu.core_type = #tpu.core_type<tc>, window_params = [{transform_indices = @transform_0, window_bounds = array<i64: 1, 2, 36, 2>}, {transform_indices = @transform_1, window_bounds = array<i64: 1, 2, 36, 2>}, {transform_indices = @transform_2, window_bounds = array<i64: 1, 2, 36, 2>}, {transform_indices = @transform_3, window_bounds = array<i64: 1, 2, 36, 2>}, {pipeline_mode = #tpu.pipeline_mode<synchronous>, transform_indices = @transform_4, window_bounds = array<i64: 16, 2, 2>}, {pipeline_mode = #tpu.pipeline_mode<synchronous>, transform_indices = @transform_5, window_bounds = array<i64: 1, 1, 2>}, {transform_indices = @transform_6, window_bounds = array<i64: 1, 1, 32, 2>}]} {
    %c0 = arith.constant 0 : index
    %c0_0 = arith.constant 0 : index
    %c0_1 = arith.constant 0 : index
    %c0_2 = arith.constant 0 : index
    %0 = vector.load %arg2[%c0, %c0_0, %c0_1, %c0_2] : memref<1x2x36x2xbf16, #tpu.memory_space<vmem>>, vector<1x1x32x2xbf16>
    %1 = vector.shape_cast %0 : vector<1x1x32x2xbf16> to vector<32x2xbf16>
    %c0_3 = arith.constant 0 : index
    %c0_4 = arith.constant 0 : index
    %c0_5 = arith.constant 0 : index
    %2 = vector.load %arg6[%c0_3, %c0_4, %c0_5] : memref<16x2x2xbf16, #tpu.memory_space<vmem>>, vector<1x2x2xbf16>
    %3 = vector.shape_cast %2 : vector<1x2x2xbf16> to vector<2x2xbf16>
    %cst = arith.constant dense<0.000000e+00> : vector<32x2xf32>
    %4 = tpu.matmul %1, %3, %cst {dimension_numbers = #tpu.dot_dimension_numbers<[1], [0], [0], [1], [0, 0, 1, 1], [], []>} : vector<32x2xbf16>, vector<2x2xbf16>, vector<32x2xf32> -> vector<32x2xf32>
    %c0_6 = arith.constant 0 : index
    %c0_7 = arith.constant 0 : index
    %c0_8 = arith.constant 0 : index
    %c0_9 = arith.constant 0 : index
    %5 = vector.load %arg3[%c0_6, %c0_7, %c0_8, %c0_9] : memref<1x2x36x2xbf16, #tpu.memory_space<vmem>>, vector<1x1x32x2xbf16>
    %6 = vector.shape_cast %5 : vector<1x1x32x2xbf16> to vector<32x2xbf16>
    %c1 = arith.constant 1 : index
    %c0_10 = arith.constant 0 : index
    %c0_11 = arith.constant 0 : index
    %7 = vector.load %arg6[%c1, %c0_10, %c0_11] : memref<16x2x2xbf16, #tpu.memory_space<vmem>>, vector<1x2x2xbf16>
    %8 = vector.shape_cast %7 : vector<1x2x2xbf16> to vector<2x2xbf16>
    %cst_12 = arith.constant dense<0.000000e+00> : vector<32x2xf32>
    %9 = tpu.matmul %6, %8, %cst_12 {dimension_numbers = #tpu.dot_dimension_numbers<[1], [0], [0], [1], [0, 0, 1, 1], [], []>} : vector<32x2xbf16>, vector<2x2xbf16>, vector<32x2xf32> -> vector<32x2xf32>
    %10 = arith.addf %4, %9 : vector<32x2xf32>
    %c0_13 = arith.constant 0 : index
    %c0_14 = arith.constant 0 : index
    %c4 = arith.constant 4 : index
    %c0_15 = arith.constant 0 : index
    %11 = vector.load %arg2[%c0_13, %c0_14, %c4, %c0_15] : memref<1x2x36x2xbf16, #tpu.memory_space<vmem>>, vector<1x1x32x2xbf16>
    %12 = vector.shape_cast %11 : vector<1x1x32x2xbf16> to vector<32x2xbf16>
    %c2 = arith.constant 2 : index
    %c0_16 = arith.constant 0 : index
    %c0_17 = arith.constant 0 : index
    %13 = vector.load %arg6[%c2, %c0_16, %c0_17] : memref<16x2x2xbf16, #tpu.memory_space<vmem>>, vector<1x2x2xbf16>
    %14 = vector.shape_cast %13 : vector<1x2x2xbf16> to vector<2x2xbf16>
    %cst_18 = arith.constant dense<0.000000e+00> : vector<32x2xf32>
    %15 = tpu.matmul %12, %14, %cst_18 {dimension_numbers = #tpu.dot_dimension_numbers<[1], [0], [0], [1], [0, 0, 1, 1], [], []>} : vector<32x2xbf16>, vector<2x2xbf16>, vector<32x2xf32> -> vector<32x2xf32>
    %16 = arith.addf %10, %15 : vector<32x2xf32>
    %c0_19 = arith.constant 0 : index
    %c0_20 = arith.constant 0 : index
    %c4_21 = arith.constant 4 : index
    %c0_22 = arith.constant 0 : index
    %17 = vector.load %arg3[%c0_19, %c0_20, %c4_21, %c0_22] : memref<1x2x36x2xbf16, #tpu.memory_space<vmem>>, vector<1x1x32x2xbf16>
    %18 = vector.shape_cast %17 : vector<1x1x32x2xbf16> to vector<32x2xbf16>
    %c3 = arith.constant 3 : index
    %c0_23 = arith.constant 0 : index
    %c0_24 = arith.constant 0 : index
    %19 = vector.load %arg6[%c3, %c0_23, %c0_24] : memref<16x2x2xbf16, #tpu.memory_space<vmem>>, vector<1x2x2xbf16>
    %20 = vector.shape_cast %19 : vector<1x2x2xbf16> to vector<2x2xbf16>
    %cst_25 = arith.constant dense<0.000000e+00> : vector<32x2xf32>
    %21 = tpu.matmul %18, %20, %cst_25 {dimension_numbers = #tpu.dot_dimension_numbers<[1], [0], [0], [1], [0, 0, 1, 1], [], []>} : vector<32x2xbf16>, vector<2x2xbf16>, vector<32x2xf32> -> vector<32x2xf32>
    %22 = arith.addf %16, %21 : vector<32x2xf32>
    %c0_26 = arith.constant 0 : index
    %c1_27 = arith.constant 1 : index
    %c0_28 = arith.constant 0 : index
    %c0_29 = arith.constant 0 : index
    %23 = vector.load %arg2[%c0_26, %c1_27, %c0_28, %c0_29] : memref<1x2x36x2xbf16, #tpu.memory_space<vmem>>, vector<1x1x32x2xbf16>
    %24 = vector.shape_cast %23 : vector<1x1x32x2xbf16> to vector<32x2xbf16>
    %c4_30 = arith.constant 4 : index
    %c0_31 = arith.constant 0 : index
    %c0_32 = arith.constant 0 : index
    %25 = vector.load %arg6[%c4_30, %c0_31, %c0_32] : memref<16x2x2xbf16, #tpu.memory_space<vmem>>, vector<1x2x2xbf16>
    %26 = vector.shape_cast %25 : vector<1x2x2xbf16> to vector<2x2xbf16>
    %cst_33 = arith.constant dense<0.000000e+00> : vector<32x2xf32>
    %27 = tpu.matmul %24, %26, %cst_33 {dimension_numbers = #tpu.dot_dimension_numbers<[1], [0], [0], [1], [0, 0, 1, 1], [], []>} : vector<32x2xbf16>, vector<2x2xbf16>, vector<32x2xf32> -> vector<32x2xf32>
    %28 = arith.addf %22, %27 : vector<32x2xf32>
    %c0_34 = arith.constant 0 : index
    %c1_35 = arith.constant 1 : index
    %c0_36 = arith.constant 0 : index
    %c0_37 = arith.constant 0 : index
    %29 = vector.load %arg3[%c0_34, %c1_35, %c0_36, %c0_37] : memref<1x2x36x2xbf16, #tpu.memory_space<vmem>>, vector<1x1x32x2xbf16>
    %30 = vector.shape_cast %29 : vector<1x1x32x2xbf16> to vector<32x2xbf16>
    %c5 = arith.constant 5 : index
    %c0_38 = arith.constant 0 : index
    %c0_39 = arith.constant 0 : index
    %31 = vector.load %arg6[%c5, %c0_38, %c0_39] : memref<16x2x2xbf16, #tpu.memory_space<vmem>>, vector<1x2x2xbf16>
    %32 = vector.shape_cast %31 : vector<1x2x2xbf16> to vector<2x2xbf16>
    %cst_40 = arith.constant dense<0.000000e+00> : vector<32x2xf32>
    %33 = tpu.matmul %30, %32, %cst_40 {dimension_numbers = #tpu.dot_dimension_numbers<[1], [0], [0], [1], [0, 0, 1, 1], [], []>} : vector<32x2xbf16>, vector<2x2xbf16>, vector<32x2xf32> -> vector<32x2xf32>
    %34 = arith.addf %28, %33 : vector<32x2xf32>
    %c0_41 = arith.constant 0 : index
    %c1_42 = arith.constant 1 : index
    %c4_43 = arith.constant 4 : index
    %c0_44 = arith.constant 0 : index
    %35 = vector.load %arg2[%c0_41, %c1_42, %c4_43, %c0_44] : memref<1x2x36x2xbf16, #tpu.memory_space<vmem>>, vector<1x1x32x2xbf16>
    %36 = vector.shape_cast %35 : vector<1x1x32x2xbf16> to vector<32x2xbf16>
    %c6 = arith.constant 6 : index
    %c0_45 = arith.constant 0 : index
    %c0_46 = arith.constant 0 : index
    %37 = vector.load %arg6[%c6, %c0_45, %c0_46] : memref<16x2x2xbf16, #tpu.memory_space<vmem>>, vector<1x2x2xbf16>
    %38 = vector.shape_cast %37 : vector<1x2x2xbf16> to vector<2x2xbf16>
    %cst_47 = arith.constant dense<0.000000e+00> : vector<32x2xf32>
    %39 = tpu.matmul %36, %38, %cst_47 {dimension_numbers = #tpu.dot_dimension_numbers<[1], [0], [0], [1], [0, 0, 1, 1], [], []>} : vector<32x2xbf16>, vector<2x2xbf16>, vector<32x2xf32> -> vector<32x2xf32>
    %40 = arith.addf %34, %39 : vector<32x2xf32>
    %c0_48 = arith.constant 0 : index
    %c1_49 = arith.constant 1 : index
    %c4_50 = arith.constant 4 : index
    %c0_51 = arith.constant 0 : index
    %41 = vector.load %arg3[%c0_48, %c1_49, %c4_50, %c0_51] : memref<1x2x36x2xbf16, #tpu.memory_space<vmem>>, vector<1x1x32x2xbf16>
    %42 = vector.shape_cast %41 : vector<1x1x32x2xbf16> to vector<32x2xbf16>
    %c7 = arith.constant 7 : index
    %c0_52 = arith.constant 0 : index
    %c0_53 = arith.constant 0 : index
    %43 = vector.load %arg6[%c7, %c0_52, %c0_53] : memref<16x2x2xbf16, #tpu.memory_space<vmem>>, vector<1x2x2xbf16>
    %44 = vector.shape_cast %43 : vector<1x2x2xbf16> to vector<2x2xbf16>
    %cst_54 = arith.constant dense<0.000000e+00> : vector<32x2xf32>
    %45 = tpu.matmul %42, %44, %cst_54 {dimension_numbers = #tpu.dot_dimension_numbers<[1], [0], [0], [1], [0, 0, 1, 1], [], []>} : vector<32x2xbf16>, vector<2x2xbf16>, vector<32x2xf32> -> vector<32x2xf32>
    %46 = arith.addf %40, %45 : vector<32x2xf32>
    %c0_55 = arith.constant 0 : index
    %c0_56 = arith.constant 0 : index
    %c0_57 = arith.constant 0 : index
    %c0_58 = arith.constant 0 : index
    %47 = vector.load %arg4[%c0_55, %c0_56, %c0_57, %c0_58] : memref<1x2x36x2xbf16, #tpu.memory_space<vmem>>, vector<1x1x32x2xbf16>
    %48 = vector.shape_cast %47 : vector<1x1x32x2xbf16> to vector<32x2xbf16>
    %c8 = arith.constant 8 : index
    %c0_59 = arith.constant 0 : index
    %c0_60 = arith.constant 0 : index
    %49 = vector.load %arg6[%c8, %c0_59, %c0_60] : memref<16x2x2xbf16, #tpu.memory_space<vmem>>, vector<1x2x2xbf16>
    %50 = vector.shape_cast %49 : vector<1x2x2xbf16> to vector<2x2xbf16>
    %cst_61 = arith.constant dense<0.000000e+00> : vector<32x2xf32>
    %51 = tpu.matmul %48, %50, %cst_61 {dimension_numbers = #tpu.dot_dimension_numbers<[1], [0], [0], [1], [0, 0, 1, 1], [], []>} : vector<32x2xbf16>, vector<2x2xbf16>, vector<32x2xf32> -> vector<32x2xf32>
    %52 = arith.addf %46, %51 : vector<32x2xf32>
    %c0_62 = arith.constant 0 : index
    %c0_63 = arith.constant 0 : index
    %c0_64 = arith.constant 0 : index
    %c0_65 = arith.constant 0 : index
    %53 = vector.load %arg5[%c0_62, %c0_63, %c0_64, %c0_65] : memref<1x2x36x2xbf16, #tpu.memory_space<vmem>>, vector<1x1x32x2xbf16>
    %54 = vector.shape_cast %53 : vector<1x1x32x2xbf16> to vector<32x2xbf16>
    %c9 = arith.constant 9 : index
    %c0_66 = arith.constant 0 : index
    %c0_67 = arith.constant 0 : index
    %55 = vector.load %arg6[%c9, %c0_66, %c0_67] : memref<16x2x2xbf16, #tpu.memory_space<vmem>>, vector<1x2x2xbf16>
    %56 = vector.shape_cast %55 : vector<1x2x2xbf16> to vector<2x2xbf16>
    %cst_68 = arith.constant dense<0.000000e+00> : vector<32x2xf32>
    %57 = tpu.matmul %54, %56, %cst_68 {dimension_numbers = #tpu.dot_dimension_numbers<[1], [0], [0], [1], [0, 0, 1, 1], [], []>} : vector<32x2xbf16>, vector<2x2xbf16>, vector<32x2xf32> -> vector<32x2xf32>
    %58 = arith.addf %52, %57 : vector<32x2xf32>
    %c0_69 = arith.constant 0 : index
    %c0_70 = arith.constant 0 : index
    %c4_71 = arith.constant 4 : index
    %c0_72 = arith.constant 0 : index
    %59 = vector.load %arg4[%c0_69, %c0_70, %c4_71, %c0_72] : memref<1x2x36x2xbf16, #tpu.memory_space<vmem>>, vector<1x1x32x2xbf16>
    %60 = vector.shape_cast %59 : vector<1x1x32x2xbf16> to vector<32x2xbf16>
    %c10 = arith.constant 10 : index
    %c0_73 = arith.constant 0 : index
    %c0_74 = arith.constant 0 : index
    %61 = vector.load %arg6[%c10, %c0_73, %c0_74] : memref<16x2x2xbf16, #tpu.memory_space<vmem>>, vector<1x2x2xbf16>
    %62 = vector.shape_cast %61 : vector<1x2x2xbf16> to vector<2x2xbf16>
    %cst_75 = arith.constant dense<0.000000e+00> : vector<32x2xf32>
    %63 = tpu.matmul %60, %62, %cst_75 {dimension_numbers = #tpu.dot_dimension_numbers<[1], [0], [0], [1], [0, 0, 1, 1], [], []>} : vector<32x2xbf16>, vector<2x2xbf16>, vector<32x2xf32> -> vector<32x2xf32>
    %64 = arith.addf %58, %63 : vector<32x2xf32>
    %c0_76 = arith.constant 0 : index
    %c0_77 = arith.constant 0 : index
    %c4_78 = arith.constant 4 : index
    %c0_79 = arith.constant 0 : index
    %65 = vector.load %arg5[%c0_76, %c0_77, %c4_78, %c0_79] : memref<1x2x36x2xbf16, #tpu.memory_space<vmem>>, vector<1x1x32x2xbf16>
    %66 = vector.shape_cast %65 : vector<1x1x32x2xbf16> to vector<32x2xbf16>
    %c11 = arith.constant 11 : index
    %c0_80 = arith.constant 0 : index
    %c0_81 = arith.constant 0 : index
    %67 = vector.load %arg6[%c11, %c0_80, %c0_81] : memref<16x2x2xbf16, #tpu.memory_space<vmem>>, vector<1x2x2xbf16>
    %68 = vector.shape_cast %67 : vector<1x2x2xbf16> to vector<2x2xbf16>
    %cst_82 = arith.constant dense<0.000000e+00> : vector<32x2xf32>
    %69 = tpu.matmul %66, %68, %cst_82 {dimension_numbers = #tpu.dot_dimension_numbers<[1], [0], [0], [1], [0, 0, 1, 1], [], []>} : vector<32x2xbf16>, vector<2x2xbf16>, vector<32x2xf32> -> vector<32x2xf32>
    %70 = arith.addf %64, %69 : vector<32x2xf32>
    %c0_83 = arith.constant 0 : index
    %c1_84 = arith.constant 1 : index
    %c0_85 = arith.constant 0 : index
    %c0_86 = arith.constant 0 : index
    %71 = vector.load %arg4[%c0_83, %c1_84, %c0_85, %c0_86] : memref<1x2x36x2xbf16, #tpu.memory_space<vmem>>, vector<1x1x32x2xbf16>
    %72 = vector.shape_cast %71 : vector<1x1x32x2xbf16> to vector<32x2xbf16>
    %c12 = arith.constant 12 : index
    %c0_87 = arith.constant 0 : index
    %c0_88 = arith.constant 0 : index
    %73 = vector.load %arg6[%c12, %c0_87, %c0_88] : memref<16x2x2xbf16, #tpu.memory_space<vmem>>, vector<1x2x2xbf16>
    %74 = vector.shape_cast %73 : vector<1x2x2xbf16> to vector<2x2xbf16>
    %cst_89 = arith.constant dense<0.000000e+00> : vector<32x2xf32>
    %75 = tpu.matmul %72, %74, %cst_89 {dimension_numbers = #tpu.dot_dimension_numbers<[1], [0], [0], [1], [0, 0, 1, 1], [], []>} : vector<32x2xbf16>, vector<2x2xbf16>, vector<32x2xf32> -> vector<32x2xf32>
    %76 = arith.addf %70, %75 : vector<32x2xf32>
    %c0_90 = arith.constant 0 : index
    %c1_91 = arith.constant 1 : index
    %c0_92 = arith.constant 0 : index
    %c0_93 = arith.constant 0 : index
    %77 = vector.load %arg5[%c0_90, %c1_91, %c0_92, %c0_93] : memref<1x2x36x2xbf16, #tpu.memory_space<vmem>>, vector<1x1x32x2xbf16>
    %78 = vector.shape_cast %77 : vector<1x1x32x2xbf16> to vector<32x2xbf16>
    %c13 = arith.constant 13 : index
    %c0_94 = arith.constant 0 : index
    %c0_95 = arith.constant 0 : index
    %79 = vector.load %arg6[%c13, %c0_94, %c0_95] : memref<16x2x2xbf16, #tpu.memory_space<vmem>>, vector<1x2x2xbf16>
    %80 = vector.shape_cast %79 : vector<1x2x2xbf16> to vector<2x2xbf16>
    %cst_96 = arith.constant dense<0.000000e+00> : vector<32x2xf32>
    %81 = tpu.matmul %78, %80, %cst_96 {dimension_numbers = #tpu.dot_dimension_numbers<[1], [0], [0], [1], [0, 0, 1, 1], [], []>} : vector<32x2xbf16>, vector<2x2xbf16>, vector<32x2xf32> -> vector<32x2xf32>
    %82 = arith.addf %76, %81 : vector<32x2xf32>
    %c0_97 = arith.constant 0 : index
    %c1_98 = arith.constant 1 : index
    %c4_99 = arith.constant 4 : index
    %c0_100 = arith.constant 0 : index
    %83 = vector.load %arg4[%c0_97, %c1_98, %c4_99, %c0_100] : memref<1x2x36x2xbf16, #tpu.memory_space<vmem>>, vector<1x1x32x2xbf16>
    %84 = vector.shape_cast %83 : vector<1x1x32x2xbf16> to vector<32x2xbf16>
    %c14 = arith.constant 14 : index
    %c0_101 = arith.constant 0 : index
    %c0_102 = arith.constant 0 : index
    %85 = vector.load %arg6[%c14, %c0_101, %c0_102] : memref<16x2x2xbf16, #tpu.memory_space<vmem>>, vector<1x2x2xbf16>
    %86 = vector.shape_cast %85 : vector<1x2x2xbf16> to vector<2x2xbf16>
    %cst_103 = arith.constant dense<0.000000e+00> : vector<32x2xf32>
    %87 = tpu.matmul %84, %86, %cst_103 {dimension_numbers = #tpu.dot_dimension_numbers<[1], [0], [0], [1], [0, 0, 1, 1], [], []>} : vector<32x2xbf16>, vector<2x2xbf16>, vector<32x2xf32> -> vector<32x2xf32>
    %88 = arith.addf %82, %87 : vector<32x2xf32>
    %c0_104 = arith.constant 0 : index
    %c1_105 = arith.constant 1 : index
    %c4_106 = arith.constant 4 : index
    %c0_107 = arith.constant 0 : index
    %89 = vector.load %arg5[%c0_104, %c1_105, %c4_106, %c0_107] : memref<1x2x36x2xbf16, #tpu.memory_space<vmem>>, vector<1x1x32x2xbf16>
    %90 = vector.shape_cast %89 : vector<1x1x32x2xbf16> to vector<32x2xbf16>
    %c15 = arith.constant 15 : index
    %c0_108 = arith.constant 0 : index
    %c0_109 = arith.constant 0 : index
    %91 = vector.load %arg6[%c15, %c0_108, %c0_109] : memref<16x2x2xbf16, #tpu.memory_space<vmem>>, vector<1x2x2xbf16>
    %92 = vector.shape_cast %91 : vector<1x2x2xbf16> to vector<2x2xbf16>
    %cst_110 = arith.constant dense<0.000000e+00> : vector<32x2xf32>
    %93 = tpu.matmul %90, %92, %cst_110 {dimension_numbers = #tpu.dot_dimension_numbers<[1], [0], [0], [1], [0, 0, 1, 1], [], []>} : vector<32x2xbf16>, vector<2x2xbf16>, vector<32x2xf32> -> vector<32x2xf32>
    %94 = arith.addf %88, %93 : vector<32x2xf32>
    %c0_111 = arith.constant 0 : index
    %c0_112 = arith.constant 0 : index
    %c0_113 = arith.constant 0 : index
    %95 = vector.load %arg7[%c0_111, %c0_112, %c0_113] : memref<1x1x2xf32, #tpu.memory_space<vmem>>, vector<1x1x2xf32>
    %96 = vector.shape_cast %95 : vector<1x1x2xf32> to vector<1x2xf32>
    %97 = vector.broadcast %96 : vector<1x2xf32> to vector<32x2xf32>
    %98 = arith.addf %94, %97 : vector<32x2xf32>
    %cst_114 = arith.constant 0.000000e+00 : f32
    %99 = vector.broadcast %cst_114 : f32 to vector<32x2xf32>
    %100 = arith.maximumf %98, %99 : vector<32x2xf32>
    %101 = arith.truncf %100 : vector<32x2xf32> to vector<32x2xbf16>
    %c0_115 = arith.constant 0 : index
    %c0_116 = arith.constant 0 : index
    %c0_117 = arith.constant 0 : index
    %c0_118 = arith.constant 0 : index
    %102 = vector.load %arg8[%c0_115, %c0_116, %c0_117, %c0_118] : memref<1x1x32x2xbf16, #tpu.memory_space<vmem>>, vector<1x1x32x2xbf16>
    %103 = vector.shape_cast %102 : vector<1x1x32x2xbf16> to vector<32x2xbf16>
    %104 = vector.shape_cast %101 : vector<32x2xbf16> to vector<1x1x32x2xbf16>
    tpu.vector_store %arg8[%c0_115, %c0_116, %c0_117, %c0_118], %104 {strides = array<i32>} : memref<1x1x32x2xbf16, #tpu.memory_space<vmem>>, vector<1x1x32x2xbf16>,
    return
  }
  func.func @transform_0(%arg0: i32, %arg1: i32) -> (i32, i32, i32, i32) {
    %c0_i32 = arith.constant 0 : i32
    %0 = arith.addi %arg1, %c0_i32 : i32
    %c0_i32_0 = arith.constant 0 : i32
    %c0_i32_1 = arith.constant 0 : i32
    %c0_i32_2 = arith.constant 0 : i32
    return %arg0, %0, %c0_i32_0, %c0_i32_1 : i32, i32, i32, i32
  }
  func.func @transform_1(%arg0: i32, %arg1: i32) -> (i32, i32, i32, i32) {
    %c0_i32 = arith.constant 0 : i32
    %0 = arith.addi %arg1, %c0_i32 : i32
    %c0_i32_0 = arith.constant 0 : i32
    %c0_i32_1 = arith.constant 0 : i32
    %c0_i32_2 = arith.constant 0 : i32
    return %arg0, %0, %c0_i32_0, %c0_i32_1 : i32, i32, i32, i32
  }
  func.func @transform_2(%arg0: i32, %arg1: i32) -> (i32, i32, i32, i32) {
    %c1_i32 = arith.constant 1 : i32
    %0 = arith.addi %arg1, %c1_i32 : i32
    %c0_i32 = arith.constant 0 : i32
    %c0_i32_0 = arith.constant 0 : i32
    %c0_i32_1 = arith.constant 0 : i32
    return %arg0, %0, %c0_i32, %c0_i32_0 : i32, i32, i32, i32
  }
  func.func @transform_3(%arg0: i32, %arg1: i32) -> (i32, i32, i32, i32) {
    %c1_i32 = arith.constant 1 : i32
    %0 = arith.addi %arg1, %c1_i32 : i32
    %c0_i32 = arith.constant 0 : i32
    %c0_i32_0 = arith.constant 0 : i32
    %c0_i32_1 = arith.constant 0 : i32
    return %arg0, %0, %c0_i32, %c0_i32_0 : i32, i32, i32, i32
  }
  func.func @transform_4(%arg0: i32, %arg1: i32) -> (i32, i32, i32) {
    %c0_i32 = arith.constant 0 : i32
    %c0_i32_0 = arith.constant 0 : i32
    %c0_i32_1 = arith.constant 0 : i32
    %c0_i32_2 = arith.constant 0 : i32
    return %c0_i32, %c0_i32_0, %c0_i32_1 : i32, i32, i32
  }
  func.func @transform_5(%arg0: i32, %arg1: i32) -> (i32, i32, i32) {
    %c0_i32 = arith.constant 0 : i32
    %c0_i32_0 = arith.constant 0 : i32
    %c0_i32_1 = arith.constant 0 : i32
    %c0_i32_2 = arith.constant 0 : i32
    return %c0_i32, %c0_i32_0, %c0_i32_1 : i32, i32, i32
  }
  func.func @transform_6(%arg0: i32, %arg1: i32) -> (i32, i32, i32, i32) {
    %c0_i32 = arith.constant 0 : i32
    %c0_i32_0 = arith.constant 0 : i32
    %c0_i32_1 = arith.constant 0 : i32
    return %arg0, %arg1, %c0_i32, %c0_i32_0 : i32, i32, i32, i32
  }
}

module attributes {stable_mosaic.version = 11 : i64} {
  func.func @kernel(%arg0: i32, %arg1: i32, %arg2: memref<1x1x40x2xbf16, #tpu.memory_space<vmem>>, %arg3: memref<1x1x40x2xbf16, #tpu.memory_space<vmem>>, %arg4: memref<1x1x40x2xbf16, #tpu.memory_space<vmem>>, %arg5: memref<9x2x8xbf16, #tpu.memory_space<vmem>>, %arg6: memref<1x1x32x2xbf16, #tpu.memory_space<vmem>>, %arg7: memref<2x8xbf16, #tpu.memory_space<vmem>>, %arg8: memref<1x1x8xf32, #tpu.memory_space<vmem>>, %arg9: memref<1x1x32x8xbf16, #tpu.memory_space<vmem>>) attributes {dimension_semantics = [#tpu.dimension_semantics<parallel>, #tpu.dimension_semantics<parallel>], iteration_bounds = array<i64: 2, 8>, scalar_prefetch = 0 : i64, scratch_operands = 0 : i64, tpu.core_type = #tpu.core_type<tc>, window_params = [{transform_indices = @transform_0, window_bounds = array<i64: 1, 1, 40, 2>}, {transform_indices = @transform_1, window_bounds = array<i64: 1, 1, 40, 2>}, {transform_indices = @transform_2, window_bounds = array<i64: 1, 1, 40, 2>}, {pipeline_mode = #tpu.pipeline_mode<synchronous>, transform_indices = @transform_3, window_bounds = array<i64: 9, 2, 8>}, {transform_indices = @transform_4, window_bounds = array<i64: 1, 1, 32, 2>}, {pipeline_mode = #tpu.pipeline_mode<synchronous>, transform_indices = @transform_5, window_bounds = array<i64: 2, 8>}, {pipeline_mode = #tpu.pipeline_mode<synchronous>, transform_indices = @transform_6, window_bounds = array<i64: 1, 1, 8>}, {transform_indices = @transform_7, window_bounds = array<i64: 1, 1, 32, 8>}]} {
    %c0 = arith.constant 0 : index
    %c0_0 = arith.constant 0 : index
    %c0_1 = arith.constant 0 : index
    %c0_2 = arith.constant 0 : index
    %0 = vector.load %arg2[%c0, %c0_0, %c0_1, %c0_2] : memref<1x1x40x2xbf16, #tpu.memory_space<vmem>>, vector<1x1x32x2xbf16>
    %1 = vector.shape_cast %0 : vector<1x1x32x2xbf16> to vector<32x2xbf16>
    %c0_3 = arith.constant 0 : index
    %c0_4 = arith.constant 0 : index
    %c0_5 = arith.constant 0 : index
    %2 = vector.load %arg5[%c0_3, %c0_4, %c0_5] : memref<9x2x8xbf16, #tpu.memory_space<vmem>>, vector<1x2x8xbf16>
    %3 = vector.shape_cast %2 : vector<1x2x8xbf16> to vector<2x8xbf16>
    %cst = arith.constant dense<0.000000e+00> : vector<32x8xf32>
    %4 = tpu.matmul %1, %3, %cst {dimension_numbers = #tpu.dot_dimension_numbers<[1], [0], [0], [1], [0, 0, 1, 1], [], []>} : vector<32x2xbf16>, vector<2x8xbf16>, vector<32x8xf32> -> vector<32x8xf32>
    %c0_6 = arith.constant 0 : index
    %c0_7 = arith.constant 0 : index
    %c4 = arith.constant 4 : index
    %c0_8 = arith.constant 0 : index
    %5 = vector.load %arg2[%c0_6, %c0_7, %c4, %c0_8] : memref<1x1x40x2xbf16, #tpu.memory_space<vmem>>, vector<1x1x32x2xbf16>
    %6 = vector.shape_cast %5 : vector<1x1x32x2xbf16> to vector<32x2xbf16>
    %c1 = arith.constant 1 : index
    %c0_9 = arith.constant 0 : index
    %c0_10 = arith.constant 0 : index
    %7 = vector.load %arg5[%c1, %c0_9, %c0_10] : memref<9x2x8xbf16, #tpu.memory_space<vmem>>, vector<1x2x8xbf16>
    %8 = vector.shape_cast %7 : vector<1x2x8xbf16> to vector<2x8xbf16>
    %cst_11 = arith.constant dense<0.000000e+00> : vector<32x8xf32>
    %9 = tpu.matmul %6, %8, %cst_11 {dimension_numbers = #tpu.dot_dimension_numbers<[1], [0], [0], [1], [0, 0, 1, 1], [], []>} : vector<32x2xbf16>, vector<2x8xbf16>, vector<32x8xf32> -> vector<32x8xf32>
    %10 = arith.addf %4, %9 : vector<32x8xf32>
    %c0_12 = arith.constant 0 : index
    %c0_13 = arith.constant 0 : index
    %c8 = arith.constant 8 : index
    %c0_14 = arith.constant 0 : index
    %11 = vector.load %arg2[%c0_12, %c0_13, %c8, %c0_14] : memref<1x1x40x2xbf16, #tpu.memory_space<vmem>>, vector<1x1x32x2xbf16>
    %12 = vector.shape_cast %11 : vector<1x1x32x2xbf16> to vector<32x2xbf16>
    %c2 = arith.constant 2 : index
    %c0_15 = arith.constant 0 : index
    %c0_16 = arith.constant 0 : index
    %13 = vector.load %arg5[%c2, %c0_15, %c0_16] : memref<9x2x8xbf16, #tpu.memory_space<vmem>>, vector<1x2x8xbf16>
    %14 = vector.shape_cast %13 : vector<1x2x8xbf16> to vector<2x8xbf16>
    %cst_17 = arith.constant dense<0.000000e+00> : vector<32x8xf32>
    %15 = tpu.matmul %12, %14, %cst_17 {dimension_numbers = #tpu.dot_dimension_numbers<[1], [0], [0], [1], [0, 0, 1, 1], [], []>} : vector<32x2xbf16>, vector<2x8xbf16>, vector<32x8xf32> -> vector<32x8xf32>
    %16 = arith.addf %10, %15 : vector<32x8xf32>
    %c0_18 = arith.constant 0 : index
    %c0_19 = arith.constant 0 : index
    %c0_20 = arith.constant 0 : index
    %c0_21 = arith.constant 0 : index
    %17 = vector.load %arg3[%c0_18, %c0_19, %c0_20, %c0_21] : memref<1x1x40x2xbf16, #tpu.memory_space<vmem>>, vector<1x1x32x2xbf16>
    %18 = vector.shape_cast %17 : vector<1x1x32x2xbf16> to vector<32x2xbf16>
    %c3 = arith.constant 3 : index
    %c0_22 = arith.constant 0 : index
    %c0_23 = arith.constant 0 : index
    %19 = vector.load %arg5[%c3, %c0_22, %c0_23] : memref<9x2x8xbf16, #tpu.memory_space<vmem>>, vector<1x2x8xbf16>
    %20 = vector.shape_cast %19 : vector<1x2x8xbf16> to vector<2x8xbf16>
    %cst_24 = arith.constant dense<0.000000e+00> : vector<32x8xf32>
    %21 = tpu.matmul %18, %20, %cst_24 {dimension_numbers = #tpu.dot_dimension_numbers<[1], [0], [0], [1], [0, 0, 1, 1], [], []>} : vector<32x2xbf16>, vector<2x8xbf16>, vector<32x8xf32> -> vector<32x8xf32>
    %22 = arith.addf %16, %21 : vector<32x8xf32>
    %c0_25 = arith.constant 0 : index
    %c0_26 = arith.constant 0 : index
    %c4_27 = arith.constant 4 : index
    %c0_28 = arith.constant 0 : index
    %23 = vector.load %arg3[%c0_25, %c0_26, %c4_27, %c0_28] : memref<1x1x40x2xbf16, #tpu.memory_space<vmem>>, vector<1x1x32x2xbf16>
    %24 = vector.shape_cast %23 : vector<1x1x32x2xbf16> to vector<32x2xbf16>
    %c4_29 = arith.constant 4 : index
    %c0_30 = arith.constant 0 : index
    %c0_31 = arith.constant 0 : index
    %25 = vector.load %arg5[%c4_29, %c0_30, %c0_31] : memref<9x2x8xbf16, #tpu.memory_space<vmem>>, vector<1x2x8xbf16>
    %26 = vector.shape_cast %25 : vector<1x2x8xbf16> to vector<2x8xbf16>
    %cst_32 = arith.constant dense<0.000000e+00> : vector<32x8xf32>
    %27 = tpu.matmul %24, %26, %cst_32 {dimension_numbers = #tpu.dot_dimension_numbers<[1], [0], [0], [1], [0, 0, 1, 1], [], []>} : vector<32x2xbf16>, vector<2x8xbf16>, vector<32x8xf32> -> vector<32x8xf32>
    %28 = arith.addf %22, %27 : vector<32x8xf32>
    %c0_33 = arith.constant 0 : index
    %c0_34 = arith.constant 0 : index
    %c8_35 = arith.constant 8 : index
    %c0_36 = arith.constant 0 : index
    %29 = vector.load %arg3[%c0_33, %c0_34, %c8_35, %c0_36] : memref<1x1x40x2xbf16, #tpu.memory_space<vmem>>, vector<1x1x32x2xbf16>
    %30 = vector.shape_cast %29 : vector<1x1x32x2xbf16> to vector<32x2xbf16>
    %c5 = arith.constant 5 : index
    %c0_37 = arith.constant 0 : index
    %c0_38 = arith.constant 0 : index
    %31 = vector.load %arg5[%c5, %c0_37, %c0_38] : memref<9x2x8xbf16, #tpu.memory_space<vmem>>, vector<1x2x8xbf16>
    %32 = vector.shape_cast %31 : vector<1x2x8xbf16> to vector<2x8xbf16>
    %cst_39 = arith.constant dense<0.000000e+00> : vector<32x8xf32>
    %33 = tpu.matmul %30, %32, %cst_39 {dimension_numbers = #tpu.dot_dimension_numbers<[1], [0], [0], [1], [0, 0, 1, 1], [], []>} : vector<32x2xbf16>, vector<2x8xbf16>, vector<32x8xf32> -> vector<32x8xf32>
    %34 = arith.addf %28, %33 : vector<32x8xf32>
    %c0_40 = arith.constant 0 : index
    %c0_41 = arith.constant 0 : index
    %c0_42 = arith.constant 0 : index
    %c0_43 = arith.constant 0 : index
    %35 = vector.load %arg4[%c0_40, %c0_41, %c0_42, %c0_43] : memref<1x1x40x2xbf16, #tpu.memory_space<vmem>>, vector<1x1x32x2xbf16>
    %36 = vector.shape_cast %35 : vector<1x1x32x2xbf16> to vector<32x2xbf16>
    %c6 = arith.constant 6 : index
    %c0_44 = arith.constant 0 : index
    %c0_45 = arith.constant 0 : index
    %37 = vector.load %arg5[%c6, %c0_44, %c0_45] : memref<9x2x8xbf16, #tpu.memory_space<vmem>>, vector<1x2x8xbf16>
    %38 = vector.shape_cast %37 : vector<1x2x8xbf16> to vector<2x8xbf16>
    %cst_46 = arith.constant dense<0.000000e+00> : vector<32x8xf32>
    %39 = tpu.matmul %36, %38, %cst_46 {dimension_numbers = #tpu.dot_dimension_numbers<[1], [0], [0], [1], [0, 0, 1, 1], [], []>} : vector<32x2xbf16>, vector<2x8xbf16>, vector<32x8xf32> -> vector<32x8xf32>
    %40 = arith.addf %34, %39 : vector<32x8xf32>
    %c0_47 = arith.constant 0 : index
    %c0_48 = arith.constant 0 : index
    %c4_49 = arith.constant 4 : index
    %c0_50 = arith.constant 0 : index
    %41 = vector.load %arg4[%c0_47, %c0_48, %c4_49, %c0_50] : memref<1x1x40x2xbf16, #tpu.memory_space<vmem>>, vector<1x1x32x2xbf16>
    %42 = vector.shape_cast %41 : vector<1x1x32x2xbf16> to vector<32x2xbf16>
    %c7 = arith.constant 7 : index
    %c0_51 = arith.constant 0 : index
    %c0_52 = arith.constant 0 : index
    %43 = vector.load %arg5[%c7, %c0_51, %c0_52] : memref<9x2x8xbf16, #tpu.memory_space<vmem>>, vector<1x2x8xbf16>
    %44 = vector.shape_cast %43 : vector<1x2x8xbf16> to vector<2x8xbf16>
    %cst_53 = arith.constant dense<0.000000e+00> : vector<32x8xf32>
    %45 = tpu.matmul %42, %44, %cst_53 {dimension_numbers = #tpu.dot_dimension_numbers<[1], [0], [0], [1], [0, 0, 1, 1], [], []>} : vector<32x2xbf16>, vector<2x8xbf16>, vector<32x8xf32> -> vector<32x8xf32>
    %46 = arith.addf %40, %45 : vector<32x8xf32>
    %c0_54 = arith.constant 0 : index
    %c0_55 = arith.constant 0 : index
    %c8_56 = arith.constant 8 : index
    %c0_57 = arith.constant 0 : index
    %47 = vector.load %arg4[%c0_54, %c0_55, %c8_56, %c0_57] : memref<1x1x40x2xbf16, #tpu.memory_space<vmem>>, vector<1x1x32x2xbf16>
    %48 = vector.shape_cast %47 : vector<1x1x32x2xbf16> to vector<32x2xbf16>
    %c8_58 = arith.constant 8 : index
    %c0_59 = arith.constant 0 : index
    %c0_60 = arith.constant 0 : index
    %49 = vector.load %arg5[%c8_58, %c0_59, %c0_60] : memref<9x2x8xbf16, #tpu.memory_space<vmem>>, vector<1x2x8xbf16>
    %50 = vector.shape_cast %49 : vector<1x2x8xbf16> to vector<2x8xbf16>
    %cst_61 = arith.constant dense<0.000000e+00> : vector<32x8xf32>
    %51 = tpu.matmul %48, %50, %cst_61 {dimension_numbers = #tpu.dot_dimension_numbers<[1], [0], [0], [1], [0, 0, 1, 1], [], []>} : vector<32x2xbf16>, vector<2x8xbf16>, vector<32x8xf32> -> vector<32x8xf32>
    %52 = arith.addf %46, %51 : vector<32x8xf32>
    %c0_62 = arith.constant 0 : index
    %c0_63 = arith.constant 0 : index
    %c0_64 = arith.constant 0 : index
    %c0_65 = arith.constant 0 : index
    %53 = vector.load %arg6[%c0_62, %c0_63, %c0_64, %c0_65] : memref<1x1x32x2xbf16, #tpu.memory_space<vmem>>, vector<1x1x32x2xbf16>
    %54 = vector.shape_cast %53 : vector<1x1x32x2xbf16> to vector<32x2xbf16>
    %c0_66 = arith.constant 0 : index
    %c0_67 = arith.constant 0 : index
    %55 = vector.load %arg7[%c0_66, %c0_67] : memref<2x8xbf16, #tpu.memory_space<vmem>>, vector<2x8xbf16>
    %cst_68 = arith.constant dense<0.000000e+00> : vector<32x8xf32>
    %56 = tpu.matmul %54, %55, %cst_68 {dimension_numbers = #tpu.dot_dimension_numbers<[1], [0], [0], [1], [0, 0, 1, 1], [], []>} : vector<32x2xbf16>, vector<2x8xbf16>, vector<32x8xf32> -> vector<32x8xf32>
    %57 = arith.addf %52, %56 : vector<32x8xf32>
    %c0_69 = arith.constant 0 : index
    %c0_70 = arith.constant 0 : index
    %c0_71 = arith.constant 0 : index
    %58 = vector.load %arg8[%c0_69, %c0_70, %c0_71] : memref<1x1x8xf32, #tpu.memory_space<vmem>>, vector<1x1x8xf32>
    %59 = vector.shape_cast %58 : vector<1x1x8xf32> to vector<1x8xf32>
    %60 = vector.broadcast %59 : vector<1x8xf32> to vector<32x8xf32>
    %61 = arith.addf %57, %60 : vector<32x8xf32>
    %cst_72 = arith.constant 0.000000e+00 : f32
    %62 = vector.broadcast %cst_72 : f32 to vector<32x8xf32>
    %63 = arith.maximumf %61, %62 : vector<32x8xf32>
    %64 = arith.truncf %63 : vector<32x8xf32> to vector<32x8xbf16>
    %c0_73 = arith.constant 0 : index
    %c0_74 = arith.constant 0 : index
    %c0_75 = arith.constant 0 : index
    %c0_76 = arith.constant 0 : index
    %65 = vector.load %arg9[%c0_73, %c0_74, %c0_75, %c0_76] : memref<1x1x32x8xbf16, #tpu.memory_space<vmem>>, vector<1x1x32x8xbf16>
    %66 = vector.shape_cast %65 : vector<1x1x32x8xbf16> to vector<32x8xbf16>
    %67 = vector.shape_cast %64 : vector<32x8xbf16> to vector<1x1x32x8xbf16>
    tpu.vector_store %arg9[%c0_73, %c0_74, %c0_75, %c0_76], %67 {strides = array<i32>} : memref<1x1x32x8xbf16, #tpu.memory_space<vmem>>, vector<1x1x32x8xbf16>,
    return
  }
  func.func @transform_0(%arg0: i32, %arg1: i32) -> (i32, i32, i32, i32) {
    %c0_i32 = arith.constant 0 : i32
    %0 = arith.addi %arg1, %c0_i32 : i32
    %c0_i32_0 = arith.constant 0 : i32
    %c0_i32_1 = arith.constant 0 : i32
    %c0_i32_2 = arith.constant 0 : i32
    return %arg0, %0, %c0_i32_0, %c0_i32_1 : i32, i32, i32, i32
  }
  func.func @transform_1(%arg0: i32, %arg1: i32) -> (i32, i32, i32, i32) {
    %c1_i32 = arith.constant 1 : i32
    %0 = arith.addi %arg1, %c1_i32 : i32
    %c0_i32 = arith.constant 0 : i32
    %c0_i32_0 = arith.constant 0 : i32
    %c0_i32_1 = arith.constant 0 : i32
    return %arg0, %0, %c0_i32, %c0_i32_0 : i32, i32, i32, i32
  }
  func.func @transform_2(%arg0: i32, %arg1: i32) -> (i32, i32, i32, i32) {
    %c2_i32 = arith.constant 2 : i32
    %0 = arith.addi %arg1, %c2_i32 : i32
    %c0_i32 = arith.constant 0 : i32
    %c0_i32_0 = arith.constant 0 : i32
    %c0_i32_1 = arith.constant 0 : i32
    return %arg0, %0, %c0_i32, %c0_i32_0 : i32, i32, i32, i32
  }
  func.func @transform_3(%arg0: i32, %arg1: i32) -> (i32, i32, i32) {
    %c0_i32 = arith.constant 0 : i32
    %c0_i32_0 = arith.constant 0 : i32
    %c0_i32_1 = arith.constant 0 : i32
    %c0_i32_2 = arith.constant 0 : i32
    return %c0_i32, %c0_i32_0, %c0_i32_1 : i32, i32, i32
  }
  func.func @transform_4(%arg0: i32, %arg1: i32) -> (i32, i32, i32, i32) {
    %c0_i32 = arith.constant 0 : i32
    %c0_i32_0 = arith.constant 0 : i32
    %c0_i32_1 = arith.constant 0 : i32
    return %arg0, %arg1, %c0_i32, %c0_i32_0 : i32, i32, i32, i32
  }
  func.func @transform_5(%arg0: i32, %arg1: i32) -> (i32, i32) {
    %c0_i32 = arith.constant 0 : i32
    %c0_i32_0 = arith.constant 0 : i32
    %c0_i32_1 = arith.constant 0 : i32
    return %c0_i32, %c0_i32_0 : i32, i32
  }
  func.func @transform_6(%arg0: i32, %arg1: i32) -> (i32, i32, i32) {
    %c0_i32 = arith.constant 0 : i32
    %c0_i32_0 = arith.constant 0 : i32
    %c0_i32_1 = arith.constant 0 : i32
    %c0_i32_2 = arith.constant 0 : i32
    return %c0_i32, %c0_i32_0, %c0_i32_1 : i32, i32, i32
  }
  func.func @transform_7(%arg0: i32, %arg1: i32) -> (i32, i32, i32, i32) {
    %c0_i32 = arith.constant 0 : i32
    %c0_i32_0 = arith.constant 0 : i32
    %c0_i32_1 = arith.constant 0 : i32
    return %arg0, %arg1, %c0_i32, %c0_i32_0 : i32, i32, i32, i32
  }
}

module attributes {stable_mosaic.version = 11 : i64} {
  func.func @kernel(%arg0: i32, %arg1: i32, %arg2: memref<1x1x40x2xbf16, #tpu.memory_space<vmem>>, %arg3: memref<1x1x40x2xbf16, #tpu.memory_space<vmem>>, %arg4: memref<1x1x40x2xbf16, #tpu.memory_space<vmem>>, %arg5: memref<9x2x8xbf16, #tpu.memory_space<vmem>>, %arg6: memref<1x1x32x2xbf16, #tpu.memory_space<vmem>>, %arg7: memref<2x8xbf16, #tpu.memory_space<vmem>>, %arg8: memref<1x1x32x8xbf16, #tpu.memory_space<vmem>>, %arg9: memref<8x8xbf16, #tpu.memory_space<vmem>>, %arg10: memref<1x1x8xf32, #tpu.memory_space<vmem>>, %arg11: memref<1x1x32x8xbf16, #tpu.memory_space<vmem>>) attributes {dimension_semantics = [#tpu.dimension_semantics<parallel>, #tpu.dimension_semantics<parallel>], iteration_bounds = array<i64: 2, 8>, scalar_prefetch = 0 : i64, scratch_operands = 0 : i64, tpu.core_type = #tpu.core_type<tc>, window_params = [{transform_indices = @transform_0, window_bounds = array<i64: 1, 1, 40, 2>}, {transform_indices = @transform_1, window_bounds = array<i64: 1, 1, 40, 2>}, {transform_indices = @transform_2, window_bounds = array<i64: 1, 1, 40, 2>}, {pipeline_mode = #tpu.pipeline_mode<synchronous>, transform_indices = @transform_3, window_bounds = array<i64: 9, 2, 8>}, {transform_indices = @transform_4, window_bounds = array<i64: 1, 1, 32, 2>}, {pipeline_mode = #tpu.pipeline_mode<synchronous>, transform_indices = @transform_5, window_bounds = array<i64: 2, 8>}, {transform_indices = @transform_6, window_bounds = array<i64: 1, 1, 32, 8>}, {pipeline_mode = #tpu.pipeline_mode<synchronous>, transform_indices = @transform_7, window_bounds = array<i64: 8, 8>}, {transform_indices = @transform_8, window_bounds = array<i64: 1, 1, 8>}, {transform_indices = @transform_9, window_bounds = array<i64: 1, 1, 32, 8>}]} {
    %c0 = arith.constant 0 : index
    %c0_0 = arith.constant 0 : index
    %c0_1 = arith.constant 0 : index
    %c0_2 = arith.constant 0 : index
    %0 = vector.load %arg2[%c0, %c0_0, %c0_1, %c0_2] : memref<1x1x40x2xbf16, #tpu.memory_space<vmem>>, vector<1x1x32x2xbf16>
    %1 = vector.shape_cast %0 : vector<1x1x32x2xbf16> to vector<32x2xbf16>
    %c0_3 = arith.constant 0 : index
    %c0_4 = arith.constant 0 : index
    %c0_5 = arith.constant 0 : index
    %2 = vector.load %arg5[%c0_3, %c0_4, %c0_5] : memref<9x2x8xbf16, #tpu.memory_space<vmem>>, vector<1x2x8xbf16>
    %3 = vector.shape_cast %2 : vector<1x2x8xbf16> to vector<2x8xbf16>
    %cst = arith.constant dense<0.000000e+00> : vector<32x8xf32>
    %4 = tpu.matmul %1, %3, %cst {dimension_numbers = #tpu.dot_dimension_numbers<[1], [0], [0], [1], [0, 0, 1, 1], [], []>} : vector<32x2xbf16>, vector<2x8xbf16>, vector<32x8xf32> -> vector<32x8xf32>
    %c0_6 = arith.constant 0 : index
    %c0_7 = arith.constant 0 : index
    %c4 = arith.constant 4 : index
    %c0_8 = arith.constant 0 : index
    %5 = vector.load %arg2[%c0_6, %c0_7, %c4, %c0_8] : memref<1x1x40x2xbf16, #tpu.memory_space<vmem>>, vector<1x1x32x2xbf16>
    %6 = vector.shape_cast %5 : vector<1x1x32x2xbf16> to vector<32x2xbf16>
    %c1 = arith.constant 1 : index
    %c0_9 = arith.constant 0 : index
    %c0_10 = arith.constant 0 : index
    %7 = vector.load %arg5[%c1, %c0_9, %c0_10] : memref<9x2x8xbf16, #tpu.memory_space<vmem>>, vector<1x2x8xbf16>
    %8 = vector.shape_cast %7 : vector<1x2x8xbf16> to vector<2x8xbf16>
    %cst_11 = arith.constant dense<0.000000e+00> : vector<32x8xf32>
    %9 = tpu.matmul %6, %8, %cst_11 {dimension_numbers = #tpu.dot_dimension_numbers<[1], [0], [0], [1], [0, 0, 1, 1], [], []>} : vector<32x2xbf16>, vector<2x8xbf16>, vector<32x8xf32> -> vector<32x8xf32>
    %10 = arith.addf %4, %9 : vector<32x8xf32>
    %c0_12 = arith.constant 0 : index
    %c0_13 = arith.constant 0 : index
    %c8 = arith.constant 8 : index
    %c0_14 = arith.constant 0 : index
    %11 = vector.load %arg2[%c0_12, %c0_13, %c8, %c0_14] : memref<1x1x40x2xbf16, #tpu.memory_space<vmem>>, vector<1x1x32x2xbf16>
    %12 = vector.shape_cast %11 : vector<1x1x32x2xbf16> to vector<32x2xbf16>
    %c2 = arith.constant 2 : index
    %c0_15 = arith.constant 0 : index
    %c0_16 = arith.constant 0 : index
    %13 = vector.load %arg5[%c2, %c0_15, %c0_16] : memref<9x2x8xbf16, #tpu.memory_space<vmem>>, vector<1x2x8xbf16>
    %14 = vector.shape_cast %13 : vector<1x2x8xbf16> to vector<2x8xbf16>
    %cst_17 = arith.constant dense<0.000000e+00> : vector<32x8xf32>
    %15 = tpu.matmul %12, %14, %cst_17 {dimension_numbers = #tpu.dot_dimension_numbers<[1], [0], [0], [1], [0, 0, 1, 1], [], []>} : vector<32x2xbf16>, vector<2x8xbf16>, vector<32x8xf32> -> vector<32x8xf32>
    %16 = arith.addf %10, %15 : vector<32x8xf32>
    %c0_18 = arith.constant 0 : index
    %c0_19 = arith.constant 0 : index
    %c0_20 = arith.constant 0 : index
    %c0_21 = arith.constant 0 : index
    %17 = vector.load %arg3[%c0_18, %c0_19, %c0_20, %c0_21] : memref<1x1x40x2xbf16, #tpu.memory_space<vmem>>, vector<1x1x32x2xbf16>
    %18 = vector.shape_cast %17 : vector<1x1x32x2xbf16> to vector<32x2xbf16>
    %c3 = arith.constant 3 : index
    %c0_22 = arith.constant 0 : index
    %c0_23 = arith.constant 0 : index
    %19 = vector.load %arg5[%c3, %c0_22, %c0_23] : memref<9x2x8xbf16, #tpu.memory_space<vmem>>, vector<1x2x8xbf16>
    %20 = vector.shape_cast %19 : vector<1x2x8xbf16> to vector<2x8xbf16>
    %cst_24 = arith.constant dense<0.000000e+00> : vector<32x8xf32>
    %21 = tpu.matmul %18, %20, %cst_24 {dimension_numbers = #tpu.dot_dimension_numbers<[1], [0], [0], [1], [0, 0, 1, 1], [], []>} : vector<32x2xbf16>, vector<2x8xbf16>, vector<32x8xf32> -> vector<32x8xf32>
    %22 = arith.addf %16, %21 : vector<32x8xf32>
    %c0_25 = arith.constant 0 : index
    %c0_26 = arith.constant 0 : index
    %c4_27 = arith.constant 4 : index
    %c0_28 = arith.constant 0 : index
    %23 = vector.load %arg3[%c0_25, %c0_26, %c4_27, %c0_28] : memref<1x1x40x2xbf16, #tpu.memory_space<vmem>>, vector<1x1x32x2xbf16>
    %24 = vector.shape_cast %23 : vector<1x1x32x2xbf16> to vector<32x2xbf16>
    %c4_29 = arith.constant 4 : index
    %c0_30 = arith.constant 0 : index
    %c0_31 = arith.constant 0 : index
    %25 = vector.load %arg5[%c4_29, %c0_30, %c0_31] : memref<9x2x8xbf16, #tpu.memory_space<vmem>>, vector<1x2x8xbf16>
    %26 = vector.shape_cast %25 : vector<1x2x8xbf16> to vector<2x8xbf16>
    %cst_32 = arith.constant dense<0.000000e+00> : vector<32x8xf32>
    %27 = tpu.matmul %24, %26, %cst_32 {dimension_numbers = #tpu.dot_dimension_numbers<[1], [0], [0], [1], [0, 0, 1, 1], [], []>} : vector<32x2xbf16>, vector<2x8xbf16>, vector<32x8xf32> -> vector<32x8xf32>
    %28 = arith.addf %22, %27 : vector<32x8xf32>
    %c0_33 = arith.constant 0 : index
    %c0_34 = arith.constant 0 : index
    %c8_35 = arith.constant 8 : index
    %c0_36 = arith.constant 0 : index
    %29 = vector.load %arg3[%c0_33, %c0_34, %c8_35, %c0_36] : memref<1x1x40x2xbf16, #tpu.memory_space<vmem>>, vector<1x1x32x2xbf16>
    %30 = vector.shape_cast %29 : vector<1x1x32x2xbf16> to vector<32x2xbf16>
    %c5 = arith.constant 5 : index
    %c0_37 = arith.constant 0 : index
    %c0_38 = arith.constant 0 : index
    %31 = vector.load %arg5[%c5, %c0_37, %c0_38] : memref<9x2x8xbf16, #tpu.memory_space<vmem>>, vector<1x2x8xbf16>
    %32 = vector.shape_cast %31 : vector<1x2x8xbf16> to vector<2x8xbf16>
    %cst_39 = arith.constant dense<0.000000e+00> : vector<32x8xf32>
    %33 = tpu.matmul %30, %32, %cst_39 {dimension_numbers = #tpu.dot_dimension_numbers<[1], [0], [0], [1], [0, 0, 1, 1], [], []>} : vector<32x2xbf16>, vector<2x8xbf16>, vector<32x8xf32> -> vector<32x8xf32>
    %34 = arith.addf %28, %33 : vector<32x8xf32>
    %c0_40 = arith.constant 0 : index
    %c0_41 = arith.constant 0 : index
    %c0_42 = arith.constant 0 : index
    %c0_43 = arith.constant 0 : index
    %35 = vector.load %arg4[%c0_40, %c0_41, %c0_42, %c0_43] : memref<1x1x40x2xbf16, #tpu.memory_space<vmem>>, vector<1x1x32x2xbf16>
    %36 = vector.shape_cast %35 : vector<1x1x32x2xbf16> to vector<32x2xbf16>
    %c6 = arith.constant 6 : index
    %c0_44 = arith.constant 0 : index
    %c0_45 = arith.constant 0 : index
    %37 = vector.load %arg5[%c6, %c0_44, %c0_45] : memref<9x2x8xbf16, #tpu.memory_space<vmem>>, vector<1x2x8xbf16>
    %38 = vector.shape_cast %37 : vector<1x2x8xbf16> to vector<2x8xbf16>
    %cst_46 = arith.constant dense<0.000000e+00> : vector<32x8xf32>
    %39 = tpu.matmul %36, %38, %cst_46 {dimension_numbers = #tpu.dot_dimension_numbers<[1], [0], [0], [1], [0, 0, 1, 1], [], []>} : vector<32x2xbf16>, vector<2x8xbf16>, vector<32x8xf32> -> vector<32x8xf32>
    %40 = arith.addf %34, %39 : vector<32x8xf32>
    %c0_47 = arith.constant 0 : index
    %c0_48 = arith.constant 0 : index
    %c4_49 = arith.constant 4 : index
    %c0_50 = arith.constant 0 : index
    %41 = vector.load %arg4[%c0_47, %c0_48, %c4_49, %c0_50] : memref<1x1x40x2xbf16, #tpu.memory_space<vmem>>, vector<1x1x32x2xbf16>
    %42 = vector.shape_cast %41 : vector<1x1x32x2xbf16> to vector<32x2xbf16>
    %c7 = arith.constant 7 : index
    %c0_51 = arith.constant 0 : index
    %c0_52 = arith.constant 0 : index
    %43 = vector.load %arg5[%c7, %c0_51, %c0_52] : memref<9x2x8xbf16, #tpu.memory_space<vmem>>, vector<1x2x8xbf16>
    %44 = vector.shape_cast %43 : vector<1x2x8xbf16> to vector<2x8xbf16>
    %cst_53 = arith.constant dense<0.000000e+00> : vector<32x8xf32>
    %45 = tpu.matmul %42, %44, %cst_53 {dimension_numbers = #tpu.dot_dimension_numbers<[1], [0], [0], [1], [0, 0, 1, 1], [], []>} : vector<32x2xbf16>, vector<2x8xbf16>, vector<32x8xf32> -> vector<32x8xf32>
    %46 = arith.addf %40, %45 : vector<32x8xf32>
    %c0_54 = arith.constant 0 : index
    %c0_55 = arith.constant 0 : index
    %c8_56 = arith.constant 8 : index
    %c0_57 = arith.constant 0 : index
    %47 = vector.load %arg4[%c0_54, %c0_55, %c8_56, %c0_57] : memref<1x1x40x2xbf16, #tpu.memory_space<vmem>>, vector<1x1x32x2xbf16>
    %48 = vector.shape_cast %47 : vector<1x1x32x2xbf16> to vector<32x2xbf16>
    %c8_58 = arith.constant 8 : index
    %c0_59 = arith.constant 0 : index
    %c0_60 = arith.constant 0 : index
    %49 = vector.load %arg5[%c8_58, %c0_59, %c0_60] : memref<9x2x8xbf16, #tpu.memory_space<vmem>>, vector<1x2x8xbf16>
    %50 = vector.shape_cast %49 : vector<1x2x8xbf16> to vector<2x8xbf16>
    %cst_61 = arith.constant dense<0.000000e+00> : vector<32x8xf32>
    %51 = tpu.matmul %48, %50, %cst_61 {dimension_numbers = #tpu.dot_dimension_numbers<[1], [0], [0], [1], [0, 0, 1, 1], [], []>} : vector<32x2xbf16>, vector<2x8xbf16>, vector<32x8xf32> -> vector<32x8xf32>
    %52 = arith.addf %46, %51 : vector<32x8xf32>
    %c0_62 = arith.constant 0 : index
    %c0_63 = arith.constant 0 : index
    %c0_64 = arith.constant 0 : index
    %c0_65 = arith.constant 0 : index
    %53 = vector.load %arg6[%c0_62, %c0_63, %c0_64, %c0_65] : memref<1x1x32x2xbf16, #tpu.memory_space<vmem>>, vector<1x1x32x2xbf16>
    %54 = vector.shape_cast %53 : vector<1x1x32x2xbf16> to vector<32x2xbf16>
    %c0_66 = arith.constant 0 : index
    %c0_67 = arith.constant 0 : index
    %55 = vector.load %arg7[%c0_66, %c0_67] : memref<2x8xbf16, #tpu.memory_space<vmem>>, vector<2x8xbf16>
    %cst_68 = arith.constant dense<0.000000e+00> : vector<32x8xf32>
    %56 = tpu.matmul %54, %55, %cst_68 {dimension_numbers = #tpu.dot_dimension_numbers<[1], [0], [0], [1], [0, 0, 1, 1], [], []>} : vector<32x2xbf16>, vector<2x8xbf16>, vector<32x8xf32> -> vector<32x8xf32>
    %57 = arith.addf %52, %56 : vector<32x8xf32>
    %c0_69 = arith.constant 0 : index
    %c0_70 = arith.constant 0 : index
    %c0_71 = arith.constant 0 : index
    %c0_72 = arith.constant 0 : index
    %58 = vector.load %arg8[%c0_69, %c0_70, %c0_71, %c0_72] : memref<1x1x32x8xbf16, #tpu.memory_space<vmem>>, vector<1x1x32x8xbf16>
    %59 = vector.shape_cast %58 : vector<1x1x32x8xbf16> to vector<32x8xbf16>
    %c0_73 = arith.constant 0 : index
    %c0_74 = arith.constant 0 : index
    %60 = vector.load %arg9[%c0_73, %c0_74] : memref<8x8xbf16, #tpu.memory_space<vmem>>, vector<8x8xbf16>
    %cst_75 = arith.constant dense<0.000000e+00> : vector<32x8xf32>
    %61 = tpu.matmul %59, %60, %cst_75 {dimension_numbers = #tpu.dot_dimension_numbers<[1], [0], [0], [1], [0, 0, 1, 1], [], []>} : vector<32x8xbf16>, vector<8x8xbf16>, vector<32x8xf32> -> vector<32x8xf32>
    %62 = arith.addf %57, %61 : vector<32x8xf32>
    %c0_76 = arith.constant 0 : index
    %c0_77 = arith.constant 0 : index
    %c0_78 = arith.constant 0 : index
    %63 = vector.load %arg10[%c0_76, %c0_77, %c0_78] : memref<1x1x8xf32, #tpu.memory_space<vmem>>, vector<1x1x8xf32>
    %64 = vector.shape_cast %63 : vector<1x1x8xf32> to vector<1x8xf32>
    %65 = vector.broadcast %64 : vector<1x8xf32> to vector<32x8xf32>
    %66 = arith.addf %62, %65 : vector<32x8xf32>
    %cst_79 = arith.constant 0.000000e+00 : f32
    %67 = vector.broadcast %cst_79 : f32 to vector<32x8xf32>
    %68 = arith.maximumf %66, %67 : vector<32x8xf32>
    %69 = arith.truncf %68 : vector<32x8xf32> to vector<32x8xbf16>
    %c0_80 = arith.constant 0 : index
    %c0_81 = arith.constant 0 : index
    %c0_82 = arith.constant 0 : index
    %c0_83 = arith.constant 0 : index
    %70 = vector.load %arg11[%c0_80, %c0_81, %c0_82, %c0_83] : memref<1x1x32x8xbf16, #tpu.memory_space<vmem>>, vector<1x1x32x8xbf16>
    %71 = vector.shape_cast %70 : vector<1x1x32x8xbf16> to vector<32x8xbf16>
    %72 = vector.shape_cast %69 : vector<32x8xbf16> to vector<1x1x32x8xbf16>
    tpu.vector_store %arg11[%c0_80, %c0_81, %c0_82, %c0_83], %72 {strides = array<i32>} : memref<1x1x32x8xbf16, #tpu.memory_space<vmem>>, vector<1x1x32x8xbf16>,
    return
  }
  func.func @transform_0(%arg0: i32, %arg1: i32) -> (i32, i32, i32, i32) {
    %c0_i32 = arith.constant 0 : i32
    %0 = arith.addi %arg1, %c0_i32 : i32
    %c0_i32_0 = arith.constant 0 : i32
    %c0_i32_1 = arith.constant 0 : i32
    %c0_i32_2 = arith.constant 0 : i32
    return %arg0, %0, %c0_i32_0, %c0_i32_1 : i32, i32, i32, i32
  }
  func.func @transform_1(%arg0: i32, %arg1: i32) -> (i32, i32, i32, i32) {
    %c1_i32 = arith.constant 1 : i32
    %0 = arith.addi %arg1, %c1_i32 : i32
    %c0_i32 = arith.constant 0 : i32
    %c0_i32_0 = arith.constant 0 : i32
    %c0_i32_1 = arith.constant 0 : i32
    return %arg0, %0, %c0_i32, %c0_i32_0 : i32, i32, i32, i32
  }
  func.func @transform_2(%arg0: i32, %arg1: i32) -> (i32, i32, i32, i32) {
    %c2_i32 = arith.constant 2 : i32
    %0 = arith.addi %arg1, %c2_i32 : i32
    %c0_i32 = arith.constant 0 : i32
    %c0_i32_0 = arith.constant 0 : i32
    %c0_i32_1 = arith.constant 0 : i32
    return %arg0, %0, %c0_i32, %c0_i32_0 : i32, i32, i32, i32
  }
  func.func @transform_3(%arg0: i32, %arg1: i32) -> (i32, i32, i32) {
    %c0_i32 = arith.constant 0 : i32
    %c0_i32_0 = arith.constant 0 : i32
    %c0_i32_1 = arith.constant 0 : i32
    %c0_i32_2 = arith.constant 0 : i32
    return %c0_i32, %c0_i32_0, %c0_i32_1 : i32, i32, i32
  }
  func.func @transform_4(%arg0: i32, %arg1: i32) -> (i32, i32, i32, i32) {
    %c0_i32 = arith.constant 0 : i32
    %c0_i32_0 = arith.constant 0 : i32
    %c0_i32_1 = arith.constant 0 : i32
    return %arg0, %arg1, %c0_i32, %c0_i32_0 : i32, i32, i32, i32
  }
  func.func @transform_5(%arg0: i32, %arg1: i32) -> (i32, i32) {
    %c0_i32 = arith.constant 0 : i32
    %c0_i32_0 = arith.constant 0 : i32
    %c0_i32_1 = arith.constant 0 : i32
    return %c0_i32, %c0_i32_0 : i32, i32
  }
  func.func @transform_6(%arg0: i32, %arg1: i32) -> (i32, i32, i32, i32) {
    %c0_i32 = arith.constant 0 : i32
    %c0_i32_0 = arith.constant 0 : i32
    %c0_i32_1 = arith.constant 0 : i32
    return %arg0, %arg1, %c0_i32, %c0_i32_0 : i32, i32, i32, i32
  }
  func.func @transform_7(%arg0: i32, %arg1: i32) -> (i32, i32) {
    %c0_i32 = arith.constant 0 : i32
    %c0_i32_0 = arith.constant 0 : i32
    %c0_i32_1 = arith.constant 0 : i32
    return %c0_i32, %c0_i32_0 : i32, i32
  }
  func.func @transform_8(%arg0: i32, %arg1: i32) -> (i32, i32, i32) {
    %c0_i32 = arith.constant 0 : i32
    %c0_i32_0 = arith.constant 0 : i32
    %c0_i32_1 = arith.constant 0 : i32
    return %arg0, %c0_i32, %c0_i32_0 : i32, i32, i32
  }
  func.func @transform_9(%arg0: i32, %arg1: i32) -> (i32, i32, i32, i32) {
    %c0_i32 = arith.constant 0 : i32
    %c0_i32_0 = arith.constant 0 : i32
    %c0_i32_1 = arith.constant 0 : i32
    return %arg0, %arg1, %c0_i32, %c0_i32_0 : i32, i32, i32, i32
  }
}

module attributes {stable_mosaic.version = 11 : i64} {
  func.func @kernel(%arg0: i32, %arg1: i32, %arg2: memref<1x2x10x8xbf16, #tpu.memory_space<vmem>>, %arg3: memref<1x2x10x8xbf16, #tpu.memory_space<vmem>>, %arg4: memref<1x2x10x8xbf16, #tpu.memory_space<vmem>>, %arg5: memref<1x2x10x8xbf16, #tpu.memory_space<vmem>>, %arg6: memref<16x8x8xbf16, #tpu.memory_space<vmem>>, %arg7: memref<1x1x8xf32, #tpu.memory_space<vmem>>, %arg8: memref<1x1x8x8xbf16, #tpu.memory_space<vmem>>) attributes {dimension_semantics = [#tpu.dimension_semantics<parallel>, #tpu.dimension_semantics<parallel>], iteration_bounds = array<i64: 2, 4>, scalar_prefetch = 0 : i64, scratch_operands = 0 : i64, tpu.core_type = #tpu.core_type<tc>, window_params = [{transform_indices = @transform_0, window_bounds = array<i64: 1, 2, 10, 8>}, {transform_indices = @transform_1, window_bounds = array<i64: 1, 2, 10, 8>}, {transform_indices = @transform_2, window_bounds = array<i64: 1, 2, 10, 8>}, {transform_indices = @transform_3, window_bounds = array<i64: 1, 2, 10, 8>}, {pipeline_mode = #tpu.pipeline_mode<synchronous>, transform_indices = @transform_4, window_bounds = array<i64: 16, 8, 8>}, {pipeline_mode = #tpu.pipeline_mode<synchronous>, transform_indices = @transform_5, window_bounds = array<i64: 1, 1, 8>}, {transform_indices = @transform_6, window_bounds = array<i64: 1, 1, 8, 8>}]} {
    %c0 = arith.constant 0 : index
    %c0_0 = arith.constant 0 : index
    %c0_1 = arith.constant 0 : index
    %c0_2 = arith.constant 0 : index
    %0 = vector.load %arg2[%c0, %c0_0, %c0_1, %c0_2] : memref<1x2x10x8xbf16, #tpu.memory_space<vmem>>, vector<1x1x8x8xbf16>
    %1 = vector.shape_cast %0 : vector<1x1x8x8xbf16> to vector<8x8xbf16>
    %c0_3 = arith.constant 0 : index
    %c0_4 = arith.constant 0 : index
    %c0_5 = arith.constant 0 : index
    %2 = vector.load %arg6[%c0_3, %c0_4, %c0_5] : memref<16x8x8xbf16, #tpu.memory_space<vmem>>, vector<1x8x8xbf16>
    %3 = vector.shape_cast %2 : vector<1x8x8xbf16> to vector<8x8xbf16>
    %cst = arith.constant dense<0.000000e+00> : vector<8x8xf32>
    %4 = tpu.matmul %1, %3, %cst {dimension_numbers = #tpu.dot_dimension_numbers<[1], [0], [0], [1], [0, 0, 1, 1], [], []>} : vector<8x8xbf16>, vector<8x8xbf16>, vector<8x8xf32> -> vector<8x8xf32>
    %c0_6 = arith.constant 0 : index
    %c0_7 = arith.constant 0 : index
    %c0_8 = arith.constant 0 : index
    %c0_9 = arith.constant 0 : index
    %5 = vector.load %arg3[%c0_6, %c0_7, %c0_8, %c0_9] : memref<1x2x10x8xbf16, #tpu.memory_space<vmem>>, vector<1x1x8x8xbf16>
    %6 = vector.shape_cast %5 : vector<1x1x8x8xbf16> to vector<8x8xbf16>
    %c1 = arith.constant 1 : index
    %c0_10 = arith.constant 0 : index
    %c0_11 = arith.constant 0 : index
    %7 = vector.load %arg6[%c1, %c0_10, %c0_11] : memref<16x8x8xbf16, #tpu.memory_space<vmem>>, vector<1x8x8xbf16>
    %8 = vector.shape_cast %7 : vector<1x8x8xbf16> to vector<8x8xbf16>
    %cst_12 = arith.constant dense<0.000000e+00> : vector<8x8xf32>
    %9 = tpu.matmul %6, %8, %cst_12 {dimension_numbers = #tpu.dot_dimension_numbers<[1], [0], [0], [1], [0, 0, 1, 1], [], []>} : vector<8x8xbf16>, vector<8x8xbf16>, vector<8x8xf32> -> vector<8x8xf32>
    %10 = arith.addf %4, %9 : vector<8x8xf32>
    %c0_13 = arith.constant 0 : index
    %c0_14 = arith.constant 0 : index
    %c2 = arith.constant 2 : index
    %c0_15 = arith.constant 0 : index
    %11 = vector.load %arg2[%c0_13, %c0_14, %c2, %c0_15] : memref<1x2x10x8xbf16, #tpu.memory_space<vmem>>, vector<1x1x8x8xbf16>
    %12 = vector.shape_cast %11 : vector<1x1x8x8xbf16> to vector<8x8xbf16>
    %c2_16 = arith.constant 2 : index
    %c0_17 = arith.constant 0 : index
    %c0_18 = arith.constant 0 : index
    %13 = vector.load %arg6[%c2_16, %c0_17, %c0_18] : memref<16x8x8xbf16, #tpu.memory_space<vmem>>, vector<1x8x8xbf16>
    %14 = vector.shape_cast %13 : vector<1x8x8xbf16> to vector<8x8xbf16>
    %cst_19 = arith.constant dense<0.000000e+00> : vector<8x8xf32>
    %15 = tpu.matmul %12, %14, %cst_19 {dimension_numbers = #tpu.dot_dimension_numbers<[1], [0], [0], [1], [0, 0, 1, 1], [], []>} : vector<8x8xbf16>, vector<8x8xbf16>, vector<8x8xf32> -> vector<8x8xf32>
    %16 = arith.addf %10, %15 : vector<8x8xf32>
    %c0_20 = arith.constant 0 : index
    %c0_21 = arith.constant 0 : index
    %c2_22 = arith.constant 2 : index
    %c0_23 = arith.constant 0 : index
    %17 = vector.load %arg3[%c0_20, %c0_21, %c2_22, %c0_23] : memref<1x2x10x8xbf16, #tpu.memory_space<vmem>>, vector<1x1x8x8xbf16>
    %18 = vector.shape_cast %17 : vector<1x1x8x8xbf16> to vector<8x8xbf16>
    %c3 = arith.constant 3 : index
    %c0_24 = arith.constant 0 : index
    %c0_25 = arith.constant 0 : index
    %19 = vector.load %arg6[%c3, %c0_24, %c0_25] : memref<16x8x8xbf16, #tpu.memory_space<vmem>>, vector<1x8x8xbf16>
    %20 = vector.shape_cast %19 : vector<1x8x8xbf16> to vector<8x8xbf16>
    %cst_26 = arith.constant dense<0.000000e+00> : vector<8x8xf32>
    %21 = tpu.matmul %18, %20, %cst_26 {dimension_numbers = #tpu.dot_dimension_numbers<[1], [0], [0], [1], [0, 0, 1, 1], [], []>} : vector<8x8xbf16>, vector<8x8xbf16>, vector<8x8xf32> -> vector<8x8xf32>
    %22 = arith.addf %16, %21 : vector<8x8xf32>
    %c0_27 = arith.constant 0 : index
    %c1_28 = arith.constant 1 : index
    %c0_29 = arith.constant 0 : index
    %c0_30 = arith.constant 0 : index
    %23 = vector.load %arg2[%c0_27, %c1_28, %c0_29, %c0_30] : memref<1x2x10x8xbf16, #tpu.memory_space<vmem>>, vector<1x1x8x8xbf16>
    %24 = vector.shape_cast %23 : vector<1x1x8x8xbf16> to vector<8x8xbf16>
    %c4 = arith.constant 4 : index
    %c0_31 = arith.constant 0 : index
    %c0_32 = arith.constant 0 : index
    %25 = vector.load %arg6[%c4, %c0_31, %c0_32] : memref<16x8x8xbf16, #tpu.memory_space<vmem>>, vector<1x8x8xbf16>
    %26 = vector.shape_cast %25 : vector<1x8x8xbf16> to vector<8x8xbf16>
    %cst_33 = arith.constant dense<0.000000e+00> : vector<8x8xf32>
    %27 = tpu.matmul %24, %26, %cst_33 {dimension_numbers = #tpu.dot_dimension_numbers<[1], [0], [0], [1], [0, 0, 1, 1], [], []>} : vector<8x8xbf16>, vector<8x8xbf16>, vector<8x8xf32> -> vector<8x8xf32>
    %28 = arith.addf %22, %27 : vector<8x8xf32>
    %c0_34 = arith.constant 0 : index
    %c1_35 = arith.constant 1 : index
    %c0_36 = arith.constant 0 : index
    %c0_37 = arith.constant 0 : index
    %29 = vector.load %arg3[%c0_34, %c1_35, %c0_36, %c0_37] : memref<1x2x10x8xbf16, #tpu.memory_space<vmem>>, vector<1x1x8x8xbf16>
    %30 = vector.shape_cast %29 : vector<1x1x8x8xbf16> to vector<8x8xbf16>
    %c5 = arith.constant 5 : index
    %c0_38 = arith.constant 0 : index
    %c0_39 = arith.constant 0 : index
    %31 = vector.load %arg6[%c5, %c0_38, %c0_39] : memref<16x8x8xbf16, #tpu.memory_space<vmem>>, vector<1x8x8xbf16>
    %32 = vector.shape_cast %31 : vector<1x8x8xbf16> to vector<8x8xbf16>
    %cst_40 = arith.constant dense<0.000000e+00> : vector<8x8xf32>
    %33 = tpu.matmul %30, %32, %cst_40 {dimension_numbers = #tpu.dot_dimension_numbers<[1], [0], [0], [1], [0, 0, 1, 1], [], []>} : vector<8x8xbf16>, vector<8x8xbf16>, vector<8x8xf32> -> vector<8x8xf32>
    %34 = arith.addf %28, %33 : vector<8x8xf32>
    %c0_41 = arith.constant 0 : index
    %c1_42 = arith.constant 1 : index
    %c2_43 = arith.constant 2 : index
    %c0_44 = arith.constant 0 : index
    %35 = vector.load %arg2[%c0_41, %c1_42, %c2_43, %c0_44] : memref<1x2x10x8xbf16, #tpu.memory_space<vmem>>, vector<1x1x8x8xbf16>
    %36 = vector.shape_cast %35 : vector<1x1x8x8xbf16> to vector<8x8xbf16>
    %c6 = arith.constant 6 : index
    %c0_45 = arith.constant 0 : index
    %c0_46 = arith.constant 0 : index
    %37 = vector.load %arg6[%c6, %c0_45, %c0_46] : memref<16x8x8xbf16, #tpu.memory_space<vmem>>, vector<1x8x8xbf16>
    %38 = vector.shape_cast %37 : vector<1x8x8xbf16> to vector<8x8xbf16>
    %cst_47 = arith.constant dense<0.000000e+00> : vector<8x8xf32>
    %39 = tpu.matmul %36, %38, %cst_47 {dimension_numbers = #tpu.dot_dimension_numbers<[1], [0], [0], [1], [0, 0, 1, 1], [], []>} : vector<8x8xbf16>, vector<8x8xbf16>, vector<8x8xf32> -> vector<8x8xf32>
    %40 = arith.addf %34, %39 : vector<8x8xf32>
    %c0_48 = arith.constant 0 : index
    %c1_49 = arith.constant 1 : index
    %c2_50 = arith.constant 2 : index
    %c0_51 = arith.constant 0 : index
    %41 = vector.load %arg3[%c0_48, %c1_49, %c2_50, %c0_51] : memref<1x2x10x8xbf16, #tpu.memory_space<vmem>>, vector<1x1x8x8xbf16>
    %42 = vector.shape_cast %41 : vector<1x1x8x8xbf16> to vector<8x8xbf16>
    %c7 = arith.constant 7 : index
    %c0_52 = arith.constant 0 : index
    %c0_53 = arith.constant 0 : index
    %43 = vector.load %arg6[%c7, %c0_52, %c0_53] : memref<16x8x8xbf16, #tpu.memory_space<vmem>>, vector<1x8x8xbf16>
    %44 = vector.shape_cast %43 : vector<1x8x8xbf16> to vector<8x8xbf16>
    %cst_54 = arith.constant dense<0.000000e+00> : vector<8x8xf32>
    %45 = tpu.matmul %42, %44, %cst_54 {dimension_numbers = #tpu.dot_dimension_numbers<[1], [0], [0], [1], [0, 0, 1, 1], [], []>} : vector<8x8xbf16>, vector<8x8xbf16>, vector<8x8xf32> -> vector<8x8xf32>
    %46 = arith.addf %40, %45 : vector<8x8xf32>
    %c0_55 = arith.constant 0 : index
    %c0_56 = arith.constant 0 : index
    %c0_57 = arith.constant 0 : index
    %c0_58 = arith.constant 0 : index
    %47 = vector.load %arg4[%c0_55, %c0_56, %c0_57, %c0_58] : memref<1x2x10x8xbf16, #tpu.memory_space<vmem>>, vector<1x1x8x8xbf16>
    %48 = vector.shape_cast %47 : vector<1x1x8x8xbf16> to vector<8x8xbf16>
    %c8 = arith.constant 8 : index
    %c0_59 = arith.constant 0 : index
    %c0_60 = arith.constant 0 : index
    %49 = vector.load %arg6[%c8, %c0_59, %c0_60] : memref<16x8x8xbf16, #tpu.memory_space<vmem>>, vector<1x8x8xbf16>
    %50 = vector.shape_cast %49 : vector<1x8x8xbf16> to vector<8x8xbf16>
    %cst_61 = arith.constant dense<0.000000e+00> : vector<8x8xf32>
    %51 = tpu.matmul %48, %50, %cst_61 {dimension_numbers = #tpu.dot_dimension_numbers<[1], [0], [0], [1], [0, 0, 1, 1], [], []>} : vector<8x8xbf16>, vector<8x8xbf16>, vector<8x8xf32> -> vector<8x8xf32>
    %52 = arith.addf %46, %51 : vector<8x8xf32>
    %c0_62 = arith.constant 0 : index
    %c0_63 = arith.constant 0 : index
    %c0_64 = arith.constant 0 : index
    %c0_65 = arith.constant 0 : index
    %53 = vector.load %arg5[%c0_62, %c0_63, %c0_64, %c0_65] : memref<1x2x10x8xbf16, #tpu.memory_space<vmem>>, vector<1x1x8x8xbf16>
    %54 = vector.shape_cast %53 : vector<1x1x8x8xbf16> to vector<8x8xbf16>
    %c9 = arith.constant 9 : index
    %c0_66 = arith.constant 0 : index
    %c0_67 = arith.constant 0 : index
    %55 = vector.load %arg6[%c9, %c0_66, %c0_67] : memref<16x8x8xbf16, #tpu.memory_space<vmem>>, vector<1x8x8xbf16>
    %56 = vector.shape_cast %55 : vector<1x8x8xbf16> to vector<8x8xbf16>
    %cst_68 = arith.constant dense<0.000000e+00> : vector<8x8xf32>
    %57 = tpu.matmul %54, %56, %cst_68 {dimension_numbers = #tpu.dot_dimension_numbers<[1], [0], [0], [1], [0, 0, 1, 1], [], []>} : vector<8x8xbf16>, vector<8x8xbf16>, vector<8x8xf32> -> vector<8x8xf32>
    %58 = arith.addf %52, %57 : vector<8x8xf32>
    %c0_69 = arith.constant 0 : index
    %c0_70 = arith.constant 0 : index
    %c2_71 = arith.constant 2 : index
    %c0_72 = arith.constant 0 : index
    %59 = vector.load %arg4[%c0_69, %c0_70, %c2_71, %c0_72] : memref<1x2x10x8xbf16, #tpu.memory_space<vmem>>, vector<1x1x8x8xbf16>
    %60 = vector.shape_cast %59 : vector<1x1x8x8xbf16> to vector<8x8xbf16>
    %c10 = arith.constant 10 : index
    %c0_73 = arith.constant 0 : index
    %c0_74 = arith.constant 0 : index
    %61 = vector.load %arg6[%c10, %c0_73, %c0_74] : memref<16x8x8xbf16, #tpu.memory_space<vmem>>, vector<1x8x8xbf16>
    %62 = vector.shape_cast %61 : vector<1x8x8xbf16> to vector<8x8xbf16>
    %cst_75 = arith.constant dense<0.000000e+00> : vector<8x8xf32>
    %63 = tpu.matmul %60, %62, %cst_75 {dimension_numbers = #tpu.dot_dimension_numbers<[1], [0], [0], [1], [0, 0, 1, 1], [], []>} : vector<8x8xbf16>, vector<8x8xbf16>, vector<8x8xf32> -> vector<8x8xf32>
    %64 = arith.addf %58, %63 : vector<8x8xf32>
    %c0_76 = arith.constant 0 : index
    %c0_77 = arith.constant 0 : index
    %c2_78 = arith.constant 2 : index
    %c0_79 = arith.constant 0 : index
    %65 = vector.load %arg5[%c0_76, %c0_77, %c2_78, %c0_79] : memref<1x2x10x8xbf16, #tpu.memory_space<vmem>>, vector<1x1x8x8xbf16>
    %66 = vector.shape_cast %65 : vector<1x1x8x8xbf16> to vector<8x8xbf16>
    %c11 = arith.constant 11 : index
    %c0_80 = arith.constant 0 : index
    %c0_81 = arith.constant 0 : index
    %67 = vector.load %arg6[%c11, %c0_80, %c0_81] : memref<16x8x8xbf16, #tpu.memory_space<vmem>>, vector<1x8x8xbf16>
    %68 = vector.shape_cast %67 : vector<1x8x8xbf16> to vector<8x8xbf16>
    %cst_82 = arith.constant dense<0.000000e+00> : vector<8x8xf32>
    %69 = tpu.matmul %66, %68, %cst_82 {dimension_numbers = #tpu.dot_dimension_numbers<[1], [0], [0], [1], [0, 0, 1, 1], [], []>} : vector<8x8xbf16>, vector<8x8xbf16>, vector<8x8xf32> -> vector<8x8xf32>
    %70 = arith.addf %64, %69 : vector<8x8xf32>
    %c0_83 = arith.constant 0 : index
    %c1_84 = arith.constant 1 : index
    %c0_85 = arith.constant 0 : index
    %c0_86 = arith.constant 0 : index
    %71 = vector.load %arg4[%c0_83, %c1_84, %c0_85, %c0_86] : memref<1x2x10x8xbf16, #tpu.memory_space<vmem>>, vector<1x1x8x8xbf16>
    %72 = vector.shape_cast %71 : vector<1x1x8x8xbf16> to vector<8x8xbf16>
    %c12 = arith.constant 12 : index
    %c0_87 = arith.constant 0 : index
    %c0_88 = arith.constant 0 : index
    %73 = vector.load %arg6[%c12, %c0_87, %c0_88] : memref<16x8x8xbf16, #tpu.memory_space<vmem>>, vector<1x8x8xbf16>
    %74 = vector.shape_cast %73 : vector<1x8x8xbf16> to vector<8x8xbf16>
    %cst_89 = arith.constant dense<0.000000e+00> : vector<8x8xf32>
    %75 = tpu.matmul %72, %74, %cst_89 {dimension_numbers = #tpu.dot_dimension_numbers<[1], [0], [0], [1], [0, 0, 1, 1], [], []>} : vector<8x8xbf16>, vector<8x8xbf16>, vector<8x8xf32> -> vector<8x8xf32>
    %76 = arith.addf %70, %75 : vector<8x8xf32>
    %c0_90 = arith.constant 0 : index
    %c1_91 = arith.constant 1 : index
    %c0_92 = arith.constant 0 : index
    %c0_93 = arith.constant 0 : index
    %77 = vector.load %arg5[%c0_90, %c1_91, %c0_92, %c0_93] : memref<1x2x10x8xbf16, #tpu.memory_space<vmem>>, vector<1x1x8x8xbf16>
    %78 = vector.shape_cast %77 : vector<1x1x8x8xbf16> to vector<8x8xbf16>
    %c13 = arith.constant 13 : index
    %c0_94 = arith.constant 0 : index
    %c0_95 = arith.constant 0 : index
    %79 = vector.load %arg6[%c13, %c0_94, %c0_95] : memref<16x8x8xbf16, #tpu.memory_space<vmem>>, vector<1x8x8xbf16>
    %80 = vector.shape_cast %79 : vector<1x8x8xbf16> to vector<8x8xbf16>
    %cst_96 = arith.constant dense<0.000000e+00> : vector<8x8xf32>
    %81 = tpu.matmul %78, %80, %cst_96 {dimension_numbers = #tpu.dot_dimension_numbers<[1], [0], [0], [1], [0, 0, 1, 1], [], []>} : vector<8x8xbf16>, vector<8x8xbf16>, vector<8x8xf32> -> vector<8x8xf32>
    %82 = arith.addf %76, %81 : vector<8x8xf32>
    %c0_97 = arith.constant 0 : index
    %c1_98 = arith.constant 1 : index
    %c2_99 = arith.constant 2 : index
    %c0_100 = arith.constant 0 : index
    %83 = vector.load %arg4[%c0_97, %c1_98, %c2_99, %c0_100] : memref<1x2x10x8xbf16, #tpu.memory_space<vmem>>, vector<1x1x8x8xbf16>
    %84 = vector.shape_cast %83 : vector<1x1x8x8xbf16> to vector<8x8xbf16>
    %c14 = arith.constant 14 : index
    %c0_101 = arith.constant 0 : index
    %c0_102 = arith.constant 0 : index
    %85 = vector.load %arg6[%c14, %c0_101, %c0_102] : memref<16x8x8xbf16, #tpu.memory_space<vmem>>, vector<1x8x8xbf16>
    %86 = vector.shape_cast %85 : vector<1x8x8xbf16> to vector<8x8xbf16>
    %cst_103 = arith.constant dense<0.000000e+00> : vector<8x8xf32>
    %87 = tpu.matmul %84, %86, %cst_103 {dimension_numbers = #tpu.dot_dimension_numbers<[1], [0], [0], [1], [0, 0, 1, 1], [], []>} : vector<8x8xbf16>, vector<8x8xbf16>, vector<8x8xf32> -> vector<8x8xf32>
    %88 = arith.addf %82, %87 : vector<8x8xf32>
    %c0_104 = arith.constant 0 : index
    %c1_105 = arith.constant 1 : index
    %c2_106 = arith.constant 2 : index
    %c0_107 = arith.constant 0 : index
    %89 = vector.load %arg5[%c0_104, %c1_105, %c2_106, %c0_107] : memref<1x2x10x8xbf16, #tpu.memory_space<vmem>>, vector<1x1x8x8xbf16>
    %90 = vector.shape_cast %89 : vector<1x1x8x8xbf16> to vector<8x8xbf16>
    %c15 = arith.constant 15 : index
    %c0_108 = arith.constant 0 : index
    %c0_109 = arith.constant 0 : index
    %91 = vector.load %arg6[%c15, %c0_108, %c0_109] : memref<16x8x8xbf16, #tpu.memory_space<vmem>>, vector<1x8x8xbf16>
    %92 = vector.shape_cast %91 : vector<1x8x8xbf16> to vector<8x8xbf16>
    %cst_110 = arith.constant dense<0.000000e+00> : vector<8x8xf32>
    %93 = tpu.matmul %90, %92, %cst_110 {dimension_numbers = #tpu.dot_dimension_numbers<[1], [0], [0], [1], [0, 0, 1, 1], [], []>} : vector<8x8xbf16>, vector<8x8xbf16>, vector<8x8xf32> -> vector<8x8xf32>
    %94 = arith.addf %88, %93 : vector<8x8xf32>
    %c0_111 = arith.constant 0 : index
    %c0_112 = arith.constant 0 : index
    %c0_113 = arith.constant 0 : index
    %95 = vector.load %arg7[%c0_111, %c0_112, %c0_113] : memref<1x1x8xf32, #tpu.memory_space<vmem>>, vector<1x1x8xf32>
    %96 = vector.shape_cast %95 : vector<1x1x8xf32> to vector<1x8xf32>
    %97 = vector.broadcast %96 : vector<1x8xf32> to vector<8x8xf32>
    %98 = arith.addf %94, %97 : vector<8x8xf32>
    %cst_114 = arith.constant 0.000000e+00 : f32
    %99 = vector.broadcast %cst_114 : f32 to vector<8x8xf32>
    %100 = arith.maximumf %98, %99 : vector<8x8xf32>
    %101 = arith.truncf %100 : vector<8x8xf32> to vector<8x8xbf16>
    %c0_115 = arith.constant 0 : index
    %c0_116 = arith.constant 0 : index
    %c0_117 = arith.constant 0 : index
    %c0_118 = arith.constant 0 : index
    %102 = vector.load %arg8[%c0_115, %c0_116, %c0_117, %c0_118] : memref<1x1x8x8xbf16, #tpu.memory_space<vmem>>, vector<1x1x8x8xbf16>
    %103 = vector.shape_cast %102 : vector<1x1x8x8xbf16> to vector<8x8xbf16>
    %104 = vector.shape_cast %101 : vector<8x8xbf16> to vector<1x1x8x8xbf16>
    tpu.vector_store %arg8[%c0_115, %c0_116, %c0_117, %c0_118], %104 {strides = array<i32>} : memref<1x1x8x8xbf16, #tpu.memory_space<vmem>>, vector<1x1x8x8xbf16>,
    return
  }
  func.func @transform_0(%arg0: i32, %arg1: i32) -> (i32, i32, i32, i32) {
    %c0_i32 = arith.constant 0 : i32
    %0 = arith.addi %arg1, %c0_i32 : i32
    %c0_i32_0 = arith.constant 0 : i32
    %c0_i32_1 = arith.constant 0 : i32
    %c0_i32_2 = arith.constant 0 : i32
    return %arg0, %0, %c0_i32_0, %c0_i32_1 : i32, i32, i32, i32
  }
  func.func @transform_1(%arg0: i32, %arg1: i32) -> (i32, i32, i32, i32) {
    %c0_i32 = arith.constant 0 : i32
    %0 = arith.addi %arg1, %c0_i32 : i32
    %c0_i32_0 = arith.constant 0 : i32
    %c0_i32_1 = arith.constant 0 : i32
    %c0_i32_2 = arith.constant 0 : i32
    return %arg0, %0, %c0_i32_0, %c0_i32_1 : i32, i32, i32, i32
  }
  func.func @transform_2(%arg0: i32, %arg1: i32) -> (i32, i32, i32, i32) {
    %c1_i32 = arith.constant 1 : i32
    %0 = arith.addi %arg1, %c1_i32 : i32
    %c0_i32 = arith.constant 0 : i32
    %c0_i32_0 = arith.constant 0 : i32
    %c0_i32_1 = arith.constant 0 : i32
    return %arg0, %0, %c0_i32, %c0_i32_0 : i32, i32, i32, i32
  }
  func.func @transform_3(%arg0: i32, %arg1: i32) -> (i32, i32, i32, i32) {
    %c1_i32 = arith.constant 1 : i32
    %0 = arith.addi %arg1, %c1_i32 : i32
    %c0_i32 = arith.constant 0 : i32
    %c0_i32_0 = arith.constant 0 : i32
    %c0_i32_1 = arith.constant 0 : i32
    return %arg0, %0, %c0_i32, %c0_i32_0 : i32, i32, i32, i32
  }
  func.func @transform_4(%arg0: i32, %arg1: i32) -> (i32, i32, i32) {
    %c0_i32 = arith.constant 0 : i32
    %c0_i32_0 = arith.constant 0 : i32
    %c0_i32_1 = arith.constant 0 : i32
    %c0_i32_2 = arith.constant 0 : i32
    return %c0_i32, %c0_i32_0, %c0_i32_1 : i32, i32, i32
  }
  func.func @transform_5(%arg0: i32, %arg1: i32) -> (i32, i32, i32) {
    %c0_i32 = arith.constant 0 : i32
    %c0_i32_0 = arith.constant 0 : i32
    %c0_i32_1 = arith.constant 0 : i32
    %c0_i32_2 = arith.constant 0 : i32
    return %c0_i32, %c0_i32_0, %c0_i32_1 : i32, i32, i32
  }
  func.func @transform_6(%arg0: i32, %arg1: i32) -> (i32, i32, i32, i32) {
    %c0_i32 = arith.constant 0 : i32
    %c0_i32_0 = arith.constant 0 : i32
    %c0_i32_1 = arith.constant 0 : i32
    return %arg0, %arg1, %c0_i32, %c0_i32_0 : i32, i32, i32, i32
  }
}

module attributes {stable_mosaic.version = 11 : i64} {
  func.func @kernel(%arg0: i32, %arg1: i32, %arg2: memref<1x1x12x8xbf16, #tpu.memory_space<vmem>>, %arg3: memref<1x1x12x8xbf16, #tpu.memory_space<vmem>>, %arg4: memref<1x1x12x8xbf16, #tpu.memory_space<vmem>>, %arg5: memref<9x8x16xbf16, #tpu.memory_space<vmem>>, %arg6: memref<1x1x8x8xbf16, #tpu.memory_space<vmem>>, %arg7: memref<8x16xbf16, #tpu.memory_space<vmem>>, %arg8: memref<1x1x16xf32, #tpu.memory_space<vmem>>, %arg9: memref<1x1x8x16xbf16, #tpu.memory_space<vmem>>) attributes {dimension_semantics = [#tpu.dimension_semantics<parallel>, #tpu.dimension_semantics<parallel>], iteration_bounds = array<i64: 2, 4>, scalar_prefetch = 0 : i64, scratch_operands = 0 : i64, tpu.core_type = #tpu.core_type<tc>, window_params = [{transform_indices = @transform_0, window_bounds = array<i64: 1, 1, 12, 8>}, {transform_indices = @transform_1, window_bounds = array<i64: 1, 1, 12, 8>}, {transform_indices = @transform_2, window_bounds = array<i64: 1, 1, 12, 8>}, {pipeline_mode = #tpu.pipeline_mode<synchronous>, transform_indices = @transform_3, window_bounds = array<i64: 9, 8, 16>}, {transform_indices = @transform_4, window_bounds = array<i64: 1, 1, 8, 8>}, {pipeline_mode = #tpu.pipeline_mode<synchronous>, transform_indices = @transform_5, window_bounds = array<i64: 8, 16>}, {pipeline_mode = #tpu.pipeline_mode<synchronous>, transform_indices = @transform_6, window_bounds = array<i64: 1, 1, 16>}, {transform_indices = @transform_7, window_bounds = array<i64: 1, 1, 8, 16>}]} {
    %c0 = arith.constant 0 : index
    %c0_0 = arith.constant 0 : index
    %c0_1 = arith.constant 0 : index
    %c0_2 = arith.constant 0 : index
    %0 = vector.load %arg2[%c0, %c0_0, %c0_1, %c0_2] : memref<1x1x12x8xbf16, #tpu.memory_space<vmem>>, vector<1x1x8x8xbf16>
    %1 = vector.shape_cast %0 : vector<1x1x8x8xbf16> to vector<8x8xbf16>
    %c0_3 = arith.constant 0 : index
    %c0_4 = arith.constant 0 : index
    %c0_5 = arith.constant 0 : index
    %2 = vector.load %arg5[%c0_3, %c0_4, %c0_5] : memref<9x8x16xbf16, #tpu.memory_space<vmem>>, vector<1x8x16xbf16>
    %3 = vector.shape_cast %2 : vector<1x8x16xbf16> to vector<8x16xbf16>
    %cst = arith.constant dense<0.000000e+00> : vector<8x16xf32>
    %4 = tpu.matmul %1, %3, %cst {dimension_numbers = #tpu.dot_dimension_numbers<[1], [0], [0], [1], [0, 0, 1, 1], [], []>} : vector<8x8xbf16>, vector<8x16xbf16>, vector<8x16xf32> -> vector<8x16xf32>
    %c0_6 = arith.constant 0 : index
    %c0_7 = arith.constant 0 : index
    %c2 = arith.constant 2 : index
    %c0_8 = arith.constant 0 : index
    %5 = vector.load %arg2[%c0_6, %c0_7, %c2, %c0_8] : memref<1x1x12x8xbf16, #tpu.memory_space<vmem>>, vector<1x1x8x8xbf16>
    %6 = vector.shape_cast %5 : vector<1x1x8x8xbf16> to vector<8x8xbf16>
    %c1 = arith.constant 1 : index
    %c0_9 = arith.constant 0 : index
    %c0_10 = arith.constant 0 : index
    %7 = vector.load %arg5[%c1, %c0_9, %c0_10] : memref<9x8x16xbf16, #tpu.memory_space<vmem>>, vector<1x8x16xbf16>
    %8 = vector.shape_cast %7 : vector<1x8x16xbf16> to vector<8x16xbf16>
    %cst_11 = arith.constant dense<0.000000e+00> : vector<8x16xf32>
    %9 = tpu.matmul %6, %8, %cst_11 {dimension_numbers = #tpu.dot_dimension_numbers<[1], [0], [0], [1], [0, 0, 1, 1], [], []>} : vector<8x8xbf16>, vector<8x16xbf16>, vector<8x16xf32> -> vector<8x16xf32>
    %10 = arith.addf %4, %9 : vector<8x16xf32>
    %c0_12 = arith.constant 0 : index
    %c0_13 = arith.constant 0 : index
    %c4 = arith.constant 4 : index
    %c0_14 = arith.constant 0 : index
    %11 = vector.load %arg2[%c0_12, %c0_13, %c4, %c0_14] : memref<1x1x12x8xbf16, #tpu.memory_space<vmem>>, vector<1x1x8x8xbf16>
    %12 = vector.shape_cast %11 : vector<1x1x8x8xbf16> to vector<8x8xbf16>
    %c2_15 = arith.constant 2 : index
    %c0_16 = arith.constant 0 : index
    %c0_17 = arith.constant 0 : index
    %13 = vector.load %arg5[%c2_15, %c0_16, %c0_17] : memref<9x8x16xbf16, #tpu.memory_space<vmem>>, vector<1x8x16xbf16>
    %14 = vector.shape_cast %13 : vector<1x8x16xbf16> to vector<8x16xbf16>
    %cst_18 = arith.constant dense<0.000000e+00> : vector<8x16xf32>
    %15 = tpu.matmul %12, %14, %cst_18 {dimension_numbers = #tpu.dot_dimension_numbers<[1], [0], [0], [1], [0, 0, 1, 1], [], []>} : vector<8x8xbf16>, vector<8x16xbf16>, vector<8x16xf32> -> vector<8x16xf32>
    %16 = arith.addf %10, %15 : vector<8x16xf32>
    %c0_19 = arith.constant 0 : index
    %c0_20 = arith.constant 0 : index
    %c0_21 = arith.constant 0 : index
    %c0_22 = arith.constant 0 : index
    %17 = vector.load %arg3[%c0_19, %c0_20, %c0_21, %c0_22] : memref<1x1x12x8xbf16, #tpu.memory_space<vmem>>, vector<1x1x8x8xbf16>
    %18 = vector.shape_cast %17 : vector<1x1x8x8xbf16> to vector<8x8xbf16>
    %c3 = arith.constant 3 : index
    %c0_23 = arith.constant 0 : index
    %c0_24 = arith.constant 0 : index
    %19 = vector.load %arg5[%c3, %c0_23, %c0_24] : memref<9x8x16xbf16, #tpu.memory_space<vmem>>, vector<1x8x16xbf16>
    %20 = vector.shape_cast %19 : vector<1x8x16xbf16> to vector<8x16xbf16>
    %cst_25 = arith.constant dense<0.000000e+00> : vector<8x16xf32>
    %21 = tpu.matmul %18, %20, %cst_25 {dimension_numbers = #tpu.dot_dimension_numbers<[1], [0], [0], [1], [0, 0, 1, 1], [], []>} : vector<8x8xbf16>, vector<8x16xbf16>, vector<8x16xf32> -> vector<8x16xf32>
    %22 = arith.addf %16, %21 : vector<8x16xf32>
    %c0_26 = arith.constant 0 : index
    %c0_27 = arith.constant 0 : index
    %c2_28 = arith.constant 2 : index
    %c0_29 = arith.constant 0 : index
    %23 = vector.load %arg3[%c0_26, %c0_27, %c2_28, %c0_29] : memref<1x1x12x8xbf16, #tpu.memory_space<vmem>>, vector<1x1x8x8xbf16>
    %24 = vector.shape_cast %23 : vector<1x1x8x8xbf16> to vector<8x8xbf16>
    %c4_30 = arith.constant 4 : index
    %c0_31 = arith.constant 0 : index
    %c0_32 = arith.constant 0 : index
    %25 = vector.load %arg5[%c4_30, %c0_31, %c0_32] : memref<9x8x16xbf16, #tpu.memory_space<vmem>>, vector<1x8x16xbf16>
    %26 = vector.shape_cast %25 : vector<1x8x16xbf16> to vector<8x16xbf16>
    %cst_33 = arith.constant dense<0.000000e+00> : vector<8x16xf32>
    %27 = tpu.matmul %24, %26, %cst_33 {dimension_numbers = #tpu.dot_dimension_numbers<[1], [0], [0], [1], [0, 0, 1, 1], [], []>} : vector<8x8xbf16>, vector<8x16xbf16>, vector<8x16xf32> -> vector<8x16xf32>
    %28 = arith.addf %22, %27 : vector<8x16xf32>
    %c0_34 = arith.constant 0 : index
    %c0_35 = arith.constant 0 : index
    %c4_36 = arith.constant 4 : index
    %c0_37 = arith.constant 0 : index
    %29 = vector.load %arg3[%c0_34, %c0_35, %c4_36, %c0_37] : memref<1x1x12x8xbf16, #tpu.memory_space<vmem>>, vector<1x1x8x8xbf16>
    %30 = vector.shape_cast %29 : vector<1x1x8x8xbf16> to vector<8x8xbf16>
    %c5 = arith.constant 5 : index
    %c0_38 = arith.constant 0 : index
    %c0_39 = arith.constant 0 : index
    %31 = vector.load %arg5[%c5, %c0_38, %c0_39] : memref<9x8x16xbf16, #tpu.memory_space<vmem>>, vector<1x8x16xbf16>
    %32 = vector.shape_cast %31 : vector<1x8x16xbf16> to vector<8x16xbf16>
    %cst_40 = arith.constant dense<0.000000e+00> : vector<8x16xf32>
    %33 = tpu.matmul %30, %32, %cst_40 {dimension_numbers = #tpu.dot_dimension_numbers<[1], [0], [0], [1], [0, 0, 1, 1], [], []>} : vector<8x8xbf16>, vector<8x16xbf16>, vector<8x16xf32> -> vector<8x16xf32>
    %34 = arith.addf %28, %33 : vector<8x16xf32>
    %c0_41 = arith.constant 0 : index
    %c0_42 = arith.constant 0 : index
    %c0_43 = arith.constant 0 : index
    %c0_44 = arith.constant 0 : index
    %35 = vector.load %arg4[%c0_41, %c0_42, %c0_43, %c0_44] : memref<1x1x12x8xbf16, #tpu.memory_space<vmem>>, vector<1x1x8x8xbf16>
    %36 = vector.shape_cast %35 : vector<1x1x8x8xbf16> to vector<8x8xbf16>
    %c6 = arith.constant 6 : index
    %c0_45 = arith.constant 0 : index
    %c0_46 = arith.constant 0 : index
    %37 = vector.load %arg5[%c6, %c0_45, %c0_46] : memref<9x8x16xbf16, #tpu.memory_space<vmem>>, vector<1x8x16xbf16>
    %38 = vector.shape_cast %37 : vector<1x8x16xbf16> to vector<8x16xbf16>
    %cst_47 = arith.constant dense<0.000000e+00> : vector<8x16xf32>
    %39 = tpu.matmul %36, %38, %cst_47 {dimension_numbers = #tpu.dot_dimension_numbers<[1], [0], [0], [1], [0, 0, 1, 1], [], []>} : vector<8x8xbf16>, vector<8x16xbf16>, vector<8x16xf32> -> vector<8x16xf32>
    %40 = arith.addf %34, %39 : vector<8x16xf32>
    %c0_48 = arith.constant 0 : index
    %c0_49 = arith.constant 0 : index
    %c2_50 = arith.constant 2 : index
    %c0_51 = arith.constant 0 : index
    %41 = vector.load %arg4[%c0_48, %c0_49, %c2_50, %c0_51] : memref<1x1x12x8xbf16, #tpu.memory_space<vmem>>, vector<1x1x8x8xbf16>
    %42 = vector.shape_cast %41 : vector<1x1x8x8xbf16> to vector<8x8xbf16>
    %c7 = arith.constant 7 : index
    %c0_52 = arith.constant 0 : index
    %c0_53 = arith.constant 0 : index
    %43 = vector.load %arg5[%c7, %c0_52, %c0_53] : memref<9x8x16xbf16, #tpu.memory_space<vmem>>, vector<1x8x16xbf16>
    %44 = vector.shape_cast %43 : vector<1x8x16xbf16> to vector<8x16xbf16>
    %cst_54 = arith.constant dense<0.000000e+00> : vector<8x16xf32>
    %45 = tpu.matmul %42, %44, %cst_54 {dimension_numbers = #tpu.dot_dimension_numbers<[1], [0], [0], [1], [0, 0, 1, 1], [], []>} : vector<8x8xbf16>, vector<8x16xbf16>, vector<8x16xf32> -> vector<8x16xf32>
    %46 = arith.addf %40, %45 : vector<8x16xf32>
    %c0_55 = arith.constant 0 : index
    %c0_56 = arith.constant 0 : index
    %c4_57 = arith.constant 4 : index
    %c0_58 = arith.constant 0 : index
    %47 = vector.load %arg4[%c0_55, %c0_56, %c4_57, %c0_58] : memref<1x1x12x8xbf16, #tpu.memory_space<vmem>>, vector<1x1x8x8xbf16>
    %48 = vector.shape_cast %47 : vector<1x1x8x8xbf16> to vector<8x8xbf16>
    %c8 = arith.constant 8 : index
    %c0_59 = arith.constant 0 : index
    %c0_60 = arith.constant 0 : index
    %49 = vector.load %arg5[%c8, %c0_59, %c0_60] : memref<9x8x16xbf16, #tpu.memory_space<vmem>>, vector<1x8x16xbf16>
    %50 = vector.shape_cast %49 : vector<1x8x16xbf16> to vector<8x16xbf16>
    %cst_61 = arith.constant dense<0.000000e+00> : vector<8x16xf32>
    %51 = tpu.matmul %48, %50, %cst_61 {dimension_numbers = #tpu.dot_dimension_numbers<[1], [0], [0], [1], [0, 0, 1, 1], [], []>} : vector<8x8xbf16>, vector<8x16xbf16>, vector<8x16xf32> -> vector<8x16xf32>
    %52 = arith.addf %46, %51 : vector<8x16xf32>
    %c0_62 = arith.constant 0 : index
    %c0_63 = arith.constant 0 : index
    %c0_64 = arith.constant 0 : index
    %c0_65 = arith.constant 0 : index
    %53 = vector.load %arg6[%c0_62, %c0_63, %c0_64, %c0_65] : memref<1x1x8x8xbf16, #tpu.memory_space<vmem>>, vector<1x1x8x8xbf16>
    %54 = vector.shape_cast %53 : vector<1x1x8x8xbf16> to vector<8x8xbf16>
    %c0_66 = arith.constant 0 : index
    %c0_67 = arith.constant 0 : index
    %55 = vector.load %arg7[%c0_66, %c0_67] : memref<8x16xbf16, #tpu.memory_space<vmem>>, vector<8x16xbf16>
    %cst_68 = arith.constant dense<0.000000e+00> : vector<8x16xf32>
    %56 = tpu.matmul %54, %55, %cst_68 {dimension_numbers = #tpu.dot_dimension_numbers<[1], [0], [0], [1], [0, 0, 1, 1], [], []>} : vector<8x8xbf16>, vector<8x16xbf16>, vector<8x16xf32> -> vector<8x16xf32>
    %57 = arith.addf %52, %56 : vector<8x16xf32>
    %c0_69 = arith.constant 0 : index
    %c0_70 = arith.constant 0 : index
    %c0_71 = arith.constant 0 : index
    %58 = vector.load %arg8[%c0_69, %c0_70, %c0_71] : memref<1x1x16xf32, #tpu.memory_space<vmem>>, vector<1x1x16xf32>
    %59 = vector.shape_cast %58 : vector<1x1x16xf32> to vector<1x16xf32>
    %60 = vector.broadcast %59 : vector<1x16xf32> to vector<8x16xf32>
    %61 = arith.addf %57, %60 : vector<8x16xf32>
    %cst_72 = arith.constant 0.000000e+00 : f32
    %62 = vector.broadcast %cst_72 : f32 to vector<8x16xf32>
    %63 = arith.maximumf %61, %62 : vector<8x16xf32>
    %64 = arith.truncf %63 : vector<8x16xf32> to vector<8x16xbf16>
    %c0_73 = arith.constant 0 : index
    %c0_74 = arith.constant 0 : index
    %c0_75 = arith.constant 0 : index
    %c0_76 = arith.constant 0 : index
    %65 = vector.load %arg9[%c0_73, %c0_74, %c0_75, %c0_76] : memref<1x1x8x16xbf16, #tpu.memory_space<vmem>>, vector<1x1x8x16xbf16>
    %66 = vector.shape_cast %65 : vector<1x1x8x16xbf16> to vector<8x16xbf16>
    %67 = vector.shape_cast %64 : vector<8x16xbf16> to vector<1x1x8x16xbf16>
    tpu.vector_store %arg9[%c0_73, %c0_74, %c0_75, %c0_76], %67 {strides = array<i32>} : memref<1x1x8x16xbf16, #tpu.memory_space<vmem>>, vector<1x1x8x16xbf16>,
    return
  }
  func.func @transform_0(%arg0: i32, %arg1: i32) -> (i32, i32, i32, i32) {
    %c0_i32 = arith.constant 0 : i32
    %0 = arith.addi %arg1, %c0_i32 : i32
    %c0_i32_0 = arith.constant 0 : i32
    %c0_i32_1 = arith.constant 0 : i32
    %c0_i32_2 = arith.constant 0 : i32
    return %arg0, %0, %c0_i32_0, %c0_i32_1 : i32, i32, i32, i32
  }
  func.func @transform_1(%arg0: i32, %arg1: i32) -> (i32, i32, i32, i32) {
    %c1_i32 = arith.constant 1 : i32
    %0 = arith.addi %arg1, %c1_i32 : i32
    %c0_i32 = arith.constant 0 : i32
    %c0_i32_0 = arith.constant 0 : i32
    %c0_i32_1 = arith.constant 0 : i32
    return %arg0, %0, %c0_i32, %c0_i32_0 : i32, i32, i32, i32
  }
  func.func @transform_2(%arg0: i32, %arg1: i32) -> (i32, i32, i32, i32) {
    %c2_i32 = arith.constant 2 : i32
    %0 = arith.addi %arg1, %c2_i32 : i32
    %c0_i32 = arith.constant 0 : i32
    %c0_i32_0 = arith.constant 0 : i32
    %c0_i32_1 = arith.constant 0 : i32
    return %arg0, %0, %c0_i32, %c0_i32_0 : i32, i32, i32, i32
  }
  func.func @transform_3(%arg0: i32, %arg1: i32) -> (i32, i32, i32) {
    %c0_i32 = arith.constant 0 : i32
    %c0_i32_0 = arith.constant 0 : i32
    %c0_i32_1 = arith.constant 0 : i32
    %c0_i32_2 = arith.constant 0 : i32
    return %c0_i32, %c0_i32_0, %c0_i32_1 : i32, i32, i32
  }
  func.func @transform_4(%arg0: i32, %arg1: i32) -> (i32, i32, i32, i32) {
    %c0_i32 = arith.constant 0 : i32
    %c0_i32_0 = arith.constant 0 : i32
    %c0_i32_1 = arith.constant 0 : i32
    return %arg0, %arg1, %c0_i32, %c0_i32_0 : i32, i32, i32, i32
  }
  func.func @transform_5(%arg0: i32, %arg1: i32) -> (i32, i32) {
    %c0_i32 = arith.constant 0 : i32
    %c0_i32_0 = arith.constant 0 : i32
    %c0_i32_1 = arith.constant 0 : i32
    return %c0_i32, %c0_i32_0 : i32, i32
  }
  func.func @transform_6(%arg0: i32, %arg1: i32) -> (i32, i32, i32) {
    %c0_i32 = arith.constant 0 : i32
    %c0_i32_0 = arith.constant 0 : i32
    %c0_i32_1 = arith.constant 0 : i32
    %c0_i32_2 = arith.constant 0 : i32
    return %c0_i32, %c0_i32_0, %c0_i32_1 : i32, i32, i32
  }
  func.func @transform_7(%arg0: i32, %arg1: i32) -> (i32, i32, i32, i32) {
    %c0_i32 = arith.constant 0 : i32
    %c0_i32_0 = arith.constant 0 : i32
    %c0_i32_1 = arith.constant 0 : i32
    return %arg0, %arg1, %c0_i32, %c0_i32_0 : i32, i32, i32, i32
  }
}

module attributes {stable_mosaic.version = 11 : i64} {
  func.func @kernel(%arg0: i32, %arg1: i32, %arg2: memref<1x1x12x8xbf16, #tpu.memory_space<vmem>>, %arg3: memref<1x1x12x8xbf16, #tpu.memory_space<vmem>>, %arg4: memref<1x1x12x8xbf16, #tpu.memory_space<vmem>>, %arg5: memref<9x8x16xbf16, #tpu.memory_space<vmem>>, %arg6: memref<1x1x8x8xbf16, #tpu.memory_space<vmem>>, %arg7: memref<8x16xbf16, #tpu.memory_space<vmem>>, %arg8: memref<1x1x8x16xbf16, #tpu.memory_space<vmem>>, %arg9: memref<16x16xbf16, #tpu.memory_space<vmem>>, %arg10: memref<1x1x16xf32, #tpu.memory_space<vmem>>, %arg11: memref<1x1x8x16xbf16, #tpu.memory_space<vmem>>) attributes {dimension_semantics = [#tpu.dimension_semantics<parallel>, #tpu.dimension_semantics<parallel>], iteration_bounds = array<i64: 2, 4>, scalar_prefetch = 0 : i64, scratch_operands = 0 : i64, tpu.core_type = #tpu.core_type<tc>, window_params = [{transform_indices = @transform_0, window_bounds = array<i64: 1, 1, 12, 8>}, {transform_indices = @transform_1, window_bounds = array<i64: 1, 1, 12, 8>}, {transform_indices = @transform_2, window_bounds = array<i64: 1, 1, 12, 8>}, {pipeline_mode = #tpu.pipeline_mode<synchronous>, transform_indices = @transform_3, window_bounds = array<i64: 9, 8, 16>}, {transform_indices = @transform_4, window_bounds = array<i64: 1, 1, 8, 8>}, {pipeline_mode = #tpu.pipeline_mode<synchronous>, transform_indices = @transform_5, window_bounds = array<i64: 8, 16>}, {transform_indices = @transform_6, window_bounds = array<i64: 1, 1, 8, 16>}, {pipeline_mode = #tpu.pipeline_mode<synchronous>, transform_indices = @transform_7, window_bounds = array<i64: 16, 16>}, {transform_indices = @transform_8, window_bounds = array<i64: 1, 1, 16>}, {transform_indices = @transform_9, window_bounds = array<i64: 1, 1, 8, 16>}]} {
    %c0 = arith.constant 0 : index
    %c0_0 = arith.constant 0 : index
    %c0_1 = arith.constant 0 : index
    %c0_2 = arith.constant 0 : index
    %0 = vector.load %arg2[%c0, %c0_0, %c0_1, %c0_2] : memref<1x1x12x8xbf16, #tpu.memory_space<vmem>>, vector<1x1x8x8xbf16>
    %1 = vector.shape_cast %0 : vector<1x1x8x8xbf16> to vector<8x8xbf16>
    %c0_3 = arith.constant 0 : index
    %c0_4 = arith.constant 0 : index
    %c0_5 = arith.constant 0 : index
    %2 = vector.load %arg5[%c0_3, %c0_4, %c0_5] : memref<9x8x16xbf16, #tpu.memory_space<vmem>>, vector<1x8x16xbf16>
    %3 = vector.shape_cast %2 : vector<1x8x16xbf16> to vector<8x16xbf16>
    %cst = arith.constant dense<0.000000e+00> : vector<8x16xf32>
    %4 = tpu.matmul %1, %3, %cst {dimension_numbers = #tpu.dot_dimension_numbers<[1], [0], [0], [1], [0, 0, 1, 1], [], []>} : vector<8x8xbf16>, vector<8x16xbf16>, vector<8x16xf32> -> vector<8x16xf32>
    %c0_6 = arith.constant 0 : index
    %c0_7 = arith.constant 0 : index
    %c2 = arith.constant 2 : index
    %c0_8 = arith.constant 0 : index
    %5 = vector.load %arg2[%c0_6, %c0_7, %c2, %c0_8] : memref<1x1x12x8xbf16, #tpu.memory_space<vmem>>, vector<1x1x8x8xbf16>
    %6 = vector.shape_cast %5 : vector<1x1x8x8xbf16> to vector<8x8xbf16>
    %c1 = arith.constant 1 : index
    %c0_9 = arith.constant 0 : index
    %c0_10 = arith.constant 0 : index
    %7 = vector.load %arg5[%c1, %c0_9, %c0_10] : memref<9x8x16xbf16, #tpu.memory_space<vmem>>, vector<1x8x16xbf16>
    %8 = vector.shape_cast %7 : vector<1x8x16xbf16> to vector<8x16xbf16>
    %cst_11 = arith.constant dense<0.000000e+00> : vector<8x16xf32>
    %9 = tpu.matmul %6, %8, %cst_11 {dimension_numbers = #tpu.dot_dimension_numbers<[1], [0], [0], [1], [0, 0, 1, 1], [], []>} : vector<8x8xbf16>, vector<8x16xbf16>, vector<8x16xf32> -> vector<8x16xf32>
    %10 = arith.addf %4, %9 : vector<8x16xf32>
    %c0_12 = arith.constant 0 : index
    %c0_13 = arith.constant 0 : index
    %c4 = arith.constant 4 : index
    %c0_14 = arith.constant 0 : index
    %11 = vector.load %arg2[%c0_12, %c0_13, %c4, %c0_14] : memref<1x1x12x8xbf16, #tpu.memory_space<vmem>>, vector<1x1x8x8xbf16>
    %12 = vector.shape_cast %11 : vector<1x1x8x8xbf16> to vector<8x8xbf16>
    %c2_15 = arith.constant 2 : index
    %c0_16 = arith.constant 0 : index
    %c0_17 = arith.constant 0 : index
    %13 = vector.load %arg5[%c2_15, %c0_16, %c0_17] : memref<9x8x16xbf16, #tpu.memory_space<vmem>>, vector<1x8x16xbf16>
    %14 = vector.shape_cast %13 : vector<1x8x16xbf16> to vector<8x16xbf16>
    %cst_18 = arith.constant dense<0.000000e+00> : vector<8x16xf32>
    %15 = tpu.matmul %12, %14, %cst_18 {dimension_numbers = #tpu.dot_dimension_numbers<[1], [0], [0], [1], [0, 0, 1, 1], [], []>} : vector<8x8xbf16>, vector<8x16xbf16>, vector<8x16xf32> -> vector<8x16xf32>
    %16 = arith.addf %10, %15 : vector<8x16xf32>
    %c0_19 = arith.constant 0 : index
    %c0_20 = arith.constant 0 : index
    %c0_21 = arith.constant 0 : index
    %c0_22 = arith.constant 0 : index
    %17 = vector.load %arg3[%c0_19, %c0_20, %c0_21, %c0_22] : memref<1x1x12x8xbf16, #tpu.memory_space<vmem>>, vector<1x1x8x8xbf16>
    %18 = vector.shape_cast %17 : vector<1x1x8x8xbf16> to vector<8x8xbf16>
    %c3 = arith.constant 3 : index
    %c0_23 = arith.constant 0 : index
    %c0_24 = arith.constant 0 : index
    %19 = vector.load %arg5[%c3, %c0_23, %c0_24] : memref<9x8x16xbf16, #tpu.memory_space<vmem>>, vector<1x8x16xbf16>
    %20 = vector.shape_cast %19 : vector<1x8x16xbf16> to vector<8x16xbf16>
    %cst_25 = arith.constant dense<0.000000e+00> : vector<8x16xf32>
    %21 = tpu.matmul %18, %20, %cst_25 {dimension_numbers = #tpu.dot_dimension_numbers<[1], [0], [0], [1], [0, 0, 1, 1], [], []>} : vector<8x8xbf16>, vector<8x16xbf16>, vector<8x16xf32> -> vector<8x16xf32>
    %22 = arith.addf %16, %21 : vector<8x16xf32>
    %c0_26 = arith.constant 0 : index
    %c0_27 = arith.constant 0 : index
    %c2_28 = arith.constant 2 : index
    %c0_29 = arith.constant 0 : index
    %23 = vector.load %arg3[%c0_26, %c0_27, %c2_28, %c0_29] : memref<1x1x12x8xbf16, #tpu.memory_space<vmem>>, vector<1x1x8x8xbf16>
    %24 = vector.shape_cast %23 : vector<1x1x8x8xbf16> to vector<8x8xbf16>
    %c4_30 = arith.constant 4 : index
    %c0_31 = arith.constant 0 : index
    %c0_32 = arith.constant 0 : index
    %25 = vector.load %arg5[%c4_30, %c0_31, %c0_32] : memref<9x8x16xbf16, #tpu.memory_space<vmem>>, vector<1x8x16xbf16>
    %26 = vector.shape_cast %25 : vector<1x8x16xbf16> to vector<8x16xbf16>
    %cst_33 = arith.constant dense<0.000000e+00> : vector<8x16xf32>
    %27 = tpu.matmul %24, %26, %cst_33 {dimension_numbers = #tpu.dot_dimension_numbers<[1], [0], [0], [1], [0, 0, 1, 1], [], []>} : vector<8x8xbf16>, vector<8x16xbf16>, vector<8x16xf32> -> vector<8x16xf32>
    %28 = arith.addf %22, %27 : vector<8x16xf32>
    %c0_34 = arith.constant 0 : index
    %c0_35 = arith.constant 0 : index
    %c4_36 = arith.constant 4 : index
    %c0_37 = arith.constant 0 : index
    %29 = vector.load %arg3[%c0_34, %c0_35, %c4_36, %c0_37] : memref<1x1x12x8xbf16, #tpu.memory_space<vmem>>, vector<1x1x8x8xbf16>
    %30 = vector.shape_cast %29 : vector<1x1x8x8xbf16> to vector<8x8xbf16>
    %c5 = arith.constant 5 : index
    %c0_38 = arith.constant 0 : index
    %c0_39 = arith.constant 0 : index
    %31 = vector.load %arg5[%c5, %c0_38, %c0_39] : memref<9x8x16xbf16, #tpu.memory_space<vmem>>, vector<1x8x16xbf16>
    %32 = vector.shape_cast %31 : vector<1x8x16xbf16> to vector<8x16xbf16>
    %cst_40 = arith.constant dense<0.000000e+00> : vector<8x16xf32>
    %33 = tpu.matmul %30, %32, %cst_40 {dimension_numbers = #tpu.dot_dimension_numbers<[1], [0], [0], [1], [0, 0, 1, 1], [], []>} : vector<8x8xbf16>, vector<8x16xbf16>, vector<8x16xf32> -> vector<8x16xf32>
    %34 = arith.addf %28, %33 : vector<8x16xf32>
    %c0_41 = arith.constant 0 : index
    %c0_42 = arith.constant 0 : index
    %c0_43 = arith.constant 0 : index
    %c0_44 = arith.constant 0 : index
    %35 = vector.load %arg4[%c0_41, %c0_42, %c0_43, %c0_44] : memref<1x1x12x8xbf16, #tpu.memory_space<vmem>>, vector<1x1x8x8xbf16>
    %36 = vector.shape_cast %35 : vector<1x1x8x8xbf16> to vector<8x8xbf16>
    %c6 = arith.constant 6 : index
    %c0_45 = arith.constant 0 : index
    %c0_46 = arith.constant 0 : index
    %37 = vector.load %arg5[%c6, %c0_45, %c0_46] : memref<9x8x16xbf16, #tpu.memory_space<vmem>>, vector<1x8x16xbf16>
    %38 = vector.shape_cast %37 : vector<1x8x16xbf16> to vector<8x16xbf16>
    %cst_47 = arith.constant dense<0.000000e+00> : vector<8x16xf32>
    %39 = tpu.matmul %36, %38, %cst_47 {dimension_numbers = #tpu.dot_dimension_numbers<[1], [0], [0], [1], [0, 0, 1, 1], [], []>} : vector<8x8xbf16>, vector<8x16xbf16>, vector<8x16xf32> -> vector<8x16xf32>
    %40 = arith.addf %34, %39 : vector<8x16xf32>
    %c0_48 = arith.constant 0 : index
    %c0_49 = arith.constant 0 : index
    %c2_50 = arith.constant 2 : index
    %c0_51 = arith.constant 0 : index
    %41 = vector.load %arg4[%c0_48, %c0_49, %c2_50, %c0_51] : memref<1x1x12x8xbf16, #tpu.memory_space<vmem>>, vector<1x1x8x8xbf16>
    %42 = vector.shape_cast %41 : vector<1x1x8x8xbf16> to vector<8x8xbf16>
    %c7 = arith.constant 7 : index
    %c0_52 = arith.constant 0 : index
    %c0_53 = arith.constant 0 : index
    %43 = vector.load %arg5[%c7, %c0_52, %c0_53] : memref<9x8x16xbf16, #tpu.memory_space<vmem>>, vector<1x8x16xbf16>
    %44 = vector.shape_cast %43 : vector<1x8x16xbf16> to vector<8x16xbf16>
    %cst_54 = arith.constant dense<0.000000e+00> : vector<8x16xf32>
    %45 = tpu.matmul %42, %44, %cst_54 {dimension_numbers = #tpu.dot_dimension_numbers<[1], [0], [0], [1], [0, 0, 1, 1], [], []>} : vector<8x8xbf16>, vector<8x16xbf16>, vector<8x16xf32> -> vector<8x16xf32>
    %46 = arith.addf %40, %45 : vector<8x16xf32>
    %c0_55 = arith.constant 0 : index
    %c0_56 = arith.constant 0 : index
    %c4_57 = arith.constant 4 : index
    %c0_58 = arith.constant 0 : index
    %47 = vector.load %arg4[%c0_55, %c0_56, %c4_57, %c0_58] : memref<1x1x12x8xbf16, #tpu.memory_space<vmem>>, vector<1x1x8x8xbf16>
    %48 = vector.shape_cast %47 : vector<1x1x8x8xbf16> to vector<8x8xbf16>
    %c8 = arith.constant 8 : index
    %c0_59 = arith.constant 0 : index
    %c0_60 = arith.constant 0 : index
    %49 = vector.load %arg5[%c8, %c0_59, %c0_60] : memref<9x8x16xbf16, #tpu.memory_space<vmem>>, vector<1x8x16xbf16>
    %50 = vector.shape_cast %49 : vector<1x8x16xbf16> to vector<8x16xbf16>
    %cst_61 = arith.constant dense<0.000000e+00> : vector<8x16xf32>
    %51 = tpu.matmul %48, %50, %cst_61 {dimension_numbers = #tpu.dot_dimension_numbers<[1], [0], [0], [1], [0, 0, 1, 1], [], []>} : vector<8x8xbf16>, vector<8x16xbf16>, vector<8x16xf32> -> vector<8x16xf32>
    %52 = arith.addf %46, %51 : vector<8x16xf32>
    %c0_62 = arith.constant 0 : index
    %c0_63 = arith.constant 0 : index
    %c0_64 = arith.constant 0 : index
    %c0_65 = arith.constant 0 : index
    %53 = vector.load %arg6[%c0_62, %c0_63, %c0_64, %c0_65] : memref<1x1x8x8xbf16, #tpu.memory_space<vmem>>, vector<1x1x8x8xbf16>
    %54 = vector.shape_cast %53 : vector<1x1x8x8xbf16> to vector<8x8xbf16>
    %c0_66 = arith.constant 0 : index
    %c0_67 = arith.constant 0 : index
    %55 = vector.load %arg7[%c0_66, %c0_67] : memref<8x16xbf16, #tpu.memory_space<vmem>>, vector<8x16xbf16>
    %cst_68 = arith.constant dense<0.000000e+00> : vector<8x16xf32>
    %56 = tpu.matmul %54, %55, %cst_68 {dimension_numbers = #tpu.dot_dimension_numbers<[1], [0], [0], [1], [0, 0, 1, 1], [], []>} : vector<8x8xbf16>, vector<8x16xbf16>, vector<8x16xf32> -> vector<8x16xf32>
    %57 = arith.addf %52, %56 : vector<8x16xf32>
    %c0_69 = arith.constant 0 : index
    %c0_70 = arith.constant 0 : index
    %c0_71 = arith.constant 0 : index
    %c0_72 = arith.constant 0 : index
    %58 = vector.load %arg8[%c0_69, %c0_70, %c0_71, %c0_72] : memref<1x1x8x16xbf16, #tpu.memory_space<vmem>>, vector<1x1x8x16xbf16>
    %59 = vector.shape_cast %58 : vector<1x1x8x16xbf16> to vector<8x16xbf16>
    %c0_73 = arith.constant 0 : index
    %c0_74 = arith.constant 0 : index
    %60 = vector.load %arg9[%c0_73, %c0_74] : memref<16x16xbf16, #tpu.memory_space<vmem>>, vector<16x16xbf16>
    %cst_75 = arith.constant dense<0.000000e+00> : vector<8x16xf32>
    %61 = tpu.matmul %59, %60, %cst_75 {dimension_numbers = #tpu.dot_dimension_numbers<[1], [0], [0], [1], [0, 0, 1, 1], [], []>} : vector<8x16xbf16>, vector<16x16xbf16>, vector<8x16xf32> -> vector<8x16xf32>
    %62 = arith.addf %57, %61 : vector<8x16xf32>
    %c0_76 = arith.constant 0 : index
    %c0_77 = arith.constant 0 : index
    %c0_78 = arith.constant 0 : index
    %63 = vector.load %arg10[%c0_76, %c0_77, %c0_78] : memref<1x1x16xf32, #tpu.memory_space<vmem>>, vector<1x1x16xf32>
    %64 = vector.shape_cast %63 : vector<1x1x16xf32> to vector<1x16xf32>
    %65 = vector.broadcast %64 : vector<1x16xf32> to vector<8x16xf32>
    %66 = arith.addf %62, %65 : vector<8x16xf32>
    %cst_79 = arith.constant 0.000000e+00 : f32
    %67 = vector.broadcast %cst_79 : f32 to vector<8x16xf32>
    %68 = arith.maximumf %66, %67 : vector<8x16xf32>
    %69 = arith.truncf %68 : vector<8x16xf32> to vector<8x16xbf16>
    %c0_80 = arith.constant 0 : index
    %c0_81 = arith.constant 0 : index
    %c0_82 = arith.constant 0 : index
    %c0_83 = arith.constant 0 : index
    %70 = vector.load %arg11[%c0_80, %c0_81, %c0_82, %c0_83] : memref<1x1x8x16xbf16, #tpu.memory_space<vmem>>, vector<1x1x8x16xbf16>
    %71 = vector.shape_cast %70 : vector<1x1x8x16xbf16> to vector<8x16xbf16>
    %72 = vector.shape_cast %69 : vector<8x16xbf16> to vector<1x1x8x16xbf16>
    tpu.vector_store %arg11[%c0_80, %c0_81, %c0_82, %c0_83], %72 {strides = array<i32>} : memref<1x1x8x16xbf16, #tpu.memory_space<vmem>>, vector<1x1x8x16xbf16>,
    return
  }
  func.func @transform_0(%arg0: i32, %arg1: i32) -> (i32, i32, i32, i32) {
    %c0_i32 = arith.constant 0 : i32
    %0 = arith.addi %arg1, %c0_i32 : i32
    %c0_i32_0 = arith.constant 0 : i32
    %c0_i32_1 = arith.constant 0 : i32
    %c0_i32_2 = arith.constant 0 : i32
    return %arg0, %0, %c0_i32_0, %c0_i32_1 : i32, i32, i32, i32
  }
  func.func @transform_1(%arg0: i32, %arg1: i32) -> (i32, i32, i32, i32) {
    %c1_i32 = arith.constant 1 : i32
    %0 = arith.addi %arg1, %c1_i32 : i32
    %c0_i32 = arith.constant 0 : i32
    %c0_i32_0 = arith.constant 0 : i32
    %c0_i32_1 = arith.constant 0 : i32
    return %arg0, %0, %c0_i32, %c0_i32_0 : i32, i32, i32, i32
  }
  func.func @transform_2(%arg0: i32, %arg1: i32) -> (i32, i32, i32, i32) {
    %c2_i32 = arith.constant 2 : i32
    %0 = arith.addi %arg1, %c2_i32 : i32
    %c0_i32 = arith.constant 0 : i32
    %c0_i32_0 = arith.constant 0 : i32
    %c0_i32_1 = arith.constant 0 : i32
    return %arg0, %0, %c0_i32, %c0_i32_0 : i32, i32, i32, i32
  }
  func.func @transform_3(%arg0: i32, %arg1: i32) -> (i32, i32, i32) {
    %c0_i32 = arith.constant 0 : i32
    %c0_i32_0 = arith.constant 0 : i32
    %c0_i32_1 = arith.constant 0 : i32
    %c0_i32_2 = arith.constant 0 : i32
    return %c0_i32, %c0_i32_0, %c0_i32_1 : i32, i32, i32
  }
  func.func @transform_4(%arg0: i32, %arg1: i32) -> (i32, i32, i32, i32) {
    %c0_i32 = arith.constant 0 : i32
    %c0_i32_0 = arith.constant 0 : i32
    %c0_i32_1 = arith.constant 0 : i32
    return %arg0, %arg1, %c0_i32, %c0_i32_0 : i32, i32, i32, i32
  }
  func.func @transform_5(%arg0: i32, %arg1: i32) -> (i32, i32) {
    %c0_i32 = arith.constant 0 : i32
    %c0_i32_0 = arith.constant 0 : i32
    %c0_i32_1 = arith.constant 0 : i32
    return %c0_i32, %c0_i32_0 : i32, i32
  }
  func.func @transform_6(%arg0: i32, %arg1: i32) -> (i32, i32, i32, i32) {
    %c0_i32 = arith.constant 0 : i32
    %c0_i32_0 = arith.constant 0 : i32
    %c0_i32_1 = arith.constant 0 : i32
    return %arg0, %arg1, %c0_i32, %c0_i32_0 : i32, i32, i32, i32
  }
  func.func @transform_7(%arg0: i32, %arg1: i32) -> (i32, i32) {
    %c0_i32 = arith.constant 0 : i32
    %c0_i32_0 = arith.constant 0 : i32
    %c0_i32_1 = arith.constant 0 : i32
    return %c0_i32, %c0_i32_0 : i32, i32
  }
  func.func @transform_8(%arg0: i32, %arg1: i32) -> (i32, i32, i32) {
    %c0_i32 = arith.constant 0 : i32
    %c0_i32_0 = arith.constant 0 : i32
    %c0_i32_1 = arith.constant 0 : i32
    return %arg0, %c0_i32, %c0_i32_0 : i32, i32, i32
  }
  func.func @transform_9(%arg0: i32, %arg1: i32) -> (i32, i32, i32, i32) {
    %c0_i32 = arith.constant 0 : i32
    %c0_i32_0 = arith.constant 0 : i32
    %c0_i32_1 = arith.constant 0 : i32
    return %arg0, %arg1, %c0_i32, %c0_i32_0 : i32, i32, i32, i32
  }
}

</mosaic_0001>

<llo_original>
// kernel: tpu_custom_call.1
$region0: #{tpu_custom_call.1}
  #allocation0 [shape = 'u32[]', space=smem, size = 0x4, offset = 0x4, fixed_abs, tag = 'smem constant byte address 0x4 - core index']
  #allocation1 [shape = 'u32[144,128]{1,0:T(1,128)}', space=vmem, size = 0x12000, scoped, tag = 'internal scratch']
  %s0 = inlined_call_operand.hbm [shape: f32[8,128], index: 0, kind: input, shape index: {}]
  %s1 = inlined_call_operand.hbm [shape: f32[8,128], index: 1, kind: output, shape index: {}]
  %s2 = sld [smem:[#allocation0]]
  $region41: #{tpu_custom_call.1} parent=0
    _
  %s4 = ssub.s32 1, %s2
  %s5 = scalar_select 0, %s4, %s2
  $region1: #{tpu_custom_call.1} parent=0
    #allocation2 [shape = 'u8[4096]{0}', space=vmem, size = 0x1000, scoped, tag = 'input window, operand 0, single buffered']
    #allocation3 [shape = 's32[2]{0}', space=sflag, size = 0x8, scoped, tag = 'scoped memory for tpu_custom_call.1']
    #allocation4 [shape = 's32[2]{0}', space=sflag, size = 0x8, scoped, tag = 'scoped memory for tpu_custom_call.1']
    #allocation5 [shape = 'u8[4096]{0}', space=vmem, size = 0x1000, scoped, tag = 'output window, operand 0, single buffered']
    %6 = vsyncpa [#allocation3], 0
    %7 = vsyncpa [#allocation4], 0
    loop: start=0, step=1, limit=4
    $region2: #{tpu_custom_call.1} parent=1 // loop_pre_header
      _
    $region3: #{tpu_custom_call.1} parent=1 // loop_header
      %s9 = sphi 0, %s13
      %p10 = scmp.ge.s32.totalorder %s9, 4
      %s17 = sphi 0, %s17
      %s19 = sphi 0, %s17
      %s20 = sphi 0, %s19
      %s34 = sphi 0, %s20
      %s38 = sphi 0, %s38
      %s40 = sphi 0, %s38
      %s41 = sphi 0, %s40
      %s55 = sphi 0, %s41
    $region4: #{tpu_custom_call.1} parent=1 // loop_header_branch
      %12 = sbr.rel (%p10) target = $region8
    $region5: #{tpu_custom_call.1} parent=1 // loop_body
      %s14 = ssub.s32 %s9, 1
      %s15 = ssub.s32 %s9, 2
      %s16 = sadd.s32 %s9, 1
      %s18 = sadd.s32 %s17, 1
      %p21 = scmp.eq.s32.totalorder %s9, 1
      %p22 = scmp.ne.s32.totalorder %s17, %s19
      %p23 = scmp.eq.s32.totalorder %s9, 0
      %p24 = por %p22, %p23
      %p25 = scmp.ne.s32.totalorder %s17, %s19
      %p26 = scmp.eq.s32.totalorder %s14, 1
      %p27 = por %p25, %p26
      %p28 = scmp.ne.s32.totalorder %s19, %s20
      %p29 = scmp.eq.s32.totalorder %s14, 0
      %p30 = por %p28, %p29
      %p31 = scmp.ne.s32.totalorder %s19, %s20
      %p32 = scmp.eq.s32.totalorder %s15, 1
      %p33 = por %p31, %p32
      %p35 = scmp.ne.s32.totalorder %s20, %s34
      %p36 = scmp.eq.s32.totalorder %s15, 0
      %p37 = por %p35, %p36
      %s39 = sadd.s32 %s38, 1
      %p42 = scmp.eq.s32.totalorder %s9, 1
      %p43 = scmp.ne.s32.totalorder %s38, %s40
      %p44 = scmp.eq.s32.totalorder %s9, 0
      %p45 = por %p43, %p44
      %p46 = scmp.ne.s32.totalorder %s38, %s40
      %p47 = scmp.eq.s32.totalorder %s14, 1
      %p48 = por %p46, %p47
      %p49 = scmp.ne.s32.totalorder %s40, %s41
      %p50 = scmp.eq.s32.totalorder %s14, 0
      %p51 = por %p49, %p50
      %p52 = scmp.ne.s32.totalorder %s40, %s41
      %p53 = scmp.eq.s32.totalorder %s15, 1
      %p54 = por %p52, %p53
      %p56 = scmp.ne.s32.totalorder %s41, %s55
      %p57 = scmp.eq.s32.totalorder %s15, 0
      %p58 = por %p56, %p57
      %p59 = scmp.le.s32.totalorder 1, %s9
      %p60 = scmp.lt.s32.totalorder %s9, 3
      %p61 = pnand %p59, %p60
      %p62 = pneg %p61
      // Predicated region
      $region9: #{tpu_custom_call.1} parent=5 // pred_check
        _
      $region10: #{tpu_custom_call.1} parent=5 // pred_check_branch
        %64 = sbr.rel (%p61) target = $region12
      $region11: #{tpu_custom_call.1} parent=5 // pred_region
        %s65 = ssub.s32 %s9, 1
        // Predicated region
        $region13: #{tpu_custom_call.1} parent=11 // pred_check
          %p66 = pneg %p30
        $region14: #{tpu_custom_call.1} parent=11 // pred_check_branch
          %68 = sbr.rel (%p66) target = $region16
        $region15: #{tpu_custom_call.1} parent=11 // pred_region
          %s70 = ssub.s32 128, 128
          %71 = vsyncadd [#allocation3], %s70
          %s73 = sshll.u32 [#allocation2], 4
          %s74 = int_to_ptr.vmem [resolvable:$true] %s73
          %76 = dma.hbm_to_vmem [thread:$0]  %s0, 128, %s74, [#allocation3]
        $region16: #{tpu_custom_call.1} parent=11 // pred_fallthru
          _
      $region12: #{tpu_custom_call.1} parent=5 // pred_fallthru
        _
      %p77 = scmp.lt.s32.totalorder %s9, 2
      // Predicated region
      $region17: #{tpu_custom_call.1} parent=5 // pred_check
        %p78 = pneg %p77
      $region18: #{tpu_custom_call.1} parent=5 // pred_check_branch
        %80 = sbr.rel (%p78) target = $region20
      $region19: #{tpu_custom_call.1} parent=5 // pred_region
        _
      $region20: #{tpu_custom_call.1} parent=5 // pred_fallthru
        _
      %p81 = scmp.le.s32.totalorder 1, %s9
      %p82 = scmp.lt.s32.totalorder %s9, 3
      %p83 = pnand %p81, %p82
      %p84 = pneg %p83
      // Predicated region
      $region21: #{tpu_custom_call.1} parent=5 // pred_check
        _
      $region22: #{tpu_custom_call.1} parent=5 // pred_check_branch
        %86 = sbr.rel (%p83) target = $region24
      $region23: #{tpu_custom_call.1} parent=5 // pred_region
        %s87 = ssub.s32 %s9, 1
        // Predicated region
        $region25: #{tpu_custom_call.1} parent=23 // pred_check
          %p88 = pneg %p30
        $region26: #{tpu_custom_call.1} parent=23 // pred_check_branch
          %90 = sbr.rel (%p88) target = $region28
        $region27: #{tpu_custom_call.1} parent=23 // pred_region
          %91 = dma.done [#allocation3], 128
        $region28: #{tpu_custom_call.1} parent=23 // pred_fallthru
          _
        %p92 = pneg %p30
        %p93 = pneg %p27
        %p94 = pneg %p51
        %p95 = pneg %p48
        %v96 = vld [vmem:[#allocation2] sm:$0xff]
        %97 = vst [vmem:[#allocation5] sm:$0xff] %v96
        // Predicated region
        $region29: #{tpu_custom_call.1} parent=23 // pred_check
          %p98 = pneg %p48
        $region30: #{tpu_custom_call.1} parent=23 // pred_check_branch
          %100 = sbr.rel (%p98) target = $region32
        $region31: #{tpu_custom_call.1} parent=23 // pred_region
          %s102 = ssub.s32 128, 128
          %103 = vsyncadd [#allocation4], %s102
          %s105 = sshll.u32 [#allocation5], 4
          %s106 = int_to_ptr.vmem [resolvable:$true] %s105
          %108 = dma.vmem_to_hbm [thread:$0]  %s106, 128, %s1, [#allocation4]
        $region32: #{tpu_custom_call.1} parent=23 // pred_fallthru
          _
        // Predicated region
        $region33: #{tpu_custom_call.1} parent=23 // pred_check
          %p109 = pneg %p48
        $region34: #{tpu_custom_call.1} parent=23 // pred_check_branch
          %111 = sbr.rel (%p109) target = $region36
        $region35: #{tpu_custom_call.1} parent=23 // pred_region
          %112 = dma.done [#allocation4], 128
        $region36: #{tpu_custom_call.1} parent=23 // pred_fallthru
          _
      $region24: #{tpu_custom_call.1} parent=5 // pred_fallthru
        _
      %p113 = scmp.le.s32.totalorder 2, %s9
      // Predicated region
      $region37: #{tpu_custom_call.1} parent=5 // pred_check
        %p114 = pneg %p113
      $region38: #{tpu_custom_call.1} parent=5 // pred_check_branch
        %116 = sbr.rel (%p114) target = $region40
      $region39: #{tpu_custom_call.1} parent=5 // pred_region
        %s117 = ssub.s32 %s9, 2
      $region40: #{tpu_custom_call.1} parent=5 // pred_fallthru
        _
    $region6: #{tpu_custom_call.1} parent=1 // loop_footer
      %s13 = sadd.s32 1, %s9
    $region7: #{tpu_custom_call.1} parent=1 // loop_footer_branch
      %8 = sbr.rel target = $region3
    $region8: #{tpu_custom_call.1} parent=1 // loop_exit
      _
    %118 = vsyncpa [#allocation3], 1
    %s119 = scalar_lea.sflag [#allocation3], 1
    %120 = vsyncpa %s119, 1
    %121 = vsyncpa [#allocation4], 1
    %s122 = scalar_lea.sflag [#allocation4], 1
    %123 = vsyncpa %s122, 1

// kernel: enc_forward.8
$region0: #{enc_forward.8}
  #allocation0 [shape = 'u32[]', space=smem, size = 0x4, offset = 0x4, fixed_abs, tag = 'smem constant byte address 0x4 - core index']
  #allocation1 [shape = 'u32[144,128]{1,0:T(1,128)}', space=vmem, size = 0x12000, scoped, tag = 'internal scratch']
  %s0 = inlined_call_operand.vmem [shape: bf16[2,18,36,2], index: 0, kind: input, shape index: {}, may-alias: {0,2}]
  %s1 = inlined_call_operand.vmem [shape: bf16[2,18,36,2], index: 1, kind: input, shape index: {}, may-alias: {1,3}]
  %s2 = inlined_call_operand.vmem [shape: bf16[2,18,36,2], index: 2, kind: input, shape index: {}, may-alias: {0,2}]
  %s3 = inlined_call_operand.vmem [shape: bf16[2,18,36,2], index: 3, kind: input, shape index: {}, may-alias: {1,3}]
  %s4 = inlined_call_operand.vmem [shape: bf16[16,2,2], index: 4, kind: input, shape index: {}]
  %s5 = inlined_call_operand.vmem [shape: f32[1,1,2], index: 5, kind: input, shape index: {}]
  %s6 = inlined_call_operand.vmem [shape: bf16[2,8,32,2], index: 6, kind: output, shape index: {}]
  %s7 = sld [smem:[#allocation0]]
  $region57: #{enc_forward.8} parent=0
    _
  %s9 = ssub.s32 1, %s7
  %s10 = scalar_select 0, %s9, %s7
  loop: start=0, step=1, limit=18
  $region2: #{enc_forward.8} parent=0 // loop_pre_header
    _
  $region3: #{enc_forward.8} parent=0 // loop_header
    %s12 = sphi 0, %s16
    %p13 = scmp.ge.s32.totalorder %s12, 18
    %s19 = sphi 0, %s31
    %s20 = sphi 0, %s27
    %s21 = sphi 0, %s19
    %s22 = sphi 0, %s20
    %s23 = sphi 0, %s21
    %s24 = sphi 0, %s22
    %s36 = sphi 0, %s38
    %s39 = sphi 0, %s36
    %s40 = sphi 0, %s39
    %s56 = sphi 0, %s40
    %s64 = sphi 0, %s66
    %s67 = sphi 0, %s64
    %s68 = sphi 0, %s67
    %s84 = sphi 0, %s68
    %s94 = sphi 0, %s96
    %s97 = sphi 0, %s94
    %s98 = sphi 0, %s97
    %s114 = sphi 0, %s98
    %s124 = sphi 0, %s126
    %s127 = sphi 0, %s124
    %s128 = sphi 0, %s127
    %s144 = sphi 0, %s128
    %s148 = sphi 0, %s148
    %s150 = sphi 0, %s148
    %s151 = sphi 0, %s150
    %s165 = sphi 0, %s151
    %s169 = sphi 0, %s169
    %s171 = sphi 0, %s169
    %s172 = sphi 0, %s171
    %s186 = sphi 0, %s172
    %s194 = sphi 0, %s196
    %s197 = sphi 0, %s194
    %s198 = sphi 0, %s197
    %s214 = sphi 0, %s198
  $region4: #{enc_forward.8} parent=0 // loop_header_branch
    %15 = sbr.rel (%p13) target = $region8
  $region5: #{enc_forward.8} parent=0 // loop_body
    %s17 = ssub.s32 %s12, 1
    %s18 = ssub.s32 %s12, 2
    %s25 = sadd.s32 1, %s20
    %p26 = scmp.ge.s32.totalorder %s25, 8
    %s27 = scalar_select %p26, 0, %s25
    %s28 = sadd.s32 1, %s19
    %s29 = scalar_select %p26, %s28, %s19
    %p30 = scmp.ge.s32.totalorder %s29, 2
    %s31 = scalar_select %p30, 0, %s29
    %s32 = ssub.s32 %s19, %s31
    %s33 = ssub.s32 %s20, %s27
    %s34 = sor.u32 %s32, %s33
    %p35 = scmp.eq.s32.totalorder %s34, 0
    %s37 = sadd.s32 %s36, 1
    %s38 = scalar_select %p35, %s36, %s37
    %p41 = pneg %p35
    %p42 = scmp.eq.s32.totalorder %s12, 15
    %p43 = por %p41, %p42
    %p44 = scmp.ne.s32.totalorder %s36, %s39
    %p45 = scmp.eq.s32.totalorder %s12, 0
    %p46 = por %p44, %p45
    %p47 = scmp.ne.s32.totalorder %s36, %s39
    %p48 = scmp.eq.s32.totalorder %s17, 15
    %p49 = por %p47, %p48
    %p50 = scmp.ne.s32.totalorder %s39, %s40
    %p51 = scmp.eq.s32.totalorder %s17, 0
    %p52 = por %p50, %p51
    %p53 = scmp.ne.s32.totalorder %s39, %s40
    %p54 = scmp.eq.s32.totalorder %s18, 15
    %p55 = por %p53, %p54
    %p57 = scmp.ne.s32.totalorder %s40, %s56
    %p58 = scmp.eq.s32.totalorder %s18, 0
    %p59 = por %p57, %p58
    %s60 = ssub.s32 %s19, %s31
    %s61 = ssub.s32 %s20, %s27
    %s62 = sor.u32 %s60, %s61
    %p63 = scmp.eq.s32.totalorder %s62, 0
    %s65 = sadd.s32 %s64, 1
    %s66 = scalar_select %p63, %s64, %s65
    %p69 = pneg %p63
    %p70 = scmp.eq.s32.totalorder %s12, 15
    %p71 = por %p69, %p70
    %p72 = scmp.ne.s32.totalorder %s64, %s67
    %p73 = scmp.eq.s32.totalorder %s12, 0
    %p74 = por %p72, %p73
    %p75 = scmp.ne.s32.totalorder %s64, %s67
    %p76 = scmp.eq.s32.totalorder %s17, 15
    %p77 = por %p75, %p76
    %p78 = scmp.ne.s32.totalorder %s67, %s68
    %p79 = scmp.eq.s32.totalorder %s17, 0
    %p80 = por %p78, %p79
    %p81 = scmp.ne.s32.totalorder %s67, %s68
    %p82 = scmp.eq.s32.totalorder %s18, 15
    %p83 = por %p81, %p82
    %p85 = scmp.ne.s32.totalorder %s68, %s84
    %p86 = scmp.eq.s32.totalorder %s18, 0
    %p87 = por %p85, %p86
    %s88 = sadd.s32 %s20, 1
    %s89 = sadd.s32 %s27, 1
    %s90 = ssub.s32 %s19, %s31
    %s91 = ssub.s32 %s88, %s89
    %s92 = sor.u32 %s90, %s91
    %p93 = scmp.eq.s32.totalorder %s92, 0
    %s95 = sadd.s32 %s94, 1
    %s96 = scalar_select %p93, %s94, %s95
    %p99 = pneg %p93
    %p100 = scmp.eq.s32.totalorder %s12, 15
    %p101 = por %p99, %p100
    %p102 = scmp.ne.s32.totalorder %s94, %s97
    %p103 = scmp.eq.s32.totalorder %s12, 0
    %p104 = por %p102, %p103
    %p105 = scmp.ne.s32.totalorder %s94, %s97
    %p106 = scmp.eq.s32.totalorder %s17, 15
    %p107 = por %p105, %p106
    %p108 = scmp.ne.s32.totalorder %s97, %s98
    %p109 = scmp.eq.s32.totalorder %s17, 0
    %p110 = por %p108, %p109
    %p111 = scmp.ne.s32.totalorder %s97, %s98
    %p112 = scmp.eq.s32.totalorder %s18, 15
    %p113 = por %p111, %p112
    %p115 = scmp.ne.s32.totalorder %s98, %s114
    %p116 = scmp.eq.s32.totalorder %s18, 0
    %p117 = por %p115, %p116
    %s118 = sadd.s32 %s20, 1
    %s119 = sadd.s32 %s27, 1
    %s120 = ssub.s32 %s19, %s31
    %s121 = ssub.s32 %s118, %s119
    %s122 = sor.u32 %s120, %s121
    %p123 = scmp.eq.s32.totalorder %s122, 0
    %s125 = sadd.s32 %s124, 1
    %s126 = scalar_select %p123, %s124, %s125
    %p129 = pneg %p123
    %p130 = scmp.eq.s32.totalorder %s12, 15
    %p131 = por %p129, %p130
    %p132 = scmp.ne.s32.totalorder %s124, %s127
    %p133 = scmp.eq.s32.totalorder %s12, 0
    %p134 = por %p132, %p133
    %p135 = scmp.ne.s32.totalorder %s124, %s127
    %p136 = scmp.eq.s32.totalorder %s17, 15
    %p137 = por %p135, %p136
    %p138 = scmp.ne.s32.totalorder %s127, %s128
    %p139 = scmp.eq.s32.totalorder %s17, 0
    %p140 = por %p138, %p139
    %p141 = scmp.ne.s32.totalorder %s127, %s128
    %p142 = scmp.eq.s32.totalorder %s18, 15
    %p143 = por %p141, %p142
    %p145 = scmp.ne.s32.totalorder %s128, %s144
    %p146 = scmp.eq.s32.totalorder %s18, 0
    %p147 = por %p145, %p146
    %s149 = sadd.s32 %s148, 1
    %p152 = scmp.eq.s32.totalorder %s12, 15
    %p153 = scmp.ne.s32.totalorder %s148, %s150
    %p154 = scmp.eq.s32.totalorder %s12, 0
    %p155 = por %p153, %p154
    %p156 = scmp.ne.s32.totalorder %s148, %s150
    %p157 = scmp.eq.s32.totalorder %s17, 15
    %p158 = por %p156, %p157
    %p159 = scmp.ne.s32.totalorder %s150, %s151
    %p160 = scmp.eq.s32.totalorder %s17, 0
    %p161 = por %p159, %p160
    %p162 = scmp.ne.s32.totalorder %s150, %s151
    %p163 = scmp.eq.s32.totalorder %s18, 15
    %p164 = por %p162, %p163
    %p166 = scmp.ne.s32.totalorder %s151, %s165
    %p167 = scmp.eq.s32.totalorder %s18, 0
    %p168 = por %p166, %p167
    %s170 = sadd.s32 %s169, 1
    %p173 = scmp.eq.s32.totalorder %s12, 15
    %p174 = scmp.ne.s32.totalorder %s169, %s171
    %p175 = scmp.eq.s32.totalorder %s12, 0
    %p176 = por %p174, %p175
    %p177 = scmp.ne.s32.totalorder %s169, %s171
    %p178 = scmp.eq.s32.totalorder %s17, 15
    %p179 = por %p177, %p178
    %p180 = scmp.ne.s32.totalorder %s171, %s172
    %p181 = scmp.eq.s32.totalorder %s17, 0
    %p182 = por %p180, %p181
    %p183 = scmp.ne.s32.totalorder %s171, %s172
    %p184 = scmp.eq.s32.totalorder %s18, 15
    %p185 = por %p183, %p184
    %p187 = scmp.ne.s32.totalorder %s172, %s186
    %p188 = scmp.eq.s32.totalorder %s18, 0
    %p189 = por %p187, %p188
    %s190 = ssub.s32 %s19, %s31
    %s191 = ssub.s32 %s20, %s27
    %s192 = sor.u32 %s190, %s191
    %p193 = scmp.eq.s32.totalorder %s192, 0
    %s195 = sadd.s32 %s194, 1
    %s196 = scalar_select %p193, %s194, %s195
    %p199 = pneg %p193
    %p200 = scmp.eq.s32.totalorder %s12, 15
    %p201 = por %p199, %p200
    %p202 = scmp.ne.s32.totalorder %s194, %s197
    %p203 = scmp.eq.s32.totalorder %s12, 0
    %p204 = por %p202, %p203
    %p205 = scmp.ne.s32.totalorder %s194, %s197
    %p206 = scmp.eq.s32.totalorder %s17, 15
    %p207 = por %p205, %p206
    %p208 = scmp.ne.s32.totalorder %s197, %s198
    %p209 = scmp.eq.s32.totalorder %s17, 0
    %p210 = por %p208, %p209
    %p211 = scmp.ne.s32.totalorder %s197, %s198
    %p212 = scmp.eq.s32.totalorder %s18, 15
    %p213 = por %p211, %p212
    %p215 = scmp.ne.s32.totalorder %s198, %s214
    %p216 = scmp.eq.s32.totalorder %s18, 0
    %p217 = por %p215, %p216
    %p218 = scmp.le.s32.totalorder 1, %s12
    %p219 = scmp.lt.s32.totalorder %s12, 17
    %p220 = pnand %p218, %p219
    %p221 = pneg %p220
    // Predicated region
    $region9: #{enc_forward.8} parent=5 // pred_check
      _
    $region10: #{enc_forward.8} parent=5 // pred_check_branch
      %223 = sbr.rel (%p220) target = $region12
    $region11: #{enc_forward.8} parent=5 // pred_region
      %s224 = ssub.s32 %s12, 1
      // Predicated region
      $region13: #{enc_forward.8} parent=11 // pred_check
        %p225 = pneg %p161
      $region14: #{enc_forward.8} parent=11 // pred_check_branch
        %227 = sbr.rel (%p225) target = $region16
      $region15: #{enc_forward.8} parent=11 // pred_region
        _
      $region16: #{enc_forward.8} parent=11 // pred_fallthru
        _
      // Predicated region
      $region17: #{enc_forward.8} parent=11 // pred_check
        %p228 = pneg %p182
      $region18: #{enc_forward.8} parent=11 // pred_check_branch
        %230 = sbr.rel (%p228) target = $region20
      $region19: #{enc_forward.8} parent=11 // pred_region
        _
      $region20: #{enc_forward.8} parent=11 // pred_fallthru
        _
    $region12: #{enc_forward.8} parent=5 // pred_fallthru
      _
    %p231 = scmp.lt.s32.totalorder %s12, 16
    // Predicated region
    $region21: #{enc_forward.8} parent=5 // pred_check
      %p232 = pneg %p231
    $region22: #{enc_forward.8} parent=5 // pred_check_branch
      %234 = sbr.rel (%p232) target = $region24
    $region23: #{enc_forward.8} parent=5 // pred_region
      // Predicated region
      $region25: #{enc_forward.8} parent=23 // pred_check
        %p235 = pneg %p46
      $region26: #{enc_forward.8} parent=23 // pred_check_branch
        %237 = sbr.rel (%p235) target = $region28
      $region27: #{enc_forward.8} parent=23 // pred_region
        %s238 = smul.u32 2, %s20
        %p239 = scmp.lt.s32.totalorder %s19, 1
        %s240 = scalar_select %p239, %s19, 1
        %p241 = scmp.lt.s32.totalorder %s238, 17
        %s242 = scalar_select %p241, %s238, 17
        %s243 = smul.addr %s242, 5
        %s244 = smul.addr %s240, 90
        %s245 = sadd.s32 %s243, %s244
        %s246 = smul.addr %s245, 4
        %s247 = scalar_lea.vmem %s0, %s246
        %s248 = smul.u32 2, %s20
      $region28: #{enc_forward.8} parent=23 // pred_fallthru
        _
      // Predicated region
      $region29: #{enc_forward.8} parent=23 // pred_check
        %p249 = pneg %p74
      $region30: #{enc_forward.8} parent=23 // pred_check_branch
        %251 = sbr.rel (%p249) target = $region32
      $region31: #{enc_forward.8} parent=23 // pred_region
        %s252 = smul.u32 2, %s20
        %p253 = scmp.lt.s32.totalorder %s19, 1
        %s254 = scalar_select %p253, %s19, 1
        %p255 = scmp.lt.s32.totalorder %s252, 17
        %s256 = scalar_select %p255, %s252, 17
        %s257 = smul.addr %s256, 5
        %s258 = smul.addr %s254, 90
        %s259 = sadd.s32 %s257, %s258
        %s260 = smul.addr %s259, 4
        %s261 = scalar_lea.vmem %s1, %s260
        %s262 = smul.u32 2, %s20
      $region32: #{enc_forward.8} parent=23 // pred_fallthru
        _
      // Predicated region
      $region33: #{enc_forward.8} parent=23 // pred_check
        %p263 = pneg %p104
      $region34: #{enc_forward.8} parent=23 // pred_check_branch
        %265 = sbr.rel (%p263) target = $region36
      $region35: #{enc_forward.8} parent=23 // pred_region
        %s266 = sadd.s32 %s20, 1
        %s267 = smul.u32 2, %s266
        %p268 = scmp.lt.s32.totalorder %s19, 1
        %s269 = scalar_select %p268, %s19, 1
        %p270 = scmp.lt.s32.totalorder %s267, 17
        %s271 = scalar_select %p270, %s267, 17
        %s272 = smul.addr %s271, 5
        %s273 = smul.addr %s269, 90
        %s274 = sadd.s32 %s272, %s273
        %s275 = smul.addr %s274, 4
        %s276 = scalar_lea.vmem %s2, %s275
        %s277 = sadd.s32 %s20, 1
        %s278 = smul.u32 2, %s277
      $region36: #{enc_forward.8} parent=23 // pred_fallthru
        _
      // Predicated region
      $region37: #{enc_forward.8} parent=23 // pred_check
        %p279 = pneg %p134
      $region38: #{enc_forward.8} parent=23 // pred_check_branch
        %281 = sbr.rel (%p279) target = $region40
      $region39: #{enc_forward.8} parent=23 // pred_region
        %s282 = sadd.s32 %s20, 1
        %s283 = smul.u32 2, %s282
        %p284 = scmp.lt.s32.totalorder %s19, 1
        %s285 = scalar_select %p284, %s19, 1
        %p286 = scmp.lt.s32.totalorder %s283, 17
        %s287 = scalar_select %p286, %s283, 17
        %s288 = smul.addr %s287, 5
        %s289 = smul.addr %s285, 90
        %s290 = sadd.s32 %s288, %s289
        %s291 = smul.addr %s290, 4
        %s292 = scalar_lea.vmem %s3, %s291
        %s293 = sadd.s32 %s20, 1
        %s294 = smul.u32 2, %s293
      $region40: #{enc_forward.8} parent=23 // pred_fallthru
        _
    $region24: #{enc_forward.8} parent=5 // pred_fallthru
      _
    %p295 = scmp.le.s32.totalorder 1, %s12
    %p296 = scmp.lt.s32.totalorder %s12, 17
    %p297 = pnand %p295, %p296
    %p298 = pneg %p297
    // Predicated region
    $region41: #{enc_forward.8} parent=5 // pred_check
      _
    $region42: #{enc_forward.8} parent=5 // pred_check_branch
      %300 = sbr.rel (%p297) target = $region44
    $region43: #{enc_forward.8} parent=5 // pred_region
      %s301 = ssub.s32 %s12, 1
      %s302 = smul.u32 2, %s22
      %p303 = scmp.lt.s32.totalorder %s21, 1
      %s304 = scalar_select %p303, %s21, 1
      %p305 = scmp.lt.s32.totalorder %s302, 17
      %s306 = scalar_select %p305, %s302, 17
      %s307 = smul.addr %s306, 5
      %s308 = smul.addr %s304, 90
      %s309 = sadd.s32 %s307, %s308
      %s310 = smul.addr %s309, 4
      %s311 = scalar_lea.vmem %s0, %s310
      %p312 = pneg %p52
      %p313 = pneg %p49
      %s314 = smul.u32 2, %s22
      %p315 = scmp.lt.s32.totalorder %s21, 1
      %s316 = scalar_select %p315, %s21, 1
      %p317 = scmp.lt.s32.totalorder %s314, 17
      %s318 = scalar_select %p317, %s314, 17
      %s319 = smul.addr %s318, 5
      %s320 = smul.addr %s316, 90
      %s321 = sadd.s32 %s319, %s320
      %s322 = smul.addr %s321, 4
      %s323 = scalar_lea.vmem %s1, %s322
      %p324 = pneg %p80
      %p325 = pneg %p77
      %s326 = sadd.s32 %s22, 1
      %s327 = smul.u32 2, %s326
      %p328 = scmp.lt.s32.totalorder %s21, 1
      %s329 = scalar_select %p328, %s21, 1
      %p330 = scmp.lt.s32.totalorder %s327, 17
      %s331 = scalar_select %p330, %s327, 17
      %s332 = smul.addr %s331, 5
      %s333 = smul.addr %s329, 90
      %s334 = sadd.s32 %s332, %s333
      %s335 = smul.addr %s334, 4
      %s336 = scalar_lea.vmem %s2, %s335
      %p337 = pneg %p110
      %p338 = pneg %p107
      %s339 = sadd.s32 %s22, 1
      %s340 = smul.u32 2, %s339
      %p341 = scmp.lt.s32.totalorder %s21, 1
      %s342 = scalar_select %p341, %s21, 1
      %p343 = scmp.lt.s32.totalorder %s340, 17
      %s344 = scalar_select %p343, %s340, 17
      %s345 = smul.addr %s344, 5
      %s346 = smul.addr %s342, 90
      %s347 = sadd.s32 %s345, %s346
      %s348 = smul.addr %s347, 4
      %s349 = scalar_lea.vmem %s3, %s348
      %p350 = pneg %p140
      %p351 = pneg %p137
      %p352 = pneg %p161
      %p353 = pneg %p158
      %p354 = pneg %p182
      %p355 = pneg %p179
      %p356 = pneg %p210
      %p357 = pneg %p207
      %p358 = scmp.lt.s32.totalorder %s21, 1
      %s359 = scalar_select %p358, %s21, 1
      %p360 = scmp.lt.s32.totalorder %s22, 7
      %s361 = scalar_select %p360, %s22, 7
      %s362 = smul.addr %s361, 4
      %s363 = smul.addr %s359, 32
      %s364 = sadd.s32 %s362, %s363
      %s365 = smul.addr %s364, 4
      %s366 = scalar_lea.vmem %s6, %s365
      %s367 = smul.u32 2, %s22
      %p368 = scmp.lt.s32.totalorder %s21, 1
      %s369 = scalar_select %p368, %s21, 1
      %p370 = scmp.lt.s32.totalorder %s367, 17
      %s371 = scalar_select %p370, %s367, 17
      %s372 = smul.addr %s371, 5
      %s373 = smul.addr %s369, 90
      %s374 = sadd.s32 %s372, %s373
      %s375 = smul.addr %s374, 4
      %s376 = scalar_lea.vmem %s0, %s375
      %s377 = smul.u32 2, %s22
      %s378 = smul.u32 2, %s22
      %p379 = scmp.lt.s32.totalorder %s21, 1
      %s380 = scalar_select %p379, %s21, 1
      %p381 = scmp.lt.s32.totalorder %s378, 17
      %s382 = scalar_select %p381, %s378, 17
      %s383 = smul.addr %s382, 5
      %s384 = smul.addr %s380, 90
      %s385 = sadd.s32 %s383, %s384
      %s386 = smul.addr %s385, 4
      %s387 = scalar_lea.vmem %s1, %s386
      %s388 = smul.u32 2, %s22
      %s389 = sadd.s32 %s22, 1
      %s390 = smul.u32 2, %s389
      %p391 = scmp.lt.s32.totalorder %s21, 1
      %s392 = scalar_select %p391, %s21, 1
      %p393 = scmp.lt.s32.totalorder %s390, 17
      %s394 = scalar_select %p393, %s390, 17
      %s395 = smul.addr %s394, 5
      %s396 = smul.addr %s392, 90
      %s397 = sadd.s32 %s395, %s396
      %s398 = smul.addr %s397, 4
      %s399 = scalar_lea.vmem %s2, %s398
      %s400 = sadd.s32 %s22, 1
      %s401 = smul.u32 2, %s400
      %s402 = sadd.s32 %s22, 1
      %s403 = smul.u32 2, %s402
      %p404 = scmp.lt.s32.totalorder %s21, 1
      %s405 = scalar_select %p404, %s21, 1
      %p406 = scmp.lt.s32.totalorder %s403, 17
      %s407 = scalar_select %p406, %s403, 17
      %s408 = smul.addr %s407, 5
      %s409 = smul.addr %s405, 90
      %s410 = sadd.s32 %s408, %s409
      %s411 = smul.addr %s410, 4
      %s412 = scalar_lea.vmem %s3, %s411
      %s413 = sadd.s32 %s22, 1
      %s414 = smul.u32 2, %s413
      %p415 = scmp.lt.s32.totalorder %s21, 1
      %s416 = scalar_select %p415, %s21, 1
      %p417 = scmp.lt.s32.totalorder %s22, 7
      %s418 = scalar_select %p417, %s22, 7
      %s419 = smul.addr %s418, 4
      %s420 = smul.addr %s416, 32
      %s421 = sadd.s32 %s419, %s420
      %s422 = smul.addr %s421, 4
      %s423 = scalar_lea.vmem %s6, %s422
      %v425 = vld [vmem:[%s376] sm:$0xf]
      %v426 = vld [vmem:[%s376 + $0x4] sm:$0xf]
      %v427 = vld [vmem:[%s376 + $0x8] sm:$0xf]
      %v428 = vld [vmem:[%s376 + $0xc] sm:$0xf]
      %v429 = vld [vmem:[%s4] sm:$0x1]
      %v430 = vld [vmem:[%s387] sm:$0xf]
      %v431 = vld [vmem:[%s387 + $0x4] sm:$0xf]
      %v432 = vld [vmem:[%s387 + $0x8] sm:$0xf]
      %v433 = vld [vmem:[%s387 + $0xc] sm:$0xf]
      %s434 = scalar_lea.vmem %s4, 1
      %v435 = vld [vmem:[%s434] sm:$0x1]
      %v440 = vunpack.c.l.b16 %v430
      %v441 = vunpack.c.l.b16 %v431
      %v442 = vunpack.c.l.b16 %v432
      %v443 = vunpack.c.l.b16 %v433
      %v444 = vpack.c.b16 %v441, %v440
      %v445 = vpack.c.b16 %v443, %v442
      %vm446 = vcmask 15360
      %v448 = vsel %vm446, %v444, 0
      %v451 = vsel %vm446, %v445, 0
      %vm453 = vcmask 1040384
      %v455 = vsel %vm453, %v435, 0
      %457 = vmatprep.subr.bf16.mxu0 0
      %458 = vmatpush1.bf16.msra.mxu0 0
      %459 = vmatprep.subr.bf16.mxu0 0
      %460 = vmatpush1.bf16.msra.mxu0 0
      %461 = vmatprep.subr.bf16.mxu0 0
      %462 = vmatpush1.bf16.msra.mxu0 0
      %463 = vmatprep.subr.bf16.mxu0 0
      %464 = vmatpush1.bf16.msra.mxu0 0
      %465 = vmatprep.subr.bf16.mxu0 0
      %466 = vmatpush1.bf16.msra.mxu0 0
      %467 = vmatprep.subr.bf16.mxu0 0
      %468 = vmatpush1.bf16.msra.mxu0 0
      %469 = vmatprep.subr.bf16.mxu0 0
      %470 = vmatpush1.bf16.msra.mxu0 0
      %471 = vmatprep.subr.bf16.mxu0 0
      %472 = vmatpush1.bf16.msra.mxu0 %v455
      %473 = vmatprep.subr.bf16.mxu0 0
      %474 = vmatpush2.bf16.msra.mxu0 0
      %475 = vmatprep.subr.bf16.mxu0 0
      %476 = vmatpush2.bf16.msra.mxu0 0
      %477 = vmatprep.subr.bf16.mxu0 0
      %478 = vmatpush2.bf16.msra.mxu0 0
      %479 = vmatprep.subr.bf16.mxu0 0
      %480 = vmatpush2.bf16.msra.mxu0 0
      %481 = vmatprep.subr.bf16.mxu0 0
      %482 = vmatpush2.bf16.msra.mxu0 0
      %483 = vmatprep.subr.bf16.mxu0 0
      %484 = vmatpush2.bf16.msra.mxu0 0
      %485 = vmatprep.subr.bf16.mxu0 0
      %486 = vmatpush2.bf16.msra.mxu0 0
      %487 = vmatprep.subr.bf16.mxu0 0
      %488 = vmatpush2.bf16.msra.mxu0 0
      %489 = vmatprep.mubr.bf16.mxu0 0
      %490 = vmatmul.mubr.bf16.gmra.mxu0 %v448
      %v491 = vpop.f32.mrf.mxu0
      %v492 = vadd.f32 0.0, %v491
      %v493 = vpop.f32.mrf.mxu0
      %v494 = vpop.f32.mrf.mxu0
      %v495 = vadd.f32 0.0, %v494
      %v496 = vpop.f32.mrf.mxu0
      %497 = vmatprep.mubr.bf16.mxu0 0
      %498 = vmatmul.mubr.bf16.gmra.mxu0 %v451
      %v499 = vpop.f32.mrf.mxu0
      %v500 = vadd.f32 0.0, %v499
      %v501 = vpop.f32.mrf.mxu0
      %v502 = vpop.f32.mrf.mxu0
      %v503 = vadd.f32 0.0, %v502
      %v504 = vpop.f32.mrf.mxu0
      %505 = vdwg.mxu0
      %v510 = vunpack.c.l.b16 %v425
      %v511 = vunpack.c.l.b16 %v426
      %v512 = vunpack.c.l.b16 %v427
      %v513 = vunpack.c.l.b16 %v428
      %v514 = vpack.c.b16 %v511, %v510
      %v515 = vpack.c.b16 %v513, %v512
      %v517 = vsel %vm446, %v514, 0
      %v520 = vsel %vm446, %v515, 0
      %v523 = vsel %vm453, %v429, 0
      %525 = vmatprep.subr.bf16.mxu0 0
      %526 = vmatpush1.bf16.msra.mxu0 0
      %527 = vmatprep.subr.bf16.mxu0 0
      %528 = vmatpush1.bf16.msra.mxu0 0
      %529 = vmatprep.subr.bf16.mxu0 0
      %530 = vmatpush1.bf16.msra.mxu0 0
      %531 = vmatprep.subr.bf16.mxu0 0
      %532 = vmatpush1.bf16.msra.mxu0 0
      %533 = vmatprep.subr.bf16.mxu0 0
      %534 = vmatpush1.bf16.msra.mxu0 0
      %535 = vmatprep.subr.bf16.mxu0 0
      %536 = vmatpush1.bf16.msra.mxu0 0
      %537 = vmatprep.subr.bf16.mxu0 0
      %538 = vmatpush1.bf16.msra.mxu0 0
      %539 = vmatprep.subr.bf16.mxu0 0
      %540 = vmatpush1.bf16.msra.mxu0 %v523
      %541 = vmatprep.subr.bf16.mxu0 0
      %542 = vmatpush2.bf16.msra.mxu0 0
      %543 = vmatprep.subr.bf16.mxu0 0
      %544 = vmatpush2.bf16.msra.mxu0 0
      %545 = vmatprep.subr.bf16.mxu0 0
      %546 = vmatpush2.bf16.msra.mxu0 0
      %547 = vmatprep.subr.bf16.mxu0 0
      %548 = vmatpush2.bf16.msra.mxu0 0
      %549 = vmatprep.subr.bf16.mxu0 0
      %550 = vmatpush2.bf16.msra.mxu0 0
      %551 = vmatprep.subr.bf16.mxu0 0
      %552 = vmatpush2.bf16.msra.mxu0 0
      %553 = vmatprep.subr.bf16.mxu0 0
      %554 = vmatpush2.bf16.msra.mxu0 0
      %555 = vmatprep.subr.bf16.mxu0 0
      %556 = vmatpush2.bf16.msra.mxu0 0
      %557 = vmatprep.mubr.bf16.mxu0 0
      %558 = vmatmul.mubr.bf16.gmra.mxu0 %v517
      %v559 = vpop.f32.mrf.mxu0
      %v560 = vadd.f32 %v492, %v559
      %v561 = vpop.f32.mrf.mxu0
      %v562 = vpop.f32.mrf.mxu0
      %v563 = vadd.f32 %v495, %v562
      %v564 = vpop.f32.mrf.mxu0
      %565 = vmatprep.mubr.bf16.mxu0 0
      %566 = vmatmul.mubr.bf16.gmra.mxu0 %v520
      %v567 = vpop.f32.mrf.mxu0
      %v568 = vadd.f32 %v500, %v567
      %v569 = vpop.f32.mrf.mxu0
      %v570 = vpop.f32.mrf.mxu0
      %v571 = vadd.f32 %v503, %v570
      %v572 = vpop.f32.mrf.mxu0
      %573 = vdwg.mxu0
      %v574 = vld [vmem:[%s376] sm:$0xc]
      %v575 = vld [vmem:[%s376 + $0x4] sm:$0xf]
      %v576 = vld [vmem:[%s376 + $0x8] sm:$0xf]
      %v577 = vld [vmem:[%s376 + $0xc] sm:$0xf]
      %v578 = vld [vmem:[%s376 + $0x10] sm:$0x3]
      %s579 = scalar_lea.vmem %s4, 2
      %v580 = vld [vmem:[%s579] sm:$0x1]
      %v586 = vunpack.c.l.b16 %v574
      %v587 = vunpack.c.l.b16 %v575
      %v588 = vunpack.c.l.b16 %v576
      %v589 = vunpack.c.l.b16 %v577
      %v590 = vunpack.c.l.b16 %v578
      %v591 = vpack.c.b16 %v587, %v586
      %v592 = vpack.c.b16 %v589, %v588
      %v593 = vpack.c.b16 %v590, %v590
      %vm594 = vcmask 1045504
      %v595 = vrot.slane %v591, 2
      %v596 = vrot.slane %v592, 2
      %v597 = vsel %vm594, %v595, %v596
      %v598 = vrot.slane %v593, 2
      %v599 = vsel %vm594, %v596, %v598
      %v601 = vsel %vm446, %v597, 0
      %v604 = vsel %vm446, %v599, 0
      %v607 = vsel %vm453, %v580, 0
      %609 = vmatprep.subr.bf16.mxu0 0
      %610 = vmatpush1.bf16.msra.mxu0 0
      %611 = vmatprep.subr.bf16.mxu0 0
      %612 = vmatpush1.bf16.msra.mxu0 0
      %613 = vmatprep.subr.bf16.mxu0 0
      %614 = vmatpush1.bf16.msra.mxu0 0
      %615 = vmatprep.subr.bf16.mxu0 0
      %616 = vmatpush1.bf16.msra.mxu0 0
      %617 = vmatprep.subr.bf16.mxu0 0
      %618 = vmatpush1.bf16.msra.mxu0 0
      %619 = vmatprep.subr.bf16.mxu0 0
      %620 = vmatpush1.bf16.msra.mxu0 0
      %621 = vmatprep.subr.bf16.mxu0 0
      %622 = vmatpush1.bf16.msra.mxu0 0
      %623 = vmatprep.subr.bf16.mxu0 0
      %624 = vmatpush1.bf16.msra.mxu0 %v607
      %625 = vmatprep.subr.bf16.mxu0 0
      %626 = vmatpush2.bf16.msra.mxu0 0
      %627 = vmatprep.subr.bf16.mxu0 0
      %628 = vmatpush2.bf16.msra.mxu0 0
      %629 = vmatprep.subr.bf16.mxu0 0
      %630 = vmatpush2.bf16.msra.mxu0 0
      %631 = vmatprep.subr.bf16.mxu0 0
      %632 = vmatpush2.bf16.msra.mxu0 0
      %633 = vmatprep.subr.bf16.mxu0 0
      %634 = vmatpush2.bf16.msra.mxu0 0
      %635 = vmatprep.subr.bf16.mxu0 0
      %636 = vmatpush2.bf16.msra.mxu0 0
      %637 = vmatprep.subr.bf16.mxu0 0
      %638 = vmatpush2.bf16.msra.mxu0 0
      %639 = vmatprep.subr.bf16.mxu0 0
      %640 = vmatpush2.bf16.msra.mxu0 0
      %641 = vmatprep.mubr.bf16.mxu0 0
      %642 = vmatmul.mubr.bf16.gmra.mxu0 %v601
      %v643 = vpop.f32.mrf.mxu0
      %v644 = vadd.f32 0.0, %v643
      %v645 = vpop.f32.mrf.mxu0
      %v646 = vpop.f32.mrf.mxu0
      %v647 = vadd.f32 0.0, %v646
      %v648 = vpop.f32.mrf.mxu0
      %649 = vmatprep.mubr.bf16.mxu0 0
      %650 = vmatmul.mubr.bf16.gmra.mxu0 %v604
      %v651 = vpop.f32.mrf.mxu0
      %v652 = vadd.f32 0.0, %v651
      %v653 = vpop.f32.mrf.mxu0
      %v654 = vpop.f32.mrf.mxu0
      %v655 = vadd.f32 0.0, %v654
      %v656 = vpop.f32.mrf.mxu0
      %657 = vdwg.mxu0
      %v658 = vadd.f32 %v560, %v644
      %v659 = vadd.f32 %v563, %v647
      %v660 = vadd.f32 %v568, %v652
      %v661 = vadd.f32 %v571, %v655
      %v662 = vld [vmem:[%s387] sm:$0xc]
      %v663 = vld [vmem:[%s387 + $0x4] sm:$0xf]
      %v664 = vld [vmem:[%s387 + $0x8] sm:$0xf]
      %v665 = vld [vmem:[%s387 + $0xc] sm:$0xf]
      %v666 = vld [vmem:[%s387 + $0x10] sm:$0x3]
      %s667 = scalar_lea.vmem %s4, 3
      %v668 = vld [vmem:[%s667] sm:$0x1]
      %v674 = vunpack.c.l.b16 %v662
      %v675 = vunpack.c.l.b16 %v663
      %v676 = vunpack.c.l.b16 %v664
      %v677 = vunpack.c.l.b16 %v665
      %v678 = vunpack.c.l.b16 %v666
      %v679 = vpack.c.b16 %v675, %v674
      %v680 = vpack.c.b16 %v677, %v676
      %v681 = vpack.c.b16 %v678, %v678
      %v682 = vrot.slane %v679, 2
      %v683 = vrot.slane %v680, 2
      %v684 = vsel %vm594, %v682, %v683
      %v685 = vrot.slane %v681, 2
      %v686 = vsel %vm594, %v683, %v685
      %v688 = vsel %vm446, %v684, 0
      %v691 = vsel %vm446, %v686, 0
      %v694 = vsel %vm453, %v668, 0
      %696 = vmatprep.subr.bf16.mxu0 0
      %697 = vmatpush1.bf16.msra.mxu0 0
      %698 = vmatprep.subr.bf16.mxu0 0
      %699 = vmatpush1.bf16.msra.mxu0 0
      %700 = vmatprep.subr.bf16.mxu0 0
      %701 = vmatpush1.bf16.msra.mxu0 0
      %702 = vmatprep.subr.bf16.mxu0 0
      %703 = vmatpush1.bf16.msra.mxu0 0
      %704 = vmatprep.subr.bf16.mxu0 0
      %705 = vmatpush1.bf16.msra.mxu0 0
      %706 = vmatprep.subr.bf16.mxu0 0
      %707 = vmatpush1.bf16.msra.mxu0 0
      %708 = vmatprep.subr.bf16.mxu0 0
      %709 = vmatpush1.bf16.msra.mxu0 0
      %710 = vmatprep.subr.bf16.mxu0 0
      %711 = vmatpush1.bf16.msra.mxu0 %v694
      %712 = vmatprep.subr.bf16.mxu0 0
      %713 = vmatpush2.bf16.msra.mxu0 0
      %714 = vmatprep.subr.bf16.mxu0 0
      %715 = vmatpush2.bf16.msra.mxu0 0
      %716 = vmatprep.subr.bf16.mxu0 0
      %717 = vmatpush2.bf16.msra.mxu0 0
      %718 = vmatprep.subr.bf16.mxu0 0
      %719 = vmatpush2.bf16.msra.mxu0 0
      %720 = vmatprep.subr.bf16.mxu0 0
      %721 = vmatpush2.bf16.msra.mxu0 0
      %722 = vmatprep.subr.bf16.mxu0 0
      %723 = vmatpush2.bf16.msra.mxu0 0
      %724 = vmatprep.subr.bf16.mxu0 0
      %725 = vmatpush2.bf16.msra.mxu0 0
      %726 = vmatprep.subr.bf16.mxu0 0
      %727 = vmatpush2.bf16.msra.mxu0 0
      %728 = vmatprep.mubr.bf16.mxu0 0
      %729 = vmatmul.mubr.bf16.gmra.mxu0 %v688
      %v730 = vpop.f32.mrf.mxu0
      %v731 = vadd.f32 0.0, %v730
      %v732 = vpop.f32.mrf.mxu0
      %v733 = vpop.f32.mrf.mxu0
      %v734 = vadd.f32 0.0, %v733
      %v735 = vpop.f32.mrf.mxu0
      %736 = vmatprep.mubr.bf16.mxu0 0
      %737 = vmatmul.mubr.bf16.gmra.mxu0 %v691
      %v738 = vpop.f32.mrf.mxu0
      %v739 = vadd.f32 0.0, %v738
      %v740 = vpop.f32.mrf.mxu0
      %v741 = vpop.f32.mrf.mxu0
      %v742 = vadd.f32 0.0, %v741
      %v743 = vpop.f32.mrf.mxu0
      %744 = vdwg.mxu0
      %v745 = vadd.f32 %v658, %v731
      %v746 = vadd.f32 %v659, %v734
      %v747 = vadd.f32 %v660, %v739
      %v748 = vadd.f32 %v661, %v742
      %s749 = scalar_lea.vmem %s376, 20
      %v750 = vld [vmem:[%s749] sm:$0xf]
      %v751 = vld [vmem:[%s749 + $0x4] sm:$0xf]
      %v752 = vld [vmem:[%s749 + $0x8] sm:$0xf]
      %v753 = vld [vmem:[%s749 + $0xc] sm:$0xf]
      %s754 = scalar_lea.vmem %s4, 4
      %v755 = vld [vmem:[%s754] sm:$0x1]
      %v760 = vunpack.c.l.b16 %v750
      %v761 = vunpack.c.l.b16 %v751
      %v762 = vunpack.c.l.b16 %v752
      %v763 = vunpack.c.l.b16 %v753
      %v764 = vpack.c.b16 %v761, %v760
      %v765 = vpack.c.b16 %v763, %v762
      %v767 = vsel %vm446, %v764, 0
      %v770 = vsel %vm446, %v765, 0
      %v773 = vsel %vm453, %v755, 0
      %775 = vmatprep.subr.bf16.mxu0 0
      %776 = vmatpush1.bf16.msra.mxu0 0
      %777 = vmatprep.subr.bf16.mxu0 0
      %778 = vmatpush1.bf16.msra.mxu0 0
      %779 = vmatprep.subr.bf16.mxu0 0
      %780 = vmatpush1.bf16.msra.mxu0 0
      %781 = vmatprep.subr.bf16.mxu0 0
      %782 = vmatpush1.bf16.msra.mxu0 0
      %783 = vmatprep.subr.bf16.mxu0 0
      %784 = vmatpush1.bf16.msra.mxu0 0
      %785 = vmatprep.subr.bf16.mxu0 0
      %786 = vmatpush1.bf16.msra.mxu0 0
      %787 = vmatprep.subr.bf16.mxu0 0
      %788 = vmatpush1.bf16.msra.mxu0 0
      %789 = vmatprep.subr.bf16.mxu0 0
      %790 = vmatpush1.bf16.msra.mxu0 %v773
      %791 = vmatprep.subr.bf16.mxu0 0
      %792 = vmatpush2.bf16.msra.mxu0 0
      %793 = vmatprep.subr.bf16.mxu0 0
      %794 = vmatpush2.bf16.msra.mxu0 0
      %795 = vmatprep.subr.bf16.mxu0 0
      %796 = vmatpush2.bf16.msra.mxu0 0
      %797 = vmatprep.subr.bf16.mxu0 0
      %798 = vmatpush2.bf16.msra.mxu0 0
      %799 = vmatprep.subr.bf16.mxu0 0
      %800 = vmatpush2.bf16.msra.mxu0 0
      %801 = vmatprep.subr.bf16.mxu0 0
      %802 = vmatpush2.bf16.msra.mxu0 0
      %803 = vmatprep.subr.bf16.mxu0 0
      %804 = vmatpush2.bf16.msra.mxu0 0
      %805 = vmatprep.subr.bf16.mxu0 0
      %806 = vmatpush2.bf16.msra.mxu0 0
      %807 = vmatprep.mubr.bf16.mxu0 0
      %808 = vmatmul.mubr.bf16.gmra.mxu0 %v767
      %v809 = vpop.f32.mrf.mxu0
      %v810 = vadd.f32 0.0, %v809
      %v811 = vpop.f32.mrf.mxu0
      %v812 = vpop.f32.mrf.mxu0
      %v813 = vadd.f32 0.0, %v812
      %v814 = vpop.f32.mrf.mxu0
      %815 = vmatprep.mubr.bf16.mxu0 0
      %816 = vmatmul.mubr.bf16.gmra.mxu0 %v770
      %v817 = vpop.f32.mrf.mxu0
      %v818 = vadd.f32 0.0, %v817
      %v819 = vpop.f32.mrf.mxu0
      %v820 = vpop.f32.mrf.mxu0
      %v821 = vadd.f32 0.0, %v820
      %v822 = vpop.f32.mrf.mxu0
      %823 = vdwg.mxu0
      %v824 = vadd.f32 %v745, %v810
      %v825 = vadd.f32 %v746, %v813
      %v826 = vadd.f32 %v747, %v818
      %v827 = vadd.f32 %v748, %v821
      %s828 = scalar_lea.vmem %s387, 20
      %v829 = vld [vmem:[%s828] sm:$0xf]
      %v830 = vld [vmem:[%s828 + $0x4] sm:$0xf]
      %v831 = vld [vmem:[%s828 + $0x8] sm:$0xf]
      %v832 = vld [vmem:[%s828 + $0xc] sm:$0xf]
      %s833 = scalar_lea.vmem %s4, 5
      %v834 = vld [vmem:[%s833] sm:$0x1]
      %v839 = vunpack.c.l.b16 %v829
      %v840 = vunpack.c.l.b16 %v830
      %v841 = vunpack.c.l.b16 %v831
      %v842 = vunpack.c.l.b16 %v832
      %v843 = vpack.c.b16 %v840, %v839
      %v844 = vpack.c.b16 %v842, %v841
      %v846 = vsel %vm446, %v843, 0
      %v849 = vsel %vm446, %v844, 0
      %v852 = vsel %vm453, %v834, 0
      %854 = vmatprep.subr.bf16.mxu0 0
      %855 = vmatpush1.bf16.msra.mxu0 0
      %856 = vmatprep.subr.bf16.mxu0 0
      %857 = vmatpush1.bf16.msra.mxu0 0
      %858 = vmatprep.subr.bf16.mxu0 0
      %859 = vmatpush1.bf16.msra.mxu0 0
      %860 = vmatprep.subr.bf16.mxu0 0
      %861 = vmatpush1.bf16.msra.mxu0 0
      %862 = vmatprep.subr.bf16.mxu0 0
      %863 = vmatpush1.bf16.msra.mxu0 0
      %864 = vmatprep.subr.bf16.mxu0 0
      %865 = vmatpush1.bf16.msra.mxu0 0
      %866 = vmatprep.subr.bf16.mxu0 0
      %867 = vmatpush1.bf16.msra.mxu0 0
      %868 = vmatprep.subr.bf16.mxu0 0
      %869 = vmatpush1.bf16.msra.mxu0 %v852
      %870 = vmatprep.subr.bf16.mxu0 0
      %871 = vmatpush2.bf16.msra.mxu0 0
      %872 = vmatprep.subr.bf16.mxu0 0
      %873 = vmatpush2.bf16.msra.mxu0 0
      %874 = vmatprep.subr.bf16.mxu0 0
      %875 = vmatpush2.bf16.msra.mxu0 0
      %876 = vmatprep.subr.bf16.mxu0 0
      %877 = vmatpush2.bf16.msra.mxu0 0
      %878 = vmatprep.subr.bf16.mxu0 0
      %879 = vmatpush2.bf16.msra.mxu0 0
      %880 = vmatprep.subr.bf16.mxu0 0
      %881 = vmatpush2.bf16.msra.mxu0 0
      %882 = vmatprep.subr.bf16.mxu0 0
      %883 = vmatpush2.bf16.msra.mxu0 0
      %884 = vmatprep.subr.bf16.mxu0 0
      %885 = vmatpush2.bf16.msra.mxu0 0
      %886 = vmatprep.mubr.bf16.mxu0 0
      %887 = vmatmul.mubr.bf16.gmra.mxu0 %v846
      %v888 = vpop.f32.mrf.mxu0
      %v889 = vadd.f32 0.0, %v888
      %v890 = vpop.f32.mrf.mxu0
      %v891 = vpop.f32.mrf.mxu0
      %v892 = vadd.f32 0.0, %v891
      %v893 = vpop.f32.mrf.mxu0
      %894 = vmatprep.mubr.bf16.mxu0 0
      %895 = vmatmul.mubr.bf16.gmra.mxu0 %v849
      %v896 = vpop.f32.mrf.mxu0
      %v897 = vadd.f32 0.0, %v896
      %v898 = vpop.f32.mrf.mxu0
      %v899 = vpop.f32.mrf.mxu0
      %v900 = vadd.f32 0.0, %v899
      %v901 = vpop.f32.mrf.mxu0
      %902 = vdwg.mxu0
      %v903 = vadd.f32 %v824, %v889
      %v904 = vadd.f32 %v825, %v892
      %v905 = vadd.f32 %v826, %v897
      %v906 = vadd.f32 %v827, %v900
      %v907 = vld [vmem:[%s749] sm:$0xc]
      %v908 = vld [vmem:[%s749 + $0x4] sm:$0xf]
      %v909 = vld [vmem:[%s749 + $0x8] sm:$0xf]
      %v910 = vld [vmem:[%s749 + $0xc] sm:$0xf]
      %v911 = vld [vmem:[%s749 + $0x10] sm:$0x3]
      %s912 = scalar_lea.vmem %s4, 6
      %v913 = vld [vmem:[%s912] sm:$0x1]
      %v919 = vunpack.c.l.b16 %v907
      %v920 = vunpack.c.l.b16 %v908
      %v921 = vunpack.c.l.b16 %v909
      %v922 = vunpack.c.l.b16 %v910
      %v923 = vunpack.c.l.b16 %v911
      %v924 = vpack.c.b16 %v920, %v919
      %v925 = vpack.c.b16 %v922, %v921
      %v926 = vpack.c.b16 %v923, %v923
      %v927 = vrot.slane %v924, 2
      %v928 = vrot.slane %v925, 2
      %v929 = vsel %vm594, %v927, %v928
      %v930 = vrot.slane %v926, 2
      %v931 = vsel %vm594, %v928, %v930
      %v933 = vsel %vm446, %v929, 0
      %v936 = vsel %vm446, %v931, 0
      %v939 = vsel %vm453, %v913, 0
      %941 = vmatprep.subr.bf16.mxu0 0
      %942 = vmatpush1.bf16.msra.mxu0 0
      %943 = vmatprep.subr.bf16.mxu0 0
      %944 = vmatpush1.bf16.msra.mxu0 0
      %945 = vmatprep.subr.bf16.mxu0 0
      %946 = vmatpush1.bf16.msra.mxu0 0
      %947 = vmatprep.subr.bf16.mxu0 0
      %948 = vmatpush1.bf16.msra.mxu0 0
      %949 = vmatprep.subr.bf16.mxu0 0
      %950 = vmatpush1.bf16.msra.mxu0 0
      %951 = vmatprep.subr.bf16.mxu0 0
      %952 = vmatpush1.bf16.msra.mxu0 0
      %953 = vmatprep.subr.bf16.mxu0 0
      %954 = vmatpush1.bf16.msra.mxu0 0
      %955 = vmatprep.subr.bf16.mxu0 0
      %956 = vmatpush1.bf16.msra.mxu0 %v939
      %957 = vmatprep.subr.bf16.mxu0 0
      %958 = vmatpush2.bf16.msra.mxu0 0
      %959 = vmatprep.subr.bf16.mxu0 0
      %960 = vmatpush2.bf16.msra.mxu0 0
      %961 = vmatprep.subr.bf16.mxu0 0
      %962 = vmatpush2.bf16.msra.mxu0 0
      %963 = vmatprep.subr.bf16.mxu0 0
      %964 = vmatpush2.bf16.msra.mxu0 0
      %965 = vmatprep.subr.bf16.mxu0 0
      %966 = vmatpush2.bf16.msra.mxu0 0
      %967 = vmatprep.subr.bf16.mxu0 0
      %968 = vmatpush2.bf16.msra.mxu0 0
      %969 = vmatprep.subr.bf16.mxu0 0
      %970 = vmatpush2.bf16.msra.mxu0 0
      %971 = vmatprep.subr.bf16.mxu0 0
      %972 = vmatpush2.bf16.msra.mxu0 0
      %973 = vmatprep.mubr.bf16.mxu0 0
      %974 = vmatmul.mubr.bf16.gmra.mxu0 %v933
      %v975 = vpop.f32.mrf.mxu0
      %v976 = vadd.f32 0.0, %v975
      %v977 = vpop.f32.mrf.mxu0
      %v978 = vpop.f32.mrf.mxu0
      %v979 = vadd.f32 0.0, %v978
      %v980 = vpop.f32.mrf.mxu0
      %981 = vmatprep.mubr.bf16.mxu0 0
      %982 = vmatmul.mubr.bf16.gmra.mxu0 %v936
      %v983 = vpop.f32.mrf.mxu0
      %v984 = vadd.f32 0.0, %v983
      %v985 = vpop.f32.mrf.mxu0
      %v986 = vpop.f32.mrf.mxu0
      %v987 = vadd.f32 0.0, %v986
      %v988 = vpop.f32.mrf.mxu0
      %989 = vdwg.mxu0
      %v990 = vadd.f32 %v903, %v976
      %v991 = vadd.f32 %v904, %v979
      %v992 = vadd.f32 %v905, %v984
      %v993 = vadd.f32 %v906, %v987
      %v994 = vld [vmem:[%s828] sm:$0xc]
      %v995 = vld [vmem:[%s828 + $0x4] sm:$0xf]
      %v996 = vld [vmem:[%s828 + $0x8] sm:$0xf]
      %v997 = vld [vmem:[%s828 + $0xc] sm:$0xf]
      %v998 = vld [vmem:[%s828 + $0x10] sm:$0x3]
      %s999 = scalar_lea.vmem %s4, 7
      %v1000 = vld [vmem:[%s999] sm:$0x1]
      %v1006 = vunpack.c.l.b16 %v994
      %v1007 = vunpack.c.l.b16 %v995
      %v1008 = vunpack.c.l.b16 %v996
      %v1009 = vunpack.c.l.b16 %v997
      %v1010 = vunpack.c.l.b16 %v998
      %v1011 = vpack.c.b16 %v1007, %v1006
      %v1012 = vpack.c.b16 %v1009, %v1008
      %v1013 = vpack.c.b16 %v1010, %v1010
      %v1014 = vrot.slane %v1011, 2
      %v1015 = vrot.slane %v1012, 2
      %v1016 = vsel %vm594, %v1014, %v1015
      %v1017 = vrot.slane %v1013, 2
      %v1018 = vsel %vm594, %v1015, %v1017
      %v1020 = vsel %vm446, %v1016, 0
      %v1023 = vsel %vm446, %v1018, 0
      %v1026 = vsel %vm453, %v1000, 0
      %1028 = vmatprep.subr.bf16.mxu0 0
      %1029 = vmatpush1.bf16.msra.mxu0 0
      %1030 = vmatprep.subr.bf16.mxu0 0
      %1031 = vmatpush1.bf16.msra.mxu0 0
      %1032 = vmatprep.subr.bf16.mxu0 0
      %1033 = vmatpush1.bf16.msra.mxu0 0
      %1034 = vmatprep.subr.bf16.mxu0 0
      %1035 = vmatpush1.bf16.msra.mxu0 0
      %1036 = vmatprep.subr.bf16.mxu0 0
      %1037 = vmatpush1.bf16.msra.mxu0 0
      %1038 = vmatprep.subr.bf16.mxu0 0
      %1039 = vmatpush1.bf16.msra.mxu0 0
      %1040 = vmatprep.subr.bf16.mxu0 0
      %1041 = vmatpush1.bf16.msra.mxu0 0
      %1042 = vmatprep.subr.bf16.mxu0 0
      %1043 = vmatpush1.bf16.msra.mxu0 %v1026
      %1044 = vmatprep.subr.bf16.mxu0 0
      %1045 = vmatpush2.bf16.msra.mxu0 0
      %1046 = vmatprep.subr.bf16.mxu0 0
      %1047 = vmatpush2.bf16.msra.mxu0 0
      %1048 = vmatprep.subr.bf16.mxu0 0
      %1049 = vmatpush2.bf16.msra.mxu0 0
      %1050 = vmatprep.subr.bf16.mxu0 0
      %1051 = vmatpush2.bf16.msra.mxu0 0
      %1052 = vmatprep.subr.bf16.mxu0 0
      %1053 = vmatpush2.bf16.msra.mxu0 0
      %1054 = vmatprep.subr.bf16.mxu0 0
      %1055 = vmatpush2.bf16.msra.mxu0 0
      %1056 = vmatprep.subr.bf16.mxu0 0
      %1057 = vmatpush2.bf16.msra.mxu0 0
      %1058 = vmatprep.subr.bf16.mxu0 0
      %1059 = vmatpush2.bf16.msra.mxu0 0
      %1060 = vmatprep.mubr.bf16.mxu0 0
      %1061 = vmatmul.mubr.bf16.gmra.mxu0 %v1020
      %v1062 = vpop.f32.mrf.mxu0
      %v1063 = vadd.f32 0.0, %v1062
      %v1064 = vpop.f32.mrf.mxu0
      %v1065 = vpop.f32.mrf.mxu0
      %v1066 = vadd.f32 0.0, %v1065
      %v1067 = vpop.f32.mrf.mxu0
      %1068 = vmatprep.mubr.bf16.mxu0 0
      %1069 = vmatmul.mubr.bf16.gmra.mxu0 %v1023
      %v1070 = vpop.f32.mrf.mxu0
      %v1071 = vadd.f32 0.0, %v1070
      %v1072 = vpop.f32.mrf.mxu0
      %v1073 = vpop.f32.mrf.mxu0
      %v1074 = vadd.f32 0.0, %v1073
      %v1075 = vpop.f32.mrf.mxu0
      %1076 = vdwg.mxu0
      %v1077 = vadd.f32 %v990, %v1063
      %v1078 = vadd.f32 %v991, %v1066
      %v1079 = vadd.f32 %v992, %v1071
      %v1080 = vadd.f32 %v993, %v1074
      %v1081 = vld [vmem:[%s399] sm:$0xf]
      %v1082 = vld [vmem:[%s399 + $0x4] sm:$0xf]
      %v1083 = vld [vmem:[%s399 + $0x8] sm:$0xf]
      %v1084 = vld [vmem:[%s399 + $0xc] sm:$0xf]
      %s1085 = scalar_lea.vmem %s4, 8
      %v1086 = vld [vmem:[%s1085] sm:$0x1]
      %v1091 = vunpack.c.l.b16 %v1081
      %v1092 = vunpack.c.l.b16 %v1082
      %v1093 = vunpack.c.l.b16 %v1083
      %v1094 = vunpack.c.l.b16 %v1084
      %v1095 = vpack.c.b16 %v1092, %v1091
      %v1096 = vpack.c.b16 %v1094, %v1093
      %v1098 = vsel %vm446, %v1095, 0
      %v1101 = vsel %vm446, %v1096, 0
      %v1104 = vsel %vm453, %v1086, 0
      %1106 = vmatprep.subr.bf16.mxu0 0
      %1107 = vmatpush1.bf16.msra.mxu0 0
      %1108 = vmatprep.subr.bf16.mxu0 0
      %1109 = vmatpush1.bf16.msra.mxu0 0
      %1110 = vmatprep.subr.bf16.mxu0 0
      %1111 = vmatpush1.bf16.msra.mxu0 0
      %1112 = vmatprep.subr.bf16.mxu0 0
      %1113 = vmatpush1.bf16.msra.mxu0 0
      %1114 = vmatprep.subr.bf16.mxu0 0
      %1115 = vmatpush1.bf16.msra.mxu0 0
      %1116 = vmatprep.subr.bf16.mxu0 0
      %1117 = vmatpush1.bf16.msra.mxu0 0
      %1118 = vmatprep.subr.bf16.mxu0 0
      %1119 = vmatpush1.bf16.msra.mxu0 0
      %1120 = vmatprep.subr.bf16.mxu0 0
      %1121 = vmatpush1.bf16.msra.mxu0 %v1104
      %1122 = vmatprep.subr.bf16.mxu0 0
      %1123 = vmatpush2.bf16.msra.mxu0 0
      %1124 = vmatprep.subr.bf16.mxu0 0
      %1125 = vmatpush2.bf16.msra.mxu0 0
      %1126 = vmatprep.subr.bf16.mxu0 0
      %1127 = vmatpush2.bf16.msra.mxu0 0
      %1128 = vmatprep.subr.bf16.mxu0 0
      %1129 = vmatpush2.bf16.msra.mxu0 0
      %1130 = vmatprep.subr.bf16.mxu0 0
      %1131 = vmatpush2.bf16.msra.mxu0 0
      %1132 = vmatprep.subr.bf16.mxu0 0
      %1133 = vmatpush2.bf16.msra.mxu0 0
      %1134 = vmatprep.subr.bf16.mxu0 0
      %1135 = vmatpush2.bf16.msra.mxu0 0
      %1136 = vmatprep.subr.bf16.mxu0 0
      %1137 = vmatpush2.bf16.msra.mxu0 0
      %1138 = vmatprep.mubr.bf16.mxu0 0
      %1139 = vmatmul.mubr.bf16.gmra.mxu0 %v1098
      %v1140 = vpop.f32.mrf.mxu0
      %v1141 = vadd.f32 0.0, %v1140
      %v1142 = vpop.f32.mrf.mxu0
      %v1143 = vpop.f32.mrf.mxu0
      %v1144 = vadd.f32 0.0, %v1143
      %v1145 = vpop.f32.mrf.mxu0
      %1146 = vmatprep.mubr.bf16.mxu0 0
      %1147 = vmatmul.mubr.bf16.gmra.mxu0 %v1101
      %v1148 = vpop.f32.mrf.mxu0
      %v1149 = vadd.f32 0.0, %v1148
      %v1150 = vpop.f32.mrf.mxu0
      %v1151 = vpop.f32.mrf.mxu0
      %v1152 = vadd.f32 0.0, %v1151
      %v1153 = vpop.f32.mrf.mxu0
      %1154 = vdwg.mxu0
      %v1155 = vadd.f32 %v1077, %v1141
      %v1156 = vadd.f32 %v1078, %v1144
      %v1157 = vadd.f32 %v1079, %v1149
      %v1158 = vadd.f32 %v1080, %v1152
      %v1159 = vld [vmem:[%s412] sm:$0xf]
      %v1160 = vld [vmem:[%s412 + $0x4] sm:$0xf]
      %v1161 = vld [vmem:[%s412 + $0x8] sm:$0xf]
      %v1162 = vld [vmem:[%s412 + $0xc] sm:$0xf]
      %s1163 = scalar_lea.vmem %s4, 9
      %v1164 = vld [vmem:[%s1163] sm:$0x1]
      %v1169 = vunpack.c.l.b16 %v1159
      %v1170 = vunpack.c.l.b16 %v1160
      %v1171 = vunpack.c.l.b16 %v1161
      %v1172 = vunpack.c.l.b16 %v1162
      %v1173 = vpack.c.b16 %v1170, %v1169
      %v1174 = vpack.c.b16 %v1172, %v1171
      %v1176 = vsel %vm446, %v1173, 0
      %v1179 = vsel %vm446, %v1174, 0
      %v1182 = vsel %vm453, %v1164, 0
      %1184 = vmatprep.subr.bf16.mxu0 0
      %1185 = vmatpush1.bf16.msra.mxu0 0
      %1186 = vmatprep.subr.bf16.mxu0 0
      %1187 = vmatpush1.bf16.msra.mxu0 0
      %1188 = vmatprep.subr.bf16.mxu0 0
      %1189 = vmatpush1.bf16.msra.mxu0 0
      %1190 = vmatprep.subr.bf16.mxu0 0
      %1191 = vmatpush1.bf16.msra.mxu0 0
      %1192 = vmatprep.subr.bf16.mxu0 0
      %1193 = vmatpush1.bf16.msra.mxu0 0
      %1194 = vmatprep.subr.bf16.mxu0 0
      %1195 = vmatpush1.bf16.msra.mxu0 0
      %1196 = vmatprep.subr.bf16.mxu0 0
      %1197 = vmatpush1.bf16.msra.mxu0 0
      %1198 = vmatprep.subr.bf16.mxu0 0
      %1199 = vmatpush1.bf16.msra.mxu0 %v1182
      %1200 = vmatprep.subr.bf16.mxu0 0
      %1201 = vmatpush2.bf16.msra.mxu0 0
      %1202 = vmatprep.subr.bf16.mxu0 0
      %1203 = vmatpush2.bf16.msra.mxu0 0
      %1204 = vmatprep.subr.bf16.mxu0 0
      %1205 = vmatpush2.bf16.msra.mxu0 0
      %1206 = vmatprep.subr.bf16.mxu0 0
      %1207 = vmatpush2.bf16.msra.mxu0 0
      %1208 = vmatprep.subr.bf16.mxu0 0
      %1209 = vmatpush2.bf16.msra.mxu0 0
      %1210 = vmatprep.subr.bf16.mxu0 0
      %1211 = vmatpush2.bf16.msra.mxu0 0
      %1212 = vmatprep.subr.bf16.mxu0 0
      %1213 = vmatpush2.bf16.msra.mxu0 0
      %1214 = vmatprep.subr.bf16.mxu0 0
      %1215 = vmatpush2.bf16.msra.mxu0 0
      %1216 = vmatprep.mubr.bf16.mxu0 0
      %1217 = vmatmul.mubr.bf16.gmra.mxu0 %v1176
      %v1218 = vpop.f32.mrf.mxu0
      %v1219 = vadd.f32 0.0, %v1218
      %v1220 = vpop.f32.mrf.mxu0
      %v1221 = vpop.f32.mrf.mxu0
      %v1222 = vadd.f32 0.0, %v1221
      %v1223 = vpop.f32.mrf.mxu0
      %1224 = vmatprep.mubr.bf16.mxu0 0
      %1225 = vmatmul.mubr.bf16.gmra.mxu0 %v1179
      %v1226 = vpop.f32.mrf.mxu0
      %v1227 = vadd.f32 0.0, %v1226
      %v1228 = vpop.f32.mrf.mxu0
      %v1229 = vpop.f32.mrf.mxu0
      %v1230 = vadd.f32 0.0, %v1229
      %v1231 = vpop.f32.mrf.mxu0
      %1232 = vdwg.mxu0
      %v1233 = vadd.f32 %v1155, %v1219
      %v1234 = vadd.f32 %v1156, %v1222
      %v1235 = vadd.f32 %v1157, %v1227
      %v1236 = vadd.f32 %v1158, %v1230
      %v1237 = vld [vmem:[%s399] sm:$0xc]
      %v1238 = vld [vmem:[%s399 + $0x4] sm:$0xf]
      %v1239 = vld [vmem:[%s399 + $0x8] sm:$0xf]
      %v1240 = vld [vmem:[%s399 + $0xc] sm:$0xf]
      %v1241 = vld [vmem:[%s399 + $0x10] sm:$0x3]
      %s1242 = scalar_lea.vmem %s4, 10
      %v1243 = vld [vmem:[%s1242] sm:$0x1]
      %v1249 = vunpack.c.l.b16 %v1237
      %v1250 = vunpack.c.l.b16 %v1238
      %v1251 = vunpack.c.l.b16 %v1239
      %v1252 = vunpack.c.l.b16 %v1240
      %v1253 = vunpack.c.l.b16 %v1241
      %v1254 = vpack.c.b16 %v1250, %v1249
      %v1255 = vpack.c.b16 %v1252, %v1251
      %v1256 = vpack.c.b16 %v1253, %v1253
      %v1257 = vrot.slane %v1254, 2
      %v1258 = vrot.slane %v1255, 2
      %v1259 = vsel %vm594, %v1257, %v1258
      %v1260 = vrot.slane %v1256, 2
      %v1261 = vsel %vm594, %v1258, %v1260
      %v1263 = vsel %vm446, %v1259, 0
      %v1266 = vsel %vm446, %v1261, 0
      %v1269 = vsel %vm453, %v1243, 0
      %1271 = vmatprep.subr.bf16.mxu0 0
      %1272 = vmatpush1.bf16.msra.mxu0 0
      %1273 = vmatprep.subr.bf16.mxu0 0
      %1274 = vmatpush1.bf16.msra.mxu0 0
      %1275 = vmatprep.subr.bf16.mxu0 0
      %1276 = vmatpush1.bf16.msra.mxu0 0
      %1277 = vmatprep.subr.bf16.mxu0 0
      %1278 = vmatpush1.bf16.msra.mxu0 0
      %1279 = vmatprep.subr.bf16.mxu0 0
      %1280 = vmatpush1.bf16.msra.mxu0 0
      %1281 = vmatprep.subr.bf16.mxu0 0
      %1282 = vmatpush1.bf16.msra.mxu0 0
      %1283 = vmatprep.subr.bf16.mxu0 0
      %1284 = vmatpush1.bf16.msra.mxu0 0
      %1285 = vmatprep.subr.bf16.mxu0 0
      %1286 = vmatpush1.bf16.msra.mxu0 %v1269
      %1287 = vmatprep.subr.bf16.mxu0 0
      %1288 = vmatpush2.bf16.msra.mxu0 0
      %1289 = vmatprep.subr.bf16.mxu0 0
      %1290 = vmatpush2.bf16.msra.mxu0 0
      %1291 = vmatprep.subr.bf16.mxu0 0
      %1292 = vmatpush2.bf16.msra.mxu0 0
      %1293 = vmatprep.subr.bf16.mxu0 0
      %1294 = vmatpush2.bf16.msra.mxu0 0
      %1295 = vmatprep.subr.bf16.mxu0 0
      %1296 = vmatpush2.bf16.msra.mxu0 0
      %1297 = vmatprep.subr.bf16.mxu0 0
      %1298 = vmatpush2.bf16.msra.mxu0 0
      %1299 = vmatprep.subr.bf16.mxu0 0
      %1300 = vmatpush2.bf16.msra.mxu0 0
      %1301 = vmatprep.subr.bf16.mxu0 0
      %1302 = vmatpush2.bf16.msra.mxu0 0
      %1303 = vmatprep.mubr.bf16.mxu0 0
      %1304 = vmatmul.mubr.bf16.gmra.mxu0 %v1263
      %v1305 = vpop.f32.mrf.mxu0
      %v1306 = vadd.f32 0.0, %v1305
      %v1307 = vpop.f32.mrf.mxu0
      %v1308 = vpop.f32.mrf.mxu0
      %v1309 = vadd.f32 0.0, %v1308
      %v1310 = vpop.f32.mrf.mxu0
      %1311 = vmatprep.mubr.bf16.mxu0 0
      %1312 = vmatmul.mubr.bf16.gmra.mxu0 %v1266
      %v1313 = vpop.f32.mrf.mxu0
      %v1314 = vadd.f32 0.0, %v1313
      %v1315 = vpop.f32.mrf.mxu0
      %v1316 = vpop.f32.mrf.mxu0
      %v1317 = vadd.f32 0.0, %v1316
      %v1318 = vpop.f32.mrf.mxu0
      %1319 = vdwg.mxu0
      %v1320 = vadd.f32 %v1233, %v1306
      %v1321 = vadd.f32 %v1234, %v1309
      %v1322 = vadd.f32 %v1235, %v1314
      %v1323 = vadd.f32 %v1236, %v1317
      %v1324 = vld [vmem:[%s412] sm:$0xc]
      %v1325 = vld [vmem:[%s412 + $0x4] sm:$0xf]
      %v1326 = vld [vmem:[%s412 + $0x8] sm:$0xf]
      %v1327 = vld [vmem:[%s412 + $0xc] sm:$0xf]
      %v1328 = vld [vmem:[%s412 + $0x10] sm:$0x3]
      %s1329 = scalar_lea.vmem %s4, 11
      %v1330 = vld [vmem:[%s1329] sm:$0x1]
      %v1336 = vunpack.c.l.b16 %v1324
      %v1337 = vunpack.c.l.b16 %v1325
      %v1338 = vunpack.c.l.b16 %v1326
      %v1339 = vunpack.c.l.b16 %v1327
      %v1340 = vunpack.c.l.b16 %v1328
      %v1341 = vpack.c.b16 %v1337, %v1336
      %v1342 = vpack.c.b16 %v1339, %v1338
      %v1343 = vpack.c.b16 %v1340, %v1340
      %v1344 = vrot.slane %v1341, 2
      %v1345 = vrot.slane %v1342, 2
      %v1346 = vsel %vm594, %v1344, %v1345
      %v1347 = vrot.slane %v1343, 2
      %v1348 = vsel %vm594, %v1345, %v1347
      %v1350 = vsel %vm446, %v1346, 0
      %v1353 = vsel %vm446, %v1348, 0
      %v1356 = vsel %vm453, %v1330, 0
      %1358 = vmatprep.subr.bf16.mxu0 0
      %1359 = vmatpush1.bf16.msra.mxu0 0
      %1360 = vmatprep.subr.bf16.mxu0 0
      %1361 = vmatpush1.bf16.msra.mxu0 0
      %1362 = vmatprep.subr.bf16.mxu0 0
      %1363 = vmatpush1.bf16.msra.mxu0 0
      %1364 = vmatprep.subr.bf16.mxu0 0
      %1365 = vmatpush1.bf16.msra.mxu0 0
      %1366 = vmatprep.subr.bf16.mxu0 0
      %1367 = vmatpush1.bf16.msra.mxu0 0
      %1368 = vmatprep.subr.bf16.mxu0 0
      %1369 = vmatpush1.bf16.msra.mxu0 0
      %1370 = vmatprep.subr.bf16.mxu0 0
      %1371 = vmatpush1.bf16.msra.mxu0 0
      %1372 = vmatprep.subr.bf16.mxu0 0
      %1373 = vmatpush1.bf16.msra.mxu0 %v1356
      %1374 = vmatprep.subr.bf16.mxu0 0
      %1375 = vmatpush2.bf16.msra.mxu0 0
      %1376 = vmatprep.subr.bf16.mxu0 0
      %1377 = vmatpush2.bf16.msra.mxu0 0
      %1378 = vmatprep.subr.bf16.mxu0 0
      %1379 = vmatpush2.bf16.msra.mxu0 0
      %1380 = vmatprep.subr.bf16.mxu0 0
      %1381 = vmatpush2.bf16.msra.mxu0 0
      %1382 = vmatprep.subr.bf16.mxu0 0
      %1383 = vmatpush2.bf16.msra.mxu0 0
      %1384 = vmatprep.subr.bf16.mxu0 0
      %1385 = vmatpush2.bf16.msra.mxu0 0
      %1386 = vmatprep.subr.bf16.mxu0 0
      %1387 = vmatpush2.bf16.msra.mxu0 0
      %1388 = vmatprep.subr.bf16.mxu0 0
      %1389 = vmatpush2.bf16.msra.mxu0 0
      %1390 = vmatprep.mubr.bf16.mxu0 0
      %1391 = vmatmul.mubr.bf16.gmra.mxu0 %v1350
      %v1392 = vpop.f32.mrf.mxu0
      %v1393 = vadd.f32 0.0, %v1392
      %v1394 = vpop.f32.mrf.mxu0
      %v1395 = vpop.f32.mrf.mxu0
      %v1396 = vadd.f32 0.0, %v1395
      %v1397 = vpop.f32.mrf.mxu0
      %1398 = vmatprep.mubr.bf16.mxu0 0
      %1399 = vmatmul.mubr.bf16.gmra.mxu0 %v1353
      %v1400 = vpop.f32.mrf.mxu0
      %v1401 = vadd.f32 0.0, %v1400
      %v1402 = vpop.f32.mrf.mxu0
      %v1403 = vpop.f32.mrf.mxu0
      %v1404 = vadd.f32 0.0, %v1403
      %v1405 = vpop.f32.mrf.mxu0
      %1406 = vdwg.mxu0
      %v1407 = vadd.f32 %v1320, %v1393
      %v1408 = vadd.f32 %v1321, %v1396
      %v1409 = vadd.f32 %v1322, %v1401
      %v1410 = vadd.f32 %v1323, %v1404
      %s1411 = scalar_lea.vmem %s399, 20
      %v1412 = vld [vmem:[%s1411] sm:$0xf]
      %v1413 = vld [vmem:[%s1411 + $0x4] sm:$0xf]
      %v1414 = vld [vmem:[%s1411 + $0x8] sm:$0xf]
      %v1415 = vld [vmem:[%s1411 + $0xc] sm:$0xf]
      %s1416 = scalar_lea.vmem %s4, 12
      %v1417 = vld [vmem:[%s1416] sm:$0x1]
      %v1422 = vunpack.c.l.b16 %v1412
      %v1423 = vunpack.c.l.b16 %v1413
      %v1424 = vunpack.c.l.b16 %v1414
      %v1425 = vunpack.c.l.b16 %v1415
      %v1426 = vpack.c.b16 %v1423, %v1422
      %v1427 = vpack.c.b16 %v1425, %v1424
      %v1429 = vsel %vm446, %v1426, 0
      %v1432 = vsel %vm446, %v1427, 0
      %v1435 = vsel %vm453, %v1417, 0
      %1437 = vmatprep.subr.bf16.mxu0 0
      %1438 = vmatpush1.bf16.msra.mxu0 0
      %1439 = vmatprep.subr.bf16.mxu0 0
      %1440 = vmatpush1.bf16.msra.mxu0 0
      %1441 = vmatprep.subr.bf16.mxu0 0
      %1442 = vmatpush1.bf16.msra.mxu0 0
      %1443 = vmatprep.subr.bf16.mxu0 0
      %1444 = vmatpush1.bf16.msra.mxu0 0
      %1445 = vmatprep.subr.bf16.mxu0 0
      %1446 = vmatpush1.bf16.msra.mxu0 0
      %1447 = vmatprep.subr.bf16.mxu0 0
      %1448 = vmatpush1.bf16.msra.mxu0 0
      %1449 = vmatprep.subr.bf16.mxu0 0
      %1450 = vmatpush1.bf16.msra.mxu0 0
      %1451 = vmatprep.subr.bf16.mxu0 0
      %1452 = vmatpush1.bf16.msra.mxu0 %v1435
      %1453 = vmatprep.subr.bf16.mxu0 0
      %1454 = vmatpush2.bf16.msra.mxu0 0
      %1455 = vmatprep.subr.bf16.mxu0 0
      %1456 = vmatpush2.bf16.msra.mxu0 0
      %1457 = vmatprep.subr.bf16.mxu0 0
      %1458 = vmatpush2.bf16.msra.mxu0 0
      %1459 = vmatprep.subr.bf16.mxu0 0
      %1460 = vmatpush2.bf16.msra.mxu0 0
      %1461 = vmatprep.subr.bf16.mxu0 0
      %1462 = vmatpush2.bf16.msra.mxu0 0
      %1463 = vmatprep.subr.bf16.mxu0 0
      %1464 = vmatpush2.bf16.msra.mxu0 0
      %1465 = vmatprep.subr.bf16.mxu0 0
      %1466 = vmatpush2.bf16.msra.mxu0 0
      %1467 = vmatprep.subr.bf16.mxu0 0
      %1468 = vmatpush2.bf16.msra.mxu0 0
      %1469 = vmatprep.mubr.bf16.mxu0 0
      %1470 = vmatmul.mubr.bf16.gmra.mxu0 %v1429
      %v1471 = vpop.f32.mrf.mxu0
      %v1472 = vadd.f32 0.0, %v1471
      %v1473 = vpop.f32.mrf.mxu0
      %v1474 = vpop.f32.mrf.mxu0
      %v1475 = vadd.f32 0.0, %v1474
      %v1476 = vpop.f32.mrf.mxu0
      %1477 = vmatprep.mubr.bf16.mxu0 0
      %1478 = vmatmul.mubr.bf16.gmra.mxu0 %v1432
      %v1479 = vpop.f32.mrf.mxu0
      %v1480 = vadd.f32 0.0, %v1479
      %v1481 = vpop.f32.mrf.mxu0
      %v1482 = vpop.f32.mrf.mxu0
      %v1483 = vadd.f32 0.0, %v1482
      %v1484 = vpop.f32.mrf.mxu0
      %1485 = vdwg.mxu0
      %v1486 = vadd.f32 %v1407, %v1472
      %v1487 = vadd.f32 %v1408, %v1475
      %v1488 = vadd.f32 %v1409, %v1480
      %v1489 = vadd.f32 %v1410, %v1483
      %s1490 = scalar_lea.vmem %s412, 20
      %v1491 = vld [vmem:[%s1490] sm:$0xf]
      %v1492 = vld [vmem:[%s1490 + $0x4] sm:$0xf]
      %v1493 = vld [vmem:[%s1490 + $0x8] sm:$0xf]
      %v1494 = vld [vmem:[%s1490 + $0xc] sm:$0xf]
      %s1495 = scalar_lea.vmem %s4, 13
      %v1496 = vld [vmem:[%s1495] sm:$0x1]
      %v1501 = vunpack.c.l.b16 %v1491
      %v1502 = vunpack.c.l.b16 %v1492
      %v1503 = vunpack.c.l.b16 %v1493
      %v1504 = vunpack.c.l.b16 %v1494
      %v1505 = vpack.c.b16 %v1502, %v1501
      %v1506 = vpack.c.b16 %v1504, %v1503
      %v1508 = vsel %vm446, %v1505, 0
      %v1511 = vsel %vm446, %v1506, 0
      %v1514 = vsel %vm453, %v1496, 0
      %1516 = vmatprep.subr.bf16.mxu0 0
      %1517 = vmatpush1.bf16.msra.mxu0 0
      %1518 = vmatprep.subr.bf16.mxu0 0
      %1519 = vmatpush1.bf16.msra.mxu0 0
      %1520 = vmatprep.subr.bf16.mxu0 0
      %1521 = vmatpush1.bf16.msra.mxu0 0
      %1522 = vmatprep.subr.bf16.mxu0 0
      %1523 = vmatpush1.bf16.msra.mxu0 0
      %1524 = vmatprep.subr.bf16.mxu0 0
      %1525 = vmatpush1.bf16.msra.mxu0 0
      %1526 = vmatprep.subr.bf16.mxu0 0
      %1527 = vmatpush1.bf16.msra.mxu0 0
      %1528 = vmatprep.subr.bf16.mxu0 0
      %1529 = vmatpush1.bf16.msra.mxu0 0
      %1530 = vmatprep.subr.bf16.mxu0 0
      %1531 = vmatpush1.bf16.msra.mxu0 %v1514
      %1532 = vmatprep.subr.bf16.mxu0 0
      %1533 = vmatpush2.bf16.msra.mxu0 0
      %1534 = vmatprep.subr.bf16.mxu0 0
      %1535 = vmatpush2.bf16.msra.mxu0 0
      %1536 = vmatprep.subr.bf16.mxu0 0
      %1537 = vmatpush2.bf16.msra.mxu0 0
      %1538 = vmatprep.subr.bf16.mxu0 0
      %1539 = vmatpush2.bf16.msra.mxu0 0
      %1540 = vmatprep.subr.bf16.mxu0 0
      %1541 = vmatpush2.bf16.msra.mxu0 0
      %1542 = vmatprep.subr.bf16.mxu0 0
      %1543 = vmatpush2.bf16.msra.mxu0 0
      %1544 = vmatprep.subr.bf16.mxu0 0
      %1545 = vmatpush2.bf16.msra.mxu0 0
      %1546 = vmatprep.subr.bf16.mxu0 0
      %1547 = vmatpush2.bf16.msra.mxu0 0
      %1548 = vmatprep.mubr.bf16.mxu0 0
      %1549 = vmatmul.mubr.bf16.gmra.mxu0 %v1508
      %v1550 = vpop.f32.mrf.mxu0
      %v1551 = vadd.f32 0.0, %v1550
      %v1552 = vpop.f32.mrf.mxu0
      %v1553 = vpop.f32.mrf.mxu0
      %v1554 = vadd.f32 0.0, %v1553
      %v1555 = vpop.f32.mrf.mxu0
      %1556 = vmatprep.mubr.bf16.mxu0 0
      %1557 = vmatmul.mubr.bf16.gmra.mxu0 %v1511
      %v1558 = vpop.f32.mrf.mxu0
      %v1559 = vadd.f32 0.0, %v1558
      %v1560 = vpop.f32.mrf.mxu0
      %v1561 = vpop.f32.mrf.mxu0
      %v1562 = vadd.f32 0.0, %v1561
      %v1563 = vpop.f32.mrf.mxu0
      %1564 = vdwg.mxu0
      %v1565 = vadd.f32 %v1486, %v1551
      %v1566 = vadd.f32 %v1487, %v1554
      %v1567 = vadd.f32 %v1488, %v1559
      %v1568 = vadd.f32 %v1489, %v1562
      %v1569 = vld [vmem:[%s1411] sm:$0xc]
      %v1570 = vld [vmem:[%s1411 + $0x4] sm:$0xf]
      %v1571 = vld [vmem:[%s1411 + $0x8] sm:$0xf]
      %v1572 = vld [vmem:[%s1411 + $0xc] sm:$0xf]
      %v1573 = vld [vmem:[%s1411 + $0x10] sm:$0x3]
      %s1574 = scalar_lea.vmem %s4, 14
      %v1575 = vld [vmem:[%s1574] sm:$0x1]
      %v1581 = vunpack.c.l.b16 %v1569
      %v1582 = vunpack.c.l.b16 %v1570
      %v1583 = vunpack.c.l.b16 %v1571
      %v1584 = vunpack.c.l.b16 %v1572
      %v1585 = vunpack.c.l.b16 %v1573
      %v1586 = vpack.c.b16 %v1582, %v1581
      %v1587 = vpack.c.b16 %v1584, %v1583
      %v1588 = vpack.c.b16 %v1585, %v1585
      %v1589 = vrot.slane %v1586, 2
      %v1590 = vrot.slane %v1587, 2
      %v1591 = vsel %vm594, %v1589, %v1590
      %v1592 = vrot.slane %v1588, 2
      %v1593 = vsel %vm594, %v1590, %v1592
      %v1595 = vsel %vm446, %v1591, 0
      %v1598 = vsel %vm446, %v1593, 0
      %v1601 = vsel %vm453, %v1575, 0
      %1603 = vmatprep.subr.bf16.mxu0 0
      %1604 = vmatpush1.bf16.msra.mxu0 0
      %1605 = vmatprep.subr.bf16.mxu0 0
      %1606 = vmatpush1.bf16.msra.mxu0 0
      %1607 = vmatprep.subr.bf16.mxu0 0
      %1608 = vmatpush1.bf16.msra.mxu0 0
      %1609 = vmatprep.subr.bf16.mxu0 0
      %1610 = vmatpush1.bf16.msra.mxu0 0
      %1611 = vmatprep.subr.bf16.mxu0 0
      %1612 = vmatpush1.bf16.msra.mxu0 0
      %1613 = vmatprep.subr.bf16.mxu0 0
      %1614 = vmatpush1.bf16.msra.mxu0 0
      %1615 = vmatprep.subr.bf16.mxu0 0
      %1616 = vmatpush1.bf16.msra.mxu0 0
      %1617 = vmatprep.subr.bf16.mxu0 0
      %1618 = vmatpush1.bf16.msra.mxu0 %v1601
      %1619 = vmatprep.subr.bf16.mxu0 0
      %1620 = vmatpush2.bf16.msra.mxu0 0
      %1621 = vmatprep.subr.bf16.mxu0 0
      %1622 = vmatpush2.bf16.msra.mxu0 0
      %1623 = vmatprep.subr.bf16.mxu0 0
      %1624 = vmatpush2.bf16.msra.mxu0 0
      %1625 = vmatprep.subr.bf16.mxu0 0
      %1626 = vmatpush2.bf16.msra.mxu0 0
      %1627 = vmatprep.subr.bf16.mxu0 0
      %1628 = vmatpush2.bf16.msra.mxu0 0
      %1629 = vmatprep.subr.bf16.mxu0 0
      %1630 = vmatpush2.bf16.msra.mxu0 0
      %1631 = vmatprep.subr.bf16.mxu0 0
      %1632 = vmatpush2.bf16.msra.mxu0 0
      %1633 = vmatprep.subr.bf16.mxu0 0
      %1634 = vmatpush2.bf16.msra.mxu0 0
      %1635 = vmatprep.mubr.bf16.mxu0 0
      %1636 = vmatmul.mubr.bf16.gmra.mxu0 %v1595
      %v1637 = vpop.f32.mrf.mxu0
      %v1638 = vadd.f32 0.0, %v1637
      %v1639 = vpop.f32.mrf.mxu0
      %v1640 = vpop.f32.mrf.mxu0
      %v1641 = vadd.f32 0.0, %v1640
      %v1642 = vpop.f32.mrf.mxu0
      %1643 = vmatprep.mubr.bf16.mxu0 0
      %1644 = vmatmul.mubr.bf16.gmra.mxu0 %v1598
      %v1645 = vpop.f32.mrf.mxu0
      %v1646 = vadd.f32 0.0, %v1645
      %v1647 = vpop.f32.mrf.mxu0
      %v1648 = vpop.f32.mrf.mxu0
      %v1649 = vadd.f32 0.0, %v1648
      %v1650 = vpop.f32.mrf.mxu0
      %1651 = vdwg.mxu0
      %v1652 = vadd.f32 %v1565, %v1638
      %v1653 = vadd.f32 %v1566, %v1641
      %v1654 = vadd.f32 %v1567, %v1646
      %v1655 = vadd.f32 %v1568, %v1649
      %v1656 = vld [vmem:[%s1490] sm:$0xc]
      %v1657 = vld [vmem:[%s1490 + $0x4] sm:$0xf]
      %v1658 = vld [vmem:[%s1490 + $0x8] sm:$0xf]
      %v1659 = vld [vmem:[%s1490 + $0xc] sm:$0xf]
      %v1660 = vld [vmem:[%s1490 + $0x10] sm:$0x3]
      %s1661 = scalar_lea.vmem %s4, 15
      %v1662 = vld [vmem:[%s1661] sm:$0x1]
      %v1668 = vunpack.c.l.b16 %v1656
      %v1669 = vunpack.c.l.b16 %v1657
      %v1670 = vunpack.c.l.b16 %v1658
      %v1671 = vunpack.c.l.b16 %v1659
      %v1672 = vunpack.c.l.b16 %v1660
      %v1673 = vpack.c.b16 %v1669, %v1668
      %v1674 = vpack.c.b16 %v1671, %v1670
      %v1675 = vpack.c.b16 %v1672, %v1672
      %v1676 = vrot.slane %v1673, 2
      %v1677 = vrot.slane %v1674, 2
      %v1678 = vsel %vm594, %v1676, %v1677
      %v1679 = vrot.slane %v1675, 2
      %v1680 = vsel %vm594, %v1677, %v1679
      %v1682 = vsel %vm446, %v1678, 0
      %v1685 = vsel %vm446, %v1680, 0
      %v1688 = vsel %vm453, %v1662, 0
      %1690 = vmatprep.subr.bf16.mxu0 0
      %1691 = vmatpush1.bf16.msra.mxu0 0
      %1692 = vmatprep.subr.bf16.mxu0 0
      %1693 = vmatpush1.bf16.msra.mxu0 0
      %1694 = vmatprep.subr.bf16.mxu0 0
      %1695 = vmatpush1.bf16.msra.mxu0 0
      %1696 = vmatprep.subr.bf16.mxu0 0
      %1697 = vmatpush1.bf16.msra.mxu0 0
      %1698 = vmatprep.subr.bf16.mxu0 0
      %1699 = vmatpush1.bf16.msra.mxu0 0
      %1700 = vmatprep.subr.bf16.mxu0 0
      %1701 = vmatpush1.bf16.msra.mxu0 0
      %1702 = vmatprep.subr.bf16.mxu0 0
      %1703 = vmatpush1.bf16.msra.mxu0 0
      %1704 = vmatprep.subr.bf16.mxu0 0
      %1705 = vmatpush1.bf16.msra.mxu0 %v1688
      %1706 = vmatprep.subr.bf16.mxu0 0
      %1707 = vmatpush2.bf16.msra.mxu0 0
      %1708 = vmatprep.subr.bf16.mxu0 0
      %1709 = vmatpush2.bf16.msra.mxu0 0
      %1710 = vmatprep.subr.bf16.mxu0 0
      %1711 = vmatpush2.bf16.msra.mxu0 0
      %1712 = vmatprep.subr.bf16.mxu0 0
      %1713 = vmatpush2.bf16.msra.mxu0 0
      %1714 = vmatprep.subr.bf16.mxu0 0
      %1715 = vmatpush2.bf16.msra.mxu0 0
      %1716 = vmatprep.subr.bf16.mxu0 0
      %1717 = vmatpush2.bf16.msra.mxu0 0
      %1718 = vmatprep.subr.bf16.mxu0 0
      %1719 = vmatpush2.bf16.msra.mxu0 0
      %1720 = vmatprep.subr.bf16.mxu0 0
      %1721 = vmatpush2.bf16.msra.mxu0 0
      %1722 = vmatprep.mubr.bf16.mxu0 0
      %1723 = vmatmul.mubr.bf16.gmra.mxu0 %v1682
      %v1724 = vpop.f32.mrf.mxu0
      %v1725 = vadd.f32 0.0, %v1724
      %v1726 = vpop.f32.mrf.mxu0
      %v1727 = vpop.f32.mrf.mxu0
      %v1728 = vadd.f32 0.0, %v1727
      %v1729 = vpop.f32.mrf.mxu0
      %1730 = vmatprep.mubr.bf16.mxu0 0
      %1731 = vmatmul.mubr.bf16.gmra.mxu0 %v1685
      %v1732 = vpop.f32.mrf.mxu0
      %v1733 = vadd.f32 0.0, %v1732
      %v1734 = vpop.f32.mrf.mxu0
      %v1735 = vpop.f32.mrf.mxu0
      %v1736 = vadd.f32 0.0, %v1735
      %v1737 = vpop.f32.mrf.mxu0
      %1738 = vdwg.mxu0
      %v1739 = vadd.f32 %v1652, %v1725
      %v1740 = vadd.f32 %v1653, %v1728
      %v1741 = vadd.f32 %v1654, %v1733
      %v1742 = vadd.f32 %v1655, %v1736
      %v1743 = vld [vmem:[%s5] sm:$0x1]
      %v1745 = vlaneseq
      %v1746 = vshrl.u32 %v1745, 7
      %v1747 = vsub.s32 0, %v1746
      %v1748 = vrot.slane %v1743, %v1747
      %v1750 = vadd.f32 %v1739, %v1748
      %v1751 = vadd.f32 %v1740, %v1748
      %v1752 = vadd.f32 %v1741, %v1748
      %v1753 = vadd.f32 %v1742, %v1748
      %v1754 = vmax.f32 %v1750, 0.0
      %v1755 = vmax.f32 %v1751, 0.0
      %v1756 = vmax.f32 %v1752, 0.0
      %v1757 = vmax.f32 %v1753, 0.0
      %v1758 = vpack.c.bf16 %v1755, %v1754
      %v1759 = vpack.c.bf16 %v1757, %v1756
      %v1762 = vunpack.c.l.b16 %v1758
      %v1763 = vunpack.c.h.b16 %v1758
      %v1764 = vunpack.c.l.b16 %v1759
      %v1765 = vunpack.c.h.b16 %v1759
      %v1766 = vpack.c.b16 %v1762, %v1762
      %v1767 = vpack.c.b16 %v1763, %v1763
      %v1768 = vpack.c.b16 %v1764, %v1764
      %v1769 = vpack.c.b16 %v1765, %v1765
      %vm1774 = vcmask 11264
      %1775 = vst.msk [vmem:[%s423] sm:$0xf] %vm1774, %v1766
      %1776 = vst.msk [vmem:[%s423 + $0x4] sm:$0xf] %vm1774, %v1767
      %1777 = vst.msk [vmem:[%s423 + $0x8] sm:$0xf] %vm1774, %v1768
      %1778 = vst.msk [vmem:[%s423 + $0xc] sm:$0xf] %vm1774, %v1769
      %p1779 = scmp.lt.s32.totalorder %s21, 1
      %s1780 = scalar_select %p1779, %s21, 1
      %p1781 = scmp.lt.s32.totalorder %s22, 7
      %s1782 = scalar_select %p1781, %s22, 7
      %s1783 = smul.addr %s1782, 4
      %s1784 = smul.addr %s1780, 32
      %s1785 = sadd.s32 %s1783, %s1784
      %s1786 = smul.addr %s1785, 4
      %s1787 = scalar_lea.vmem %s6, %s1786
      // Predicated region
      $region45: #{enc_forward.8} parent=43 // pred_check
        %p1788 = pneg %p207
      $region46: #{enc_forward.8} parent=43 // pred_check_branch
        %1790 = sbr.rel (%p1788) target = $region48
      $region47: #{enc_forward.8} parent=43 // pred_region
        _
      $region48: #{enc_forward.8} parent=43 // pred_fallthru
        _
    $region44: #{enc_forward.8} parent=5 // pred_fallthru
      _
    %p1791 = scmp.le.s32.totalorder 2, %s12
    // Predicated region
    $region49: #{enc_forward.8} parent=5 // pred_check
      %p1792 = pneg %p1791
    $region50: #{enc_forward.8} parent=5 // pred_check_branch
      %1794 = sbr.rel (%p1792) target = $region52
    $region51: #{enc_forward.8} parent=5 // pred_region
      %s1795 = ssub.s32 %s12, 2
      // Predicated region
      $region53: #{enc_forward.8} parent=51 // pred_check
        %p1796 = pneg %p213
      $region54: #{enc_forward.8} parent=51 // pred_check_branch
        %1798 = sbr.rel (%p1796) target = $region56
      $region55: #{enc_forward.8} parent=51 // pred_region
        %p1799 = scmp.lt.s32.totalorder %s23, 1
        %s1800 = scalar_select %p1799, %s23, 1
        %p1801 = scmp.lt.s32.totalorder %s24, 7
        %s1802 = scalar_select %p1801, %s24, 7
        %s1803 = smul.addr %s1802, 4
        %s1804 = smul.addr %s1800, 32
        %s1805 = sadd.s32 %s1803, %s1804
        %s1806 = smul.addr %s1805, 4
        %s1807 = scalar_lea.vmem %s6, %s1806
      $region56: #{enc_forward.8} parent=51 // pred_fallthru
        _
    $region52: #{enc_forward.8} parent=5 // pred_fallthru
      _
  $region6: #{enc_forward.8} parent=0 // loop_footer
    %s16 = sadd.s32 1, %s12
  $region7: #{enc_forward.8} parent=0 // loop_footer_branch
    %11 = sbr.rel target = $region3
  $region8: #{enc_forward.8} parent=0 // loop_exit
    _

// kernel: enc_forward.9
$region0: #{enc_forward.9}
  #allocation0 [shape = 'u32[]', space=smem, size = 0x4, offset = 0x4, fixed_abs, tag = 'smem constant byte address 0x4 - core index']
  #allocation1 [shape = 'u32[144,128]{1,0:T(1,128)}', space=vmem, size = 0x12000, scoped, tag = 'internal scratch']
  %s0 = inlined_call_operand.vmem [shape: bf16[2,10,40,2], index: 0, kind: input, shape index: {}, may-alias: {0,1,2}]
  %s1 = inlined_call_operand.vmem [shape: bf16[2,10,40,2], index: 1, kind: input, shape index: {}, may-alias: {0,1,2}]
  %s2 = inlined_call_operand.vmem [shape: bf16[2,10,40,2], index: 2, kind: input, shape index: {}, may-alias: {0,1,2}]
  %s3 = inlined_call_operand.vmem [shape: bf16[9,2,8], index: 3, kind: input, shape index: {}]
  %s4 = inlined_call_operand.vmem [shape: bf16[2,8,32,2], index: 4, kind: input, shape index: {}]
  %s5 = inlined_call_operand.vmem [shape: bf16[2,8], index: 5, kind: input, shape index: {}]
  %s6 = inlined_call_operand.vmem [shape: f32[1,1,8], index: 6, kind: input, shape index: {}]
  %s7 = inlined_call_operand.vmem [shape: bf16[2,8,32,8], index: 7, kind: output, shape index: {}]
  %s8 = sld [smem:[#allocation0]]
  $region61: #{enc_forward.9} parent=0
    _
  %s10 = ssub.s32 1, %s8
  %s11 = scalar_select 0, %s10, %s8
  loop: start=0, step=1, limit=18
  $region2: #{enc_forward.9} parent=0 // loop_pre_header
    _
  $region3: #{enc_forward.9} parent=0 // loop_header
    %s13 = sphi 0, %s17
    %p14 = scmp.ge.s32.totalorder %s13, 18
    %s20 = sphi 0, %s32
    %s21 = sphi 0, %s28
    %s22 = sphi 0, %s20
    %s23 = sphi 0, %s21
    %s24 = sphi 0, %s22
    %s25 = sphi 0, %s23
    %s37 = sphi 0, %s39
    %s40 = sphi 0, %s37
    %s41 = sphi 0, %s40
    %s57 = sphi 0, %s41
    %s67 = sphi 0, %s69
    %s70 = sphi 0, %s67
    %s71 = sphi 0, %s70
    %s87 = sphi 0, %s71
    %s97 = sphi 0, %s99
    %s100 = sphi 0, %s97
    %s101 = sphi 0, %s100
    %s117 = sphi 0, %s101
    %s121 = sphi 0, %s121
    %s123 = sphi 0, %s121
    %s124 = sphi 0, %s123
    %s138 = sphi 0, %s124
    %s146 = sphi 0, %s148
    %s149 = sphi 0, %s146
    %s150 = sphi 0, %s149
    %s166 = sphi 0, %s150
    %s170 = sphi 0, %s170
    %s172 = sphi 0, %s170
    %s173 = sphi 0, %s172
    %s187 = sphi 0, %s173
    %s191 = sphi 0, %s191
    %s193 = sphi 0, %s191
    %s194 = sphi 0, %s193
    %s208 = sphi 0, %s194
    %s216 = sphi 0, %s218
    %s219 = sphi 0, %s216
    %s220 = sphi 0, %s219
    %s236 = sphi 0, %s220
  $region4: #{enc_forward.9} parent=0 // loop_header_branch
    %16 = sbr.rel (%p14) target = $region8
  $region5: #{enc_forward.9} parent=0 // loop_body
    %s18 = ssub.s32 %s13, 1
    %s19 = ssub.s32 %s13, 2
    %s26 = sadd.s32 1, %s21
    %p27 = scmp.ge.s32.totalorder %s26, 8
    %s28 = scalar_select %p27, 0, %s26
    %s29 = sadd.s32 1, %s20
    %s30 = scalar_select %p27, %s29, %s20
    %p31 = scmp.ge.s32.totalorder %s30, 2
    %s32 = scalar_select %p31, 0, %s30
    %s33 = ssub.s32 %s20, %s32
    %s34 = ssub.s32 %s21, %s28
    %s35 = sor.u32 %s33, %s34
    %p36 = scmp.eq.s32.totalorder %s35, 0
    %s38 = sadd.s32 %s37, 1
    %s39 = scalar_select %p36, %s37, %s38
    %p42 = pneg %p36
    %p43 = scmp.eq.s32.totalorder %s13, 15
    %p44 = por %p42, %p43
    %p45 = scmp.ne.s32.totalorder %s37, %s40
    %p46 = scmp.eq.s32.totalorder %s13, 0
    %p47 = por %p45, %p46
    %p48 = scmp.ne.s32.totalorder %s37, %s40
    %p49 = scmp.eq.s32.totalorder %s18, 15
    %p50 = por %p48, %p49
    %p51 = scmp.ne.s32.totalorder %s40, %s41
    %p52 = scmp.eq.s32.totalorder %s18, 0
    %p53 = por %p51, %p52
    %p54 = scmp.ne.s32.totalorder %s40, %s41
    %p55 = scmp.eq.s32.totalorder %s19, 15
    %p56 = por %p54, %p55
    %p58 = scmp.ne.s32.totalorder %s41, %s57
    %p59 = scmp.eq.s32.totalorder %s19, 0
    %p60 = por %p58, %p59
    %s61 = sadd.s32 %s21, 1
    %s62 = sadd.s32 %s28, 1
    %s63 = ssub.s32 %s20, %s32
    %s64 = ssub.s32 %s61, %s62
    %s65 = sor.u32 %s63, %s64
    %p66 = scmp.eq.s32.totalorder %s65, 0
    %s68 = sadd.s32 %s67, 1
    %s69 = scalar_select %p66, %s67, %s68
    %p72 = pneg %p66
    %p73 = scmp.eq.s32.totalorder %s13, 15
    %p74 = por %p72, %p73
    %p75 = scmp.ne.s32.totalorder %s67, %s70
    %p76 = scmp.eq.s32.totalorder %s13, 0
    %p77 = por %p75, %p76
    %p78 = scmp.ne.s32.totalorder %s67, %s70
    %p79 = scmp.eq.s32.totalorder %s18, 15
    %p80 = por %p78, %p79
    %p81 = scmp.ne.s32.totalorder %s70, %s71
    %p82 = scmp.eq.s32.totalorder %s18, 0
    %p83 = por %p81, %p82
    %p84 = scmp.ne.s32.totalorder %s70, %s71
    %p85 = scmp.eq.s32.totalorder %s19, 15
    %p86 = por %p84, %p85
    %p88 = scmp.ne.s32.totalorder %s71, %s87
    %p89 = scmp.eq.s32.totalorder %s19, 0
    %p90 = por %p88, %p89
    %s91 = sadd.s32 %s21, 2
    %s92 = sadd.s32 %s28, 2
    %s93 = ssub.s32 %s20, %s32
    %s94 = ssub.s32 %s91, %s92
    %s95 = sor.u32 %s93, %s94
    %p96 = scmp.eq.s32.totalorder %s95, 0
    %s98 = sadd.s32 %s97, 1
    %s99 = scalar_select %p96, %s97, %s98
    %p102 = pneg %p96
    %p103 = scmp.eq.s32.totalorder %s13, 15
    %p104 = por %p102, %p103
    %p105 = scmp.ne.s32.totalorder %s97, %s100
    %p106 = scmp.eq.s32.totalorder %s13, 0
    %p107 = por %p105, %p106
    %p108 = scmp.ne.s32.totalorder %s97, %s100
    %p109 = scmp.eq.s32.totalorder %s18, 15
    %p110 = por %p108, %p109
    %p111 = scmp.ne.s32.totalorder %s100, %s101
    %p112 = scmp.eq.s32.totalorder %s18, 0
    %p113 = por %p111, %p112
    %p114 = scmp.ne.s32.totalorder %s100, %s101
    %p115 = scmp.eq.s32.totalorder %s19, 15
    %p116 = por %p114, %p115
    %p118 = scmp.ne.s32.totalorder %s101, %s117
    %p119 = scmp.eq.s32.totalorder %s19, 0
    %p120 = por %p118, %p119
    %s122 = sadd.s32 %s121, 1
    %p125 = scmp.eq.s32.totalorder %s13, 15
    %p126 = scmp.ne.s32.totalorder %s121, %s123
    %p127 = scmp.eq.s32.totalorder %s13, 0
    %p128 = por %p126, %p127
    %p129 = scmp.ne.s32.totalorder %s121, %s123
    %p130 = scmp.eq.s32.totalorder %s18, 15
    %p131 = por %p129, %p130
    %p132 = scmp.ne.s32.totalorder %s123, %s124
    %p133 = scmp.eq.s32.totalorder %s18, 0
    %p134 = por %p132, %p133
    %p135 = scmp.ne.s32.totalorder %s123, %s124
    %p136 = scmp.eq.s32.totalorder %s19, 15
    %p137 = por %p135, %p136
    %p139 = scmp.ne.s32.totalorder %s124, %s138
    %p140 = scmp.eq.s32.totalorder %s19, 0
    %p141 = por %p139, %p140
    %s142 = ssub.s32 %s20, %s32
    %s143 = ssub.s32 %s21, %s28
    %s144 = sor.u32 %s142, %s143
    %p145 = scmp.eq.s32.totalorder %s144, 0
    %s147 = sadd.s32 %s146, 1
    %s148 = scalar_select %p145, %s146, %s147
    %p151 = pneg %p145
    %p152 = scmp.eq.s32.totalorder %s13, 15
    %p153 = por %p151, %p152
    %p154 = scmp.ne.s32.totalorder %s146, %s149
    %p155 = scmp.eq.s32.totalorder %s13, 0
    %p156 = por %p154, %p155
    %p157 = scmp.ne.s32.totalorder %s146, %s149
    %p158 = scmp.eq.s32.totalorder %s18, 15
    %p159 = por %p157, %p158
    %p160 = scmp.ne.s32.totalorder %s149, %s150
    %p161 = scmp.eq.s32.totalorder %s18, 0
    %p162 = por %p160, %p161
    %p163 = scmp.ne.s32.totalorder %s149, %s150
    %p164 = scmp.eq.s32.totalorder %s19, 15
    %p165 = por %p163, %p164
    %p167 = scmp.ne.s32.totalorder %s150, %s166
    %p168 = scmp.eq.s32.totalorder %s19, 0
    %p169 = por %p167, %p168
    %s171 = sadd.s32 %s170, 1
    %p174 = scmp.eq.s32.totalorder %s13, 15
    %p175 = scmp.ne.s32.totalorder %s170, %s172
    %p176 = scmp.eq.s32.totalorder %s13, 0
    %p177 = por %p175, %p176
    %p178 = scmp.ne.s32.totalorder %s170, %s172
    %p179 = scmp.eq.s32.totalorder %s18, 15
    %p180 = por %p178, %p179
    %p181 = scmp.ne.s32.totalorder %s172, %s173
    %p182 = scmp.eq.s32.totalorder %s18, 0
    %p183 = por %p181, %p182
    %p184 = scmp.ne.s32.totalorder %s172, %s173
    %p185 = scmp.eq.s32.totalorder %s19, 15
    %p186 = por %p184, %p185
    %p188 = scmp.ne.s32.totalorder %s173, %s187
    %p189 = scmp.eq.s32.totalorder %s19, 0
    %p190 = por %p188, %p189
    %s192 = sadd.s32 %s191, 1
    %p195 = scmp.eq.s32.totalorder %s13, 15
    %p196 = scmp.ne.s32.totalorder %s191, %s193
    %p197 = scmp.eq.s32.totalorder %s13, 0
    %p198 = por %p196, %p197
    %p199 = scmp.ne.s32.totalorder %s191, %s193
    %p200 = scmp.eq.s32.totalorder %s18, 15
    %p201 = por %p199, %p200
    %p202 = scmp.ne.s32.totalorder %s193, %s194
    %p203 = scmp.eq.s32.totalorder %s18, 0
    %p204 = por %p202, %p203
    %p205 = scmp.ne.s32.totalorder %s193, %s194
    %p206 = scmp.eq.s32.totalorder %s19, 15
    %p207 = por %p205, %p206
    %p209 = scmp.ne.s32.totalorder %s194, %s208
    %p210 = scmp.eq.s32.totalorder %s19, 0
    %p211 = por %p209, %p210
    %s212 = ssub.s32 %s20, %s32
    %s213 = ssub.s32 %s21, %s28
    %s214 = sor.u32 %s212, %s213
    %p215 = scmp.eq.s32.totalorder %s214, 0
    %s217 = sadd.s32 %s216, 1
    %s218 = scalar_select %p215, %s216, %s217
    %p221 = pneg %p215
    %p222 = scmp.eq.s32.totalorder %s13, 15
    %p223 = por %p221, %p222
    %p224 = scmp.ne.s32.totalorder %s216, %s219
    %p225 = scmp.eq.s32.totalorder %s13, 0
    %p226 = por %p224, %p225
    %p227 = scmp.ne.s32.totalorder %s216, %s219
    %p228 = scmp.eq.s32.totalorder %s18, 15
    %p229 = por %p227, %p228
    %p230 = scmp.ne.s32.totalorder %s219, %s220
    %p231 = scmp.eq.s32.totalorder %s18, 0
    %p232 = por %p230, %p231
    %p233 = scmp.ne.s32.totalorder %s219, %s220
    %p234 = scmp.eq.s32.totalorder %s19, 15
    %p235 = por %p233, %p234
    %p237 = scmp.ne.s32.totalorder %s220, %s236
    %p238 = scmp.eq.s32.totalorder %s19, 0
    %p239 = por %p237, %p238
    %p240 = scmp.le.s32.totalorder 1, %s13
    %p241 = scmp.lt.s32.totalorder %s13, 17
    %p242 = pnand %p240, %p241
    %p243 = pneg %p242
    // Predicated region
    $region9: #{enc_forward.9} parent=5 // pred_check
      _
    $region10: #{enc_forward.9} parent=5 // pred_check_branch
      %245 = sbr.rel (%p242) target = $region12
    $region11: #{enc_forward.9} parent=5 // pred_region
      %s246 = ssub.s32 %s13, 1
      // Predicated region
      $region13: #{enc_forward.9} parent=11 // pred_check
        %p247 = pneg %p134
      $region14: #{enc_forward.9} parent=11 // pred_check_branch
        %249 = sbr.rel (%p247) target = $region16
      $region15: #{enc_forward.9} parent=11 // pred_region
        _
      $region16: #{enc_forward.9} parent=11 // pred_fallthru
        _
      // Predicated region
      $region17: #{enc_forward.9} parent=11 // pred_check
        %p250 = pneg %p183
      $region18: #{enc_forward.9} parent=11 // pred_check_branch
        %252 = sbr.rel (%p250) target = $region20
      $region19: #{enc_forward.9} parent=11 // pred_region
        _
      $region20: #{enc_forward.9} parent=11 // pred_fallthru
        _
      // Predicated region
      $region21: #{enc_forward.9} parent=11 // pred_check
        %p253 = pneg %p204
      $region22: #{enc_forward.9} parent=11 // pred_check_branch
        %255 = sbr.rel (%p253) target = $region24
      $region23: #{enc_forward.9} parent=11 // pred_region
        _
      $region24: #{enc_forward.9} parent=11 // pred_fallthru
        _
    $region12: #{enc_forward.9} parent=5 // pred_fallthru
      _
    %p256 = scmp.lt.s32.totalorder %s13, 16
    // Predicated region
    $region25: #{enc_forward.9} parent=5 // pred_check
      %p257 = pneg %p256
    $region26: #{enc_forward.9} parent=5 // pred_check_branch
      %259 = sbr.rel (%p257) target = $region28
    $region27: #{enc_forward.9} parent=5 // pred_region
      // Predicated region
      $region29: #{enc_forward.9} parent=27 // pred_check
        %p260 = pneg %p47
      $region30: #{enc_forward.9} parent=27 // pred_check_branch
        %262 = sbr.rel (%p260) target = $region32
      $region31: #{enc_forward.9} parent=27 // pred_region
        %p263 = scmp.lt.s32.totalorder %s20, 1
        %s264 = scalar_select %p263, %s20, 1
        %p265 = scmp.lt.s32.totalorder %s21, 9
        %s266 = scalar_select %p265, %s21, 9
        %s267 = smul.addr %s266, 5
        %s268 = smul.addr %s264, 50
        %s269 = sadd.s32 %s267, %s268
        %s270 = smul.addr %s269, 4
        %s271 = scalar_lea.vmem %s0, %s270
      $region32: #{enc_forward.9} parent=27 // pred_fallthru
        _
      // Predicated region
      $region33: #{enc_forward.9} parent=27 // pred_check
        %p272 = pneg %p77
      $region34: #{enc_forward.9} parent=27 // pred_check_branch
        %274 = sbr.rel (%p272) target = $region36
      $region35: #{enc_forward.9} parent=27 // pred_region
        %s275 = sadd.s32 %s21, 1
        %p276 = scmp.lt.s32.totalorder %s20, 1
        %s277 = scalar_select %p276, %s20, 1
        %p278 = scmp.lt.s32.totalorder %s275, 9
        %s279 = scalar_select %p278, %s275, 9
        %s280 = smul.addr %s279, 5
        %s281 = smul.addr %s277, 50
        %s282 = sadd.s32 %s280, %s281
        %s283 = smul.addr %s282, 4
        %s284 = scalar_lea.vmem %s1, %s283
        %s285 = sadd.s32 %s21, 1
      $region36: #{enc_forward.9} parent=27 // pred_fallthru
        _
      // Predicated region
      $region37: #{enc_forward.9} parent=27 // pred_check
        %p286 = pneg %p107
      $region38: #{enc_forward.9} parent=27 // pred_check_branch
        %288 = sbr.rel (%p286) target = $region40
      $region39: #{enc_forward.9} parent=27 // pred_region
        %s289 = sadd.s32 %s21, 2
        %p290 = scmp.lt.s32.totalorder %s20, 1
        %s291 = scalar_select %p290, %s20, 1
        %p292 = scmp.lt.s32.totalorder %s289, 9
        %s293 = scalar_select %p292, %s289, 9
        %s294 = smul.addr %s293, 5
        %s295 = smul.addr %s291, 50
        %s296 = sadd.s32 %s294, %s295
        %s297 = smul.addr %s296, 4
        %s298 = scalar_lea.vmem %s2, %s297
        %s299 = sadd.s32 %s21, 2
      $region40: #{enc_forward.9} parent=27 // pred_fallthru
        _
      // Predicated region
      $region41: #{enc_forward.9} parent=27 // pred_check
        %p300 = pneg %p156
      $region42: #{enc_forward.9} parent=27 // pred_check_branch
        %302 = sbr.rel (%p300) target = $region44
      $region43: #{enc_forward.9} parent=27 // pred_region
        %p303 = scmp.lt.s32.totalorder %s20, 1
        %s304 = scalar_select %p303, %s20, 1
        %p305 = scmp.lt.s32.totalorder %s21, 7
        %s306 = scalar_select %p305, %s21, 7
        %s307 = smul.addr %s306, 4
        %s308 = smul.addr %s304, 32
        %s309 = sadd.s32 %s307, %s308
        %s310 = smul.addr %s309, 4
        %s311 = scalar_lea.vmem %s4, %s310
      $region44: #{enc_forward.9} parent=27 // pred_fallthru
        _
    $region28: #{enc_forward.9} parent=5 // pred_fallthru
      _
    %p312 = scmp.le.s32.totalorder 1, %s13
    %p313 = scmp.lt.s32.totalorder %s13, 17
    %p314 = pnand %p312, %p313
    %p315 = pneg %p314
    // Predicated region
    $region45: #{enc_forward.9} parent=5 // pred_check
      _
    $region46: #{enc_forward.9} parent=5 // pred_check_branch
      %317 = sbr.rel (%p314) target = $region48
    $region47: #{enc_forward.9} parent=5 // pred_region
      %s318 = ssub.s32 %s13, 1
      %p319 = scmp.lt.s32.totalorder %s22, 1
      %s320 = scalar_select %p319, %s22, 1
      %p321 = scmp.lt.s32.totalorder %s23, 9
      %s322 = scalar_select %p321, %s23, 9
      %s323 = smul.addr %s322, 5
      %s324 = smul.addr %s320, 50
      %s325 = sadd.s32 %s323, %s324
      %s326 = smul.addr %s325, 4
      %s327 = scalar_lea.vmem %s0, %s326
      %p328 = pneg %p53
      %p329 = pneg %p50
      %s330 = sadd.s32 %s23, 1
      %p331 = scmp.lt.s32.totalorder %s22, 1
      %s332 = scalar_select %p331, %s22, 1
      %p333 = scmp.lt.s32.totalorder %s330, 9
      %s334 = scalar_select %p333, %s330, 9
      %s335 = smul.addr %s334, 5
      %s336 = smul.addr %s332, 50
      %s337 = sadd.s32 %s335, %s336
      %s338 = smul.addr %s337, 4
      %s339 = scalar_lea.vmem %s1, %s338
      %p340 = pneg %p83
      %p341 = pneg %p80
      %s342 = sadd.s32 %s23, 2
      %p343 = scmp.lt.s32.totalorder %s22, 1
      %s344 = scalar_select %p343, %s22, 1
      %p345 = scmp.lt.s32.totalorder %s342, 9
      %s346 = scalar_select %p345, %s342, 9
      %s347 = smul.addr %s346, 5
      %s348 = smul.addr %s344, 50
      %s349 = sadd.s32 %s347, %s348
      %s350 = smul.addr %s349, 4
      %s351 = scalar_lea.vmem %s2, %s350
      %p352 = pneg %p113
      %p353 = pneg %p110
      %p354 = pneg %p134
      %p355 = pneg %p131
      %p356 = scmp.lt.s32.totalorder %s22, 1
      %s357 = scalar_select %p356, %s22, 1
      %p358 = scmp.lt.s32.totalorder %s23, 7
      %s359 = scalar_select %p358, %s23, 7
      %s360 = smul.addr %s359, 4
      %s361 = smul.addr %s357, 32
      %s362 = sadd.s32 %s360, %s361
      %s363 = smul.addr %s362, 4
      %s364 = scalar_lea.vmem %s4, %s363
      %p365 = pneg %p162
      %p366 = pneg %p159
      %p367 = pneg %p183
      %p368 = pneg %p180
      %p369 = pneg %p204
      %p370 = pneg %p201
      %p371 = pneg %p232
      %p372 = pneg %p229
      %p373 = scmp.lt.s32.totalorder %s22, 1
      %s374 = scalar_select %p373, %s22, 1
      %p375 = scmp.lt.s32.totalorder %s23, 7
      %s376 = scalar_select %p375, %s23, 7
      %s377 = smul.addr %s376, 4
      %s378 = smul.addr %s374, 32
      %s379 = sadd.s32 %s377, %s378
      %s380 = smul.addr %s379, 4
      %s381 = scalar_lea.vmem %s7, %s380
      %p382 = scmp.lt.s32.totalorder %s22, 1
      %s383 = scalar_select %p382, %s22, 1
      %p384 = scmp.lt.s32.totalorder %s23, 9
      %s385 = scalar_select %p384, %s23, 9
      %s386 = smul.addr %s385, 5
      %s387 = smul.addr %s383, 50
      %s388 = sadd.s32 %s386, %s387
      %s389 = smul.addr %s388, 4
      %s390 = scalar_lea.vmem %s0, %s389
      %s391 = sadd.s32 %s23, 1
      %p392 = scmp.lt.s32.totalorder %s22, 1
      %s393 = scalar_select %p392, %s22, 1
      %p394 = scmp.lt.s32.totalorder %s391, 9
      %s395 = scalar_select %p394, %s391, 9
      %s396 = smul.addr %s395, 5
      %s397 = smul.addr %s393, 50
      %s398 = sadd.s32 %s396, %s397
      %s399 = smul.addr %s398, 4
      %s400 = scalar_lea.vmem %s1, %s399
      %s401 = sadd.s32 %s23, 1
      %s402 = sadd.s32 %s23, 2
      %p403 = scmp.lt.s32.totalorder %s22, 1
      %s404 = scalar_select %p403, %s22, 1
      %p405 = scmp.lt.s32.totalorder %s402, 9
      %s406 = scalar_select %p405, %s402, 9
      %s407 = smul.addr %s406, 5
      %s408 = smul.addr %s404, 50
      %s409 = sadd.s32 %s407, %s408
      %s410 = smul.addr %s409, 4
      %s411 = scalar_lea.vmem %s2, %s410
      %s412 = sadd.s32 %s23, 2
      %p413 = scmp.lt.s32.totalorder %s22, 1
      %s414 = scalar_select %p413, %s22, 1
      %p415 = scmp.lt.s32.totalorder %s23, 7
      %s416 = scalar_select %p415, %s23, 7
      %s417 = smul.addr %s416, 4
      %s418 = smul.addr %s414, 32
      %s419 = sadd.s32 %s417, %s418
      %s420 = smul.addr %s419, 4
      %s421 = scalar_lea.vmem %s4, %s420
      %p422 = scmp.lt.s32.totalorder %s22, 1
      %s423 = scalar_select %p422, %s22, 1
      %p424 = scmp.lt.s32.totalorder %s23, 7
      %s425 = scalar_select %p424, %s23, 7
      %s426 = smul.addr %s425, 4
      %s427 = smul.addr %s423, 32
      %s428 = sadd.s32 %s426, %s427
      %s429 = smul.addr %s428, 4
      %s430 = scalar_lea.vmem %s7, %s429
      %v432 = vld [vmem:[%s390] sm:$0xf]
      %v433 = vld [vmem:[%s390 + $0x4] sm:$0xf]
      %v434 = vld [vmem:[%s390 + $0x8] sm:$0xf]
      %v435 = vld [vmem:[%s390 + $0xc] sm:$0xf]
      %v436 = vld [vmem:[%s3] sm:$0x1]
      %v437 = vld [vmem:[%s390] sm:$0xc]
      %v438 = vld [vmem:[%s390 + $0x10] sm:$0x3]
      %s439 = scalar_lea.vmem %s3, 1
      %v440 = vld [vmem:[%s439] sm:$0x1]
      %v446 = vunpack.c.l.b16 %v437
      %v447 = vunpack.c.l.b16 %v433
      %v448 = vunpack.c.l.b16 %v434
      %v449 = vunpack.c.l.b16 %v435
      %v450 = vunpack.c.l.b16 %v438
      %v451 = vpack.c.b16 %v447, %v446
      %v452 = vpack.c.b16 %v449, %v448
      %v453 = vpack.c.b16 %v450, %v450
      %vm454 = vcmask 1045504
      %v455 = vrot.slane %v451, 2
      %v456 = vrot.slane %v452, 2
      %v457 = vsel %vm454, %v455, %v456
      %v458 = vrot.slane %v453, 2
      %v459 = vsel %vm454, %v456, %v458
      %vm460 = vcmask 15360
      %v462 = vsel %vm460, %v457, 0
      %v465 = vsel %vm460, %v459, 0
      %vm467 = vcmask 1040384
      %v469 = vsel %vm467, %v440, 0
      %471 = vmatprep.subr.bf16.mxu0 0
      %472 = vmatpush1.bf16.msra.mxu0 0
      %473 = vmatprep.subr.bf16.mxu0 0
      %474 = vmatpush1.bf16.msra.mxu0 0
      %475 = vmatprep.subr.bf16.mxu0 0
      %476 = vmatpush1.bf16.msra.mxu0 0
      %477 = vmatprep.subr.bf16.mxu0 0
      %478 = vmatpush1.bf16.msra.mxu0 0
      %479 = vmatprep.subr.bf16.mxu0 0
      %480 = vmatpush1.bf16.msra.mxu0 0
      %481 = vmatprep.subr.bf16.mxu0 0
      %482 = vmatpush1.bf16.msra.mxu0 0
      %483 = vmatprep.subr.bf16.mxu0 0
      %484 = vmatpush1.bf16.msra.mxu0 0
      %485 = vmatprep.subr.bf16.mxu0 0
      %486 = vmatpush1.bf16.msra.mxu0 %v469
      %487 = vmatprep.subr.bf16.mxu0 0
      %488 = vmatpush2.bf16.msra.mxu0 0
      %489 = vmatprep.subr.bf16.mxu0 0
      %490 = vmatpush2.bf16.msra.mxu0 0
      %491 = vmatprep.subr.bf16.mxu0 0
      %492 = vmatpush2.bf16.msra.mxu0 0
      %493 = vmatprep.subr.bf16.mxu0 0
      %494 = vmatpush2.bf16.msra.mxu0 0
      %495 = vmatprep.subr.bf16.mxu0 0
      %496 = vmatpush2.bf16.msra.mxu0 0
      %497 = vmatprep.subr.bf16.mxu0 0
      %498 = vmatpush2.bf16.msra.mxu0 0
      %499 = vmatprep.subr.bf16.mxu0 0
      %500 = vmatpush2.bf16.msra.mxu0 0
      %501 = vmatprep.subr.bf16.mxu0 0
      %502 = vmatpush2.bf16.msra.mxu0 0
      %503 = vmatprep.mubr.bf16.mxu0 0
      %504 = vmatmul.mubr.bf16.gmra.mxu0 %v462
      %v505 = vpop.f32.mrf.mxu0
      %v506 = vadd.f32 0.0, %v505
      %v507 = vpop.f32.mrf.mxu0
      %v508 = vpop.f32.mrf.mxu0
      %v509 = vadd.f32 0.0, %v508
      %v510 = vpop.f32.mrf.mxu0
      %511 = vmatprep.mubr.bf16.mxu0 0
      %512 = vmatmul.mubr.bf16.gmra.mxu0 %v465
      %v513 = vpop.f32.mrf.mxu0
      %v514 = vadd.f32 0.0, %v513
      %v515 = vpop.f32.mrf.mxu0
      %v516 = vpop.f32.mrf.mxu0
      %v517 = vadd.f32 0.0, %v516
      %v518 = vpop.f32.mrf.mxu0
      %519 = vdwg.mxu0
      %v521 = vunpack.c.l.b16 %v432
      %v522 = vpack.c.b16 %v447, %v521
      %v524 = vsel %vm460, %v522, 0
      %v527 = vsel %vm460, %v452, 0
      %v530 = vsel %vm467, %v436, 0
      %532 = vmatprep.subr.bf16.mxu0 0
      %533 = vmatpush1.bf16.msra.mxu0 0
      %534 = vmatprep.subr.bf16.mxu0 0
      %535 = vmatpush1.bf16.msra.mxu0 0
      %536 = vmatprep.subr.bf16.mxu0 0
      %537 = vmatpush1.bf16.msra.mxu0 0
      %538 = vmatprep.subr.bf16.mxu0 0
      %539 = vmatpush1.bf16.msra.mxu0 0
      %540 = vmatprep.subr.bf16.mxu0 0
      %541 = vmatpush1.bf16.msra.mxu0 0
      %542 = vmatprep.subr.bf16.mxu0 0
      %543 = vmatpush1.bf16.msra.mxu0 0
      %544 = vmatprep.subr.bf16.mxu0 0
      %545 = vmatpush1.bf16.msra.mxu0 0
      %546 = vmatprep.subr.bf16.mxu0 0
      %547 = vmatpush1.bf16.msra.mxu0 %v530
      %548 = vmatprep.subr.bf16.mxu0 0
      %549 = vmatpush2.bf16.msra.mxu0 0
      %550 = vmatprep.subr.bf16.mxu0 0
      %551 = vmatpush2.bf16.msra.mxu0 0
      %552 = vmatprep.subr.bf16.mxu0 0
      %553 = vmatpush2.bf16.msra.mxu0 0
      %554 = vmatprep.subr.bf16.mxu0 0
      %555 = vmatpush2.bf16.msra.mxu0 0
      %556 = vmatprep.subr.bf16.mxu0 0
      %557 = vmatpush2.bf16.msra.mxu0 0
      %558 = vmatprep.subr.bf16.mxu0 0
      %559 = vmatpush2.bf16.msra.mxu0 0
      %560 = vmatprep.subr.bf16.mxu0 0
      %561 = vmatpush2.bf16.msra.mxu0 0
      %562 = vmatprep.subr.bf16.mxu0 0
      %563 = vmatpush2.bf16.msra.mxu0 0
      %564 = vmatprep.mubr.bf16.mxu0 0
      %565 = vmatmul.mubr.bf16.gmra.mxu0 %v524
      %v566 = vpop.f32.mrf.mxu0
      %v567 = vadd.f32 %v506, %v566
      %v568 = vpop.f32.mrf.mxu0
      %v569 = vpop.f32.mrf.mxu0
      %v570 = vadd.f32 %v509, %v569
      %v571 = vpop.f32.mrf.mxu0
      %572 = vmatprep.mubr.bf16.mxu0 0
      %573 = vmatmul.mubr.bf16.gmra.mxu0 %v527
      %v574 = vpop.f32.mrf.mxu0
      %v575 = vadd.f32 %v514, %v574
      %v576 = vpop.f32.mrf.mxu0
      %v577 = vpop.f32.mrf.mxu0
      %v578 = vadd.f32 %v517, %v577
      %v579 = vpop.f32.mrf.mxu0
      %580 = vdwg.mxu0
      %v581 = vld [vmem:[%s390 + $0x10] sm:$0xf]
      %s582 = scalar_lea.vmem %s3, 2
      %v583 = vld [vmem:[%s582] sm:$0x1]
      %v585 = vunpack.c.l.b16 %v581
      %v586 = vpack.c.b16 %v448, %v447
      %v587 = vpack.c.b16 %v585, %v449
      %v589 = vsel %vm460, %v586, 0
      %v592 = vsel %vm460, %v587, 0
      %v595 = vsel %vm467, %v583, 0
      %597 = vmatprep.subr.bf16.mxu0 0
      %598 = vmatpush1.bf16.msra.mxu0 0
      %599 = vmatprep.subr.bf16.mxu0 0
      %600 = vmatpush1.bf16.msra.mxu0 0
      %601 = vmatprep.subr.bf16.mxu0 0
      %602 = vmatpush1.bf16.msra.mxu0 0
      %603 = vmatprep.subr.bf16.mxu0 0
      %604 = vmatpush1.bf16.msra.mxu0 0
      %605 = vmatprep.subr.bf16.mxu0 0
      %606 = vmatpush1.bf16.msra.mxu0 0
      %607 = vmatprep.subr.bf16.mxu0 0
      %608 = vmatpush1.bf16.msra.mxu0 0
      %609 = vmatprep.subr.bf16.mxu0 0
      %610 = vmatpush1.bf16.msra.mxu0 0
      %611 = vmatprep.subr.bf16.mxu0 0
      %612 = vmatpush1.bf16.msra.mxu0 %v595
      %613 = vmatprep.subr.bf16.mxu0 0
      %614 = vmatpush2.bf16.msra.mxu0 0
      %615 = vmatprep.subr.bf16.mxu0 0
      %616 = vmatpush2.bf16.msra.mxu0 0
      %617 = vmatprep.subr.bf16.mxu0 0
      %618 = vmatpush2.bf16.msra.mxu0 0
      %619 = vmatprep.subr.bf16.mxu0 0
      %620 = vmatpush2.bf16.msra.mxu0 0
      %621 = vmatprep.subr.bf16.mxu0 0
      %622 = vmatpush2.bf16.msra.mxu0 0
      %623 = vmatprep.subr.bf16.mxu0 0
      %624 = vmatpush2.bf16.msra.mxu0 0
      %625 = vmatprep.subr.bf16.mxu0 0
      %626 = vmatpush2.bf16.msra.mxu0 0
      %627 = vmatprep.subr.bf16.mxu0 0
      %628 = vmatpush2.bf16.msra.mxu0 0
      %629 = vmatprep.mubr.bf16.mxu0 0
      %630 = vmatmul.mubr.bf16.gmra.mxu0 %v589
      %v631 = vpop.f32.mrf.mxu0
      %v632 = vadd.f32 0.0, %v631
      %v633 = vpop.f32.mrf.mxu0
      %v634 = vpop.f32.mrf.mxu0
      %v635 = vadd.f32 0.0, %v634
      %v636 = vpop.f32.mrf.mxu0
      %637 = vmatprep.mubr.bf16.mxu0 0
      %638 = vmatmul.mubr.bf16.gmra.mxu0 %v592
      %v639 = vpop.f32.mrf.mxu0
      %v640 = vadd.f32 0.0, %v639
      %v641 = vpop.f32.mrf.mxu0
      %v642 = vpop.f32.mrf.mxu0
      %v643 = vadd.f32 0.0, %v642
      %v644 = vpop.f32.mrf.mxu0
      %645 = vdwg.mxu0
      %v646 = vadd.f32 %v567, %v632
      %v647 = vadd.f32 %v570, %v635
      %v648 = vadd.f32 %v575, %v640
      %v649 = vadd.f32 %v578, %v643
      %v650 = vld [vmem:[%s400] sm:$0xf]
      %v651 = vld [vmem:[%s400 + $0x4] sm:$0xf]
      %v652 = vld [vmem:[%s400 + $0x8] sm:$0xf]
      %v653 = vld [vmem:[%s400 + $0xc] sm:$0xf]
      %s654 = scalar_lea.vmem %s3, 3
      %v655 = vld [vmem:[%s654] sm:$0x1]
      %v660 = vunpack.c.l.b16 %v650
      %v661 = vunpack.c.l.b16 %v651
      %v662 = vunpack.c.l.b16 %v652
      %v663 = vunpack.c.l.b16 %v653
      %v664 = vpack.c.b16 %v661, %v660
      %v665 = vpack.c.b16 %v663, %v662
      %v667 = vsel %vm460, %v664, 0
      %v670 = vsel %vm460, %v665, 0
      %v673 = vsel %vm467, %v655, 0
      %675 = vmatprep.subr.bf16.mxu0 0
      %676 = vmatpush1.bf16.msra.mxu0 0
      %677 = vmatprep.subr.bf16.mxu0 0
      %678 = vmatpush1.bf16.msra.mxu0 0
      %679 = vmatprep.subr.bf16.mxu0 0
      %680 = vmatpush1.bf16.msra.mxu0 0
      %681 = vmatprep.subr.bf16.mxu0 0
      %682 = vmatpush1.bf16.msra.mxu0 0
      %683 = vmatprep.subr.bf16.mxu0 0
      %684 = vmatpush1.bf16.msra.mxu0 0
      %685 = vmatprep.subr.bf16.mxu0 0
      %686 = vmatpush1.bf16.msra.mxu0 0
      %687 = vmatprep.subr.bf16.mxu0 0
      %688 = vmatpush1.bf16.msra.mxu0 0
      %689 = vmatprep.subr.bf16.mxu0 0
      %690 = vmatpush1.bf16.msra.mxu0 %v673
      %691 = vmatprep.subr.bf16.mxu0 0
      %692 = vmatpush2.bf16.msra.mxu0 0
      %693 = vmatprep.subr.bf16.mxu0 0
      %694 = vmatpush2.bf16.msra.mxu0 0
      %695 = vmatprep.subr.bf16.mxu0 0
      %696 = vmatpush2.bf16.msra.mxu0 0
      %697 = vmatprep.subr.bf16.mxu0 0
      %698 = vmatpush2.bf16.msra.mxu0 0
      %699 = vmatprep.subr.bf16.mxu0 0
      %700 = vmatpush2.bf16.msra.mxu0 0
      %701 = vmatprep.subr.bf16.mxu0 0
      %702 = vmatpush2.bf16.msra.mxu0 0
      %703 = vmatprep.subr.bf16.mxu0 0
      %704 = vmatpush2.bf16.msra.mxu0 0
      %705 = vmatprep.subr.bf16.mxu0 0
      %706 = vmatpush2.bf16.msra.mxu0 0
      %707 = vmatprep.mubr.bf16.mxu0 0
      %708 = vmatmul.mubr.bf16.gmra.mxu0 %v667
      %v709 = vpop.f32.mrf.mxu0
      %v710 = vadd.f32 0.0, %v709
      %v711 = vpop.f32.mrf.mxu0
      %v712 = vpop.f32.mrf.mxu0
      %v713 = vadd.f32 0.0, %v712
      %v714 = vpop.f32.mrf.mxu0
      %715 = vmatprep.mubr.bf16.mxu0 0
      %716 = vmatmul.mubr.bf16.gmra.mxu0 %v670
      %v717 = vpop.f32.mrf.mxu0
      %v718 = vadd.f32 0.0, %v717
      %v719 = vpop.f32.mrf.mxu0
      %v720 = vpop.f32.mrf.mxu0
      %v721 = vadd.f32 0.0, %v720
      %v722 = vpop.f32.mrf.mxu0
      %723 = vdwg.mxu0
      %v724 = vadd.f32 %v646, %v710
      %v725 = vadd.f32 %v647, %v713
      %v726 = vadd.f32 %v648, %v718
      %v727 = vadd.f32 %v649, %v721
      %v728 = vld [vmem:[%s400] sm:$0xc]
      %v729 = vld [vmem:[%s400 + $0x4] sm:$0xf]
      %v730 = vld [vmem:[%s400 + $0x8] sm:$0xf]
      %v731 = vld [vmem:[%s400 + $0xc] sm:$0xf]
      %v732 = vld [vmem:[%s400 + $0x10] sm:$0x3]
      %s733 = scalar_lea.vmem %s3, 4
      %v734 = vld [vmem:[%s733] sm:$0x1]
      %v740 = vunpack.c.l.b16 %v728
      %v741 = vunpack.c.l.b16 %v729
      %v742 = vunpack.c.l.b16 %v730
      %v743 = vunpack.c.l.b16 %v731
      %v744 = vunpack.c.l.b16 %v732
      %v745 = vpack.c.b16 %v741, %v740
      %v746 = vpack.c.b16 %v743, %v742
      %v747 = vpack.c.b16 %v744, %v744
      %v748 = vrot.slane %v745, 2
      %v749 = vrot.slane %v746, 2
      %v750 = vsel %vm454, %v748, %v749
      %v751 = vrot.slane %v747, 2
      %v752 = vsel %vm454, %v749, %v751
      %v754 = vsel %vm460, %v750, 0
      %v757 = vsel %vm460, %v752, 0
      %v760 = vsel %vm467, %v734, 0
      %762 = vmatprep.subr.bf16.mxu0 0
      %763 = vmatpush1.bf16.msra.mxu0 0
      %764 = vmatprep.subr.bf16.mxu0 0
      %765 = vmatpush1.bf16.msra.mxu0 0
      %766 = vmatprep.subr.bf16.mxu0 0
      %767 = vmatpush1.bf16.msra.mxu0 0
      %768 = vmatprep.subr.bf16.mxu0 0
      %769 = vmatpush1.bf16.msra.mxu0 0
      %770 = vmatprep.subr.bf16.mxu0 0
      %771 = vmatpush1.bf16.msra.mxu0 0
      %772 = vmatprep.subr.bf16.mxu0 0
      %773 = vmatpush1.bf16.msra.mxu0 0
      %774 = vmatprep.subr.bf16.mxu0 0
      %775 = vmatpush1.bf16.msra.mxu0 0
      %776 = vmatprep.subr.bf16.mxu0 0
      %777 = vmatpush1.bf16.msra.mxu0 %v760
      %778 = vmatprep.subr.bf16.mxu0 0
      %779 = vmatpush2.bf16.msra.mxu0 0
      %780 = vmatprep.subr.bf16.mxu0 0
      %781 = vmatpush2.bf16.msra.mxu0 0
      %782 = vmatprep.subr.bf16.mxu0 0
      %783 = vmatpush2.bf16.msra.mxu0 0
      %784 = vmatprep.subr.bf16.mxu0 0
      %785 = vmatpush2.bf16.msra.mxu0 0
      %786 = vmatprep.subr.bf16.mxu0 0
      %787 = vmatpush2.bf16.msra.mxu0 0
      %788 = vmatprep.subr.bf16.mxu0 0
      %789 = vmatpush2.bf16.msra.mxu0 0
      %790 = vmatprep.subr.bf16.mxu0 0
      %791 = vmatpush2.bf16.msra.mxu0 0
      %792 = vmatprep.subr.bf16.mxu0 0
      %793 = vmatpush2.bf16.msra.mxu0 0
      %794 = vmatprep.mubr.bf16.mxu0 0
      %795 = vmatmul.mubr.bf16.gmra.mxu0 %v754
      %v796 = vpop.f32.mrf.mxu0
      %v797 = vadd.f32 0.0, %v796
      %v798 = vpop.f32.mrf.mxu0
      %v799 = vpop.f32.mrf.mxu0
      %v800 = vadd.f32 0.0, %v799
      %v801 = vpop.f32.mrf.mxu0
      %802 = vmatprep.mubr.bf16.mxu0 0
      %803 = vmatmul.mubr.bf16.gmra.mxu0 %v757
      %v804 = vpop.f32.mrf.mxu0
      %v805 = vadd.f32 0.0, %v804
      %v806 = vpop.f32.mrf.mxu0
      %v807 = vpop.f32.mrf.mxu0
      %v808 = vadd.f32 0.0, %v807
      %v809 = vpop.f32.mrf.mxu0
      %810 = vdwg.mxu0
      %v811 = vadd.f32 %v724, %v797
      %v812 = vadd.f32 %v725, %v800
      %v813 = vadd.f32 %v726, %v805
      %v814 = vadd.f32 %v727, %v808
      %v815 = vld [vmem:[%s400 + $0x10] sm:$0xf]
      %s816 = scalar_lea.vmem %s3, 5
      %v817 = vld [vmem:[%s816] sm:$0x1]
      %v819 = vunpack.c.l.b16 %v815
      %v820 = vpack.c.b16 %v742, %v741
      %v821 = vpack.c.b16 %v819, %v743
      %v823 = vsel %vm460, %v820, 0
      %v826 = vsel %vm460, %v821, 0
      %v829 = vsel %vm467, %v817, 0
      %831 = vmatprep.subr.bf16.mxu0 0
      %832 = vmatpush1.bf16.msra.mxu0 0
      %833 = vmatprep.subr.bf16.mxu0 0
      %834 = vmatpush1.bf16.msra.mxu0 0
      %835 = vmatprep.subr.bf16.mxu0 0
      %836 = vmatpush1.bf16.msra.mxu0 0
      %837 = vmatprep.subr.bf16.mxu0 0
      %838 = vmatpush1.bf16.msra.mxu0 0
      %839 = vmatprep.subr.bf16.mxu0 0
      %840 = vmatpush1.bf16.msra.mxu0 0
      %841 = vmatprep.subr.bf16.mxu0 0
      %842 = vmatpush1.bf16.msra.mxu0 0
      %843 = vmatprep.subr.bf16.mxu0 0
      %844 = vmatpush1.bf16.msra.mxu0 0
      %845 = vmatprep.subr.bf16.mxu0 0
      %846 = vmatpush1.bf16.msra.mxu0 %v829
      %847 = vmatprep.subr.bf16.mxu0 0
      %848 = vmatpush2.bf16.msra.mxu0 0
      %849 = vmatprep.subr.bf16.mxu0 0
      %850 = vmatpush2.bf16.msra.mxu0 0
      %851 = vmatprep.subr.bf16.mxu0 0
      %852 = vmatpush2.bf16.msra.mxu0 0
      %853 = vmatprep.subr.bf16.mxu0 0
      %854 = vmatpush2.bf16.msra.mxu0 0
      %855 = vmatprep.subr.bf16.mxu0 0
      %856 = vmatpush2.bf16.msra.mxu0 0
      %857 = vmatprep.subr.bf16.mxu0 0
      %858 = vmatpush2.bf16.msra.mxu0 0
      %859 = vmatprep.subr.bf16.mxu0 0
      %860 = vmatpush2.bf16.msra.mxu0 0
      %861 = vmatprep.subr.bf16.mxu0 0
      %862 = vmatpush2.bf16.msra.mxu0 0
      %863 = vmatprep.mubr.bf16.mxu0 0
      %864 = vmatmul.mubr.bf16.gmra.mxu0 %v823
      %v865 = vpop.f32.mrf.mxu0
      %v866 = vadd.f32 0.0, %v865
      %v867 = vpop.f32.mrf.mxu0
      %v868 = vpop.f32.mrf.mxu0
      %v869 = vadd.f32 0.0, %v868
      %v870 = vpop.f32.mrf.mxu0
      %871 = vmatprep.mubr.bf16.mxu0 0
      %872 = vmatmul.mubr.bf16.gmra.mxu0 %v826
      %v873 = vpop.f32.mrf.mxu0
      %v874 = vadd.f32 0.0, %v873
      %v875 = vpop.f32.mrf.mxu0
      %v876 = vpop.f32.mrf.mxu0
      %v877 = vadd.f32 0.0, %v876
      %v878 = vpop.f32.mrf.mxu0
      %879 = vdwg.mxu0
      %v880 = vadd.f32 %v811, %v866
      %v881 = vadd.f32 %v812, %v869
      %v882 = vadd.f32 %v813, %v874
      %v883 = vadd.f32 %v814, %v877
      %v884 = vld [vmem:[%s411] sm:$0xf]
      %v885 = vld [vmem:[%s411 + $0x4] sm:$0xf]
      %v886 = vld [vmem:[%s411 + $0x8] sm:$0xf]
      %v887 = vld [vmem:[%s411 + $0xc] sm:$0xf]
      %s888 = scalar_lea.vmem %s3, 6
      %v889 = vld [vmem:[%s888] sm:$0x1]
      %v894 = vunpack.c.l.b16 %v884
      %v895 = vunpack.c.l.b16 %v885
      %v896 = vunpack.c.l.b16 %v886
      %v897 = vunpack.c.l.b16 %v887
      %v898 = vpack.c.b16 %v895, %v894
      %v899 = vpack.c.b16 %v897, %v896
      %v901 = vsel %vm460, %v898, 0
      %v904 = vsel %vm460, %v899, 0
      %v907 = vsel %vm467, %v889, 0
      %909 = vmatprep.subr.bf16.mxu0 0
      %910 = vmatpush1.bf16.msra.mxu0 0
      %911 = vmatprep.subr.bf16.mxu0 0
      %912 = vmatpush1.bf16.msra.mxu0 0
      %913 = vmatprep.subr.bf16.mxu0 0
      %914 = vmatpush1.bf16.msra.mxu0 0
      %915 = vmatprep.subr.bf16.mxu0 0
      %916 = vmatpush1.bf16.msra.mxu0 0
      %917 = vmatprep.subr.bf16.mxu0 0
      %918 = vmatpush1.bf16.msra.mxu0 0
      %919 = vmatprep.subr.bf16.mxu0 0
      %920 = vmatpush1.bf16.msra.mxu0 0
      %921 = vmatprep.subr.bf16.mxu0 0
      %922 = vmatpush1.bf16.msra.mxu0 0
      %923 = vmatprep.subr.bf16.mxu0 0
      %924 = vmatpush1.bf16.msra.mxu0 %v907
      %925 = vmatprep.subr.bf16.mxu0 0
      %926 = vmatpush2.bf16.msra.mxu0 0
      %927 = vmatprep.subr.bf16.mxu0 0
      %928 = vmatpush2.bf16.msra.mxu0 0
      %929 = vmatprep.subr.bf16.mxu0 0
      %930 = vmatpush2.bf16.msra.mxu0 0
      %931 = vmatprep.subr.bf16.mxu0 0
      %932 = vmatpush2.bf16.msra.mxu0 0
      %933 = vmatprep.subr.bf16.mxu0 0
      %934 = vmatpush2.bf16.msra.mxu0 0
      %935 = vmatprep.subr.bf16.mxu0 0
      %936 = vmatpush2.bf16.msra.mxu0 0
      %937 = vmatprep.subr.bf16.mxu0 0
      %938 = vmatpush2.bf16.msra.mxu0 0
      %939 = vmatprep.subr.bf16.mxu0 0
      %940 = vmatpush2.bf16.msra.mxu0 0
      %941 = vmatprep.mubr.bf16.mxu0 0
      %942 = vmatmul.mubr.bf16.gmra.mxu0 %v901
      %v943 = vpop.f32.mrf.mxu0
      %v944 = vadd.f32 0.0, %v943
      %v945 = vpop.f32.mrf.mxu0
      %v946 = vpop.f32.mrf.mxu0
      %v947 = vadd.f32 0.0, %v946
      %v948 = vpop.f32.mrf.mxu0
      %949 = vmatprep.mubr.bf16.mxu0 0
      %950 = vmatmul.mubr.bf16.gmra.mxu0 %v904
      %v951 = vpop.f32.mrf.mxu0
      %v952 = vadd.f32 0.0, %v951
      %v953 = vpop.f32.mrf.mxu0
      %v954 = vpop.f32.mrf.mxu0
      %v955 = vadd.f32 0.0, %v954
      %v956 = vpop.f32.mrf.mxu0
      %957 = vdwg.mxu0
      %v958 = vadd.f32 %v880, %v944
      %v959 = vadd.f32 %v881, %v947
      %v960 = vadd.f32 %v882, %v952
      %v961 = vadd.f32 %v883, %v955
      %v962 = vld [vmem:[%s411] sm:$0xc]
      %v963 = vld [vmem:[%s411 + $0x4] sm:$0xf]
      %v964 = vld [vmem:[%s411 + $0x8] sm:$0xf]
      %v965 = vld [vmem:[%s411 + $0xc] sm:$0xf]
      %v966 = vld [vmem:[%s411 + $0x10] sm:$0x3]
      %s967 = scalar_lea.vmem %s3, 7
      %v968 = vld [vmem:[%s967] sm:$0x1]
      %v974 = vunpack.c.l.b16 %v962
      %v975 = vunpack.c.l.b16 %v963
      %v976 = vunpack.c.l.b16 %v964
      %v977 = vunpack.c.l.b16 %v965
      %v978 = vunpack.c.l.b16 %v966
      %v979 = vpack.c.b16 %v975, %v974
      %v980 = vpack.c.b16 %v977, %v976
      %v981 = vpack.c.b16 %v978, %v978
      %v982 = vrot.slane %v979, 2
      %v983 = vrot.slane %v980, 2
      %v984 = vsel %vm454, %v982, %v983
      %v985 = vrot.slane %v981, 2
      %v986 = vsel %vm454, %v983, %v985
      %v988 = vsel %vm460, %v984, 0
      %v991 = vsel %vm460, %v986, 0
      %v994 = vsel %vm467, %v968, 0
      %996 = vmatprep.subr.bf16.mxu0 0
      %997 = vmatpush1.bf16.msra.mxu0 0
      %998 = vmatprep.subr.bf16.mxu0 0
      %999 = vmatpush1.bf16.msra.mxu0 0
      %1000 = vmatprep.subr.bf16.mxu0 0
      %1001 = vmatpush1.bf16.msra.mxu0 0
      %1002 = vmatprep.subr.bf16.mxu0 0
      %1003 = vmatpush1.bf16.msra.mxu0 0
      %1004 = vmatprep.subr.bf16.mxu0 0
      %1005 = vmatpush1.bf16.msra.mxu0 0
      %1006 = vmatprep.subr.bf16.mxu0 0
      %1007 = vmatpush1.bf16.msra.mxu0 0
      %1008 = vmatprep.subr.bf16.mxu0 0
      %1009 = vmatpush1.bf16.msra.mxu0 0
      %1010 = vmatprep.subr.bf16.mxu0 0
      %1011 = vmatpush1.bf16.msra.mxu0 %v994
      %1012 = vmatprep.subr.bf16.mxu0 0
      %1013 = vmatpush2.bf16.msra.mxu0 0
      %1014 = vmatprep.subr.bf16.mxu0 0
      %1015 = vmatpush2.bf16.msra.mxu0 0
      %1016 = vmatprep.subr.bf16.mxu0 0
      %1017 = vmatpush2.bf16.msra.mxu0 0
      %1018 = vmatprep.subr.bf16.mxu0 0
      %1019 = vmatpush2.bf16.msra.mxu0 0
      %1020 = vmatprep.subr.bf16.mxu0 0
      %1021 = vmatpush2.bf16.msra.mxu0 0
      %1022 = vmatprep.subr.bf16.mxu0 0
      %1023 = vmatpush2.bf16.msra.mxu0 0
      %1024 = vmatprep.subr.bf16.mxu0 0
      %1025 = vmatpush2.bf16.msra.mxu0 0
      %1026 = vmatprep.subr.bf16.mxu0 0
      %1027 = vmatpush2.bf16.msra.mxu0 0
      %1028 = vmatprep.mubr.bf16.mxu0 0
      %1029 = vmatmul.mubr.bf16.gmra.mxu0 %v988
      %v1030 = vpop.f32.mrf.mxu0
      %v1031 = vadd.f32 0.0, %v1030
      %v1032 = vpop.f32.mrf.mxu0
      %v1033 = vpop.f32.mrf.mxu0
      %v1034 = vadd.f32 0.0, %v1033
      %v1035 = vpop.f32.mrf.mxu0
      %1036 = vmatprep.mubr.bf16.mxu0 0
      %1037 = vmatmul.mubr.bf16.gmra.mxu0 %v991
      %v1038 = vpop.f32.mrf.mxu0
      %v1039 = vadd.f32 0.0, %v1038
      %v1040 = vpop.f32.mrf.mxu0
      %v1041 = vpop.f32.mrf.mxu0
      %v1042 = vadd.f32 0.0, %v1041
      %v1043 = vpop.f32.mrf.mxu0
      %1044 = vdwg.mxu0
      %v1045 = vadd.f32 %v958, %v1031
      %v1046 = vadd.f32 %v959, %v1034
      %v1047 = vadd.f32 %v960, %v1039
      %v1048 = vadd.f32 %v961, %v1042
      %v1049 = vld [vmem:[%s411 + $0x10] sm:$0xf]
      %s1050 = scalar_lea.vmem %s3, 8
      %v1051 = vld [vmem:[%s1050] sm:$0x1]
      %v1053 = vunpack.c.l.b16 %v1049
      %v1054 = vpack.c.b16 %v976, %v975
      %v1055 = vpack.c.b16 %v1053, %v977
      %v1057 = vsel %vm460, %v1054, 0
      %v1060 = vsel %vm460, %v1055, 0
      %v1063 = vsel %vm467, %v1051, 0
      %1065 = vmatprep.subr.bf16.mxu0 0
      %1066 = vmatpush1.bf16.msra.mxu0 0
      %1067 = vmatprep.subr.bf16.mxu0 0
      %1068 = vmatpush1.bf16.msra.mxu0 0
      %1069 = vmatprep.subr.bf16.mxu0 0
      %1070 = vmatpush1.bf16.msra.mxu0 0
      %1071 = vmatprep.subr.bf16.mxu0 0
      %1072 = vmatpush1.bf16.msra.mxu0 0
      %1073 = vmatprep.subr.bf16.mxu0 0
      %1074 = vmatpush1.bf16.msra.mxu0 0
      %1075 = vmatprep.subr.bf16.mxu0 0
      %1076 = vmatpush1.bf16.msra.mxu0 0
      %1077 = vmatprep.subr.bf16.mxu0 0
      %1078 = vmatpush1.bf16.msra.mxu0 0
      %1079 = vmatprep.subr.bf16.mxu0 0
      %1080 = vmatpush1.bf16.msra.mxu0 %v1063
      %1081 = vmatprep.subr.bf16.mxu0 0
      %1082 = vmatpush2.bf16.msra.mxu0 0
      %1083 = vmatprep.subr.bf16.mxu0 0
      %1084 = vmatpush2.bf16.msra.mxu0 0
      %1085 = vmatprep.subr.bf16.mxu0 0
      %1086 = vmatpush2.bf16.msra.mxu0 0
      %1087 = vmatprep.subr.bf16.mxu0 0
      %1088 = vmatpush2.bf16.msra.mxu0 0
      %1089 = vmatprep.subr.bf16.mxu0 0
      %1090 = vmatpush2.bf16.msra.mxu0 0
      %1091 = vmatprep.subr.bf16.mxu0 0
      %1092 = vmatpush2.bf16.msra.mxu0 0
      %1093 = vmatprep.subr.bf16.mxu0 0
      %1094 = vmatpush2.bf16.msra.mxu0 0
      %1095 = vmatprep.subr.bf16.mxu0 0
      %1096 = vmatpush2.bf16.msra.mxu0 0
      %1097 = vmatprep.mubr.bf16.mxu0 0
      %1098 = vmatmul.mubr.bf16.gmra.mxu0 %v1057
      %v1099 = vpop.f32.mrf.mxu0
      %v1100 = vadd.f32 0.0, %v1099
      %v1101 = vpop.f32.mrf.mxu0
      %v1102 = vpop.f32.mrf.mxu0
      %v1103 = vadd.f32 0.0, %v1102
      %v1104 = vpop.f32.mrf.mxu0
      %1105 = vmatprep.mubr.bf16.mxu0 0
      %1106 = vmatmul.mubr.bf16.gmra.mxu0 %v1060
      %v1107 = vpop.f32.mrf.mxu0
      %v1108 = vadd.f32 0.0, %v1107
      %v1109 = vpop.f32.mrf.mxu0
      %v1110 = vpop.f32.mrf.mxu0
      %v1111 = vadd.f32 0.0, %v1110
      %v1112 = vpop.f32.mrf.mxu0
      %1113 = vdwg.mxu0
      %v1114 = vadd.f32 %v1045, %v1100
      %v1115 = vadd.f32 %v1046, %v1103
      %v1116 = vadd.f32 %v1047, %v1108
      %v1117 = vadd.f32 %v1048, %v1111
      %v1118 = vld [vmem:[%s421] sm:$0xf]
      %v1119 = vld [vmem:[%s421 + $0x4] sm:$0xf]
      %v1120 = vld [vmem:[%s421 + $0x8] sm:$0xf]
      %v1121 = vld [vmem:[%s421 + $0xc] sm:$0xf]
      %v1122 = vld [vmem:[%s5] sm:$0x1]
      %v1127 = vunpack.c.l.b16 %v1118
      %v1128 = vunpack.c.l.b16 %v1119
      %v1129 = vunpack.c.l.b16 %v1120
      %v1130 = vunpack.c.l.b16 %v1121
      %v1131 = vpack.c.b16 %v1128, %v1127
      %v1132 = vpack.c.b16 %v1130, %v1129
      %v1134 = vsel %vm460, %v1131, 0
      %v1137 = vsel %vm460, %v1132, 0
      %v1140 = vsel %vm467, %v1122, 0
      %1142 = vmatprep.subr.bf16.mxu0 0
      %1143 = vmatpush1.bf16.msra.mxu0 0
      %1144 = vmatprep.subr.bf16.mxu0 0
      %1145 = vmatpush1.bf16.msra.mxu0 0
      %1146 = vmatprep.subr.bf16.mxu0 0
      %1147 = vmatpush1.bf16.msra.mxu0 0
      %1148 = vmatprep.subr.bf16.mxu0 0
      %1149 = vmatpush1.bf16.msra.mxu0 0
      %1150 = vmatprep.subr.bf16.mxu0 0
      %1151 = vmatpush1.bf16.msra.mxu0 0
      %1152 = vmatprep.subr.bf16.mxu0 0
      %1153 = vmatpush1.bf16.msra.mxu0 0
      %1154 = vmatprep.subr.bf16.mxu0 0
      %1155 = vmatpush1.bf16.msra.mxu0 0
      %1156 = vmatprep.subr.bf16.mxu0 0
      %1157 = vmatpush1.bf16.msra.mxu0 %v1140
      %1158 = vmatprep.subr.bf16.mxu0 0
      %1159 = vmatpush2.bf16.msra.mxu0 0
      %1160 = vmatprep.subr.bf16.mxu0 0
      %1161 = vmatpush2.bf16.msra.mxu0 0
      %1162 = vmatprep.subr.bf16.mxu0 0
      %1163 = vmatpush2.bf16.msra.mxu0 0
      %1164 = vmatprep.subr.bf16.mxu0 0
      %1165 = vmatpush2.bf16.msra.mxu0 0
      %1166 = vmatprep.subr.bf16.mxu0 0
      %1167 = vmatpush2.bf16.msra.mxu0 0
      %1168 = vmatprep.subr.bf16.mxu0 0
      %1169 = vmatpush2.bf16.msra.mxu0 0
      %1170 = vmatprep.subr.bf16.mxu0 0
      %1171 = vmatpush2.bf16.msra.mxu0 0
      %1172 = vmatprep.subr.bf16.mxu0 0
      %1173 = vmatpush2.bf16.msra.mxu0 0
      %1174 = vmatprep.mubr.bf16.mxu0 0
      %1175 = vmatmul.mubr.bf16.gmra.mxu0 %v1134
      %v1176 = vpop.f32.mrf.mxu0
      %v1177 = vadd.f32 0.0, %v1176
      %v1178 = vpop.f32.mrf.mxu0
      %v1179 = vpop.f32.mrf.mxu0
      %v1180 = vadd.f32 0.0, %v1179
      %v1181 = vpop.f32.mrf.mxu0
      %1182 = vmatprep.mubr.bf16.mxu0 0
      %1183 = vmatmul.mubr.bf16.gmra.mxu0 %v1137
      %v1184 = vpop.f32.mrf.mxu0
      %v1185 = vadd.f32 0.0, %v1184
      %v1186 = vpop.f32.mrf.mxu0
      %v1187 = vpop.f32.mrf.mxu0
      %v1188 = vadd.f32 0.0, %v1187
      %v1189 = vpop.f32.mrf.mxu0
      %1190 = vdwg.mxu0
      %v1191 = vadd.f32 %v1114, %v1177
      %v1192 = vadd.f32 %v1115, %v1180
      %v1193 = vadd.f32 %v1116, %v1185
      %v1194 = vadd.f32 %v1117, %v1188
      %v1195 = vld [vmem:[%s6] sm:$0x1]
      %v1197 = vlaneseq
      %v1198 = vshrl.u32 %v1197, 7
      %v1199 = vsub.s32 0, %v1198
      %v1200 = vrot.slane %v1195, %v1199
      %v1202 = vadd.f32 %v1191, %v1200
      %v1203 = vadd.f32 %v1192, %v1200
      %v1204 = vadd.f32 %v1193, %v1200
      %v1205 = vadd.f32 %v1194, %v1200
      %v1206 = vmax.f32 %v1202, 0.0
      %v1207 = vmax.f32 %v1203, 0.0
      %v1208 = vmax.f32 %v1204, 0.0
      %v1209 = vmax.f32 %v1205, 0.0
      %v1210 = vpack.c.bf16 %v1207, %v1206
      %v1211 = vpack.c.bf16 %v1209, %v1208
      %v1214 = vunpack.c.l.b16 %v1210
      %v1215 = vunpack.c.h.b16 %v1210
      %v1216 = vunpack.c.l.b16 %v1211
      %v1217 = vunpack.c.h.b16 %v1211
      %v1218 = vpack.c.b16 %v1214, %v1214
      %v1219 = vpack.c.b16 %v1215, %v1215
      %v1220 = vpack.c.b16 %v1216, %v1216
      %v1221 = vpack.c.b16 %v1217, %v1217
      %vm1226 = vcmask 60416
      %1227 = vst.msk [vmem:[%s430] sm:$0xf] %vm1226, %v1218
      %1228 = vst.msk [vmem:[%s430 + $0x4] sm:$0xf] %vm1226, %v1219
      %1229 = vst.msk [vmem:[%s430 + $0x8] sm:$0xf] %vm1226, %v1220
      %1230 = vst.msk [vmem:[%s430 + $0xc] sm:$0xf] %vm1226, %v1221
      %p1231 = scmp.lt.s32.totalorder %s22, 1
      %s1232 = scalar_select %p1231, %s22, 1
      %p1233 = scmp.lt.s32.totalorder %s23, 7
      %s1234 = scalar_select %p1233, %s23, 7
      %s1235 = smul.addr %s1234, 4
      %s1236 = smul.addr %s1232, 32
      %s1237 = sadd.s32 %s1235, %s1236
      %s1238 = smul.addr %s1237, 4
      %s1239 = scalar_lea.vmem %s7, %s1238
      // Predicated region
      $region49: #{enc_forward.9} parent=47 // pred_check
        %p1240 = pneg %p229
      $region50: #{enc_forward.9} parent=47 // pred_check_branch
        %1242 = sbr.rel (%p1240) target = $region52
      $region51: #{enc_forward.9} parent=47 // pred_region
        _
      $region52: #{enc_forward.9} parent=47 // pred_fallthru
        _
    $region48: #{enc_forward.9} parent=5 // pred_fallthru
      _
    %p1243 = scmp.le.s32.totalorder 2, %s13
    // Predicated region
    $region53: #{enc_forward.9} parent=5 // pred_check
      %p1244 = pneg %p1243
    $region54: #{enc_forward.9} parent=5 // pred_check_branch
      %1246 = sbr.rel (%p1244) target = $region56
    $region55: #{enc_forward.9} parent=5 // pred_region
      %s1247 = ssub.s32 %s13, 2
      // Predicated region
      $region57: #{enc_forward.9} parent=55 // pred_check
        %p1248 = pneg %p235
      $region58: #{enc_forward.9} parent=55 // pred_check_branch
        %1250 = sbr.rel (%p1248) target = $region60
      $region59: #{enc_forward.9} parent=55 // pred_region
        %p1251 = scmp.lt.s32.totalorder %s24, 1
        %s1252 = scalar_select %p1251, %s24, 1
        %p1253 = scmp.lt.s32.totalorder %s25, 7
        %s1254 = scalar_select %p1253, %s25, 7
        %s1255 = smul.addr %s1254, 4
        %s1256 = smul.addr %s1252, 32
        %s1257 = sadd.s32 %s1255, %s1256
        %s1258 = smul.addr %s1257, 4
        %s1259 = scalar_lea.vmem %s7, %s1258
      $region60: #{enc_forward.9} parent=55 // pred_fallthru
        _
    $region56: #{enc_forward.9} parent=5 // pred_fallthru
      _
  $region6: #{enc_forward.9} parent=0 // loop_footer
    %s17 = sadd.s32 1, %s13
  $region7: #{enc_forward.9} parent=0 // loop_footer_branch
    %12 = sbr.rel target = $region3
  $region8: #{enc_forward.9} parent=0 // loop_exit
    _

// kernel: enc_forward.11
$region0: #{enc_forward.11}
  #allocation0 [shape = 'u32[]', space=smem, size = 0x4, offset = 0x4, fixed_abs, tag = 'smem constant byte address 0x4 - core index']
  #allocation1 [shape = 'u32[144,128]{1,0:T(1,128)}', space=vmem, size = 0x12000, scoped, tag = 'internal scratch']
  %s0 = inlined_call_operand.vmem [shape: bf16[2,10,40,2], index: 0, kind: input, shape index: {}, may-alias: {0,1,2}]
  %s1 = inlined_call_operand.vmem [shape: bf16[2,10,40,2], index: 1, kind: input, shape index: {}, may-alias: {0,1,2}]
  %s2 = inlined_call_operand.vmem [shape: bf16[2,10,40,2], index: 2, kind: input, shape index: {}, may-alias: {0,1,2}]
  %s3 = inlined_call_operand.vmem [shape: bf16[9,2,8], index: 3, kind: input, shape index: {}]
  %s4 = inlined_call_operand.vmem [shape: bf16[2,8,32,2], index: 4, kind: input, shape index: {}]
  %s5 = inlined_call_operand.vmem [shape: bf16[2,8], index: 5, kind: input, shape index: {}]
  %s6 = inlined_call_operand.vmem [shape: bf16[2,8,32,8], index: 6, kind: input, shape index: {}]
  %s7 = inlined_call_operand.vmem [shape: bf16[8,8], index: 7, kind: input, shape index: {}]
  %s8 = inlined_call_operand.vmem [shape: f32[2,1,8], index: 8, kind: input, shape index: {}]
  %s9 = inlined_call_operand.vmem [shape: bf16[2,8,32,8], index: 9, kind: output, shape index: {}]
  %s10 = sld [smem:[#allocation0]]
  $region69: #{enc_forward.11} parent=0
    _
  %s12 = ssub.s32 1, %s10
  %s13 = scalar_select 0, %s12, %s10
  loop: start=0, step=1, limit=18
  $region2: #{enc_forward.11} parent=0 // loop_pre_header
    _
  $region3: #{enc_forward.11} parent=0 // loop_header
    %s15 = sphi 0, %s19
    %p16 = scmp.ge.s32.totalorder %s15, 18
    %s22 = sphi 0, %s34
    %s23 = sphi 0, %s30
    %s24 = sphi 0, %s22
    %s25 = sphi 0, %s23
    %s26 = sphi 0, %s24
    %s27 = sphi 0, %s25
    %s39 = sphi 0, %s41
    %s42 = sphi 0, %s39
    %s43 = sphi 0, %s42
    %s59 = sphi 0, %s43
    %s69 = sphi 0, %s71
    %s72 = sphi 0, %s69
    %s73 = sphi 0, %s72
    %s89 = sphi 0, %s73
    %s99 = sphi 0, %s101
    %s102 = sphi 0, %s99
    %s103 = sphi 0, %s102
    %s119 = sphi 0, %s103
    %s123 = sphi 0, %s123
    %s125 = sphi 0, %s123
    %s126 = sphi 0, %s125
    %s140 = sphi 0, %s126
    %s148 = sphi 0, %s150
    %s151 = sphi 0, %s148
    %s152 = sphi 0, %s151
    %s168 = sphi 0, %s152
    %s172 = sphi 0, %s172
    %s174 = sphi 0, %s172
    %s175 = sphi 0, %s174
    %s189 = sphi 0, %s175
    %s197 = sphi 0, %s199
    %s200 = sphi 0, %s197
    %s201 = sphi 0, %s200
    %s217 = sphi 0, %s201
    %s221 = sphi 0, %s221
    %s223 = sphi 0, %s221
    %s224 = sphi 0, %s223
    %s238 = sphi 0, %s224
    %s244 = sphi 0, %s246
    %s247 = sphi 0, %s244
    %s248 = sphi 0, %s247
    %s264 = sphi 0, %s248
    %s272 = sphi 0, %s274
    %s275 = sphi 0, %s272
    %s276 = sphi 0, %s275
    %s292 = sphi 0, %s276
  $region4: #{enc_forward.11} parent=0 // loop_header_branch
    %18 = sbr.rel (%p16) target = $region8
  $region5: #{enc_forward.11} parent=0 // loop_body
    %s20 = ssub.s32 %s15, 1
    %s21 = ssub.s32 %s15, 2
    %s28 = sadd.s32 1, %s23
    %p29 = scmp.ge.s32.totalorder %s28, 8
    %s30 = scalar_select %p29, 0, %s28
    %s31 = sadd.s32 1, %s22
    %s32 = scalar_select %p29, %s31, %s22
    %p33 = scmp.ge.s32.totalorder %s32, 2
    %s34 = scalar_select %p33, 0, %s32
    %s35 = ssub.s32 %s22, %s34
    %s36 = ssub.s32 %s23, %s30
    %s37 = sor.u32 %s35, %s36
    %p38 = scmp.eq.s32.totalorder %s37, 0
    %s40 = sadd.s32 %s39, 1
    %s41 = scalar_select %p38, %s39, %s40
    %p44 = pneg %p38
    %p45 = scmp.eq.s32.totalorder %s15, 15
    %p46 = por %p44, %p45
    %p47 = scmp.ne.s32.totalorder %s39, %s42
    %p48 = scmp.eq.s32.totalorder %s15, 0
    %p49 = por %p47, %p48
    %p50 = scmp.ne.s32.totalorder %s39, %s42
    %p51 = scmp.eq.s32.totalorder %s20, 15
    %p52 = por %p50, %p51
    %p53 = scmp.ne.s32.totalorder %s42, %s43
    %p54 = scmp.eq.s32.totalorder %s20, 0
    %p55 = por %p53, %p54
    %p56 = scmp.ne.s32.totalorder %s42, %s43
    %p57 = scmp.eq.s32.totalorder %s21, 15
    %p58 = por %p56, %p57
    %p60 = scmp.ne.s32.totalorder %s43, %s59
    %p61 = scmp.eq.s32.totalorder %s21, 0
    %p62 = por %p60, %p61
    %s63 = sadd.s32 %s23, 1
    %s64 = sadd.s32 %s30, 1
    %s65 = ssub.s32 %s22, %s34
    %s66 = ssub.s32 %s63, %s64
    %s67 = sor.u32 %s65, %s66
    %p68 = scmp.eq.s32.totalorder %s67, 0
    %s70 = sadd.s32 %s69, 1
    %s71 = scalar_select %p68, %s69, %s70
    %p74 = pneg %p68
    %p75 = scmp.eq.s32.totalorder %s15, 15
    %p76 = por %p74, %p75
    %p77 = scmp.ne.s32.totalorder %s69, %s72
    %p78 = scmp.eq.s32.totalorder %s15, 0
    %p79 = por %p77, %p78
    %p80 = scmp.ne.s32.totalorder %s69, %s72
    %p81 = scmp.eq.s32.totalorder %s20, 15
    %p82 = por %p80, %p81
    %p83 = scmp.ne.s32.totalorder %s72, %s73
    %p84 = scmp.eq.s32.totalorder %s20, 0
    %p85 = por %p83, %p84
    %p86 = scmp.ne.s32.totalorder %s72, %s73
    %p87 = scmp.eq.s32.totalorder %s21, 15
    %p88 = por %p86, %p87
    %p90 = scmp.ne.s32.totalorder %s73, %s89
    %p91 = scmp.eq.s32.totalorder %s21, 0
    %p92 = por %p90, %p91
    %s93 = sadd.s32 %s23, 2
    %s94 = sadd.s32 %s30, 2
    %s95 = ssub.s32 %s22, %s34
    %s96 = ssub.s32 %s93, %s94
    %s97 = sor.u32 %s95, %s96
    %p98 = scmp.eq.s32.totalorder %s97, 0
    %s100 = sadd.s32 %s99, 1
    %s101 = scalar_select %p98, %s99, %s100
    %p104 = pneg %p98
    %p105 = scmp.eq.s32.totalorder %s15, 15
    %p106 = por %p104, %p105
    %p107 = scmp.ne.s32.totalorder %s99, %s102
    %p108 = scmp.eq.s32.totalorder %s15, 0
    %p109 = por %p107, %p108
    %p110 = scmp.ne.s32.totalorder %s99, %s102
    %p111 = scmp.eq.s32.totalorder %s20, 15
    %p112 = por %p110, %p111
    %p113 = scmp.ne.s32.totalorder %s102, %s103
    %p114 = scmp.eq.s32.totalorder %s20, 0
    %p115 = por %p113, %p114
    %p116 = scmp.ne.s32.totalorder %s102, %s103
    %p117 = scmp.eq.s32.totalorder %s21, 15
    %p118 = por %p116, %p117
    %p120 = scmp.ne.s32.totalorder %s103, %s119
    %p121 = scmp.eq.s32.totalorder %s21, 0
    %p122 = por %p120, %p121
    %s124 = sadd.s32 %s123, 1
    %p127 = scmp.eq.s32.totalorder %s15, 15
    %p128 = scmp.ne.s32.totalorder %s123, %s125
    %p129 = scmp.eq.s32.totalorder %s15, 0
    %p130 = por %p128, %p129
    %p131 = scmp.ne.s32.totalorder %s123, %s125
    %p132 = scmp.eq.s32.totalorder %s20, 15
    %p133 = por %p131, %p132
    %p134 = scmp.ne.s32.totalorder %s125, %s126
    %p135 = scmp.eq.s32.totalorder %s20, 0
    %p136 = por %p134, %p135
    %p137 = scmp.ne.s32.totalorder %s125, %s126
    %p138 = scmp.eq.s32.totalorder %s21, 15
    %p139 = por %p137, %p138
    %p141 = scmp.ne.s32.totalorder %s126, %s140
    %p142 = scmp.eq.s32.totalorder %s21, 0
    %p143 = por %p141, %p142
    %s144 = ssub.s32 %s22, %s34
    %s145 = ssub.s32 %s23, %s30
    %s146 = sor.u32 %s144, %s145
    %p147 = scmp.eq.s32.totalorder %s146, 0
    %s149 = sadd.s32 %s148, 1
    %s150 = scalar_select %p147, %s148, %s149
    %p153 = pneg %p147
    %p154 = scmp.eq.s32.totalorder %s15, 15
    %p155 = por %p153, %p154
    %p156 = scmp.ne.s32.totalorder %s148, %s151
    %p157 = scmp.eq.s32.totalorder %s15, 0
    %p158 = por %p156, %p157
    %p159 = scmp.ne.s32.totalorder %s148, %s151
    %p160 = scmp.eq.s32.totalorder %s20, 15
    %p161 = por %p159, %p160
    %p162 = scmp.ne.s32.totalorder %s151, %s152
    %p163 = scmp.eq.s32.totalorder %s20, 0
    %p164 = por %p162, %p163
    %p165 = scmp.ne.s32.totalorder %s151, %s152
    %p166 = scmp.eq.s32.totalorder %s21, 15
    %p167 = por %p165, %p166
    %p169 = scmp.ne.s32.totalorder %s152, %s168
    %p170 = scmp.eq.s32.totalorder %s21, 0
    %p171 = por %p169, %p170
    %s173 = sadd.s32 %s172, 1
    %p176 = scmp.eq.s32.totalorder %s15, 15
    %p177 = scmp.ne.s32.totalorder %s172, %s174
    %p178 = scmp.eq.s32.totalorder %s15, 0
    %p179 = por %p177, %p178
    %p180 = scmp.ne.s32.totalorder %s172, %s174
    %p181 = scmp.eq.s32.totalorder %s20, 15
    %p182 = por %p180, %p181
    %p183 = scmp.ne.s32.totalorder %s174, %s175
    %p184 = scmp.eq.s32.totalorder %s20, 0
    %p185 = por %p183, %p184
    %p186 = scmp.ne.s32.totalorder %s174, %s175
    %p187 = scmp.eq.s32.totalorder %s21, 15
    %p188 = por %p186, %p187
    %p190 = scmp.ne.s32.totalorder %s175, %s189
    %p191 = scmp.eq.s32.totalorder %s21, 0
    %p192 = por %p190, %p191
    %s193 = ssub.s32 %s22, %s34
    %s194 = ssub.s32 %s23, %s30
    %s195 = sor.u32 %s193, %s194
    %p196 = scmp.eq.s32.totalorder %s195, 0
    %s198 = sadd.s32 %s197, 1
    %s199 = scalar_select %p196, %s197, %s198
    %p202 = pneg %p196
    %p203 = scmp.eq.s32.totalorder %s15, 15
    %p204 = por %p202, %p203
    %p205 = scmp.ne.s32.totalorder %s197, %s200
    %p206 = scmp.eq.s32.totalorder %s15, 0
    %p207 = por %p205, %p206
    %p208 = scmp.ne.s32.totalorder %s197, %s200
    %p209 = scmp.eq.s32.totalorder %s20, 15
    %p210 = por %p208, %p209
    %p211 = scmp.ne.s32.totalorder %s200, %s201
    %p212 = scmp.eq.s32.totalorder %s20, 0
    %p213 = por %p211, %p212
    %p214 = scmp.ne.s32.totalorder %s200, %s201
    %p215 = scmp.eq.s32.totalorder %s21, 15
    %p216 = por %p214, %p215
    %p218 = scmp.ne.s32.totalorder %s201, %s217
    %p219 = scmp.eq.s32.totalorder %s21, 0
    %p220 = por %p218, %p219
    %s222 = sadd.s32 %s221, 1
    %p225 = scmp.eq.s32.totalorder %s15, 15
    %p226 = scmp.ne.s32.totalorder %s221, %s223
    %p227 = scmp.eq.s32.totalorder %s15, 0
    %p228 = por %p226, %p227
    %p229 = scmp.ne.s32.totalorder %s221, %s223
    %p230 = scmp.eq.s32.totalorder %s20, 15
    %p231 = por %p229, %p230
    %p232 = scmp.ne.s32.totalorder %s223, %s224
    %p233 = scmp.eq.s32.totalorder %s20, 0
    %p234 = por %p232, %p233
    %p235 = scmp.ne.s32.totalorder %s223, %s224
    %p236 = scmp.eq.s32.totalorder %s21, 15
    %p237 = por %p235, %p236
    %p239 = scmp.ne.s32.totalorder %s224, %s238
    %p240 = scmp.eq.s32.totalorder %s21, 0
    %p241 = por %p239, %p240
    %s242 = ssub.s32 %s22, %s34
    %p243 = scmp.eq.s32.totalorder %s242, 0
    %s245 = sadd.s32 %s244, 1
    %s246 = scalar_select %p243, %s244, %s245
    %p249 = pneg %p243
    %p250 = scmp.eq.s32.totalorder %s15, 15
    %p251 = por %p249, %p250
    %p252 = scmp.ne.s32.totalorder %s244, %s247
    %p253 = scmp.eq.s32.totalorder %s15, 0
    %p254 = por %p252, %p253
    %p255 = scmp.ne.s32.totalorder %s244, %s247
    %p256 = scmp.eq.s32.totalorder %s20, 15
    %p257 = por %p255, %p256
    %p258 = scmp.ne.s32.totalorder %s247, %s248
    %p259 = scmp.eq.s32.totalorder %s20, 0
    %p260 = por %p258, %p259
    %p261 = scmp.ne.s32.totalorder %s247, %s248
    %p262 = scmp.eq.s32.totalorder %s21, 15
    %p263 = por %p261, %p262
    %p265 = scmp.ne.s32.totalorder %s248, %s264
    %p266 = scmp.eq.s32.totalorder %s21, 0
    %p267 = por %p265, %p266
    %s268 = ssub.s32 %s22, %s34
    %s269 = ssub.s32 %s23, %s30
    %s270 = sor.u32 %s268, %s269
    %p271 = scmp.eq.s32.totalorder %s270, 0
    %s273 = sadd.s32 %s272, 1
    %s274 = scalar_select %p271, %s272, %s273
    %p277 = pneg %p271
    %p278 = scmp.eq.s32.totalorder %s15, 15
    %p279 = por %p277, %p278
    %p280 = scmp.ne.s32.totalorder %s272, %s275
    %p281 = scmp.eq.s32.totalorder %s15, 0
    %p282 = por %p280, %p281
    %p283 = scmp.ne.s32.totalorder %s272, %s275
    %p284 = scmp.eq.s32.totalorder %s20, 15
    %p285 = por %p283, %p284
    %p286 = scmp.ne.s32.totalorder %s275, %s276
    %p287 = scmp.eq.s32.totalorder %s20, 0
    %p288 = por %p286, %p287
    %p289 = scmp.ne.s32.totalorder %s275, %s276
    %p290 = scmp.eq.s32.totalorder %s21, 15
    %p291 = por %p289, %p290
    %p293 = scmp.ne.s32.totalorder %s276, %s292
    %p294 = scmp.eq.s32.totalorder %s21, 0
    %p295 = por %p293, %p294
    %p296 = scmp.le.s32.totalorder 1, %s15
    %p297 = scmp.lt.s32.totalorder %s15, 17
    %p298 = pnand %p296, %p297
    %p299 = pneg %p298
    // Predicated region
    $region9: #{enc_forward.11} parent=5 // pred_check
      _
    $region10: #{enc_forward.11} parent=5 // pred_check_branch
      %301 = sbr.rel (%p298) target = $region12
    $region11: #{enc_forward.11} parent=5 // pred_region
      %s302 = ssub.s32 %s15, 1
      // Predicated region
      $region13: #{enc_forward.11} parent=11 // pred_check
        %p303 = pneg %p136
      $region14: #{enc_forward.11} parent=11 // pred_check_branch
        %305 = sbr.rel (%p303) target = $region16
      $region15: #{enc_forward.11} parent=11 // pred_region
        _
      $region16: #{enc_forward.11} parent=11 // pred_fallthru
        _
      // Predicated region
      $region17: #{enc_forward.11} parent=11 // pred_check
        %p306 = pneg %p185
      $region18: #{enc_forward.11} parent=11 // pred_check_branch
        %308 = sbr.rel (%p306) target = $region20
      $region19: #{enc_forward.11} parent=11 // pred_region
        _
      $region20: #{enc_forward.11} parent=11 // pred_fallthru
        _
      // Predicated region
      $region21: #{enc_forward.11} parent=11 // pred_check
        %p309 = pneg %p234
      $region22: #{enc_forward.11} parent=11 // pred_check_branch
        %311 = sbr.rel (%p309) target = $region24
      $region23: #{enc_forward.11} parent=11 // pred_region
        _
      $region24: #{enc_forward.11} parent=11 // pred_fallthru
        _
    $region12: #{enc_forward.11} parent=5 // pred_fallthru
      _
    %p312 = scmp.lt.s32.totalorder %s15, 16
    // Predicated region
    $region25: #{enc_forward.11} parent=5 // pred_check
      %p313 = pneg %p312
    $region26: #{enc_forward.11} parent=5 // pred_check_branch
      %315 = sbr.rel (%p313) target = $region28
    $region27: #{enc_forward.11} parent=5 // pred_region
      // Predicated region
      $region29: #{enc_forward.11} parent=27 // pred_check
        %p316 = pneg %p49
      $region30: #{enc_forward.11} parent=27 // pred_check_branch
        %318 = sbr.rel (%p316) target = $region32
      $region31: #{enc_forward.11} parent=27 // pred_region
        %p319 = scmp.lt.s32.totalorder %s22, 1
        %s320 = scalar_select %p319, %s22, 1
        %p321 = scmp.lt.s32.totalorder %s23, 9
        %s322 = scalar_select %p321, %s23, 9
        %s323 = smul.addr %s322, 5
        %s324 = smul.addr %s320, 50
        %s325 = sadd.s32 %s323, %s324
        %s326 = smul.addr %s325, 4
        %s327 = scalar_lea.vmem %s0, %s326
      $region32: #{enc_forward.11} parent=27 // pred_fallthru
        _
      // Predicated region
      $region33: #{enc_forward.11} parent=27 // pred_check
        %p328 = pneg %p79
      $region34: #{enc_forward.11} parent=27 // pred_check_branch
        %330 = sbr.rel (%p328) target = $region36
      $region35: #{enc_forward.11} parent=27 // pred_region
        %s331 = sadd.s32 %s23, 1
        %p332 = scmp.lt.s32.totalorder %s22, 1
        %s333 = scalar_select %p332, %s22, 1
        %p334 = scmp.lt.s32.totalorder %s331, 9
        %s335 = scalar_select %p334, %s331, 9
        %s336 = smul.addr %s335, 5
        %s337 = smul.addr %s333, 50
        %s338 = sadd.s32 %s336, %s337
        %s339 = smul.addr %s338, 4
        %s340 = scalar_lea.vmem %s1, %s339
        %s341 = sadd.s32 %s23, 1
      $region36: #{enc_forward.11} parent=27 // pred_fallthru
        _
      // Predicated region
      $region37: #{enc_forward.11} parent=27 // pred_check
        %p342 = pneg %p109
      $region38: #{enc_forward.11} parent=27 // pred_check_branch
        %344 = sbr.rel (%p342) target = $region40
      $region39: #{enc_forward.11} parent=27 // pred_region
        %s345 = sadd.s32 %s23, 2
        %p346 = scmp.lt.s32.totalorder %s22, 1
        %s347 = scalar_select %p346, %s22, 1
        %p348 = scmp.lt.s32.totalorder %s345, 9
        %s349 = scalar_select %p348, %s345, 9
        %s350 = smul.addr %s349, 5
        %s351 = smul.addr %s347, 50
        %s352 = sadd.s32 %s350, %s351
        %s353 = smul.addr %s352, 4
        %s354 = scalar_lea.vmem %s2, %s353
        %s355 = sadd.s32 %s23, 2
      $region40: #{enc_forward.11} parent=27 // pred_fallthru
        _
      // Predicated region
      $region41: #{enc_forward.11} parent=27 // pred_check
        %p356 = pneg %p158
      $region42: #{enc_forward.11} parent=27 // pred_check_branch
        %358 = sbr.rel (%p356) target = $region44
      $region43: #{enc_forward.11} parent=27 // pred_region
        %p359 = scmp.lt.s32.totalorder %s22, 1
        %s360 = scalar_select %p359, %s22, 1
        %p361 = scmp.lt.s32.totalorder %s23, 7
        %s362 = scalar_select %p361, %s23, 7
        %s363 = smul.addr %s362, 4
        %s364 = smul.addr %s360, 32
        %s365 = sadd.s32 %s363, %s364
        %s366 = smul.addr %s365, 4
        %s367 = scalar_lea.vmem %s4, %s366
      $region44: #{enc_forward.11} parent=27 // pred_fallthru
        _
      // Predicated region
      $region45: #{enc_forward.11} parent=27 // pred_check
        %p368 = pneg %p207
      $region46: #{enc_forward.11} parent=27 // pred_check_branch
        %370 = sbr.rel (%p368) target = $region48
      $region47: #{enc_forward.11} parent=27 // pred_region
        %p371 = scmp.lt.s32.totalorder %s22, 1
        %s372 = scalar_select %p371, %s22, 1
        %p373 = scmp.lt.s32.totalorder %s23, 7
        %s374 = scalar_select %p373, %s23, 7
        %s375 = smul.addr %s374, 4
        %s376 = smul.addr %s372, 32
        %s377 = sadd.s32 %s375, %s376
        %s378 = smul.addr %s377, 4
        %s379 = scalar_lea.vmem %s6, %s378
      $region48: #{enc_forward.11} parent=27 // pred_fallthru
        _
      // Predicated region
      $region49: #{enc_forward.11} parent=27 // pred_check
        %p380 = pneg %p254
      $region50: #{enc_forward.11} parent=27 // pred_check_branch
        %382 = sbr.rel (%p380) target = $region52
      $region51: #{enc_forward.11} parent=27 // pred_region
        %p383 = scmp.lt.s32.totalorder %s22, 1
        %s384 = scalar_select %p383, %s22, 1
        %s385 = scalar_lea.vmem %s8, %s384
      $region52: #{enc_forward.11} parent=27 // pred_fallthru
        _
    $region28: #{enc_forward.11} parent=5 // pred_fallthru
      _
    %p386 = scmp.le.s32.totalorder 1, %s15
    %p387 = scmp.lt.s32.totalorder %s15, 17
    %p388 = pnand %p386, %p387
    %p389 = pneg %p388
    // Predicated region
    $region53: #{enc_forward.11} parent=5 // pred_check
      _
    $region54: #{enc_forward.11} parent=5 // pred_check_branch
      %391 = sbr.rel (%p388) target = $region56
    $region55: #{enc_forward.11} parent=5 // pred_region
      %s392 = ssub.s32 %s15, 1
      %p393 = scmp.lt.s32.totalorder %s24, 1
      %s394 = scalar_select %p393, %s24, 1
      %p395 = scmp.lt.s32.totalorder %s25, 9
      %s396 = scalar_select %p395, %s25, 9
      %s397 = smul.addr %s396, 5
      %s398 = smul.addr %s394, 50
      %s399 = sadd.s32 %s397, %s398
      %s400 = smul.addr %s399, 4
      %s401 = scalar_lea.vmem %s0, %s400
      %p402 = pneg %p55
      %p403 = pneg %p52
      %s404 = sadd.s32 %s25, 1
      %p405 = scmp.lt.s32.totalorder %s24, 1
      %s406 = scalar_select %p405, %s24, 1
      %p407 = scmp.lt.s32.totalorder %s404, 9
      %s408 = scalar_select %p407, %s404, 9
      %s409 = smul.addr %s408, 5
      %s410 = smul.addr %s406, 50
      %s411 = sadd.s32 %s409, %s410
      %s412 = smul.addr %s411, 4
      %s413 = scalar_lea.vmem %s1, %s412
      %p414 = pneg %p85
      %p415 = pneg %p82
      %s416 = sadd.s32 %s25, 2
      %p417 = scmp.lt.s32.totalorder %s24, 1
      %s418 = scalar_select %p417, %s24, 1
      %p419 = scmp.lt.s32.totalorder %s416, 9
      %s420 = scalar_select %p419, %s416, 9
      %s421 = smul.addr %s420, 5
      %s422 = smul.addr %s418, 50
      %s423 = sadd.s32 %s421, %s422
      %s424 = smul.addr %s423, 4
      %s425 = scalar_lea.vmem %s2, %s424
      %p426 = pneg %p115
      %p427 = pneg %p112
      %p428 = pneg %p136
      %p429 = pneg %p133
      %p430 = scmp.lt.s32.totalorder %s24, 1
      %s431 = scalar_select %p430, %s24, 1
      %p432 = scmp.lt.s32.totalorder %s25, 7
      %s433 = scalar_select %p432, %s25, 7
      %s434 = smul.addr %s433, 4
      %s435 = smul.addr %s431, 32
      %s436 = sadd.s32 %s434, %s435
      %s437 = smul.addr %s436, 4
      %s438 = scalar_lea.vmem %s4, %s437
      %p439 = pneg %p164
      %p440 = pneg %p161
      %p441 = pneg %p185
      %p442 = pneg %p182
      %p443 = scmp.lt.s32.totalorder %s24, 1
      %s444 = scalar_select %p443, %s24, 1
      %p445 = scmp.lt.s32.totalorder %s25, 7
      %s446 = scalar_select %p445, %s25, 7
      %s447 = smul.addr %s446, 4
      %s448 = smul.addr %s444, 32
      %s449 = sadd.s32 %s447, %s448
      %s450 = smul.addr %s449, 4
      %s451 = scalar_lea.vmem %s6, %s450
      %p452 = pneg %p213
      %p453 = pneg %p210
      %p454 = pneg %p234
      %p455 = pneg %p231
      %p456 = scmp.lt.s32.totalorder %s24, 1
      %s457 = scalar_select %p456, %s24, 1
      %s458 = scalar_lea.vmem %s8, %s457
      %p459 = pneg %p260
      %p460 = pneg %p257
      %p461 = pneg %p288
      %p462 = pneg %p285
      %p463 = scmp.lt.s32.totalorder %s24, 1
      %s464 = scalar_select %p463, %s24, 1
      %p465 = scmp.lt.s32.totalorder %s25, 7
      %s466 = scalar_select %p465, %s25, 7
      %s467 = smul.addr %s466, 4
      %s468 = smul.addr %s464, 32
      %s469 = sadd.s32 %s467, %s468
      %s470 = smul.addr %s469, 4
      %s471 = scalar_lea.vmem %s9, %s470
      %p472 = scmp.lt.s32.totalorder %s24, 1
      %s473 = scalar_select %p472, %s24, 1
      %p474 = scmp.lt.s32.totalorder %s25, 9
      %s475 = scalar_select %p474, %s25, 9
      %s476 = smul.addr %s475, 5
      %s477 = smul.addr %s473, 50
      %s478 = sadd.s32 %s476, %s477
      %s479 = smul.addr %s478, 4
      %s480 = scalar_lea.vmem %s0, %s479
      %s481 = sadd.s32 %s25, 1
      %p482 = scmp.lt.s32.totalorder %s24, 1
      %s483 = scalar_select %p482, %s24, 1
      %p484 = scmp.lt.s32.totalorder %s481, 9
      %s485 = scalar_select %p484, %s481, 9
      %s486 = smul.addr %s485, 5
      %s487 = smul.addr %s483, 50
      %s488 = sadd.s32 %s486, %s487
      %s489 = smul.addr %s488, 4
      %s490 = scalar_lea.vmem %s1, %s489
      %s491 = sadd.s32 %s25, 1
      %s492 = sadd.s32 %s25, 2
      %p493 = scmp.lt.s32.totalorder %s24, 1
      %s494 = scalar_select %p493, %s24, 1
      %p495 = scmp.lt.s32.totalorder %s492, 9
      %s496 = scalar_select %p495, %s492, 9
      %s497 = smul.addr %s496, 5
      %s498 = smul.addr %s494, 50
      %s499 = sadd.s32 %s497, %s498
      %s500 = smul.addr %s499, 4
      %s501 = scalar_lea.vmem %s2, %s500
      %s502 = sadd.s32 %s25, 2
      %p503 = scmp.lt.s32.totalorder %s24, 1
      %s504 = scalar_select %p503, %s24, 1
      %p505 = scmp.lt.s32.totalorder %s25, 7
      %s506 = scalar_select %p505, %s25, 7
      %s507 = smul.addr %s506, 4
      %s508 = smul.addr %s504, 32
      %s509 = sadd.s32 %s507, %s508
      %s510 = smul.addr %s509, 4
      %s511 = scalar_lea.vmem %s4, %s510
      %p512 = scmp.lt.s32.totalorder %s24, 1
      %s513 = scalar_select %p512, %s24, 1
      %p514 = scmp.lt.s32.totalorder %s25, 7
      %s515 = scalar_select %p514, %s25, 7
      %s516 = smul.addr %s515, 4
      %s517 = smul.addr %s513, 32
      %s518 = sadd.s32 %s516, %s517
      %s519 = smul.addr %s518, 4
      %s520 = scalar_lea.vmem %s6, %s519
      %p521 = scmp.lt.s32.totalorder %s24, 1
      %s522 = scalar_select %p521, %s24, 1
      %s523 = scalar_lea.vmem %s8, %s522
      %p524 = scmp.lt.s32.totalorder %s24, 1
      %s525 = scalar_select %p524, %s24, 1
      %p526 = scmp.lt.s32.totalorder %s25, 7
      %s527 = scalar_select %p526, %s25, 7
      %s528 = smul.addr %s527, 4
      %s529 = smul.addr %s525, 32
      %s530 = sadd.s32 %s528, %s529
      %s531 = smul.addr %s530, 4
      %s532 = scalar_lea.vmem %s9, %s531
      %v534 = vld [vmem:[%s480] sm:$0xf]
      %v535 = vld [vmem:[%s480 + $0x4] sm:$0xf]
      %v536 = vld [vmem:[%s480 + $0x8] sm:$0xf]
      %v537 = vld [vmem:[%s480 + $0xc] sm:$0xf]
      %v538 = vld [vmem:[%s3] sm:$0x1]
      %v539 = vld [vmem:[%s480] sm:$0xc]
      %v540 = vld [vmem:[%s480 + $0x10] sm:$0x3]
      %s541 = scalar_lea.vmem %s3, 1
      %v542 = vld [vmem:[%s541] sm:$0x1]
      %v548 = vunpack.c.l.b16 %v539
      %v549 = vunpack.c.l.b16 %v535
      %v550 = vunpack.c.l.b16 %v536
      %v551 = vunpack.c.l.b16 %v537
      %v552 = vunpack.c.l.b16 %v540
      %v553 = vpack.c.b16 %v549, %v548
      %v554 = vpack.c.b16 %v551, %v550
      %v555 = vpack.c.b16 %v552, %v552
      %vm556 = vcmask 1045504
      %v557 = vrot.slane %v553, 2
      %v558 = vrot.slane %v554, 2
      %v559 = vsel %vm556, %v557, %v558
      %v560 = vrot.slane %v555, 2
      %v561 = vsel %vm556, %v558, %v560
      %vm562 = vcmask 15360
      %v564 = vsel %vm562, %v559, 0
      %v567 = vsel %vm562, %v561, 0
      %vm569 = vcmask 1040384
      %v571 = vsel %vm569, %v542, 0
      %573 = vmatprep.subr.bf16.mxu0 0
      %574 = vmatpush1.bf16.msra.mxu0 0
      %575 = vmatprep.subr.bf16.mxu0 0
      %576 = vmatpush1.bf16.msra.mxu0 0
      %577 = vmatprep.subr.bf16.mxu0 0
      %578 = vmatpush1.bf16.msra.mxu0 0
      %579 = vmatprep.subr.bf16.mxu0 0
      %580 = vmatpush1.bf16.msra.mxu0 0
      %581 = vmatprep.subr.bf16.mxu0 0
      %582 = vmatpush1.bf16.msra.mxu0 0
      %583 = vmatprep.subr.bf16.mxu0 0
      %584 = vmatpush1.bf16.msra.mxu0 0
      %585 = vmatprep.subr.bf16.mxu0 0
      %586 = vmatpush1.bf16.msra.mxu0 0
      %587 = vmatprep.subr.bf16.mxu0 0
      %588 = vmatpush1.bf16.msra.mxu0 %v571
      %589 = vmatprep.subr.bf16.mxu0 0
      %590 = vmatpush2.bf16.msra.mxu0 0
      %591 = vmatprep.subr.bf16.mxu0 0
      %592 = vmatpush2.bf16.msra.mxu0 0
      %593 = vmatprep.subr.bf16.mxu0 0
      %594 = vmatpush2.bf16.msra.mxu0 0
      %595 = vmatprep.subr.bf16.mxu0 0
      %596 = vmatpush2.bf16.msra.mxu0 0
      %597 = vmatprep.subr.bf16.mxu0 0
      %598 = vmatpush2.bf16.msra.mxu0 0
      %599 = vmatprep.subr.bf16.mxu0 0
      %600 = vmatpush2.bf16.msra.mxu0 0
      %601 = vmatprep.subr.bf16.mxu0 0
      %602 = vmatpush2.bf16.msra.mxu0 0
      %603 = vmatprep.subr.bf16.mxu0 0
      %604 = vmatpush2.bf16.msra.mxu0 0
      %605 = vmatprep.mubr.bf16.mxu0 0
      %606 = vmatmul.mubr.bf16.gmra.mxu0 %v564
      %v607 = vpop.f32.mrf.mxu0
      %v608 = vadd.f32 0.0, %v607
      %v609 = vpop.f32.mrf.mxu0
      %v610 = vpop.f32.mrf.mxu0
      %v611 = vadd.f32 0.0, %v610
      %v612 = vpop.f32.mrf.mxu0
      %613 = vmatprep.mubr.bf16.mxu0 0
      %614 = vmatmul.mubr.bf16.gmra.mxu0 %v567
      %v615 = vpop.f32.mrf.mxu0
      %v616 = vadd.f32 0.0, %v615
      %v617 = vpop.f32.mrf.mxu0
      %v618 = vpop.f32.mrf.mxu0
      %v619 = vadd.f32 0.0, %v618
      %v620 = vpop.f32.mrf.mxu0
      %621 = vdwg.mxu0
      %v623 = vunpack.c.l.b16 %v534
      %v624 = vpack.c.b16 %v549, %v623
      %v626 = vsel %vm562, %v624, 0
      %v629 = vsel %vm562, %v554, 0
      %v632 = vsel %vm569, %v538, 0
      %634 = vmatprep.subr.bf16.mxu0 0
      %635 = vmatpush1.bf16.msra.mxu0 0
      %636 = vmatprep.subr.bf16.mxu0 0
      %637 = vmatpush1.bf16.msra.mxu0 0
      %638 = vmatprep.subr.bf16.mxu0 0
      %639 = vmatpush1.bf16.msra.mxu0 0
      %640 = vmatprep.subr.bf16.mxu0 0
      %641 = vmatpush1.bf16.msra.mxu0 0
      %642 = vmatprep.subr.bf16.mxu0 0
      %643 = vmatpush1.bf16.msra.mxu0 0
      %644 = vmatprep.subr.bf16.mxu0 0
      %645 = vmatpush1.bf16.msra.mxu0 0
      %646 = vmatprep.subr.bf16.mxu0 0
      %647 = vmatpush1.bf16.msra.mxu0 0
      %648 = vmatprep.subr.bf16.mxu0 0
      %649 = vmatpush1.bf16.msra.mxu0 %v632
      %650 = vmatprep.subr.bf16.mxu0 0
      %651 = vmatpush2.bf16.msra.mxu0 0
      %652 = vmatprep.subr.bf16.mxu0 0
      %653 = vmatpush2.bf16.msra.mxu0 0
      %654 = vmatprep.subr.bf16.mxu0 0
      %655 = vmatpush2.bf16.msra.mxu0 0
      %656 = vmatprep.subr.bf16.mxu0 0
      %657 = vmatpush2.bf16.msra.mxu0 0
      %658 = vmatprep.subr.bf16.mxu0 0
      %659 = vmatpush2.bf16.msra.mxu0 0
      %660 = vmatprep.subr.bf16.mxu0 0
      %661 = vmatpush2.bf16.msra.mxu0 0
      %662 = vmatprep.subr.bf16.mxu0 0
      %663 = vmatpush2.bf16.msra.mxu0 0
      %664 = vmatprep.subr.bf16.mxu0 0
      %665 = vmatpush2.bf16.msra.mxu0 0
      %666 = vmatprep.mubr.bf16.mxu0 0
      %667 = vmatmul.mubr.bf16.gmra.mxu0 %v626
      %v668 = vpop.f32.mrf.mxu0
      %v669 = vadd.f32 %v608, %v668
      %v670 = vpop.f32.mrf.mxu0
      %v671 = vpop.f32.mrf.mxu0
      %v672 = vadd.f32 %v611, %v671
      %v673 = vpop.f32.mrf.mxu0
      %674 = vmatprep.mubr.bf16.mxu0 0
      %675 = vmatmul.mubr.bf16.gmra.mxu0 %v629
      %v676 = vpop.f32.mrf.mxu0
      %v677 = vadd.f32 %v616, %v676
      %v678 = vpop.f32.mrf.mxu0
      %v679 = vpop.f32.mrf.mxu0
      %v680 = vadd.f32 %v619, %v679
      %v681 = vpop.f32.mrf.mxu0
      %682 = vdwg.mxu0
      %v683 = vld [vmem:[%s480 + $0x10] sm:$0xf]
      %s684 = scalar_lea.vmem %s3, 2
      %v685 = vld [vmem:[%s684] sm:$0x1]
      %v687 = vunpack.c.l.b16 %v683
      %v688 = vpack.c.b16 %v550, %v549
      %v689 = vpack.c.b16 %v687, %v551
      %v691 = vsel %vm562, %v688, 0
      %v694 = vsel %vm562, %v689, 0
      %v697 = vsel %vm569, %v685, 0
      %699 = vmatprep.subr.bf16.mxu0 0
      %700 = vmatpush1.bf16.msra.mxu0 0
      %701 = vmatprep.subr.bf16.mxu0 0
      %702 = vmatpush1.bf16.msra.mxu0 0
      %703 = vmatprep.subr.bf16.mxu0 0
      %704 = vmatpush1.bf16.msra.mxu0 0
      %705 = vmatprep.subr.bf16.mxu0 0
      %706 = vmatpush1.bf16.msra.mxu0 0
      %707 = vmatprep.subr.bf16.mxu0 0
      %708 = vmatpush1.bf16.msra.mxu0 0
      %709 = vmatprep.subr.bf16.mxu0 0
      %710 = vmatpush1.bf16.msra.mxu0 0
      %711 = vmatprep.subr.bf16.mxu0 0
      %712 = vmatpush1.bf16.msra.mxu0 0
      %713 = vmatprep.subr.bf16.mxu0 0
      %714 = vmatpush1.bf16.msra.mxu0 %v697
      %715 = vmatprep.subr.bf16.mxu0 0
      %716 = vmatpush2.bf16.msra.mxu0 0
      %717 = vmatprep.subr.bf16.mxu0 0
      %718 = vmatpush2.bf16.msra.mxu0 0
      %719 = vmatprep.subr.bf16.mxu0 0
      %720 = vmatpush2.bf16.msra.mxu0 0
      %721 = vmatprep.subr.bf16.mxu0 0
      %722 = vmatpush2.bf16.msra.mxu0 0
      %723 = vmatprep.subr.bf16.mxu0 0
      %724 = vmatpush2.bf16.msra.mxu0 0
      %725 = vmatprep.subr.bf16.mxu0 0
      %726 = vmatpush2.bf16.msra.mxu0 0
      %727 = vmatprep.subr.bf16.mxu0 0
      %728 = vmatpush2.bf16.msra.mxu0 0
      %729 = vmatprep.subr.bf16.mxu0 0
      %730 = vmatpush2.bf16.msra.mxu0 0
      %731 = vmatprep.mubr.bf16.mxu0 0
      %732 = vmatmul.mubr.bf16.gmra.mxu0 %v691
      %v733 = vpop.f32.mrf.mxu0
      %v734 = vadd.f32 0.0, %v733
      %v735 = vpop.f32.mrf.mxu0
      %v736 = vpop.f32.mrf.mxu0
      %v737 = vadd.f32 0.0, %v736
      %v738 = vpop.f32.mrf.mxu0
      %739 = vmatprep.mubr.bf16.mxu0 0
      %740 = vmatmul.mubr.bf16.gmra.mxu0 %v694
      %v741 = vpop.f32.mrf.mxu0
      %v742 = vadd.f32 0.0, %v741
      %v743 = vpop.f32.mrf.mxu0
      %v744 = vpop.f32.mrf.mxu0
      %v745 = vadd.f32 0.0, %v744
      %v746 = vpop.f32.mrf.mxu0
      %747 = vdwg.mxu0
      %v748 = vadd.f32 %v669, %v734
      %v749 = vadd.f32 %v672, %v737
      %v750 = vadd.f32 %v677, %v742
      %v751 = vadd.f32 %v680, %v745
      %v752 = vld [vmem:[%s490] sm:$0xf]
      %v753 = vld [vmem:[%s490 + $0x4] sm:$0xf]
      %v754 = vld [vmem:[%s490 + $0x8] sm:$0xf]
      %v755 = vld [vmem:[%s490 + $0xc] sm:$0xf]
      %s756 = scalar_lea.vmem %s3, 3
      %v757 = vld [vmem:[%s756] sm:$0x1]
      %v762 = vunpack.c.l.b16 %v752
      %v763 = vunpack.c.l.b16 %v753
      %v764 = vunpack.c.l.b16 %v754
      %v765 = vunpack.c.l.b16 %v755
      %v766 = vpack.c.b16 %v763, %v762
      %v767 = vpack.c.b16 %v765, %v764
      %v769 = vsel %vm562, %v766, 0
      %v772 = vsel %vm562, %v767, 0
      %v775 = vsel %vm569, %v757, 0
      %777 = vmatprep.subr.bf16.mxu0 0
      %778 = vmatpush1.bf16.msra.mxu0 0
      %779 = vmatprep.subr.bf16.mxu0 0
      %780 = vmatpush1.bf16.msra.mxu0 0
      %781 = vmatprep.subr.bf16.mxu0 0
      %782 = vmatpush1.bf16.msra.mxu0 0
      %783 = vmatprep.subr.bf16.mxu0 0
      %784 = vmatpush1.bf16.msra.mxu0 0
      %785 = vmatprep.subr.bf16.mxu0 0
      %786 = vmatpush1.bf16.msra.mxu0 0
      %787 = vmatprep.subr.bf16.mxu0 0
      %788 = vmatpush1.bf16.msra.mxu0 0
      %789 = vmatprep.subr.bf16.mxu0 0
      %790 = vmatpush1.bf16.msra.mxu0 0
      %791 = vmatprep.subr.bf16.mxu0 0
      %792 = vmatpush1.bf16.msra.mxu0 %v775
      %793 = vmatprep.subr.bf16.mxu0 0
      %794 = vmatpush2.bf16.msra.mxu0 0
      %795 = vmatprep.subr.bf16.mxu0 0
      %796 = vmatpush2.bf16.msra.mxu0 0
      %797 = vmatprep.subr.bf16.mxu0 0
      %798 = vmatpush2.bf16.msra.mxu0 0
      %799 = vmatprep.subr.bf16.mxu0 0
      %800 = vmatpush2.bf16.msra.mxu0 0
      %801 = vmatprep.subr.bf16.mxu0 0
      %802 = vmatpush2.bf16.msra.mxu0 0
      %803 = vmatprep.subr.bf16.mxu0 0
      %804 = vmatpush2.bf16.msra.mxu0 0
      %805 = vmatprep.subr.bf16.mxu0 0
      %806 = vmatpush2.bf16.msra.mxu0 0
      %807 = vmatprep.subr.bf16.mxu0 0
      %808 = vmatpush2.bf16.msra.mxu0 0
      %809 = vmatprep.mubr.bf16.mxu0 0
      %810 = vmatmul.mubr.bf16.gmra.mxu0 %v769
      %v811 = vpop.f32.mrf.mxu0
      %v812 = vadd.f32 0.0, %v811
      %v813 = vpop.f32.mrf.mxu0
      %v814 = vpop.f32.mrf.mxu0
      %v815 = vadd.f32 0.0, %v814
      %v816 = vpop.f32.mrf.mxu0
      %817 = vmatprep.mubr.bf16.mxu0 0
      %818 = vmatmul.mubr.bf16.gmra.mxu0 %v772
      %v819 = vpop.f32.mrf.mxu0
      %v820 = vadd.f32 0.0, %v819
      %v821 = vpop.f32.mrf.mxu0
      %v822 = vpop.f32.mrf.mxu0
      %v823 = vadd.f32 0.0, %v822
      %v824 = vpop.f32.mrf.mxu0
      %825 = vdwg.mxu0
      %v826 = vadd.f32 %v748, %v812
      %v827 = vadd.f32 %v749, %v815
      %v828 = vadd.f32 %v750, %v820
      %v829 = vadd.f32 %v751, %v823
      %v830 = vld [vmem:[%s490] sm:$0xc]
      %v831 = vld [vmem:[%s490 + $0x4] sm:$0xf]
      %v832 = vld [vmem:[%s490 + $0x8] sm:$0xf]
      %v833 = vld [vmem:[%s490 + $0xc] sm:$0xf]
      %v834 = vld [vmem:[%s490 + $0x10] sm:$0x3]
      %s835 = scalar_lea.vmem %s3, 4
      %v836 = vld [vmem:[%s835] sm:$0x1]
      %v842 = vunpack.c.l.b16 %v830
      %v843 = vunpack.c.l.b16 %v831
      %v844 = vunpack.c.l.b16 %v832
      %v845 = vunpack.c.l.b16 %v833
      %v846 = vunpack.c.l.b16 %v834
      %v847 = vpack.c.b16 %v843, %v842
      %v848 = vpack.c.b16 %v845, %v844
      %v849 = vpack.c.b16 %v846, %v846
      %v850 = vrot.slane %v847, 2
      %v851 = vrot.slane %v848, 2
      %v852 = vsel %vm556, %v850, %v851
      %v853 = vrot.slane %v849, 2
      %v854 = vsel %vm556, %v851, %v853
      %v856 = vsel %vm562, %v852, 0
      %v859 = vsel %vm562, %v854, 0
      %v862 = vsel %vm569, %v836, 0
      %864 = vmatprep.subr.bf16.mxu0 0
      %865 = vmatpush1.bf16.msra.mxu0 0
      %866 = vmatprep.subr.bf16.mxu0 0
      %867 = vmatpush1.bf16.msra.mxu0 0
      %868 = vmatprep.subr.bf16.mxu0 0
      %869 = vmatpush1.bf16.msra.mxu0 0
      %870 = vmatprep.subr.bf16.mxu0 0
      %871 = vmatpush1.bf16.msra.mxu0 0
      %872 = vmatprep.subr.bf16.mxu0 0
      %873 = vmatpush1.bf16.msra.mxu0 0
      %874 = vmatprep.subr.bf16.mxu0 0
      %875 = vmatpush1.bf16.msra.mxu0 0
      %876 = vmatprep.subr.bf16.mxu0 0
      %877 = vmatpush1.bf16.msra.mxu0 0
      %878 = vmatprep.subr.bf16.mxu0 0
      %879 = vmatpush1.bf16.msra.mxu0 %v862
      %880 = vmatprep.subr.bf16.mxu0 0
      %881 = vmatpush2.bf16.msra.mxu0 0
      %882 = vmatprep.subr.bf16.mxu0 0
      %883 = vmatpush2.bf16.msra.mxu0 0
      %884 = vmatprep.subr.bf16.mxu0 0
      %885 = vmatpush2.bf16.msra.mxu0 0
      %886 = vmatprep.subr.bf16.mxu0 0
      %887 = vmatpush2.bf16.msra.mxu0 0
      %888 = vmatprep.subr.bf16.mxu0 0
      %889 = vmatpush2.bf16.msra.mxu0 0
      %890 = vmatprep.subr.bf16.mxu0 0
      %891 = vmatpush2.bf16.msra.mxu0 0
      %892 = vmatprep.subr.bf16.mxu0 0
      %893 = vmatpush2.bf16.msra.mxu0 0
      %894 = vmatprep.subr.bf16.mxu0 0
      %895 = vmatpush2.bf16.msra.mxu0 0
      %896 = vmatprep.mubr.bf16.mxu0 0
      %897 = vmatmul.mubr.bf16.gmra.mxu0 %v856
      %v898 = vpop.f32.mrf.mxu0
      %v899 = vadd.f32 0.0, %v898
      %v900 = vpop.f32.mrf.mxu0
      %v901 = vpop.f32.mrf.mxu0
      %v902 = vadd.f32 0.0, %v901
      %v903 = vpop.f32.mrf.mxu0
      %904 = vmatprep.mubr.bf16.mxu0 0
      %905 = vmatmul.mubr.bf16.gmra.mxu0 %v859
      %v906 = vpop.f32.mrf.mxu0
      %v907 = vadd.f32 0.0, %v906
      %v908 = vpop.f32.mrf.mxu0
      %v909 = vpop.f32.mrf.mxu0
      %v910 = vadd.f32 0.0, %v909
      %v911 = vpop.f32.mrf.mxu0
      %912 = vdwg.mxu0
      %v913 = vadd.f32 %v826, %v899
      %v914 = vadd.f32 %v827, %v902
      %v915 = vadd.f32 %v828, %v907
      %v916 = vadd.f32 %v829, %v910
      %v917 = vld [vmem:[%s490 + $0x10] sm:$0xf]
      %s918 = scalar_lea.vmem %s3, 5
      %v919 = vld [vmem:[%s918] sm:$0x1]
      %v921 = vunpack.c.l.b16 %v917
      %v922 = vpack.c.b16 %v844, %v843
      %v923 = vpack.c.b16 %v921, %v845
      %v925 = vsel %vm562, %v922, 0
      %v928 = vsel %vm562, %v923, 0
      %v931 = vsel %vm569, %v919, 0
      %933 = vmatprep.subr.bf16.mxu0 0
      %934 = vmatpush1.bf16.msra.mxu0 0
      %935 = vmatprep.subr.bf16.mxu0 0
      %936 = vmatpush1.bf16.msra.mxu0 0
      %937 = vmatprep.subr.bf16.mxu0 0
      %938 = vmatpush1.bf16.msra.mxu0 0
      %939 = vmatprep.subr.bf16.mxu0 0
      %940 = vmatpush1.bf16.msra.mxu0 0
      %941 = vmatprep.subr.bf16.mxu0 0
      %942 = vmatpush1.bf16.msra.mxu0 0
      %943 = vmatprep.subr.bf16.mxu0 0
      %944 = vmatpush1.bf16.msra.mxu0 0
      %945 = vmatprep.subr.bf16.mxu0 0
      %946 = vmatpush1.bf16.msra.mxu0 0
      %947 = vmatprep.subr.bf16.mxu0 0
      %948 = vmatpush1.bf16.msra.mxu0 %v931
      %949 = vmatprep.subr.bf16.mxu0 0
      %950 = vmatpush2.bf16.msra.mxu0 0
      %951 = vmatprep.subr.bf16.mxu0 0
      %952 = vmatpush2.bf16.msra.mxu0 0
      %953 = vmatprep.subr.bf16.mxu0 0
      %954 = vmatpush2.bf16.msra.mxu0 0
      %955 = vmatprep.subr.bf16.mxu0 0
      %956 = vmatpush2.bf16.msra.mxu0 0
      %957 = vmatprep.subr.bf16.mxu0 0
      %958 = vmatpush2.bf16.msra.mxu0 0
      %959 = vmatprep.subr.bf16.mxu0 0
      %960 = vmatpush2.bf16.msra.mxu0 0
      %961 = vmatprep.subr.bf16.mxu0 0
      %962 = vmatpush2.bf16.msra.mxu0 0
      %963 = vmatprep.subr.bf16.mxu0 0
      %964 = vmatpush2.bf16.msra.mxu0 0
      %965 = vmatprep.mubr.bf16.mxu0 0
      %966 = vmatmul.mubr.bf16.gmra.mxu0 %v925
      %v967 = vpop.f32.mrf.mxu0
      %v968 = vadd.f32 0.0, %v967
      %v969 = vpop.f32.mrf.mxu0
      %v970 = vpop.f32.mrf.mxu0
      %v971 = vadd.f32 0.0, %v970
      %v972 = vpop.f32.mrf.mxu0
      %973 = vmatprep.mubr.bf16.mxu0 0
      %974 = vmatmul.mubr.bf16.gmra.mxu0 %v928
      %v975 = vpop.f32.mrf.mxu0
      %v976 = vadd.f32 0.0, %v975
      %v977 = vpop.f32.mrf.mxu0
      %v978 = vpop.f32.mrf.mxu0
      %v979 = vadd.f32 0.0, %v978
      %v980 = vpop.f32.mrf.mxu0
      %981 = vdwg.mxu0
      %v982 = vadd.f32 %v913, %v968
      %v983 = vadd.f32 %v914, %v971
      %v984 = vadd.f32 %v915, %v976
      %v985 = vadd.f32 %v916, %v979
      %v986 = vld [vmem:[%s501] sm:$0xf]
      %v987 = vld [vmem:[%s501 + $0x4] sm:$0xf]
      %v988 = vld [vmem:[%s501 + $0x8] sm:$0xf]
      %v989 = vld [vmem:[%s501 + $0xc] sm:$0xf]
      %s990 = scalar_lea.vmem %s3, 6
      %v991 = vld [vmem:[%s990] sm:$0x1]
      %v996 = vunpack.c.l.b16 %v986
      %v997 = vunpack.c.l.b16 %v987
      %v998 = vunpack.c.l.b16 %v988
      %v999 = vunpack.c.l.b16 %v989
      %v1000 = vpack.c.b16 %v997, %v996
      %v1001 = vpack.c.b16 %v999, %v998
      %v1003 = vsel %vm562, %v1000, 0
      %v1006 = vsel %vm562, %v1001, 0
      %v1009 = vsel %vm569, %v991, 0
      %1011 = vmatprep.subr.bf16.mxu0 0
      %1012 = vmatpush1.bf16.msra.mxu0 0
      %1013 = vmatprep.subr.bf16.mxu0 0
      %1014 = vmatpush1.bf16.msra.mxu0 0
      %1015 = vmatprep.subr.bf16.mxu0 0
      %1016 = vmatpush1.bf16.msra.mxu0 0
      %1017 = vmatprep.subr.bf16.mxu0 0
      %1018 = vmatpush1.bf16.msra.mxu0 0
      %1019 = vmatprep.subr.bf16.mxu0 0
      %1020 = vmatpush1.bf16.msra.mxu0 0
      %1021 = vmatprep.subr.bf16.mxu0 0
      %1022 = vmatpush1.bf16.msra.mxu0 0
      %1023 = vmatprep.subr.bf16.mxu0 0
      %1024 = vmatpush1.bf16.msra.mxu0 0
      %1025 = vmatprep.subr.bf16.mxu0 0
      %1026 = vmatpush1.bf16.msra.mxu0 %v1009
      %1027 = vmatprep.subr.bf16.mxu0 0
      %1028 = vmatpush2.bf16.msra.mxu0 0
      %1029 = vmatprep.subr.bf16.mxu0 0
      %1030 = vmatpush2.bf16.msra.mxu0 0
      %1031 = vmatprep.subr.bf16.mxu0 0
      %1032 = vmatpush2.bf16.msra.mxu0 0
      %1033 = vmatprep.subr.bf16.mxu0 0
      %1034 = vmatpush2.bf16.msra.mxu0 0
      %1035 = vmatprep.subr.bf16.mxu0 0
      %1036 = vmatpush2.bf16.msra.mxu0 0
      %1037 = vmatprep.subr.bf16.mxu0 0
      %1038 = vmatpush2.bf16.msra.mxu0 0
      %1039 = vmatprep.subr.bf16.mxu0 0
      %1040 = vmatpush2.bf16.msra.mxu0 0
      %1041 = vmatprep.subr.bf16.mxu0 0
      %1042 = vmatpush2.bf16.msra.mxu0 0
      %1043 = vmatprep.mubr.bf16.mxu0 0
      %1044 = vmatmul.mubr.bf16.gmra.mxu0 %v1003
      %v1045 = vpop.f32.mrf.mxu0
      %v1046 = vadd.f32 0.0, %v1045
      %v1047 = vpop.f32.mrf.mxu0
      %v1048 = vpop.f32.mrf.mxu0
      %v1049 = vadd.f32 0.0, %v1048
      %v1050 = vpop.f32.mrf.mxu0
      %1051 = vmatprep.mubr.bf16.mxu0 0
      %1052 = vmatmul.mubr.bf16.gmra.mxu0 %v1006
      %v1053 = vpop.f32.mrf.mxu0
      %v1054 = vadd.f32 0.0, %v1053
      %v1055 = vpop.f32.mrf.mxu0
      %v1056 = vpop.f32.mrf.mxu0
      %v1057 = vadd.f32 0.0, %v1056
      %v1058 = vpop.f32.mrf.mxu0
      %1059 = vdwg.mxu0
      %v1060 = vadd.f32 %v982, %v1046
      %v1061 = vadd.f32 %v983, %v1049
      %v1062 = vadd.f32 %v984, %v1054
      %v1063 = vadd.f32 %v985, %v1057
      %v1064 = vld [vmem:[%s501] sm:$0xc]
      %v1065 = vld [vmem:[%s501 + $0x4] sm:$0xf]
      %v1066 = vld [vmem:[%s501 + $0x8] sm:$0xf]
      %v1067 = vld [vmem:[%s501 + $0xc] sm:$0xf]
      %v1068 = vld [vmem:[%s501 + $0x10] sm:$0x3]
      %s1069 = scalar_lea.vmem %s3, 7
      %v1070 = vld [vmem:[%s1069] sm:$0x1]
      %v1076 = vunpack.c.l.b16 %v1064
      %v1077 = vunpack.c.l.b16 %v1065
      %v1078 = vunpack.c.l.b16 %v1066
      %v1079 = vunpack.c.l.b16 %v1067
      %v1080 = vunpack.c.l.b16 %v1068
      %v1081 = vpack.c.b16 %v1077, %v1076
      %v1082 = vpack.c.b16 %v1079, %v1078
      %v1083 = vpack.c.b16 %v1080, %v1080
      %v1084 = vrot.slane %v1081, 2
      %v1085 = vrot.slane %v1082, 2
      %v1086 = vsel %vm556, %v1084, %v1085
      %v1087 = vrot.slane %v1083, 2
      %v1088 = vsel %vm556, %v1085, %v1087
      %v1090 = vsel %vm562, %v1086, 0
      %v1093 = vsel %vm562, %v1088, 0
      %v1096 = vsel %vm569, %v1070, 0
      %1098 = vmatprep.subr.bf16.mxu0 0
      %1099 = vmatpush1.bf16.msra.mxu0 0
      %1100 = vmatprep.subr.bf16.mxu0 0
      %1101 = vmatpush1.bf16.msra.mxu0 0
      %1102 = vmatprep.subr.bf16.mxu0 0
      %1103 = vmatpush1.bf16.msra.mxu0 0
      %1104 = vmatprep.subr.bf16.mxu0 0
      %1105 = vmatpush1.bf16.msra.mxu0 0
      %1106 = vmatprep.subr.bf16.mxu0 0
      %1107 = vmatpush1.bf16.msra.mxu0 0
      %1108 = vmatprep.subr.bf16.mxu0 0
      %1109 = vmatpush1.bf16.msra.mxu0 0
      %1110 = vmatprep.subr.bf16.mxu0 0
      %1111 = vmatpush1.bf16.msra.mxu0 0
      %1112 = vmatprep.subr.bf16.mxu0 0
      %1113 = vmatpush1.bf16.msra.mxu0 %v1096
      %1114 = vmatprep.subr.bf16.mxu0 0
      %1115 = vmatpush2.bf16.msra.mxu0 0
      %1116 = vmatprep.subr.bf16.mxu0 0
      %1117 = vmatpush2.bf16.msra.mxu0 0
      %1118 = vmatprep.subr.bf16.mxu0 0
      %1119 = vmatpush2.bf16.msra.mxu0 0
      %1120 = vmatprep.subr.bf16.mxu0 0
      %1121 = vmatpush2.bf16.msra.mxu0 0
      %1122 = vmatprep.subr.bf16.mxu0 0
      %1123 = vmatpush2.bf16.msra.mxu0 0
      %1124 = vmatprep.subr.bf16.mxu0 0
      %1125 = vmatpush2.bf16.msra.mxu0 0
      %1126 = vmatprep.subr.bf16.mxu0 0
      %1127 = vmatpush2.bf16.msra.mxu0 0
      %1128 = vmatprep.subr.bf16.mxu0 0
      %1129 = vmatpush2.bf16.msra.mxu0 0
      %1130 = vmatprep.mubr.bf16.mxu0 0
      %1131 = vmatmul.mubr.bf16.gmra.mxu0 %v1090
      %v1132 = vpop.f32.mrf.mxu0
      %v1133 = vadd.f32 0.0, %v1132
      %v1134 = vpop.f32.mrf.mxu0
      %v1135 = vpop.f32.mrf.mxu0
      %v1136 = vadd.f32 0.0, %v1135
      %v1137 = vpop.f32.mrf.mxu0
      %1138 = vmatprep.mubr.bf16.mxu0 0
      %1139 = vmatmul.mubr.bf16.gmra.mxu0 %v1093
      %v1140 = vpop.f32.mrf.mxu0
      %v1141 = vadd.f32 0.0, %v1140
      %v1142 = vpop.f32.mrf.mxu0
      %v1143 = vpop.f32.mrf.mxu0
      %v1144 = vadd.f32 0.0, %v1143
      %v1145 = vpop.f32.mrf.mxu0
      %1146 = vdwg.mxu0
      %v1147 = vadd.f32 %v1060, %v1133
      %v1148 = vadd.f32 %v1061, %v1136
      %v1149 = vadd.f32 %v1062, %v1141
      %v1150 = vadd.f32 %v1063, %v1144
      %v1151 = vld [vmem:[%s501 + $0x10] sm:$0xf]
      %s1152 = scalar_lea.vmem %s3, 8
      %v1153 = vld [vmem:[%s1152] sm:$0x1]
      %v1155 = vunpack.c.l.b16 %v1151
      %v1156 = vpack.c.b16 %v1078, %v1077
      %v1157 = vpack.c.b16 %v1155, %v1079
      %v1159 = vsel %vm562, %v1156, 0
      %v1162 = vsel %vm562, %v1157, 0
      %v1165 = vsel %vm569, %v1153, 0
      %1167 = vmatprep.subr.bf16.mxu0 0
      %1168 = vmatpush1.bf16.msra.mxu0 0
      %1169 = vmatprep.subr.bf16.mxu0 0
      %1170 = vmatpush1.bf16.msra.mxu0 0
      %1171 = vmatprep.subr.bf16.mxu0 0
      %1172 = vmatpush1.bf16.msra.mxu0 0
      %1173 = vmatprep.subr.bf16.mxu0 0
      %1174 = vmatpush1.bf16.msra.mxu0 0
      %1175 = vmatprep.subr.bf16.mxu0 0
      %1176 = vmatpush1.bf16.msra.mxu0 0
      %1177 = vmatprep.subr.bf16.mxu0 0
      %1178 = vmatpush1.bf16.msra.mxu0 0
      %1179 = vmatprep.subr.bf16.mxu0 0
      %1180 = vmatpush1.bf16.msra.mxu0 0
      %1181 = vmatprep.subr.bf16.mxu0 0
      %1182 = vmatpush1.bf16.msra.mxu0 %v1165
      %1183 = vmatprep.subr.bf16.mxu0 0
      %1184 = vmatpush2.bf16.msra.mxu0 0
      %1185 = vmatprep.subr.bf16.mxu0 0
      %1186 = vmatpush2.bf16.msra.mxu0 0
      %1187 = vmatprep.subr.bf16.mxu0 0
      %1188 = vmatpush2.bf16.msra.mxu0 0
      %1189 = vmatprep.subr.bf16.mxu0 0
      %1190 = vmatpush2.bf16.msra.mxu0 0
      %1191 = vmatprep.subr.bf16.mxu0 0
      %1192 = vmatpush2.bf16.msra.mxu0 0
      %1193 = vmatprep.subr.bf16.mxu0 0
      %1194 = vmatpush2.bf16.msra.mxu0 0
      %1195 = vmatprep.subr.bf16.mxu0 0
      %1196 = vmatpush2.bf16.msra.mxu0 0
      %1197 = vmatprep.subr.bf16.mxu0 0
      %1198 = vmatpush2.bf16.msra.mxu0 0
      %1199 = vmatprep.mubr.bf16.mxu0 0
      %1200 = vmatmul.mubr.bf16.gmra.mxu0 %v1159
      %v1201 = vpop.f32.mrf.mxu0
      %v1202 = vadd.f32 0.0, %v1201
      %v1203 = vpop.f32.mrf.mxu0
      %v1204 = vpop.f32.mrf.mxu0
      %v1205 = vadd.f32 0.0, %v1204
      %v1206 = vpop.f32.mrf.mxu0
      %1207 = vmatprep.mubr.bf16.mxu0 0
      %1208 = vmatmul.mubr.bf16.gmra.mxu0 %v1162
      %v1209 = vpop.f32.mrf.mxu0
      %v1210 = vadd.f32 0.0, %v1209
      %v1211 = vpop.f32.mrf.mxu0
      %v1212 = vpop.f32.mrf.mxu0
      %v1213 = vadd.f32 0.0, %v1212
      %v1214 = vpop.f32.mrf.mxu0
      %1215 = vdwg.mxu0
      %v1216 = vadd.f32 %v1147, %v1202
      %v1217 = vadd.f32 %v1148, %v1205
      %v1218 = vadd.f32 %v1149, %v1210
      %v1219 = vadd.f32 %v1150, %v1213
      %v1220 = vld [vmem:[%s511] sm:$0xf]
      %v1221 = vld [vmem:[%s511 + $0x4] sm:$0xf]
      %v1222 = vld [vmem:[%s511 + $0x8] sm:$0xf]
      %v1223 = vld [vmem:[%s511 + $0xc] sm:$0xf]
      %v1224 = vld [vmem:[%s5] sm:$0x1]
      %v1229 = vunpack.c.l.b16 %v1220
      %v1230 = vunpack.c.l.b16 %v1221
      %v1231 = vunpack.c.l.b16 %v1222
      %v1232 = vunpack.c.l.b16 %v1223
      %v1233 = vpack.c.b16 %v1230, %v1229
      %v1234 = vpack.c.b16 %v1232, %v1231
      %v1236 = vsel %vm562, %v1233, 0
      %v1239 = vsel %vm562, %v1234, 0
      %v1242 = vsel %vm569, %v1224, 0
      %1244 = vmatprep.subr.bf16.mxu0 0
      %1245 = vmatpush1.bf16.msra.mxu0 0
      %1246 = vmatprep.subr.bf16.mxu0 0
      %1247 = vmatpush1.bf16.msra.mxu0 0
      %1248 = vmatprep.subr.bf16.mxu0 0
      %1249 = vmatpush1.bf16.msra.mxu0 0
      %1250 = vmatprep.subr.bf16.mxu0 0
      %1251 = vmatpush1.bf16.msra.mxu0 0
      %1252 = vmatprep.subr.bf16.mxu0 0
      %1253 = vmatpush1.bf16.msra.mxu0 0
      %1254 = vmatprep.subr.bf16.mxu0 0
      %1255 = vmatpush1.bf16.msra.mxu0 0
      %1256 = vmatprep.subr.bf16.mxu0 0
      %1257 = vmatpush1.bf16.msra.mxu0 0
      %1258 = vmatprep.subr.bf16.mxu0 0
      %1259 = vmatpush1.bf16.msra.mxu0 %v1242
      %1260 = vmatprep.subr.bf16.mxu0 0
      %1261 = vmatpush2.bf16.msra.mxu0 0
      %1262 = vmatprep.subr.bf16.mxu0 0
      %1263 = vmatpush2.bf16.msra.mxu0 0
      %1264 = vmatprep.subr.bf16.mxu0 0
      %1265 = vmatpush2.bf16.msra.mxu0 0
      %1266 = vmatprep.subr.bf16.mxu0 0
      %1267 = vmatpush2.bf16.msra.mxu0 0
      %1268 = vmatprep.subr.bf16.mxu0 0
      %1269 = vmatpush2.bf16.msra.mxu0 0
      %1270 = vmatprep.subr.bf16.mxu0 0
      %1271 = vmatpush2.bf16.msra.mxu0 0
      %1272 = vmatprep.subr.bf16.mxu0 0
      %1273 = vmatpush2.bf16.msra.mxu0 0
      %1274 = vmatprep.subr.bf16.mxu0 0
      %1275 = vmatpush2.bf16.msra.mxu0 0
      %1276 = vmatprep.mubr.bf16.mxu0 0
      %1277 = vmatmul.mubr.bf16.gmra.mxu0 %v1236
      %v1278 = vpop.f32.mrf.mxu0
      %v1279 = vadd.f32 0.0, %v1278
      %v1280 = vpop.f32.mrf.mxu0
      %v1281 = vpop.f32.mrf.mxu0
      %v1282 = vadd.f32 0.0, %v1281
      %v1283 = vpop.f32.mrf.mxu0
      %1284 = vmatprep.mubr.bf16.mxu0 0
      %1285 = vmatmul.mubr.bf16.gmra.mxu0 %v1239
      %v1286 = vpop.f32.mrf.mxu0
      %v1287 = vadd.f32 0.0, %v1286
      %v1288 = vpop.f32.mrf.mxu0
      %v1289 = vpop.f32.mrf.mxu0
      %v1290 = vadd.f32 0.0, %v1289
      %v1291 = vpop.f32.mrf.mxu0
      %1292 = vdwg.mxu0
      %v1293 = vadd.f32 %v1216, %v1279
      %v1294 = vadd.f32 %v1217, %v1282
      %v1295 = vadd.f32 %v1218, %v1287
      %v1296 = vadd.f32 %v1219, %v1290
      %v1297 = vld [vmem:[%s520] sm:$0xf]
      %v1298 = vld [vmem:[%s520 + $0x4] sm:$0xf]
      %v1299 = vld [vmem:[%s520 + $0x8] sm:$0xf]
      %v1300 = vld [vmem:[%s520 + $0xc] sm:$0xf]
      %v1301 = vld [vmem:[%s7] sm:$0xf]
      %v1306 = vunpack.c.l.b16 %v1297
      %v1307 = vunpack.c.l.b16 %v1298
      %v1308 = vunpack.c.l.b16 %v1299
      %v1309 = vunpack.c.l.b16 %v1300
      %v1310 = vpack.c.b16 %v1307, %v1306
      %v1311 = vpack.c.b16 %v1309, %v1308
      %vm1312 = vcmask 64512
      %v1314 = vsel %vm1312, %v1310, 0
      %v1317 = vsel %vm1312, %v1311, 0
      %vm1319 = vcmask 1043456
      %v1321 = vsel %vm1319, %v1301, 0
      %1323 = vmatprep.subr.bf16.mxu0 0
      %1324 = vmatpush1.bf16.msra.mxu0 0
      %1325 = vmatprep.subr.bf16.mxu0 0
      %1326 = vmatpush1.bf16.msra.mxu0 0
      %1327 = vmatprep.subr.bf16.mxu0 0
      %1328 = vmatpush1.bf16.msra.mxu0 0
      %1329 = vmatprep.subr.bf16.mxu0 0
      %1330 = vmatpush1.bf16.msra.mxu0 0
      %1331 = vmatprep.subr.bf16.mxu0 0
      %1332 = vmatpush1.bf16.msra.mxu0 0
      %1333 = vmatprep.subr.bf16.mxu0 0
      %1334 = vmatpush1.bf16.msra.mxu0 0
      %1335 = vmatprep.subr.bf16.mxu0 0
      %1336 = vmatpush1.bf16.msra.mxu0 0
      %1337 = vmatprep.subr.bf16.mxu0 0
      %1338 = vmatpush1.bf16.msra.mxu0 %v1321
      %1339 = vmatprep.subr.bf16.mxu0 0
      %1340 = vmatpush2.bf16.msra.mxu0 0
      %1341 = vmatprep.subr.bf16.mxu0 0
      %1342 = vmatpush2.bf16.msra.mxu0 0
      %1343 = vmatprep.subr.bf16.mxu0 0
      %1344 = vmatpush2.bf16.msra.mxu0 0
      %1345 = vmatprep.subr.bf16.mxu0 0
      %1346 = vmatpush2.bf16.msra.mxu0 0
      %1347 = vmatprep.subr.bf16.mxu0 0
      %1348 = vmatpush2.bf16.msra.mxu0 0
      %1349 = vmatprep.subr.bf16.mxu0 0
      %1350 = vmatpush2.bf16.msra.mxu0 0
      %1351 = vmatprep.subr.bf16.mxu0 0
      %1352 = vmatpush2.bf16.msra.mxu0 0
      %1353 = vmatprep.subr.bf16.mxu0 0
      %1354 = vmatpush2.bf16.msra.mxu0 0
      %1355 = vmatprep.mubr.bf16.mxu0 0
      %1356 = vmatmul.mubr.bf16.gmra.mxu0 %v1314
      %v1357 = vpop.f32.mrf.mxu0
      %v1358 = vadd.f32 0.0, %v1357
      %v1359 = vpop.f32.mrf.mxu0
      %v1360 = vpop.f32.mrf.mxu0
      %v1361 = vadd.f32 0.0, %v1360
      %v1362 = vpop.f32.mrf.mxu0
      %1363 = vmatprep.mubr.bf16.mxu0 0
      %1364 = vmatmul.mubr.bf16.gmra.mxu0 %v1317
      %v1365 = vpop.f32.mrf.mxu0
      %v1366 = vadd.f32 0.0, %v1365
      %v1367 = vpop.f32.mrf.mxu0
      %v1368 = vpop.f32.mrf.mxu0
      %v1369 = vadd.f32 0.0, %v1368
      %v1370 = vpop.f32.mrf.mxu0
      %1371 = vdwg.mxu0
      %v1372 = vadd.f32 %v1293, %v1358
      %v1373 = vadd.f32 %v1294, %v1361
      %v1374 = vadd.f32 %v1295, %v1366
      %v1375 = vadd.f32 %v1296, %v1369
      %v1376 = vld [vmem:[%s523] sm:$0x1]
      %v1378 = vlaneseq
      %v1379 = vshrl.u32 %v1378, 7
      %v1380 = vsub.s32 0, %v1379
      %v1381 = vrot.slane %v1376, %v1380
      %v1383 = vadd.f32 %v1372, %v1381
      %v1384 = vadd.f32 %v1373, %v1381
      %v1385 = vadd.f32 %v1374, %v1381
      %v1386 = vadd.f32 %v1375, %v1381
      %v1387 = vmax.f32 %v1383, 0.0
      %v1388 = vmax.f32 %v1384, 0.0
      %v1389 = vmax.f32 %v1385, 0.0
      %v1390 = vmax.f32 %v1386, 0.0
      %v1391 = vpack.c.bf16 %v1388, %v1387
      %v1392 = vpack.c.bf16 %v1390, %v1389
      %v1395 = vunpack.c.l.b16 %v1391
      %v1396 = vunpack.c.h.b16 %v1391
      %v1397 = vunpack.c.l.b16 %v1392
      %v1398 = vunpack.c.h.b16 %v1392
      %v1399 = vpack.c.b16 %v1395, %v1395
      %v1400 = vpack.c.b16 %v1396, %v1396
      %v1401 = vpack.c.b16 %v1397, %v1397
      %v1402 = vpack.c.b16 %v1398, %v1398
      %vm1407 = vcmask 60416
      %1408 = vst.msk [vmem:[%s532] sm:$0xf] %vm1407, %v1399
      %1409 = vst.msk [vmem:[%s532 + $0x4] sm:$0xf] %vm1407, %v1400
      %1410 = vst.msk [vmem:[%s532 + $0x8] sm:$0xf] %vm1407, %v1401
      %1411 = vst.msk [vmem:[%s532 + $0xc] sm:$0xf] %vm1407, %v1402
      %p1412 = scmp.lt.s32.totalorder %s24, 1
      %s1413 = scalar_select %p1412, %s24, 1
      %p1414 = scmp.lt.s32.totalorder %s25, 7
      %s1415 = scalar_select %p1414, %s25, 7
      %s1416 = smul.addr %s1415, 4
      %s1417 = smul.addr %s1413, 32
      %s1418 = sadd.s32 %s1416, %s1417
      %s1419 = smul.addr %s1418, 4
      %s1420 = scalar_lea.vmem %s9, %s1419
      // Predicated region
      $region57: #{enc_forward.11} parent=55 // pred_check
        %p1421 = pneg %p285
      $region58: #{enc_forward.11} parent=55 // pred_check_branch
        %1423 = sbr.rel (%p1421) target = $region60
      $region59: #{enc_forward.11} parent=55 // pred_region
        _
      $region60: #{enc_forward.11} parent=55 // pred_fallthru
        _
    $region56: #{enc_forward.11} parent=5 // pred_fallthru
      _
    %p1424 = scmp.le.s32.totalorder 2, %s15
    // Predicated region
    $region61: #{enc_forward.11} parent=5 // pred_check
      %p1425 = pneg %p1424
    $region62: #{enc_forward.11} parent=5 // pred_check_branch
      %1427 = sbr.rel (%p1425) target = $region64
    $region63: #{enc_forward.11} parent=5 // pred_region
      %s1428 = ssub.s32 %s15, 2
      // Predicated region
      $region65: #{enc_forward.11} parent=63 // pred_check
        %p1429 = pneg %p291
      $region66: #{enc_forward.11} parent=63 // pred_check_branch
        %1431 = sbr.rel (%p1429) target = $region68
      $region67: #{enc_forward.11} parent=63 // pred_region
        %p1432 = scmp.lt.s32.totalorder %s26, 1
        %s1433 = scalar_select %p1432, %s26, 1
        %p1434 = scmp.lt.s32.totalorder %s27, 7
        %s1435 = scalar_select %p1434, %s27, 7
        %s1436 = smul.addr %s1435, 4
        %s1437 = smul.addr %s1433, 32
        %s1438 = sadd.s32 %s1436, %s1437
        %s1439 = smul.addr %s1438, 4
        %s1440 = scalar_lea.vmem %s9, %s1439
      $region68: #{enc_forward.11} parent=63 // pred_fallthru
        _
    $region64: #{enc_forward.11} parent=5 // pred_fallthru
      _
  $region6: #{enc_forward.11} parent=0 // loop_footer
    %s19 = sadd.s32 1, %s15
  $region7: #{enc_forward.11} parent=0 // loop_footer_branch
    %14 = sbr.rel target = $region3
  $region8: #{enc_forward.11} parent=0 // loop_exit
    _

// kernel: enc_forward.14
$region0: #{enc_forward.14}
  #allocation0 [shape = 'u32[]', space=smem, size = 0x4, offset = 0x4, fixed_abs, tag = 'smem constant byte address 0x4 - core index']
  #allocation1 [shape = 'u32[144,128]{1,0:T(1,128)}', space=vmem, size = 0x12000, scoped, tag = 'internal scratch']
  %s0 = inlined_call_operand.vmem [shape: bf16[2,10,10,8], index: 0, kind: input, shape index: {}, may-alias: {0,2}]
  %s1 = inlined_call_operand.vmem [shape: bf16[2,10,10,8], index: 1, kind: input, shape index: {}, may-alias: {1,3}]
  %s2 = inlined_call_operand.vmem [shape: bf16[2,10,10,8], index: 2, kind: input, shape index: {}, may-alias: {0,2}]
  %s3 = inlined_call_operand.vmem [shape: bf16[2,10,10,8], index: 3, kind: input, shape index: {}, may-alias: {1,3}]
  %s4 = inlined_call_operand.vmem [shape: bf16[16,8,8], index: 4, kind: input, shape index: {}]
  %s5 = inlined_call_operand.vmem [shape: f32[1,1,8], index: 5, kind: input, shape index: {}]
  %s6 = inlined_call_operand.vmem [shape: bf16[2,4,8,8], index: 6, kind: output, shape index: {}]
  %s7 = sld [smem:[#allocation0]]
  $region57: #{enc_forward.14} parent=0
    _
  %s9 = ssub.s32 1, %s7
  %s10 = scalar_select 0, %s9, %s7
  loop: start=0, step=1, limit=10
  $region2: #{enc_forward.14} parent=0 // loop_pre_header
    _
  $region3: #{enc_forward.14} parent=0 // loop_header
    %s12 = sphi 0, %s16
    %p13 = scmp.ge.s32.totalorder %s12, 10
    %s19 = sphi 0, %s31
    %s20 = sphi 0, %s27
    %s21 = sphi 0, %s19
    %s22 = sphi 0, %s20
    %s23 = sphi 0, %s21
    %s24 = sphi 0, %s22
    %s36 = sphi 0, %s38
    %s39 = sphi 0, %s36
    %s40 = sphi 0, %s39
    %s56 = sphi 0, %s40
    %s64 = sphi 0, %s66
    %s67 = sphi 0, %s64
    %s68 = sphi 0, %s67
    %s84 = sphi 0, %s68
    %s94 = sphi 0, %s96
    %s97 = sphi 0, %s94
    %s98 = sphi 0, %s97
    %s114 = sphi 0, %s98
    %s124 = sphi 0, %s126
    %s127 = sphi 0, %s124
    %s128 = sphi 0, %s127
    %s144 = sphi 0, %s128
    %s148 = sphi 0, %s148
    %s150 = sphi 0, %s148
    %s151 = sphi 0, %s150
    %s165 = sphi 0, %s151
    %s169 = sphi 0, %s169
    %s171 = sphi 0, %s169
    %s172 = sphi 0, %s171
    %s186 = sphi 0, %s172
    %s194 = sphi 0, %s196
    %s197 = sphi 0, %s194
    %s198 = sphi 0, %s197
    %s214 = sphi 0, %s198
  $region4: #{enc_forward.14} parent=0 // loop_header_branch
    %15 = sbr.rel (%p13) target = $region8
  $region5: #{enc_forward.14} parent=0 // loop_body
    %s17 = ssub.s32 %s12, 1
    %s18 = ssub.s32 %s12, 2
    %s25 = sadd.s32 1, %s20
    %p26 = scmp.ge.s32.totalorder %s25, 4
    %s27 = scalar_select %p26, 0, %s25
    %s28 = sadd.s32 1, %s19
    %s29 = scalar_select %p26, %s28, %s19
    %p30 = scmp.ge.s32.totalorder %s29, 2
    %s31 = scalar_select %p30, 0, %s29
    %s32 = ssub.s32 %s19, %s31
    %s33 = ssub.s32 %s20, %s27
    %s34 = sor.u32 %s32, %s33
    %p35 = scmp.eq.s32.totalorder %s34, 0
    %s37 = sadd.s32 %s36, 1
    %s38 = scalar_select %p35, %s36, %s37
    %p41 = pneg %p35
    %p42 = scmp.eq.s32.totalorder %s12, 7
    %p43 = por %p41, %p42
    %p44 = scmp.ne.s32.totalorder %s36, %s39
    %p45 = scmp.eq.s32.totalorder %s12, 0
    %p46 = por %p44, %p45
    %p47 = scmp.ne.s32.totalorder %s36, %s39
    %p48 = scmp.eq.s32.totalorder %s17, 7
    %p49 = por %p47, %p48
    %p50 = scmp.ne.s32.totalorder %s39, %s40
    %p51 = scmp.eq.s32.totalorder %s17, 0
    %p52 = por %p50, %p51
    %p53 = scmp.ne.s32.totalorder %s39, %s40
    %p54 = scmp.eq.s32.totalorder %s18, 7
    %p55 = por %p53, %p54
    %p57 = scmp.ne.s32.totalorder %s40, %s56
    %p58 = scmp.eq.s32.totalorder %s18, 0
    %p59 = por %p57, %p58
    %s60 = ssub.s32 %s19, %s31
    %s61 = ssub.s32 %s20, %s27
    %s62 = sor.u32 %s60, %s61
    %p63 = scmp.eq.s32.totalorder %s62, 0
    %s65 = sadd.s32 %s64, 1
    %s66 = scalar_select %p63, %s64, %s65
    %p69 = pneg %p63
    %p70 = scmp.eq.s32.totalorder %s12, 7
    %p71 = por %p69, %p70
    %p72 = scmp.ne.s32.totalorder %s64, %s67
    %p73 = scmp.eq.s32.totalorder %s12, 0
    %p74 = por %p72, %p73
    %p75 = scmp.ne.s32.totalorder %s64, %s67
    %p76 = scmp.eq.s32.totalorder %s17, 7
    %p77 = por %p75, %p76
    %p78 = scmp.ne.s32.totalorder %s67, %s68
    %p79 = scmp.eq.s32.totalorder %s17, 0
    %p80 = por %p78, %p79
    %p81 = scmp.ne.s32.totalorder %s67, %s68
    %p82 = scmp.eq.s32.totalorder %s18, 7
    %p83 = por %p81, %p82
    %p85 = scmp.ne.s32.totalorder %s68, %s84
    %p86 = scmp.eq.s32.totalorder %s18, 0
    %p87 = por %p85, %p86
    %s88 = sadd.s32 %s20, 1
    %s89 = sadd.s32 %s27, 1
    %s90 = ssub.s32 %s19, %s31
    %s91 = ssub.s32 %s88, %s89
    %s92 = sor.u32 %s90, %s91
    %p93 = scmp.eq.s32.totalorder %s92, 0
    %s95 = sadd.s32 %s94, 1
    %s96 = scalar_select %p93, %s94, %s95
    %p99 = pneg %p93
    %p100 = scmp.eq.s32.totalorder %s12, 7
    %p101 = por %p99, %p100
    %p102 = scmp.ne.s32.totalorder %s94, %s97
    %p103 = scmp.eq.s32.totalorder %s12, 0
    %p104 = por %p102, %p103
    %p105 = scmp.ne.s32.totalorder %s94, %s97
    %p106 = scmp.eq.s32.totalorder %s17, 7
    %p107 = por %p105, %p106
    %p108 = scmp.ne.s32.totalorder %s97, %s98
    %p109 = scmp.eq.s32.totalorder %s17, 0
    %p110 = por %p108, %p109
    %p111 = scmp.ne.s32.totalorder %s97, %s98
    %p112 = scmp.eq.s32.totalorder %s18, 7
    %p113 = por %p111, %p112
    %p115 = scmp.ne.s32.totalorder %s98, %s114
    %p116 = scmp.eq.s32.totalorder %s18, 0
    %p117 = por %p115, %p116
    %s118 = sadd.s32 %s20, 1
    %s119 = sadd.s32 %s27, 1
    %s120 = ssub.s32 %s19, %s31
    %s121 = ssub.s32 %s118, %s119
    %s122 = sor.u32 %s120, %s121
    %p123 = scmp.eq.s32.totalorder %s122, 0
    %s125 = sadd.s32 %s124, 1
    %s126 = scalar_select %p123, %s124, %s125
    %p129 = pneg %p123
    %p130 = scmp.eq.s32.totalorder %s12, 7
    %p131 = por %p129, %p130
    %p132 = scmp.ne.s32.totalorder %s124, %s127
    %p133 = scmp.eq.s32.totalorder %s12, 0
    %p134 = por %p132, %p133
    %p135 = scmp.ne.s32.totalorder %s124, %s127
    %p136 = scmp.eq.s32.totalorder %s17, 7
    %p137 = por %p135, %p136
    %p138 = scmp.ne.s32.totalorder %s127, %s128
    %p139 = scmp.eq.s32.totalorder %s17, 0
    %p140 = por %p138, %p139
    %p141 = scmp.ne.s32.totalorder %s127, %s128
    %p142 = scmp.eq.s32.totalorder %s18, 7
    %p143 = por %p141, %p142
    %p145 = scmp.ne.s32.totalorder %s128, %s144
    %p146 = scmp.eq.s32.totalorder %s18, 0
    %p147 = por %p145, %p146
    %s149 = sadd.s32 %s148, 1
    %p152 = scmp.eq.s32.totalorder %s12, 7
    %p153 = scmp.ne.s32.totalorder %s148, %s150
    %p154 = scmp.eq.s32.totalorder %s12, 0
    %p155 = por %p153, %p154
    %p156 = scmp.ne.s32.totalorder %s148, %s150
    %p157 = scmp.eq.s32.totalorder %s17, 7
    %p158 = por %p156, %p157
    %p159 = scmp.ne.s32.totalorder %s150, %s151
    %p160 = scmp.eq.s32.totalorder %s17, 0
    %p161 = por %p159, %p160
    %p162 = scmp.ne.s32.totalorder %s150, %s151
    %p163 = scmp.eq.s32.totalorder %s18, 7
    %p164 = por %p162, %p163
    %p166 = scmp.ne.s32.totalorder %s151, %s165
    %p167 = scmp.eq.s32.totalorder %s18, 0
    %p168 = por %p166, %p167
    %s170 = sadd.s32 %s169, 1
    %p173 = scmp.eq.s32.totalorder %s12, 7
    %p174 = scmp.ne.s32.totalorder %s169, %s171
    %p175 = scmp.eq.s32.totalorder %s12, 0
    %p176 = por %p174, %p175
    %p177 = scmp.ne.s32.totalorder %s169, %s171
    %p178 = scmp.eq.s32.totalorder %s17, 7
    %p179 = por %p177, %p178
    %p180 = scmp.ne.s32.totalorder %s171, %s172
    %p181 = scmp.eq.s32.totalorder %s17, 0
    %p182 = por %p180, %p181
    %p183 = scmp.ne.s32.totalorder %s171, %s172
    %p184 = scmp.eq.s32.totalorder %s18, 7
    %p185 = por %p183, %p184
    %p187 = scmp.ne.s32.totalorder %s172, %s186
    %p188 = scmp.eq.s32.totalorder %s18, 0
    %p189 = por %p187, %p188
    %s190 = ssub.s32 %s19, %s31
    %s191 = ssub.s32 %s20, %s27
    %s192 = sor.u32 %s190, %s191
    %p193 = scmp.eq.s32.totalorder %s192, 0
    %s195 = sadd.s32 %s194, 1
    %s196 = scalar_select %p193, %s194, %s195
    %p199 = pneg %p193
    %p200 = scmp.eq.s32.totalorder %s12, 7
    %p201 = por %p199, %p200
    %p202 = scmp.ne.s32.totalorder %s194, %s197
    %p203 = scmp.eq.s32.totalorder %s12, 0
    %p204 = por %p202, %p203
    %p205 = scmp.ne.s32.totalorder %s194, %s197
    %p206 = scmp.eq.s32.totalorder %s17, 7
    %p207 = por %p205, %p206
    %p208 = scmp.ne.s32.totalorder %s197, %s198
    %p209 = scmp.eq.s32.totalorder %s17, 0
    %p210 = por %p208, %p209
    %p211 = scmp.ne.s32.totalorder %s197, %s198
    %p212 = scmp.eq.s32.totalorder %s18, 7
    %p213 = por %p211, %p212
    %p215 = scmp.ne.s32.totalorder %s198, %s214
    %p216 = scmp.eq.s32.totalorder %s18, 0
    %p217 = por %p215, %p216
    %p218 = scmp.le.s32.totalorder 1, %s12
    %p219 = scmp.lt.s32.totalorder %s12, 9
    %p220 = pnand %p218, %p219
    %p221 = pneg %p220
    // Predicated region
    $region9: #{enc_forward.14} parent=5 // pred_check
      _
    $region10: #{enc_forward.14} parent=5 // pred_check_branch
      %223 = sbr.rel (%p220) target = $region12
    $region11: #{enc_forward.14} parent=5 // pred_region
      %s224 = ssub.s32 %s12, 1
      // Predicated region
      $region13: #{enc_forward.14} parent=11 // pred_check
        %p225 = pneg %p161
      $region14: #{enc_forward.14} parent=11 // pred_check_branch
        %227 = sbr.rel (%p225) target = $region16
      $region15: #{enc_forward.14} parent=11 // pred_region
        _
      $region16: #{enc_forward.14} parent=11 // pred_fallthru
        _
      // Predicated region
      $region17: #{enc_forward.14} parent=11 // pred_check
        %p228 = pneg %p182
      $region18: #{enc_forward.14} parent=11 // pred_check_branch
        %230 = sbr.rel (%p228) target = $region20
      $region19: #{enc_forward.14} parent=11 // pred_region
        _
      $region20: #{enc_forward.14} parent=11 // pred_fallthru
        _
    $region12: #{enc_forward.14} parent=5 // pred_fallthru
      _
    %p231 = scmp.lt.s32.totalorder %s12, 8
    // Predicated region
    $region21: #{enc_forward.14} parent=5 // pred_check
      %p232 = pneg %p231
    $region22: #{enc_forward.14} parent=5 // pred_check_branch
      %234 = sbr.rel (%p232) target = $region24
    $region23: #{enc_forward.14} parent=5 // pred_region
      // Predicated region
      $region25: #{enc_forward.14} parent=23 // pred_check
        %p235 = pneg %p46
      $region26: #{enc_forward.14} parent=23 // pred_check_branch
        %237 = sbr.rel (%p235) target = $region28
      $region27: #{enc_forward.14} parent=23 // pred_region
        %s238 = smul.u32 2, %s20
        %p239 = scmp.lt.s32.totalorder %s19, 1
        %s240 = scalar_select %p239, %s19, 1
        %p241 = scmp.lt.s32.totalorder %s238, 9
        %s242 = scalar_select %p241, %s238, 9
        %s243 = smul.addr %s242, 2
        %s244 = smul.addr %s240, 20
        %s245 = sadd.s32 %s243, %s244
        %s246 = smul.addr %s245, 4
        %s247 = scalar_lea.vmem %s0, %s246
        %s248 = smul.u32 2, %s20
      $region28: #{enc_forward.14} parent=23 // pred_fallthru
        _
      // Predicated region
      $region29: #{enc_forward.14} parent=23 // pred_check
        %p249 = pneg %p74
      $region30: #{enc_forward.14} parent=23 // pred_check_branch
        %251 = sbr.rel (%p249) target = $region32
      $region31: #{enc_forward.14} parent=23 // pred_region
        %s252 = smul.u32 2, %s20
        %p253 = scmp.lt.s32.totalorder %s19, 1
        %s254 = scalar_select %p253, %s19, 1
        %p255 = scmp.lt.s32.totalorder %s252, 9
        %s256 = scalar_select %p255, %s252, 9
        %s257 = smul.addr %s256, 2
        %s258 = smul.addr %s254, 20
        %s259 = sadd.s32 %s257, %s258
        %s260 = smul.addr %s259, 4
        %s261 = scalar_lea.vmem %s1, %s260
        %s262 = smul.u32 2, %s20
      $region32: #{enc_forward.14} parent=23 // pred_fallthru
        _
      // Predicated region
      $region33: #{enc_forward.14} parent=23 // pred_check
        %p263 = pneg %p104
      $region34: #{enc_forward.14} parent=23 // pred_check_branch
        %265 = sbr.rel (%p263) target = $region36
      $region35: #{enc_forward.14} parent=23 // pred_region
        %s266 = sadd.s32 %s20, 1
        %s267 = smul.u32 2, %s266
        %p268 = scmp.lt.s32.totalorder %s19, 1
        %s269 = scalar_select %p268, %s19, 1
        %p270 = scmp.lt.s32.totalorder %s267, 9
        %s271 = scalar_select %p270, %s267, 9
        %s272 = smul.addr %s271, 2
        %s273 = smul.addr %s269, 20
        %s274 = sadd.s32 %s272, %s273
        %s275 = smul.addr %s274, 4
        %s276 = scalar_lea.vmem %s2, %s275
        %s277 = sadd.s32 %s20, 1
        %s278 = smul.u32 2, %s277
      $region36: #{enc_forward.14} parent=23 // pred_fallthru
        _
      // Predicated region
      $region37: #{enc_forward.14} parent=23 // pred_check
        %p279 = pneg %p134
      $region38: #{enc_forward.14} parent=23 // pred_check_branch
        %281 = sbr.rel (%p279) target = $region40
      $region39: #{enc_forward.14} parent=23 // pred_region
        %s282 = sadd.s32 %s20, 1
        %s283 = smul.u32 2, %s282
        %p284 = scmp.lt.s32.totalorder %s19, 1
        %s285 = scalar_select %p284, %s19, 1
        %p286 = scmp.lt.s32.totalorder %s283, 9
        %s287 = scalar_select %p286, %s283, 9
        %s288 = smul.addr %s287, 2
        %s289 = smul.addr %s285, 20
        %s290 = sadd.s32 %s288, %s289
        %s291 = smul.addr %s290, 4
        %s292 = scalar_lea.vmem %s3, %s291
        %s293 = sadd.s32 %s20, 1
        %s294 = smul.u32 2, %s293
      $region40: #{enc_forward.14} parent=23 // pred_fallthru
        _
    $region24: #{enc_forward.14} parent=5 // pred_fallthru
      _
    %p295 = scmp.le.s32.totalorder 1, %s12
    %p296 = scmp.lt.s32.totalorder %s12, 9
    %p297 = pnand %p295, %p296
    %p298 = pneg %p297
    // Predicated region
    $region41: #{enc_forward.14} parent=5 // pred_check
      _
    $region42: #{enc_forward.14} parent=5 // pred_check_branch
      %300 = sbr.rel (%p297) target = $region44
    $region43: #{enc_forward.14} parent=5 // pred_region
      %s301 = ssub.s32 %s12, 1
      %s302 = smul.u32 2, %s22
      %p303 = scmp.lt.s32.totalorder %s21, 1
      %s304 = scalar_select %p303, %s21, 1
      %p305 = scmp.lt.s32.totalorder %s302, 9
      %s306 = scalar_select %p305, %s302, 9
      %s307 = smul.addr %s306, 2
      %s308 = smul.addr %s304, 20
      %s309 = sadd.s32 %s307, %s308
      %s310 = smul.addr %s309, 4
      %s311 = scalar_lea.vmem %s0, %s310
      %p312 = pneg %p52
      %p313 = pneg %p49
      %s314 = smul.u32 2, %s22
      %p315 = scmp.lt.s32.totalorder %s21, 1
      %s316 = scalar_select %p315, %s21, 1
      %p317 = scmp.lt.s32.totalorder %s314, 9
      %s318 = scalar_select %p317, %s314, 9
      %s319 = smul.addr %s318, 2
      %s320 = smul.addr %s316, 20
      %s321 = sadd.s32 %s319, %s320
      %s322 = smul.addr %s321, 4
      %s323 = scalar_lea.vmem %s1, %s322
      %p324 = pneg %p80
      %p325 = pneg %p77
      %s326 = sadd.s32 %s22, 1
      %s327 = smul.u32 2, %s326
      %p328 = scmp.lt.s32.totalorder %s21, 1
      %s329 = scalar_select %p328, %s21, 1
      %p330 = scmp.lt.s32.totalorder %s327, 9
      %s331 = scalar_select %p330, %s327, 9
      %s332 = smul.addr %s331, 2
      %s333 = smul.addr %s329, 20
      %s334 = sadd.s32 %s332, %s333
      %s335 = smul.addr %s334, 4
      %s336 = scalar_lea.vmem %s2, %s335
      %p337 = pneg %p110
      %p338 = pneg %p107
      %s339 = sadd.s32 %s22, 1
      %s340 = smul.u32 2, %s339
      %p341 = scmp.lt.s32.totalorder %s21, 1
      %s342 = scalar_select %p341, %s21, 1
      %p343 = scmp.lt.s32.totalorder %s340, 9
      %s344 = scalar_select %p343, %s340, 9
      %s345 = smul.addr %s344, 2
      %s346 = smul.addr %s342, 20
      %s347 = sadd.s32 %s345, %s346
      %s348 = smul.addr %s347, 4
      %s349 = scalar_lea.vmem %s3, %s348
      %p350 = pneg %p140
      %p351 = pneg %p137
      %p352 = pneg %p161
      %p353 = pneg %p158
      %p354 = pneg %p182
      %p355 = pneg %p179
      %p356 = pneg %p210
      %p357 = pneg %p207
      %p358 = scmp.lt.s32.totalorder %s21, 1
      %s359 = scalar_select %p358, %s21, 1
      %p360 = scmp.lt.s32.totalorder %s22, 3
      %s361 = scalar_select %p360, %s22, 3
      %s362 = smul.addr %s359, 4
      %s363 = sadd.s32 %s361, %s362
      %s364 = smul.addr %s363, 4
      %s365 = scalar_lea.vmem %s6, %s364
      %s366 = smul.u32 2, %s22
      %p367 = scmp.lt.s32.totalorder %s21, 1
      %s368 = scalar_select %p367, %s21, 1
      %p369 = scmp.lt.s32.totalorder %s366, 9
      %s370 = scalar_select %p369, %s366, 9
      %s371 = smul.addr %s370, 2
      %s372 = smul.addr %s368, 20
      %s373 = sadd.s32 %s371, %s372
      %s374 = smul.addr %s373, 4
      %s375 = scalar_lea.vmem %s0, %s374
      %s376 = smul.u32 2, %s22
      %s377 = smul.u32 2, %s22
      %p378 = scmp.lt.s32.totalorder %s21, 1
      %s379 = scalar_select %p378, %s21, 1
      %p380 = scmp.lt.s32.totalorder %s377, 9
      %s381 = scalar_select %p380, %s377, 9
      %s382 = smul.addr %s381, 2
      %s383 = smul.addr %s379, 20
      %s384 = sadd.s32 %s382, %s383
      %s385 = smul.addr %s384, 4
      %s386 = scalar_lea.vmem %s1, %s385
      %s387 = smul.u32 2, %s22
      %s388 = sadd.s32 %s22, 1
      %s389 = smul.u32 2, %s388
      %p390 = scmp.lt.s32.totalorder %s21, 1
      %s391 = scalar_select %p390, %s21, 1
      %p392 = scmp.lt.s32.totalorder %s389, 9
      %s393 = scalar_select %p392, %s389, 9
      %s394 = smul.addr %s393, 2
      %s395 = smul.addr %s391, 20
      %s396 = sadd.s32 %s394, %s395
      %s397 = smul.addr %s396, 4
      %s398 = scalar_lea.vmem %s2, %s397
      %s399 = sadd.s32 %s22, 1
      %s400 = smul.u32 2, %s399
      %s401 = sadd.s32 %s22, 1
      %s402 = smul.u32 2, %s401
      %p403 = scmp.lt.s32.totalorder %s21, 1
      %s404 = scalar_select %p403, %s21, 1
      %p405 = scmp.lt.s32.totalorder %s402, 9
      %s406 = scalar_select %p405, %s402, 9
      %s407 = smul.addr %s406, 2
      %s408 = smul.addr %s404, 20
      %s409 = sadd.s32 %s407, %s408
      %s410 = smul.addr %s409, 4
      %s411 = scalar_lea.vmem %s3, %s410
      %s412 = sadd.s32 %s22, 1
      %s413 = smul.u32 2, %s412
      %p414 = scmp.lt.s32.totalorder %s21, 1
      %s415 = scalar_select %p414, %s21, 1
      %p416 = scmp.lt.s32.totalorder %s22, 3
      %s417 = scalar_select %p416, %s22, 3
      %s418 = smul.addr %s415, 4
      %s419 = sadd.s32 %s417, %s418
      %s420 = smul.addr %s419, 4
      %s421 = scalar_lea.vmem %s6, %s420
      %v423 = vld [vmem:[%s375] sm:$0xf]
      %v424 = vld [vmem:[%s4] sm:$0xf]
      %v425 = vld [vmem:[%s386] sm:$0xf]
      %s426 = scalar_lea.vmem %s4, 4
      %v427 = vld [vmem:[%s426] sm:$0xf]
      %vm428 = vcmask 64512
      %v430 = vsel %vm428, %v425, 0
      %vm432 = vcmask 1043456
      %v434 = vsel %vm432, %v427, 0
      %436 = vmatprep.subr.bf16.mxu0 0
      %437 = vmatpush1.bf16.msra.mxu0 0
      %438 = vmatprep.subr.bf16.mxu0 0
      %439 = vmatpush1.bf16.msra.mxu0 0
      %440 = vmatprep.subr.bf16.mxu0 0
      %441 = vmatpush1.bf16.msra.mxu0 0
      %442 = vmatprep.subr.bf16.mxu0 0
      %443 = vmatpush1.bf16.msra.mxu0 0
      %444 = vmatprep.subr.bf16.mxu0 0
      %445 = vmatpush1.bf16.msra.mxu0 0
      %446 = vmatprep.subr.bf16.mxu0 0
      %447 = vmatpush1.bf16.msra.mxu0 0
      %448 = vmatprep.subr.bf16.mxu0 0
      %449 = vmatpush1.bf16.msra.mxu0 0
      %450 = vmatprep.subr.bf16.mxu0 0
      %451 = vmatpush1.bf16.msra.mxu0 %v434
      %452 = vmatprep.subr.bf16.mxu0 0
      %453 = vmatpush2.bf16.msra.mxu0 0
      %454 = vmatprep.subr.bf16.mxu0 0
      %455 = vmatpush2.bf16.msra.mxu0 0
      %456 = vmatprep.subr.bf16.mxu0 0
      %457 = vmatpush2.bf16.msra.mxu0 0
      %458 = vmatprep.subr.bf16.mxu0 0
      %459 = vmatpush2.bf16.msra.mxu0 0
      %460 = vmatprep.subr.bf16.mxu0 0
      %461 = vmatpush2.bf16.msra.mxu0 0
      %462 = vmatprep.subr.bf16.mxu0 0
      %463 = vmatpush2.bf16.msra.mxu0 0
      %464 = vmatprep.subr.bf16.mxu0 0
      %465 = vmatpush2.bf16.msra.mxu0 0
      %466 = vmatprep.subr.bf16.mxu0 0
      %467 = vmatpush2.bf16.msra.mxu0 0
      %468 = vmatprep.mubr.bf16.mxu0 0
      %469 = vmatmul.mubr.bf16.gmra.mxu0 %v430
      %v470 = vpop.f32.mrf.mxu0
      %v471 = vadd.f32 0.0, %v470
      %v472 = vpop.f32.mrf.mxu0
      %v473 = vpop.f32.mrf.mxu0
      %v474 = vpop.f32.mrf.mxu0
      %475 = vdwg.mxu0
      %v477 = vsel %vm428, %v423, 0
      %v480 = vsel %vm432, %v424, 0
      %482 = vmatprep.subr.bf16.mxu0 0
      %483 = vmatpush1.bf16.msra.mxu0 0
      %484 = vmatprep.subr.bf16.mxu0 0
      %485 = vmatpush1.bf16.msra.mxu0 0
      %486 = vmatprep.subr.bf16.mxu0 0
      %487 = vmatpush1.bf16.msra.mxu0 0
      %488 = vmatprep.subr.bf16.mxu0 0
      %489 = vmatpush1.bf16.msra.mxu0 0
      %490 = vmatprep.subr.bf16.mxu0 0
      %491 = vmatpush1.bf16.msra.mxu0 0
      %492 = vmatprep.subr.bf16.mxu0 0
      %493 = vmatpush1.bf16.msra.mxu0 0
      %494 = vmatprep.subr.bf16.mxu0 0
      %495 = vmatpush1.bf16.msra.mxu0 0
      %496 = vmatprep.subr.bf16.mxu0 0
      %497 = vmatpush1.bf16.msra.mxu0 %v480
      %498 = vmatprep.subr.bf16.mxu0 0
      %499 = vmatpush2.bf16.msra.mxu0 0
      %500 = vmatprep.subr.bf16.mxu0 0
      %501 = vmatpush2.bf16.msra.mxu0 0
      %502 = vmatprep.subr.bf16.mxu0 0
      %503 = vmatpush2.bf16.msra.mxu0 0
      %504 = vmatprep.subr.bf16.mxu0 0
      %505 = vmatpush2.bf16.msra.mxu0 0
      %506 = vmatprep.subr.bf16.mxu0 0
      %507 = vmatpush2.bf16.msra.mxu0 0
      %508 = vmatprep.subr.bf16.mxu0 0
      %509 = vmatpush2.bf16.msra.mxu0 0
      %510 = vmatprep.subr.bf16.mxu0 0
      %511 = vmatpush2.bf16.msra.mxu0 0
      %512 = vmatprep.subr.bf16.mxu0 0
      %513 = vmatpush2.bf16.msra.mxu0 0
      %514 = vmatprep.mubr.bf16.mxu0 0
      %515 = vmatmul.mubr.bf16.gmra.mxu0 %v477
      %v516 = vpop.f32.mrf.mxu0
      %v517 = vadd.f32 %v471, %v516
      %v518 = vpop.f32.mrf.mxu0
      %v519 = vpop.f32.mrf.mxu0
      %v520 = vpop.f32.mrf.mxu0
      %521 = vdwg.mxu0
      %v522 = vld [vmem:[%s375] sm:$0xe]
      %v523 = vld [vmem:[%s375 + $0x4] sm:$0x1]
      %s524 = scalar_lea.vmem %s4, 8
      %v525 = vld [vmem:[%s524] sm:$0xf]
      %v528 = vunpack.c.l.b16 %v522
      %v529 = vunpack.c.l.b16 %v523
      %v530 = vpack.c.b16 %v529, %v528
      %v531 = vrot.slane %v530, 1
      %v533 = vsel %vm428, %v531, 0
      %v536 = vsel %vm432, %v525, 0
      %538 = vmatprep.subr.bf16.mxu0 0
      %539 = vmatpush1.bf16.msra.mxu0 0
      %540 = vmatprep.subr.bf16.mxu0 0
      %541 = vmatpush1.bf16.msra.mxu0 0
      %542 = vmatprep.subr.bf16.mxu0 0
      %543 = vmatpush1.bf16.msra.mxu0 0
      %544 = vmatprep.subr.bf16.mxu0 0
      %545 = vmatpush1.bf16.msra.mxu0 0
      %546 = vmatprep.subr.bf16.mxu0 0
      %547 = vmatpush1.bf16.msra.mxu0 0
      %548 = vmatprep.subr.bf16.mxu0 0
      %549 = vmatpush1.bf16.msra.mxu0 0
      %550 = vmatprep.subr.bf16.mxu0 0
      %551 = vmatpush1.bf16.msra.mxu0 0
      %552 = vmatprep.subr.bf16.mxu0 0
      %553 = vmatpush1.bf16.msra.mxu0 %v536
      %554 = vmatprep.subr.bf16.mxu0 0
      %555 = vmatpush2.bf16.msra.mxu0 0
      %556 = vmatprep.subr.bf16.mxu0 0
      %557 = vmatpush2.bf16.msra.mxu0 0
      %558 = vmatprep.subr.bf16.mxu0 0
      %559 = vmatpush2.bf16.msra.mxu0 0
      %560 = vmatprep.subr.bf16.mxu0 0
      %561 = vmatpush2.bf16.msra.mxu0 0
      %562 = vmatprep.subr.bf16.mxu0 0
      %563 = vmatpush2.bf16.msra.mxu0 0
      %564 = vmatprep.subr.bf16.mxu0 0
      %565 = vmatpush2.bf16.msra.mxu0 0
      %566 = vmatprep.subr.bf16.mxu0 0
      %567 = vmatpush2.bf16.msra.mxu0 0
      %568 = vmatprep.subr.bf16.mxu0 0
      %569 = vmatpush2.bf16.msra.mxu0 0
      %570 = vmatprep.mubr.bf16.mxu0 0
      %571 = vmatmul.mubr.bf16.gmra.mxu0 %v533
      %v572 = vpop.f32.mrf.mxu0
      %v573 = vadd.f32 0.0, %v572
      %v574 = vpop.f32.mrf.mxu0
      %v575 = vpop.f32.mrf.mxu0
      %v576 = vpop.f32.mrf.mxu0
      %577 = vdwg.mxu0
      %v578 = vadd.f32 %v517, %v573
      %v579 = vld [vmem:[%s386] sm:$0xe]
      %v580 = vld [vmem:[%s386 + $0x4] sm:$0x1]
      %s581 = scalar_lea.vmem %s4, 12
      %v582 = vld [vmem:[%s581] sm:$0xf]
      %v585 = vunpack.c.l.b16 %v579
      %v586 = vunpack.c.l.b16 %v580
      %v587 = vpack.c.b16 %v586, %v585
      %v588 = vrot.slane %v587, 1
      %v590 = vsel %vm428, %v588, 0
      %v593 = vsel %vm432, %v582, 0
      %595 = vmatprep.subr.bf16.mxu0 0
      %596 = vmatpush1.bf16.msra.mxu0 0
      %597 = vmatprep.subr.bf16.mxu0 0
      %598 = vmatpush1.bf16.msra.mxu0 0
      %599 = vmatprep.subr.bf16.mxu0 0
      %600 = vmatpush1.bf16.msra.mxu0 0
      %601 = vmatprep.subr.bf16.mxu0 0
      %602 = vmatpush1.bf16.msra.mxu0 0
      %603 = vmatprep.subr.bf16.mxu0 0
      %604 = vmatpush1.bf16.msra.mxu0 0
      %605 = vmatprep.subr.bf16.mxu0 0
      %606 = vmatpush1.bf16.msra.mxu0 0
      %607 = vmatprep.subr.bf16.mxu0 0
      %608 = vmatpush1.bf16.msra.mxu0 0
      %609 = vmatprep.subr.bf16.mxu0 0
      %610 = vmatpush1.bf16.msra.mxu0 %v593
      %611 = vmatprep.subr.bf16.mxu0 0
      %612 = vmatpush2.bf16.msra.mxu0 0
      %613 = vmatprep.subr.bf16.mxu0 0
      %614 = vmatpush2.bf16.msra.mxu0 0
      %615 = vmatprep.subr.bf16.mxu0 0
      %616 = vmatpush2.bf16.msra.mxu0 0
      %617 = vmatprep.subr.bf16.mxu0 0
      %618 = vmatpush2.bf16.msra.mxu0 0
      %619 = vmatprep.subr.bf16.mxu0 0
      %620 = vmatpush2.bf16.msra.mxu0 0
      %621 = vmatprep.subr.bf16.mxu0 0
      %622 = vmatpush2.bf16.msra.mxu0 0
      %623 = vmatprep.subr.bf16.mxu0 0
      %624 = vmatpush2.bf16.msra.mxu0 0
      %625 = vmatprep.subr.bf16.mxu0 0
      %626 = vmatpush2.bf16.msra.mxu0 0
      %627 = vmatprep.mubr.bf16.mxu0 0
      %628 = vmatmul.mubr.bf16.gmra.mxu0 %v590
      %v629 = vpop.f32.mrf.mxu0
      %v630 = vadd.f32 0.0, %v629
      %v631 = vpop.f32.mrf.mxu0
      %v632 = vpop.f32.mrf.mxu0
      %v633 = vpop.f32.mrf.mxu0
      %634 = vdwg.mxu0
      %v635 = vadd.f32 %v578, %v630
      %s636 = scalar_lea.vmem %s375, 8
      %v637 = vld [vmem:[%s636] sm:$0xf]
      %s638 = scalar_lea.vmem %s4, 16
      %v639 = vld [vmem:[%s638] sm:$0xf]
      %v641 = vsel %vm428, %v637, 0
      %v644 = vsel %vm432, %v639, 0
      %646 = vmatprep.subr.bf16.mxu0 0
      %647 = vmatpush1.bf16.msra.mxu0 0
      %648 = vmatprep.subr.bf16.mxu0 0
      %649 = vmatpush1.bf16.msra.mxu0 0
      %650 = vmatprep.subr.bf16.mxu0 0
      %651 = vmatpush1.bf16.msra.mxu0 0
      %652 = vmatprep.subr.bf16.mxu0 0
      %653 = vmatpush1.bf16.msra.mxu0 0
      %654 = vmatprep.subr.bf16.mxu0 0
      %655 = vmatpush1.bf16.msra.mxu0 0
      %656 = vmatprep.subr.bf16.mxu0 0
      %657 = vmatpush1.bf16.msra.mxu0 0
      %658 = vmatprep.subr.bf16.mxu0 0
      %659 = vmatpush1.bf16.msra.mxu0 0
      %660 = vmatprep.subr.bf16.mxu0 0
      %661 = vmatpush1.bf16.msra.mxu0 %v644
      %662 = vmatprep.subr.bf16.mxu0 0
      %663 = vmatpush2.bf16.msra.mxu0 0
      %664 = vmatprep.subr.bf16.mxu0 0
      %665 = vmatpush2.bf16.msra.mxu0 0
      %666 = vmatprep.subr.bf16.mxu0 0
      %667 = vmatpush2.bf16.msra.mxu0 0
      %668 = vmatprep.subr.bf16.mxu0 0
      %669 = vmatpush2.bf16.msra.mxu0 0
      %670 = vmatprep.subr.bf16.mxu0 0
      %671 = vmatpush2.bf16.msra.mxu0 0
      %672 = vmatprep.subr.bf16.mxu0 0
      %673 = vmatpush2.bf16.msra.mxu0 0
      %674 = vmatprep.subr.bf16.mxu0 0
      %675 = vmatpush2.bf16.msra.mxu0 0
      %676 = vmatprep.subr.bf16.mxu0 0
      %677 = vmatpush2.bf16.msra.mxu0 0
      %678 = vmatprep.mubr.bf16.mxu0 0
      %679 = vmatmul.mubr.bf16.gmra.mxu0 %v641
      %v680 = vpop.f32.mrf.mxu0
      %v681 = vadd.f32 0.0, %v680
      %v682 = vpop.f32.mrf.mxu0
      %v683 = vpop.f32.mrf.mxu0
      %v684 = vpop.f32.mrf.mxu0
      %685 = vdwg.mxu0
      %v686 = vadd.f32 %v635, %v681
      %s687 = scalar_lea.vmem %s386, 8
      %v688 = vld [vmem:[%s687] sm:$0xf]
      %s689 = scalar_lea.vmem %s4, 20
      %v690 = vld [vmem:[%s689] sm:$0xf]
      %v692 = vsel %vm428, %v688, 0
      %v695 = vsel %vm432, %v690, 0
      %697 = vmatprep.subr.bf16.mxu0 0
      %698 = vmatpush1.bf16.msra.mxu0 0
      %699 = vmatprep.subr.bf16.mxu0 0
      %700 = vmatpush1.bf16.msra.mxu0 0
      %701 = vmatprep.subr.bf16.mxu0 0
      %702 = vmatpush1.bf16.msra.mxu0 0
      %703 = vmatprep.subr.bf16.mxu0 0
      %704 = vmatpush1.bf16.msra.mxu0 0
      %705 = vmatprep.subr.bf16.mxu0 0
      %706 = vmatpush1.bf16.msra.mxu0 0
      %707 = vmatprep.subr.bf16.mxu0 0
      %708 = vmatpush1.bf16.msra.mxu0 0
      %709 = vmatprep.subr.bf16.mxu0 0
      %710 = vmatpush1.bf16.msra.mxu0 0
      %711 = vmatprep.subr.bf16.mxu0 0
      %712 = vmatpush1.bf16.msra.mxu0 %v695
      %713 = vmatprep.subr.bf16.mxu0 0
      %714 = vmatpush2.bf16.msra.mxu0 0
      %715 = vmatprep.subr.bf16.mxu0 0
      %716 = vmatpush2.bf16.msra.mxu0 0
      %717 = vmatprep.subr.bf16.mxu0 0
      %718 = vmatpush2.bf16.msra.mxu0 0
      %719 = vmatprep.subr.bf16.mxu0 0
      %720 = vmatpush2.bf16.msra.mxu0 0
      %721 = vmatprep.subr.bf16.mxu0 0
      %722 = vmatpush2.bf16.msra.mxu0 0
      %723 = vmatprep.subr.bf16.mxu0 0
      %724 = vmatpush2.bf16.msra.mxu0 0
      %725 = vmatprep.subr.bf16.mxu0 0
      %726 = vmatpush2.bf16.msra.mxu0 0
      %727 = vmatprep.subr.bf16.mxu0 0
      %728 = vmatpush2.bf16.msra.mxu0 0
      %729 = vmatprep.mubr.bf16.mxu0 0
      %730 = vmatmul.mubr.bf16.gmra.mxu0 %v692
      %v731 = vpop.f32.mrf.mxu0
      %v732 = vadd.f32 0.0, %v731
      %v733 = vpop.f32.mrf.mxu0
      %v734 = vpop.f32.mrf.mxu0
      %v735 = vpop.f32.mrf.mxu0
      %736 = vdwg.mxu0
      %v737 = vadd.f32 %v686, %v732
      %v738 = vld [vmem:[%s636] sm:$0xe]
      %v739 = vld [vmem:[%s636 + $0x4] sm:$0x1]
      %s740 = scalar_lea.vmem %s4, 24
      %v741 = vld [vmem:[%s740] sm:$0xf]
      %v744 = vunpack.c.l.b16 %v738
      %v745 = vunpack.c.l.b16 %v739
      %v746 = vpack.c.b16 %v745, %v744
      %v747 = vrot.slane %v746, 1
      %v749 = vsel %vm428, %v747, 0
      %v752 = vsel %vm432, %v741, 0
      %754 = vmatprep.subr.bf16.mxu0 0
      %755 = vmatpush1.bf16.msra.mxu0 0
      %756 = vmatprep.subr.bf16.mxu0 0
      %757 = vmatpush1.bf16.msra.mxu0 0
      %758 = vmatprep.subr.bf16.mxu0 0
      %759 = vmatpush1.bf16.msra.mxu0 0
      %760 = vmatprep.subr.bf16.mxu0 0
      %761 = vmatpush1.bf16.msra.mxu0 0
      %762 = vmatprep.subr.bf16.mxu0 0
      %763 = vmatpush1.bf16.msra.mxu0 0
      %764 = vmatprep.subr.bf16.mxu0 0
      %765 = vmatpush1.bf16.msra.mxu0 0
      %766 = vmatprep.subr.bf16.mxu0 0
      %767 = vmatpush1.bf16.msra.mxu0 0
      %768 = vmatprep.subr.bf16.mxu0 0
      %769 = vmatpush1.bf16.msra.mxu0 %v752
      %770 = vmatprep.subr.bf16.mxu0 0
      %771 = vmatpush2.bf16.msra.mxu0 0
      %772 = vmatprep.subr.bf16.mxu0 0
      %773 = vmatpush2.bf16.msra.mxu0 0
      %774 = vmatprep.subr.bf16.mxu0 0
      %775 = vmatpush2.bf16.msra.mxu0 0
      %776 = vmatprep.subr.bf16.mxu0 0
      %777 = vmatpush2.bf16.msra.mxu0 0
      %778 = vmatprep.subr.bf16.mxu0 0
      %779 = vmatpush2.bf16.msra.mxu0 0
      %780 = vmatprep.subr.bf16.mxu0 0
      %781 = vmatpush2.bf16.msra.mxu0 0
      %782 = vmatprep.subr.bf16.mxu0 0
      %783 = vmatpush2.bf16.msra.mxu0 0
      %784 = vmatprep.subr.bf16.mxu0 0
      %785 = vmatpush2.bf16.msra.mxu0 0
      %786 = vmatprep.mubr.bf16.mxu0 0
      %787 = vmatmul.mubr.bf16.gmra.mxu0 %v749
      %v788 = vpop.f32.mrf.mxu0
      %v789 = vadd.f32 0.0, %v788
      %v790 = vpop.f32.mrf.mxu0
      %v791 = vpop.f32.mrf.mxu0
      %v792 = vpop.f32.mrf.mxu0
      %793 = vdwg.mxu0
      %v794 = vadd.f32 %v737, %v789
      %v795 = vld [vmem:[%s687] sm:$0xe]
      %v796 = vld [vmem:[%s687 + $0x4] sm:$0x1]
      %s797 = scalar_lea.vmem %s4, 28
      %v798 = vld [vmem:[%s797] sm:$0xf]
      %v801 = vunpack.c.l.b16 %v795
      %v802 = vunpack.c.l.b16 %v796
      %v803 = vpack.c.b16 %v802, %v801
      %v804 = vrot.slane %v803, 1
      %v806 = vsel %vm428, %v804, 0
      %v809 = vsel %vm432, %v798, 0
      %811 = vmatprep.subr.bf16.mxu0 0
      %812 = vmatpush1.bf16.msra.mxu0 0
      %813 = vmatprep.subr.bf16.mxu0 0
      %814 = vmatpush1.bf16.msra.mxu0 0
      %815 = vmatprep.subr.bf16.mxu0 0
      %816 = vmatpush1.bf16.msra.mxu0 0
      %817 = vmatprep.subr.bf16.mxu0 0
      %818 = vmatpush1.bf16.msra.mxu0 0
      %819 = vmatprep.subr.bf16.mxu0 0
      %820 = vmatpush1.bf16.msra.mxu0 0
      %821 = vmatprep.subr.bf16.mxu0 0
      %822 = vmatpush1.bf16.msra.mxu0 0
      %823 = vmatprep.subr.bf16.mxu0 0
      %824 = vmatpush1.bf16.msra.mxu0 0
      %825 = vmatprep.subr.bf16.mxu0 0
      %826 = vmatpush1.bf16.msra.mxu0 %v809
      %827 = vmatprep.subr.bf16.mxu0 0
      %828 = vmatpush2.bf16.msra.mxu0 0
      %829 = vmatprep.subr.bf16.mxu0 0
      %830 = vmatpush2.bf16.msra.mxu0 0
      %831 = vmatprep.subr.bf16.mxu0 0
      %832 = vmatpush2.bf16.msra.mxu0 0
      %833 = vmatprep.subr.bf16.mxu0 0
      %834 = vmatpush2.bf16.msra.mxu0 0
      %835 = vmatprep.subr.bf16.mxu0 0
      %836 = vmatpush2.bf16.msra.mxu0 0
      %837 = vmatprep.subr.bf16.mxu0 0
      %838 = vmatpush2.bf16.msra.mxu0 0
      %839 = vmatprep.subr.bf16.mxu0 0
      %840 = vmatpush2.bf16.msra.mxu0 0
      %841 = vmatprep.subr.bf16.mxu0 0
      %842 = vmatpush2.bf16.msra.mxu0 0
      %843 = vmatprep.mubr.bf16.mxu0 0
      %844 = vmatmul.mubr.bf16.gmra.mxu0 %v806
      %v845 = vpop.f32.mrf.mxu0
      %v846 = vadd.f32 0.0, %v845
      %v847 = vpop.f32.mrf.mxu0
      %v848 = vpop.f32.mrf.mxu0
      %v849 = vpop.f32.mrf.mxu0
      %850 = vdwg.mxu0
      %v851 = vadd.f32 %v794, %v846
      %v852 = vld [vmem:[%s398] sm:$0xf]
      %s853 = scalar_lea.vmem %s4, 32
      %v854 = vld [vmem:[%s853] sm:$0xf]
      %v856 = vsel %vm428, %v852, 0
      %v859 = vsel %vm432, %v854, 0
      %861 = vmatprep.subr.bf16.mxu0 0
      %862 = vmatpush1.bf16.msra.mxu0 0
      %863 = vmatprep.subr.bf16.mxu0 0
      %864 = vmatpush1.bf16.msra.mxu0 0
      %865 = vmatprep.subr.bf16.mxu0 0
      %866 = vmatpush1.bf16.msra.mxu0 0
      %867 = vmatprep.subr.bf16.mxu0 0
      %868 = vmatpush1.bf16.msra.mxu0 0
      %869 = vmatprep.subr.bf16.mxu0 0
      %870 = vmatpush1.bf16.msra.mxu0 0
      %871 = vmatprep.subr.bf16.mxu0 0
      %872 = vmatpush1.bf16.msra.mxu0 0
      %873 = vmatprep.subr.bf16.mxu0 0
      %874 = vmatpush1.bf16.msra.mxu0 0
      %875 = vmatprep.subr.bf16.mxu0 0
      %876 = vmatpush1.bf16.msra.mxu0 %v859
      %877 = vmatprep.subr.bf16.mxu0 0
      %878 = vmatpush2.bf16.msra.mxu0 0
      %879 = vmatprep.subr.bf16.mxu0 0
      %880 = vmatpush2.bf16.msra.mxu0 0
      %881 = vmatprep.subr.bf16.mxu0 0
      %882 = vmatpush2.bf16.msra.mxu0 0
      %883 = vmatprep.subr.bf16.mxu0 0
      %884 = vmatpush2.bf16.msra.mxu0 0
      %885 = vmatprep.subr.bf16.mxu0 0
      %886 = vmatpush2.bf16.msra.mxu0 0
      %887 = vmatprep.subr.bf16.mxu0 0
      %888 = vmatpush2.bf16.msra.mxu0 0
      %889 = vmatprep.subr.bf16.mxu0 0
      %890 = vmatpush2.bf16.msra.mxu0 0
      %891 = vmatprep.subr.bf16.mxu0 0
      %892 = vmatpush2.bf16.msra.mxu0 0
      %893 = vmatprep.mubr.bf16.mxu0 0
      %894 = vmatmul.mubr.bf16.gmra.mxu0 %v856
      %v895 = vpop.f32.mrf.mxu0
      %v896 = vadd.f32 0.0, %v895
      %v897 = vpop.f32.mrf.mxu0
      %v898 = vpop.f32.mrf.mxu0
      %v899 = vpop.f32.mrf.mxu0
      %900 = vdwg.mxu0
      %v901 = vadd.f32 %v851, %v896
      %v902 = vld [vmem:[%s411] sm:$0xf]
      %s903 = scalar_lea.vmem %s4, 36
      %v904 = vld [vmem:[%s903] sm:$0xf]
      %v906 = vsel %vm428, %v902, 0
      %v909 = vsel %vm432, %v904, 0
      %911 = vmatprep.subr.bf16.mxu0 0
      %912 = vmatpush1.bf16.msra.mxu0 0
      %913 = vmatprep.subr.bf16.mxu0 0
      %914 = vmatpush1.bf16.msra.mxu0 0
      %915 = vmatprep.subr.bf16.mxu0 0
      %916 = vmatpush1.bf16.msra.mxu0 0
      %917 = vmatprep.subr.bf16.mxu0 0
      %918 = vmatpush1.bf16.msra.mxu0 0
      %919 = vmatprep.subr.bf16.mxu0 0
      %920 = vmatpush1.bf16.msra.mxu0 0
      %921 = vmatprep.subr.bf16.mxu0 0
      %922 = vmatpush1.bf16.msra.mxu0 0
      %923 = vmatprep.subr.bf16.mxu0 0
      %924 = vmatpush1.bf16.msra.mxu0 0
      %925 = vmatprep.subr.bf16.mxu0 0
      %926 = vmatpush1.bf16.msra.mxu0 %v909
      %927 = vmatprep.subr.bf16.mxu0 0
      %928 = vmatpush2.bf16.msra.mxu0 0
      %929 = vmatprep.subr.bf16.mxu0 0
      %930 = vmatpush2.bf16.msra.mxu0 0
      %931 = vmatprep.subr.bf16.mxu0 0
      %932 = vmatpush2.bf16.msra.mxu0 0
      %933 = vmatprep.subr.bf16.mxu0 0
      %934 = vmatpush2.bf16.msra.mxu0 0
      %935 = vmatprep.subr.bf16.mxu0 0
      %936 = vmatpush2.bf16.msra.mxu0 0
      %937 = vmatprep.subr.bf16.mxu0 0
      %938 = vmatpush2.bf16.msra.mxu0 0
      %939 = vmatprep.subr.bf16.mxu0 0
      %940 = vmatpush2.bf16.msra.mxu0 0
      %941 = vmatprep.subr.bf16.mxu0 0
      %942 = vmatpush2.bf16.msra.mxu0 0
      %943 = vmatprep.mubr.bf16.mxu0 0
      %944 = vmatmul.mubr.bf16.gmra.mxu0 %v906
      %v945 = vpop.f32.mrf.mxu0
      %v946 = vadd.f32 0.0, %v945
      %v947 = vpop.f32.mrf.mxu0
      %v948 = vpop.f32.mrf.mxu0
      %v949 = vpop.f32.mrf.mxu0
      %950 = vdwg.mxu0
      %v951 = vadd.f32 %v901, %v946
      %v952 = vld [vmem:[%s398] sm:$0xe]
      %v953 = vld [vmem:[%s398 + $0x4] sm:$0x1]
      %s954 = scalar_lea.vmem %s4, 40
      %v955 = vld [vmem:[%s954] sm:$0xf]
      %v958 = vunpack.c.l.b16 %v952
      %v959 = vunpack.c.l.b16 %v953
      %v960 = vpack.c.b16 %v959, %v958
      %v961 = vrot.slane %v960, 1
      %v963 = vsel %vm428, %v961, 0
      %v966 = vsel %vm432, %v955, 0
      %968 = vmatprep.subr.bf16.mxu0 0
      %969 = vmatpush1.bf16.msra.mxu0 0
      %970 = vmatprep.subr.bf16.mxu0 0
      %971 = vmatpush1.bf16.msra.mxu0 0
      %972 = vmatprep.subr.bf16.mxu0 0
      %973 = vmatpush1.bf16.msra.mxu0 0
      %974 = vmatprep.subr.bf16.mxu0 0
      %975 = vmatpush1.bf16.msra.mxu0 0
      %976 = vmatprep.subr.bf16.mxu0 0
      %977 = vmatpush1.bf16.msra.mxu0 0
      %978 = vmatprep.subr.bf16.mxu0 0
      %979 = vmatpush1.bf16.msra.mxu0 0
      %980 = vmatprep.subr.bf16.mxu0 0
      %981 = vmatpush1.bf16.msra.mxu0 0
      %982 = vmatprep.subr.bf16.mxu0 0
      %983 = vmatpush1.bf16.msra.mxu0 %v966
      %984 = vmatprep.subr.bf16.mxu0 0
      %985 = vmatpush2.bf16.msra.mxu0 0
      %986 = vmatprep.subr.bf16.mxu0 0
      %987 = vmatpush2.bf16.msra.mxu0 0
      %988 = vmatprep.subr.bf16.mxu0 0
      %989 = vmatpush2.bf16.msra.mxu0 0
      %990 = vmatprep.subr.bf16.mxu0 0
      %991 = vmatpush2.bf16.msra.mxu0 0
      %992 = vmatprep.subr.bf16.mxu0 0
      %993 = vmatpush2.bf16.msra.mxu0 0
      %994 = vmatprep.subr.bf16.mxu0 0
      %995 = vmatpush2.bf16.msra.mxu0 0
      %996 = vmatprep.subr.bf16.mxu0 0
      %997 = vmatpush2.bf16.msra.mxu0 0
      %998 = vmatprep.subr.bf16.mxu0 0
      %999 = vmatpush2.bf16.msra.mxu0 0
      %1000 = vmatprep.mubr.bf16.mxu0 0
      %1001 = vmatmul.mubr.bf16.gmra.mxu0 %v963
      %v1002 = vpop.f32.mrf.mxu0
      %v1003 = vadd.f32 0.0, %v1002
      %v1004 = vpop.f32.mrf.mxu0
      %v1005 = vpop.f32.mrf.mxu0
      %v1006 = vpop.f32.mrf.mxu0
      %1007 = vdwg.mxu0
      %v1008 = vadd.f32 %v951, %v1003
      %v1009 = vld [vmem:[%s411] sm:$0xe]
      %v1010 = vld [vmem:[%s411 + $0x4] sm:$0x1]
      %s1011 = scalar_lea.vmem %s4, 44
      %v1012 = vld [vmem:[%s1011] sm:$0xf]
      %v1015 = vunpack.c.l.b16 %v1009
      %v1016 = vunpack.c.l.b16 %v1010
      %v1017 = vpack.c.b16 %v1016, %v1015
      %v1018 = vrot.slane %v1017, 1
      %v1020 = vsel %vm428, %v1018, 0
      %v1023 = vsel %vm432, %v1012, 0
      %1025 = vmatprep.subr.bf16.mxu0 0
      %1026 = vmatpush1.bf16.msra.mxu0 0
      %1027 = vmatprep.subr.bf16.mxu0 0
      %1028 = vmatpush1.bf16.msra.mxu0 0
      %1029 = vmatprep.subr.bf16.mxu0 0
      %1030 = vmatpush1.bf16.msra.mxu0 0
      %1031 = vmatprep.subr.bf16.mxu0 0
      %1032 = vmatpush1.bf16.msra.mxu0 0
      %1033 = vmatprep.subr.bf16.mxu0 0
      %1034 = vmatpush1.bf16.msra.mxu0 0
      %1035 = vmatprep.subr.bf16.mxu0 0
      %1036 = vmatpush1.bf16.msra.mxu0 0
      %1037 = vmatprep.subr.bf16.mxu0 0
      %1038 = vmatpush1.bf16.msra.mxu0 0
      %1039 = vmatprep.subr.bf16.mxu0 0
      %1040 = vmatpush1.bf16.msra.mxu0 %v1023
      %1041 = vmatprep.subr.bf16.mxu0 0
      %1042 = vmatpush2.bf16.msra.mxu0 0
      %1043 = vmatprep.subr.bf16.mxu0 0
      %1044 = vmatpush2.bf16.msra.mxu0 0
      %1045 = vmatprep.subr.bf16.mxu0 0
      %1046 = vmatpush2.bf16.msra.mxu0 0
      %1047 = vmatprep.subr.bf16.mxu0 0
      %1048 = vmatpush2.bf16.msra.mxu0 0
      %1049 = vmatprep.subr.bf16.mxu0 0
      %1050 = vmatpush2.bf16.msra.mxu0 0
      %1051 = vmatprep.subr.bf16.mxu0 0
      %1052 = vmatpush2.bf16.msra.mxu0 0
      %1053 = vmatprep.subr.bf16.mxu0 0
      %1054 = vmatpush2.bf16.msra.mxu0 0
      %1055 = vmatprep.subr.bf16.mxu0 0
      %1056 = vmatpush2.bf16.msra.mxu0 0
      %1057 = vmatprep.mubr.bf16.mxu0 0
      %1058 = vmatmul.mubr.bf16.gmra.mxu0 %v1020
      %v1059 = vpop.f32.mrf.mxu0
      %v1060 = vadd.f32 0.0, %v1059
      %v1061 = vpop.f32.mrf.mxu0
      %v1062 = vpop.f32.mrf.mxu0
      %v1063 = vpop.f32.mrf.mxu0
      %1064 = vdwg.mxu0
      %v1065 = vadd.f32 %v1008, %v1060
      %s1066 = scalar_lea.vmem %s398, 8
      %v1067 = vld [vmem:[%s1066] sm:$0xf]
      %s1068 = scalar_lea.vmem %s4, 48
      %v1069 = vld [vmem:[%s1068] sm:$0xf]
      %v1071 = vsel %vm428, %v1067, 0
      %v1074 = vsel %vm432, %v1069, 0
      %1076 = vmatprep.subr.bf16.mxu0 0
      %1077 = vmatpush1.bf16.msra.mxu0 0
      %1078 = vmatprep.subr.bf16.mxu0 0
      %1079 = vmatpush1.bf16.msra.mxu0 0
      %1080 = vmatprep.subr.bf16.mxu0 0
      %1081 = vmatpush1.bf16.msra.mxu0 0
      %1082 = vmatprep.subr.bf16.mxu0 0
      %1083 = vmatpush1.bf16.msra.mxu0 0
      %1084 = vmatprep.subr.bf16.mxu0 0
      %1085 = vmatpush1.bf16.msra.mxu0 0
      %1086 = vmatprep.subr.bf16.mxu0 0
      %1087 = vmatpush1.bf16.msra.mxu0 0
      %1088 = vmatprep.subr.bf16.mxu0 0
      %1089 = vmatpush1.bf16.msra.mxu0 0
      %1090 = vmatprep.subr.bf16.mxu0 0
      %1091 = vmatpush1.bf16.msra.mxu0 %v1074
      %1092 = vmatprep.subr.bf16.mxu0 0
      %1093 = vmatpush2.bf16.msra.mxu0 0
      %1094 = vmatprep.subr.bf16.mxu0 0
      %1095 = vmatpush2.bf16.msra.mxu0 0
      %1096 = vmatprep.subr.bf16.mxu0 0
      %1097 = vmatpush2.bf16.msra.mxu0 0
      %1098 = vmatprep.subr.bf16.mxu0 0
      %1099 = vmatpush2.bf16.msra.mxu0 0
      %1100 = vmatprep.subr.bf16.mxu0 0
      %1101 = vmatpush2.bf16.msra.mxu0 0
      %1102 = vmatprep.subr.bf16.mxu0 0
      %1103 = vmatpush2.bf16.msra.mxu0 0
      %1104 = vmatprep.subr.bf16.mxu0 0
      %1105 = vmatpush2.bf16.msra.mxu0 0
      %1106 = vmatprep.subr.bf16.mxu0 0
      %1107 = vmatpush2.bf16.msra.mxu0 0
      %1108 = vmatprep.mubr.bf16.mxu0 0
      %1109 = vmatmul.mubr.bf16.gmra.mxu0 %v1071
      %v1110 = vpop.f32.mrf.mxu0
      %v1111 = vadd.f32 0.0, %v1110
      %v1112 = vpop.f32.mrf.mxu0
      %v1113 = vpop.f32.mrf.mxu0
      %v1114 = vpop.f32.mrf.mxu0
      %1115 = vdwg.mxu0
      %v1116 = vadd.f32 %v1065, %v1111
      %s1117 = scalar_lea.vmem %s411, 8
      %v1118 = vld [vmem:[%s1117] sm:$0xf]
      %s1119 = scalar_lea.vmem %s4, 52
      %v1120 = vld [vmem:[%s1119] sm:$0xf]
      %v1122 = vsel %vm428, %v1118, 0
      %v1125 = vsel %vm432, %v1120, 0
      %1127 = vmatprep.subr.bf16.mxu0 0
      %1128 = vmatpush1.bf16.msra.mxu0 0
      %1129 = vmatprep.subr.bf16.mxu0 0
      %1130 = vmatpush1.bf16.msra.mxu0 0
      %1131 = vmatprep.subr.bf16.mxu0 0
      %1132 = vmatpush1.bf16.msra.mxu0 0
      %1133 = vmatprep.subr.bf16.mxu0 0
      %1134 = vmatpush1.bf16.msra.mxu0 0
      %1135 = vmatprep.subr.bf16.mxu0 0
      %1136 = vmatpush1.bf16.msra.mxu0 0
      %1137 = vmatprep.subr.bf16.mxu0 0
      %1138 = vmatpush1.bf16.msra.mxu0 0
      %1139 = vmatprep.subr.bf16.mxu0 0
      %1140 = vmatpush1.bf16.msra.mxu0 0
      %1141 = vmatprep.subr.bf16.mxu0 0
      %1142 = vmatpush1.bf16.msra.mxu0 %v1125
      %1143 = vmatprep.subr.bf16.mxu0 0
      %1144 = vmatpush2.bf16.msra.mxu0 0
      %1145 = vmatprep.subr.bf16.mxu0 0
      %1146 = vmatpush2.bf16.msra.mxu0 0
      %1147 = vmatprep.subr.bf16.mxu0 0
      %1148 = vmatpush2.bf16.msra.mxu0 0
      %1149 = vmatprep.subr.bf16.mxu0 0
      %1150 = vmatpush2.bf16.msra.mxu0 0
      %1151 = vmatprep.subr.bf16.mxu0 0
      %1152 = vmatpush2.bf16.msra.mxu0 0
      %1153 = vmatprep.subr.bf16.mxu0 0
      %1154 = vmatpush2.bf16.msra.mxu0 0
      %1155 = vmatprep.subr.bf16.mxu0 0
      %1156 = vmatpush2.bf16.msra.mxu0 0
      %1157 = vmatprep.subr.bf16.mxu0 0
      %1158 = vmatpush2.bf16.msra.mxu0 0
      %1159 = vmatprep.mubr.bf16.mxu0 0
      %1160 = vmatmul.mubr.bf16.gmra.mxu0 %v1122
      %v1161 = vpop.f32.mrf.mxu0
      %v1162 = vadd.f32 0.0, %v1161
      %v1163 = vpop.f32.mrf.mxu0
      %v1164 = vpop.f32.mrf.mxu0
      %v1165 = vpop.f32.mrf.mxu0
      %1166 = vdwg.mxu0
      %v1167 = vadd.f32 %v1116, %v1162
      %v1168 = vld [vmem:[%s1066] sm:$0xe]
      %v1169 = vld [vmem:[%s1066 + $0x4] sm:$0x1]
      %s1170 = scalar_lea.vmem %s4, 56
      %v1171 = vld [vmem:[%s1170] sm:$0xf]
      %v1174 = vunpack.c.l.b16 %v1168
      %v1175 = vunpack.c.l.b16 %v1169
      %v1176 = vpack.c.b16 %v1175, %v1174
      %v1177 = vrot.slane %v1176, 1
      %v1179 = vsel %vm428, %v1177, 0
      %v1182 = vsel %vm432, %v1171, 0
      %1184 = vmatprep.subr.bf16.mxu0 0
      %1185 = vmatpush1.bf16.msra.mxu0 0
      %1186 = vmatprep.subr.bf16.mxu0 0
      %1187 = vmatpush1.bf16.msra.mxu0 0
      %1188 = vmatprep.subr.bf16.mxu0 0
      %1189 = vmatpush1.bf16.msra.mxu0 0
      %1190 = vmatprep.subr.bf16.mxu0 0
      %1191 = vmatpush1.bf16.msra.mxu0 0
      %1192 = vmatprep.subr.bf16.mxu0 0
      %1193 = vmatpush1.bf16.msra.mxu0 0
      %1194 = vmatprep.subr.bf16.mxu0 0
      %1195 = vmatpush1.bf16.msra.mxu0 0
      %1196 = vmatprep.subr.bf16.mxu0 0
      %1197 = vmatpush1.bf16.msra.mxu0 0
      %1198 = vmatprep.subr.bf16.mxu0 0
      %1199 = vmatpush1.bf16.msra.mxu0 %v1182
      %1200 = vmatprep.subr.bf16.mxu0 0
      %1201 = vmatpush2.bf16.msra.mxu0 0
      %1202 = vmatprep.subr.bf16.mxu0 0
      %1203 = vmatpush2.bf16.msra.mxu0 0
      %1204 = vmatprep.subr.bf16.mxu0 0
      %1205 = vmatpush2.bf16.msra.mxu0 0
      %1206 = vmatprep.subr.bf16.mxu0 0
      %1207 = vmatpush2.bf16.msra.mxu0 0
      %1208 = vmatprep.subr.bf16.mxu0 0
      %1209 = vmatpush2.bf16.msra.mxu0 0
      %1210 = vmatprep.subr.bf16.mxu0 0
      %1211 = vmatpush2.bf16.msra.mxu0 0
      %1212 = vmatprep.subr.bf16.mxu0 0
      %1213 = vmatpush2.bf16.msra.mxu0 0
      %1214 = vmatprep.subr.bf16.mxu0 0
      %1215 = vmatpush2.bf16.msra.mxu0 0
      %1216 = vmatprep.mubr.bf16.mxu0 0
      %1217 = vmatmul.mubr.bf16.gmra.mxu0 %v1179
      %v1218 = vpop.f32.mrf.mxu0
      %v1219 = vadd.f32 0.0, %v1218
      %v1220 = vpop.f32.mrf.mxu0
      %v1221 = vpop.f32.mrf.mxu0
      %v1222 = vpop.f32.mrf.mxu0
      %1223 = vdwg.mxu0
      %v1224 = vadd.f32 %v1167, %v1219
      %v1225 = vld [vmem:[%s1117] sm:$0xe]
      %v1226 = vld [vmem:[%s1117 + $0x4] sm:$0x1]
      %s1227 = scalar_lea.vmem %s4, 60
      %v1228 = vld [vmem:[%s1227] sm:$0xf]
      %v1231 = vunpack.c.l.b16 %v1225
      %v1232 = vunpack.c.l.b16 %v1226
      %v1233 = vpack.c.b16 %v1232, %v1231
      %v1234 = vrot.slane %v1233, 1
      %v1236 = vsel %vm428, %v1234, 0
      %v1239 = vsel %vm432, %v1228, 0
      %1241 = vmatprep.subr.bf16.mxu0 0
      %1242 = vmatpush1.bf16.msra.mxu0 0
      %1243 = vmatprep.subr.bf16.mxu0 0
      %1244 = vmatpush1.bf16.msra.mxu0 0
      %1245 = vmatprep.subr.bf16.mxu0 0
      %1246 = vmatpush1.bf16.msra.mxu0 0
      %1247 = vmatprep.subr.bf16.mxu0 0
      %1248 = vmatpush1.bf16.msra.mxu0 0
      %1249 = vmatprep.subr.bf16.mxu0 0
      %1250 = vmatpush1.bf16.msra.mxu0 0
      %1251 = vmatprep.subr.bf16.mxu0 0
      %1252 = vmatpush1.bf16.msra.mxu0 0
      %1253 = vmatprep.subr.bf16.mxu0 0
      %1254 = vmatpush1.bf16.msra.mxu0 0
      %1255 = vmatprep.subr.bf16.mxu0 0
      %1256 = vmatpush1.bf16.msra.mxu0 %v1239
      %1257 = vmatprep.subr.bf16.mxu0 0
      %1258 = vmatpush2.bf16.msra.mxu0 0
      %1259 = vmatprep.subr.bf16.mxu0 0
      %1260 = vmatpush2.bf16.msra.mxu0 0
      %1261 = vmatprep.subr.bf16.mxu0 0
      %1262 = vmatpush2.bf16.msra.mxu0 0
      %1263 = vmatprep.subr.bf16.mxu0 0
      %1264 = vmatpush2.bf16.msra.mxu0 0
      %1265 = vmatprep.subr.bf16.mxu0 0
      %1266 = vmatpush2.bf16.msra.mxu0 0
      %1267 = vmatprep.subr.bf16.mxu0 0
      %1268 = vmatpush2.bf16.msra.mxu0 0
      %1269 = vmatprep.subr.bf16.mxu0 0
      %1270 = vmatpush2.bf16.msra.mxu0 0
      %1271 = vmatprep.subr.bf16.mxu0 0
      %1272 = vmatpush2.bf16.msra.mxu0 0
      %1273 = vmatprep.mubr.bf16.mxu0 0
      %1274 = vmatmul.mubr.bf16.gmra.mxu0 %v1236
      %v1275 = vpop.f32.mrf.mxu0
      %v1276 = vadd.f32 0.0, %v1275
      %v1277 = vpop.f32.mrf.mxu0
      %v1278 = vpop.f32.mrf.mxu0
      %v1279 = vpop.f32.mrf.mxu0
      %1280 = vdwg.mxu0
      %v1281 = vadd.f32 %v1224, %v1276
      %v1282 = vld [vmem:[%s5] sm:$0x1]
      %v1284 = vlaneseq
      %v1285 = vshrl.u32 %v1284, 7
      %v1286 = vsub.s32 0, %v1285
      %v1287 = vrot.slane %v1282, %v1286
      %v1289 = vadd.f32 %v1281, %v1287
      %v1290 = vmax.f32 %v1289, 0.0
      %v1291 = vpack.c.bf16 %v1290, %v1290
      %vm1292 = vcmask 60416
      %1293 = vst.msk [vmem:[%s421] sm:$0xf] %vm1292, %v1291
      %p1294 = scmp.lt.s32.totalorder %s21, 1
      %s1295 = scalar_select %p1294, %s21, 1
      %p1296 = scmp.lt.s32.totalorder %s22, 3
      %s1297 = scalar_select %p1296, %s22, 3
      %s1298 = smul.addr %s1295, 4
      %s1299 = sadd.s32 %s1297, %s1298
      %s1300 = smul.addr %s1299, 4
      %s1301 = scalar_lea.vmem %s6, %s1300
      // Predicated region
      $region45: #{enc_forward.14} parent=43 // pred_check
        %p1302 = pneg %p207
      $region46: #{enc_forward.14} parent=43 // pred_check_branch
        %1304 = sbr.rel (%p1302) target = $region48
      $region47: #{enc_forward.14} parent=43 // pred_region
        _
      $region48: #{enc_forward.14} parent=43 // pred_fallthru
        _
    $region44: #{enc_forward.14} parent=5 // pred_fallthru
      _
    %p1305 = scmp.le.s32.totalorder 2, %s12
    // Predicated region
    $region49: #{enc_forward.14} parent=5 // pred_check
      %p1306 = pneg %p1305
    $region50: #{enc_forward.14} parent=5 // pred_check_branch
      %1308 = sbr.rel (%p1306) target = $region52
    $region51: #{enc_forward.14} parent=5 // pred_region
      %s1309 = ssub.s32 %s12, 2
      // Predicated region
      $region53: #{enc_forward.14} parent=51 // pred_check
        %p1310 = pneg %p213
      $region54: #{enc_forward.14} parent=51 // pred_check_branch
        %1312 = sbr.rel (%p1310) target = $region56
      $region55: #{enc_forward.14} parent=51 // pred_region
        %p1313 = scmp.lt.s32.totalorder %s23, 1
        %s1314 = scalar_select %p1313, %s23, 1
        %p1315 = scmp.lt.s32.totalorder %s24, 3
        %s1316 = scalar_select %p1315, %s24, 3
        %s1317 = smul.addr %s1314, 4
        %s1318 = sadd.s32 %s1316, %s1317
        %s1319 = smul.addr %s1318, 4
        %s1320 = scalar_lea.vmem %s6, %s1319
      $region56: #{enc_forward.14} parent=51 // pred_fallthru
        _
    $region52: #{enc_forward.14} parent=5 // pred_fallthru
      _
  $region6: #{enc_forward.14} parent=0 // loop_footer
    %s16 = sadd.s32 1, %s12
  $region7: #{enc_forward.14} parent=0 // loop_footer_branch
    %11 = sbr.rel target = $region3
  $region8: #{enc_forward.14} parent=0 // loop_exit
    _

// kernel: enc_forward.13
$region0: #{enc_forward.13}
  #allocation0 [shape = 'u32[]', space=smem, size = 0x4, offset = 0x4, fixed_abs, tag = 'smem constant byte address 0x4 - core index']
  #allocation1 [shape = 'u32[144,128]{1,0:T(1,128)}', space=vmem, size = 0x12000, scoped, tag = 'internal scratch']
  %s0 = inlined_call_operand.vmem [shape: bf16[2,6,12,8], index: 0, kind: input, shape index: {}, may-alias: {0,1,2}]
  %s1 = inlined_call_operand.vmem [shape: bf16[2,6,12,8], index: 1, kind: input, shape index: {}, may-alias: {0,1,2}]
  %s2 = inlined_call_operand.vmem [shape: bf16[2,6,12,8], index: 2, kind: input, shape index: {}, may-alias: {0,1,2}]
  %s3 = inlined_call_operand.vmem [shape: bf16[9,8,16], index: 3, kind: input, shape index: {}]
  %s4 = inlined_call_operand.vmem [shape: bf16[2,4,8,8], index: 4, kind: input, shape index: {}]
  %s5 = inlined_call_operand.vmem [shape: bf16[8,16], index: 5, kind: input, shape index: {}]
  %s6 = inlined_call_operand.vmem [shape: f32[1,1,16], index: 6, kind: input, shape index: {}]
  %s7 = inlined_call_operand.vmem [shape: bf16[2,4,8,16], index: 7, kind: output, shape index: {}]
  %s8 = sld [smem:[#allocation0]]
  $region61: #{enc_forward.13} parent=0
    _
  %s10 = ssub.s32 1, %s8
  %s11 = scalar_select 0, %s10, %s8
  loop: start=0, step=1, limit=10
  $region2: #{enc_forward.13} parent=0 // loop_pre_header
    _
  $region3: #{enc_forward.13} parent=0 // loop_header
    %s13 = sphi 0, %s17
    %p14 = scmp.ge.s32.totalorder %s13, 10
    %s20 = sphi 0, %s32
    %s21 = sphi 0, %s28
    %s22 = sphi 0, %s20
    %s23 = sphi 0, %s21
    %s24 = sphi 0, %s22
    %s25 = sphi 0, %s23
    %s37 = sphi 0, %s39
    %s40 = sphi 0, %s37
    %s41 = sphi 0, %s40
    %s57 = sphi 0, %s41
    %s67 = sphi 0, %s69
    %s70 = sphi 0, %s67
    %s71 = sphi 0, %s70
    %s87 = sphi 0, %s71
    %s97 = sphi 0, %s99
    %s100 = sphi 0, %s97
    %s101 = sphi 0, %s100
    %s117 = sphi 0, %s101
    %s121 = sphi 0, %s121
    %s123 = sphi 0, %s121
    %s124 = sphi 0, %s123
    %s138 = sphi 0, %s124
    %s146 = sphi 0, %s148
    %s149 = sphi 0, %s146
    %s150 = sphi 0, %s149
    %s166 = sphi 0, %s150
    %s170 = sphi 0, %s170
    %s172 = sphi 0, %s170
    %s173 = sphi 0, %s172
    %s187 = sphi 0, %s173
    %s191 = sphi 0, %s191
    %s193 = sphi 0, %s191
    %s194 = sphi 0, %s193
    %s208 = sphi 0, %s194
    %s216 = sphi 0, %s218
    %s219 = sphi 0, %s216
    %s220 = sphi 0, %s219
    %s236 = sphi 0, %s220
  $region4: #{enc_forward.13} parent=0 // loop_header_branch
    %16 = sbr.rel (%p14) target = $region8
  $region5: #{enc_forward.13} parent=0 // loop_body
    %s18 = ssub.s32 %s13, 1
    %s19 = ssub.s32 %s13, 2
    %s26 = sadd.s32 1, %s21
    %p27 = scmp.ge.s32.totalorder %s26, 4
    %s28 = scalar_select %p27, 0, %s26
    %s29 = sadd.s32 1, %s20
    %s30 = scalar_select %p27, %s29, %s20
    %p31 = scmp.ge.s32.totalorder %s30, 2
    %s32 = scalar_select %p31, 0, %s30
    %s33 = ssub.s32 %s20, %s32
    %s34 = ssub.s32 %s21, %s28
    %s35 = sor.u32 %s33, %s34
    %p36 = scmp.eq.s32.totalorder %s35, 0
    %s38 = sadd.s32 %s37, 1
    %s39 = scalar_select %p36, %s37, %s38
    %p42 = pneg %p36
    %p43 = scmp.eq.s32.totalorder %s13, 7
    %p44 = por %p42, %p43
    %p45 = scmp.ne.s32.totalorder %s37, %s40
    %p46 = scmp.eq.s32.totalorder %s13, 0
    %p47 = por %p45, %p46
    %p48 = scmp.ne.s32.totalorder %s37, %s40
    %p49 = scmp.eq.s32.totalorder %s18, 7
    %p50 = por %p48, %p49
    %p51 = scmp.ne.s32.totalorder %s40, %s41
    %p52 = scmp.eq.s32.totalorder %s18, 0
    %p53 = por %p51, %p52
    %p54 = scmp.ne.s32.totalorder %s40, %s41
    %p55 = scmp.eq.s32.totalorder %s19, 7
    %p56 = por %p54, %p55
    %p58 = scmp.ne.s32.totalorder %s41, %s57
    %p59 = scmp.eq.s32.totalorder %s19, 0
    %p60 = por %p58, %p59
    %s61 = sadd.s32 %s21, 1
    %s62 = sadd.s32 %s28, 1
    %s63 = ssub.s32 %s20, %s32
    %s64 = ssub.s32 %s61, %s62
    %s65 = sor.u32 %s63, %s64
    %p66 = scmp.eq.s32.totalorder %s65, 0
    %s68 = sadd.s32 %s67, 1
    %s69 = scalar_select %p66, %s67, %s68
    %p72 = pneg %p66
    %p73 = scmp.eq.s32.totalorder %s13, 7
    %p74 = por %p72, %p73
    %p75 = scmp.ne.s32.totalorder %s67, %s70
    %p76 = scmp.eq.s32.totalorder %s13, 0
    %p77 = por %p75, %p76
    %p78 = scmp.ne.s32.totalorder %s67, %s70
    %p79 = scmp.eq.s32.totalorder %s18, 7
    %p80 = por %p78, %p79
    %p81 = scmp.ne.s32.totalorder %s70, %s71
    %p82 = scmp.eq.s32.totalorder %s18, 0
    %p83 = por %p81, %p82
    %p84 = scmp.ne.s32.totalorder %s70, %s71
    %p85 = scmp.eq.s32.totalorder %s19, 7
    %p86 = por %p84, %p85
    %p88 = scmp.ne.s32.totalorder %s71, %s87
    %p89 = scmp.eq.s32.totalorder %s19, 0
    %p90 = por %p88, %p89
    %s91 = sadd.s32 %s21, 2
    %s92 = sadd.s32 %s28, 2
    %s93 = ssub.s32 %s20, %s32
    %s94 = ssub.s32 %s91, %s92
    %s95 = sor.u32 %s93, %s94
    %p96 = scmp.eq.s32.totalorder %s95, 0
    %s98 = sadd.s32 %s97, 1
    %s99 = scalar_select %p96, %s97, %s98
    %p102 = pneg %p96
    %p103 = scmp.eq.s32.totalorder %s13, 7
    %p104 = por %p102, %p103
    %p105 = scmp.ne.s32.totalorder %s97, %s100
    %p106 = scmp.eq.s32.totalorder %s13, 0
    %p107 = por %p105, %p106
    %p108 = scmp.ne.s32.totalorder %s97, %s100
    %p109 = scmp.eq.s32.totalorder %s18, 7
    %p110 = por %p108, %p109
    %p111 = scmp.ne.s32.totalorder %s100, %s101
    %p112 = scmp.eq.s32.totalorder %s18, 0
    %p113 = por %p111, %p112
    %p114 = scmp.ne.s32.totalorder %s100, %s101
    %p115 = scmp.eq.s32.totalorder %s19, 7
    %p116 = por %p114, %p115
    %p118 = scmp.ne.s32.totalorder %s101, %s117
    %p119 = scmp.eq.s32.totalorder %s19, 0
    %p120 = por %p118, %p119
    %s122 = sadd.s32 %s121, 1
    %p125 = scmp.eq.s32.totalorder %s13, 7
    %p126 = scmp.ne.s32.totalorder %s121, %s123
    %p127 = scmp.eq.s32.totalorder %s13, 0
    %p128 = por %p126, %p127
    %p129 = scmp.ne.s32.totalorder %s121, %s123
    %p130 = scmp.eq.s32.totalorder %s18, 7
    %p131 = por %p129, %p130
    %p132 = scmp.ne.s32.totalorder %s123, %s124
    %p133 = scmp.eq.s32.totalorder %s18, 0
    %p134 = por %p132, %p133
    %p135 = scmp.ne.s32.totalorder %s123, %s124
    %p136 = scmp.eq.s32.totalorder %s19, 7
    %p137 = por %p135, %p136
    %p139 = scmp.ne.s32.totalorder %s124, %s138
    %p140 = scmp.eq.s32.totalorder %s19, 0
    %p141 = por %p139, %p140
    %s142 = ssub.s32 %s20, %s32
    %s143 = ssub.s32 %s21, %s28
    %s144 = sor.u32 %s142, %s143
    %p145 = scmp.eq.s32.totalorder %s144, 0
    %s147 = sadd.s32 %s146, 1
    %s148 = scalar_select %p145, %s146, %s147
    %p151 = pneg %p145
    %p152 = scmp.eq.s32.totalorder %s13, 7
    %p153 = por %p151, %p152
    %p154 = scmp.ne.s32.totalorder %s146, %s149
    %p155 = scmp.eq.s32.totalorder %s13, 0
    %p156 = por %p154, %p155
    %p157 = scmp.ne.s32.totalorder %s146, %s149
    %p158 = scmp.eq.s32.totalorder %s18, 7
    %p159 = por %p157, %p158
    %p160 = scmp.ne.s32.totalorder %s149, %s150
    %p161 = scmp.eq.s32.totalorder %s18, 0
    %p162 = por %p160, %p161
    %p163 = scmp.ne.s32.totalorder %s149, %s150
    %p164 = scmp.eq.s32.totalorder %s19, 7
    %p165 = por %p163, %p164
    %p167 = scmp.ne.s32.totalorder %s150, %s166
    %p168 = scmp.eq.s32.totalorder %s19, 0
    %p169 = por %p167, %p168
    %s171 = sadd.s32 %s170, 1
    %p174 = scmp.eq.s32.totalorder %s13, 7
    %p175 = scmp.ne.s32.totalorder %s170, %s172
    %p176 = scmp.eq.s32.totalorder %s13, 0
    %p177 = por %p175, %p176
    %p178 = scmp.ne.s32.totalorder %s170, %s172
    %p179 = scmp.eq.s32.totalorder %s18, 7
    %p180 = por %p178, %p179
    %p181 = scmp.ne.s32.totalorder %s172, %s173
    %p182 = scmp.eq.s32.totalorder %s18, 0
    %p183 = por %p181, %p182
    %p184 = scmp.ne.s32.totalorder %s172, %s173
    %p185 = scmp.eq.s32.totalorder %s19, 7
    %p186 = por %p184, %p185
    %p188 = scmp.ne.s32.totalorder %s173, %s187
    %p189 = scmp.eq.s32.totalorder %s19, 0
    %p190 = por %p188, %p189
    %s192 = sadd.s32 %s191, 1
    %p195 = scmp.eq.s32.totalorder %s13, 7
    %p196 = scmp.ne.s32.totalorder %s191, %s193
    %p197 = scmp.eq.s32.totalorder %s13, 0
    %p198 = por %p196, %p197
    %p199 = scmp.ne.s32.totalorder %s191, %s193
    %p200 = scmp.eq.s32.totalorder %s18, 7
    %p201 = por %p199, %p200
    %p202 = scmp.ne.s32.totalorder %s193, %s194
    %p203 = scmp.eq.s32.totalorder %s18, 0
    %p204 = por %p202, %p203
    %p205 = scmp.ne.s32.totalorder %s193, %s194
    %p206 = scmp.eq.s32.totalorder %s19, 7
    %p207 = por %p205, %p206
    %p209 = scmp.ne.s32.totalorder %s194, %s208
    %p210 = scmp.eq.s32.totalorder %s19, 0
    %p211 = por %p209, %p210
    %s212 = ssub.s32 %s20, %s32
    %s213 = ssub.s32 %s21, %s28
    %s214 = sor.u32 %s212, %s213
    %p215 = scmp.eq.s32.totalorder %s214, 0
    %s217 = sadd.s32 %s216, 1
    %s218 = scalar_select %p215, %s216, %s217
    %p221 = pneg %p215
    %p222 = scmp.eq.s32.totalorder %s13, 7
    %p223 = por %p221, %p222
    %p224 = scmp.ne.s32.totalorder %s216, %s219
    %p225 = scmp.eq.s32.totalorder %s13, 0
    %p226 = por %p224, %p225
    %p227 = scmp.ne.s32.totalorder %s216, %s219
    %p228 = scmp.eq.s32.totalorder %s18, 7
    %p229 = por %p227, %p228
    %p230 = scmp.ne.s32.totalorder %s219, %s220
    %p231 = scmp.eq.s32.totalorder %s18, 0
    %p232 = por %p230, %p231
    %p233 = scmp.ne.s32.totalorder %s219, %s220
    %p234 = scmp.eq.s32.totalorder %s19, 7
    %p235 = por %p233, %p234
    %p237 = scmp.ne.s32.totalorder %s220, %s236
    %p238 = scmp.eq.s32.totalorder %s19, 0
    %p239 = por %p237, %p238
    %p240 = scmp.le.s32.totalorder 1, %s13
    %p241 = scmp.lt.s32.totalorder %s13, 9
    %p242 = pnand %p240, %p241
    %p243 = pneg %p242
    // Predicated region
    $region9: #{enc_forward.13} parent=5 // pred_check
      _
    $region10: #{enc_forward.13} parent=5 // pred_check_branch
      %245 = sbr.rel (%p242) target = $region12
    $region11: #{enc_forward.13} parent=5 // pred_region
      %s246 = ssub.s32 %s13, 1
      // Predicated region
      $region13: #{enc_forward.13} parent=11 // pred_check
        %p247 = pneg %p134
      $region14: #{enc_forward.13} parent=11 // pred_check_branch
        %249 = sbr.rel (%p247) target = $region16
      $region15: #{enc_forward.13} parent=11 // pred_region
        _
      $region16: #{enc_forward.13} parent=11 // pred_fallthru
        _
      // Predicated region
      $region17: #{enc_forward.13} parent=11 // pred_check
        %p250 = pneg %p183
      $region18: #{enc_forward.13} parent=11 // pred_check_branch
        %252 = sbr.rel (%p250) target = $region20
      $region19: #{enc_forward.13} parent=11 // pred_region
        _
      $region20: #{enc_forward.13} parent=11 // pred_fallthru
        _
      // Predicated region
      $region21: #{enc_forward.13} parent=11 // pred_check
        %p253 = pneg %p204
      $region22: #{enc_forward.13} parent=11 // pred_check_branch
        %255 = sbr.rel (%p253) target = $region24
      $region23: #{enc_forward.13} parent=11 // pred_region
        _
      $region24: #{enc_forward.13} parent=11 // pred_fallthru
        _
    $region12: #{enc_forward.13} parent=5 // pred_fallthru
      _
    %p256 = scmp.lt.s32.totalorder %s13, 8
    // Predicated region
    $region25: #{enc_forward.13} parent=5 // pred_check
      %p257 = pneg %p256
    $region26: #{enc_forward.13} parent=5 // pred_check_branch
      %259 = sbr.rel (%p257) target = $region28
    $region27: #{enc_forward.13} parent=5 // pred_region
      // Predicated region
      $region29: #{enc_forward.13} parent=27 // pred_check
        %p260 = pneg %p47
      $region30: #{enc_forward.13} parent=27 // pred_check_branch
        %262 = sbr.rel (%p260) target = $region32
      $region31: #{enc_forward.13} parent=27 // pred_region
        %p263 = scmp.lt.s32.totalorder %s20, 1
        %s264 = scalar_select %p263, %s20, 1
        %p265 = scmp.lt.s32.totalorder %s21, 5
        %s266 = scalar_select %p265, %s21, 5
        %s267 = smul.addr %s266, 2
        %s268 = smul.addr %s264, 12
        %s269 = sadd.s32 %s267, %s268
        %s270 = smul.addr %s269, 4
        %s271 = scalar_lea.vmem %s0, %s270
      $region32: #{enc_forward.13} parent=27 // pred_fallthru
        _
      // Predicated region
      $region33: #{enc_forward.13} parent=27 // pred_check
        %p272 = pneg %p77
      $region34: #{enc_forward.13} parent=27 // pred_check_branch
        %274 = sbr.rel (%p272) target = $region36
      $region35: #{enc_forward.13} parent=27 // pred_region
        %s275 = sadd.s32 %s21, 1
        %p276 = scmp.lt.s32.totalorder %s20, 1
        %s277 = scalar_select %p276, %s20, 1
        %p278 = scmp.lt.s32.totalorder %s275, 5
        %s279 = scalar_select %p278, %s275, 5
        %s280 = smul.addr %s279, 2
        %s281 = smul.addr %s277, 12
        %s282 = sadd.s32 %s280, %s281
        %s283 = smul.addr %s282, 4
        %s284 = scalar_lea.vmem %s1, %s283
        %s285 = sadd.s32 %s21, 1
      $region36: #{enc_forward.13} parent=27 // pred_fallthru
        _
      // Predicated region
      $region37: #{enc_forward.13} parent=27 // pred_check
        %p286 = pneg %p107
      $region38: #{enc_forward.13} parent=27 // pred_check_branch
        %288 = sbr.rel (%p286) target = $region40
      $region39: #{enc_forward.13} parent=27 // pred_region
        %s289 = sadd.s32 %s21, 2
        %p290 = scmp.lt.s32.totalorder %s20, 1
        %s291 = scalar_select %p290, %s20, 1
        %p292 = scmp.lt.s32.totalorder %s289, 5
        %s293 = scalar_select %p292, %s289, 5
        %s294 = smul.addr %s293, 2
        %s295 = smul.addr %s291, 12
        %s296 = sadd.s32 %s294, %s295
        %s297 = smul.addr %s296, 4
        %s298 = scalar_lea.vmem %s2, %s297
        %s299 = sadd.s32 %s21, 2
      $region40: #{enc_forward.13} parent=27 // pred_fallthru
        _
      // Predicated region
      $region41: #{enc_forward.13} parent=27 // pred_check
        %p300 = pneg %p156
      $region42: #{enc_forward.13} parent=27 // pred_check_branch
        %302 = sbr.rel (%p300) target = $region44
      $region43: #{enc_forward.13} parent=27 // pred_region
        %p303 = scmp.lt.s32.totalorder %s20, 1
        %s304 = scalar_select %p303, %s20, 1
        %p305 = scmp.lt.s32.totalorder %s21, 3
        %s306 = scalar_select %p305, %s21, 3
        %s307 = smul.addr %s304, 4
        %s308 = sadd.s32 %s306, %s307
        %s309 = smul.addr %s308, 4
        %s310 = scalar_lea.vmem %s4, %s309
      $region44: #{enc_forward.13} parent=27 // pred_fallthru
        _
    $region28: #{enc_forward.13} parent=5 // pred_fallthru
      _
    %p311 = scmp.le.s32.totalorder 1, %s13
    %p312 = scmp.lt.s32.totalorder %s13, 9
    %p313 = pnand %p311, %p312
    %p314 = pneg %p313
    // Predicated region
    $region45: #{enc_forward.13} parent=5 // pred_check
      _
    $region46: #{enc_forward.13} parent=5 // pred_check_branch
      %316 = sbr.rel (%p313) target = $region48
    $region47: #{enc_forward.13} parent=5 // pred_region
      %s317 = ssub.s32 %s13, 1
      %p318 = scmp.lt.s32.totalorder %s22, 1
      %s319 = scalar_select %p318, %s22, 1
      %p320 = scmp.lt.s32.totalorder %s23, 5
      %s321 = scalar_select %p320, %s23, 5
      %s322 = smul.addr %s321, 2
      %s323 = smul.addr %s319, 12
      %s324 = sadd.s32 %s322, %s323
      %s325 = smul.addr %s324, 4
      %s326 = scalar_lea.vmem %s0, %s325
      %p327 = pneg %p53
      %p328 = pneg %p50
      %s329 = sadd.s32 %s23, 1
      %p330 = scmp.lt.s32.totalorder %s22, 1
      %s331 = scalar_select %p330, %s22, 1
      %p332 = scmp.lt.s32.totalorder %s329, 5
      %s333 = scalar_select %p332, %s329, 5
      %s334 = smul.addr %s333, 2
      %s335 = smul.addr %s331, 12
      %s336 = sadd.s32 %s334, %s335
      %s337 = smul.addr %s336, 4
      %s338 = scalar_lea.vmem %s1, %s337
      %p339 = pneg %p83
      %p340 = pneg %p80
      %s341 = sadd.s32 %s23, 2
      %p342 = scmp.lt.s32.totalorder %s22, 1
      %s343 = scalar_select %p342, %s22, 1
      %p344 = scmp.lt.s32.totalorder %s341, 5
      %s345 = scalar_select %p344, %s341, 5
      %s346 = smul.addr %s345, 2
      %s347 = smul.addr %s343, 12
      %s348 = sadd.s32 %s346, %s347
      %s349 = smul.addr %s348, 4
      %s350 = scalar_lea.vmem %s2, %s349
      %p351 = pneg %p113
      %p352 = pneg %p110
      %p353 = pneg %p134
      %p354 = pneg %p131
      %p355 = scmp.lt.s32.totalorder %s22, 1
      %s356 = scalar_select %p355, %s22, 1
      %p357 = scmp.lt.s32.totalorder %s23, 3
      %s358 = scalar_select %p357, %s23, 3
      %s359 = smul.addr %s356, 4
      %s360 = sadd.s32 %s358, %s359
      %s361 = smul.addr %s360, 4
      %s362 = scalar_lea.vmem %s4, %s361
      %p363 = pneg %p162
      %p364 = pneg %p159
      %p365 = pneg %p183
      %p366 = pneg %p180
      %p367 = pneg %p204
      %p368 = pneg %p201
      %p369 = pneg %p232
      %p370 = pneg %p229
      %p371 = scmp.lt.s32.totalorder %s22, 1
      %s372 = scalar_select %p371, %s22, 1
      %p373 = scmp.lt.s32.totalorder %s23, 3
      %s374 = scalar_select %p373, %s23, 3
      %s375 = smul.addr %s372, 4
      %s376 = sadd.s32 %s374, %s375
      %s377 = smul.addr %s376, 4
      %s378 = scalar_lea.vmem %s7, %s377
      %p379 = scmp.lt.s32.totalorder %s22, 1
      %s380 = scalar_select %p379, %s22, 1
      %p381 = scmp.lt.s32.totalorder %s23, 5
      %s382 = scalar_select %p381, %s23, 5
      %s383 = smul.addr %s382, 2
      %s384 = smul.addr %s380, 12
      %s385 = sadd.s32 %s383, %s384
      %s386 = smul.addr %s385, 4
      %s387 = scalar_lea.vmem %s0, %s386
      %s388 = sadd.s32 %s23, 1
      %p389 = scmp.lt.s32.totalorder %s22, 1
      %s390 = scalar_select %p389, %s22, 1
      %p391 = scmp.lt.s32.totalorder %s388, 5
      %s392 = scalar_select %p391, %s388, 5
      %s393 = smul.addr %s392, 2
      %s394 = smul.addr %s390, 12
      %s395 = sadd.s32 %s393, %s394
      %s396 = smul.addr %s395, 4
      %s397 = scalar_lea.vmem %s1, %s396
      %s398 = sadd.s32 %s23, 1
      %s399 = sadd.s32 %s23, 2
      %p400 = scmp.lt.s32.totalorder %s22, 1
      %s401 = scalar_select %p400, %s22, 1
      %p402 = scmp.lt.s32.totalorder %s399, 5
      %s403 = scalar_select %p402, %s399, 5
      %s404 = smul.addr %s403, 2
      %s405 = smul.addr %s401, 12
      %s406 = sadd.s32 %s404, %s405
      %s407 = smul.addr %s406, 4
      %s408 = scalar_lea.vmem %s2, %s407
      %s409 = sadd.s32 %s23, 2
      %p410 = scmp.lt.s32.totalorder %s22, 1
      %s411 = scalar_select %p410, %s22, 1
      %p412 = scmp.lt.s32.totalorder %s23, 3
      %s413 = scalar_select %p412, %s23, 3
      %s414 = smul.addr %s411, 4
      %s415 = sadd.s32 %s413, %s414
      %s416 = smul.addr %s415, 4
      %s417 = scalar_lea.vmem %s4, %s416
      %p418 = scmp.lt.s32.totalorder %s22, 1
      %s419 = scalar_select %p418, %s22, 1
      %p420 = scmp.lt.s32.totalorder %s23, 3
      %s421 = scalar_select %p420, %s23, 3
      %s422 = smul.addr %s419, 4
      %s423 = sadd.s32 %s421, %s422
      %s424 = smul.addr %s423, 4
      %s425 = scalar_lea.vmem %s7, %s424
      %v427 = vld [vmem:[%s387] sm:$0xf]
      %v428 = vld [vmem:[%s3] sm:$0xf]
      %v429 = vld [vmem:[%s387] sm:$0xe]
      %v430 = vld [vmem:[%s387 + $0x4] sm:$0x1]
      %s431 = scalar_lea.vmem %s3, 4
      %v432 = vld [vmem:[%s431] sm:$0xf]
      %v435 = vunpack.c.l.b16 %v429
      %v436 = vunpack.c.l.b16 %v430
      %v437 = vpack.c.b16 %v436, %v435
      %v438 = vrot.slane %v437, 1
      %vm439 = vcmask 64512
      %v441 = vsel %vm439, %v438, 0
      %vm443 = vcmask 1043456
      %v445 = vsel %vm443, %v432, 0
      %447 = vmatprep.subr.bf16.mxu0 0
      %448 = vmatpush1.bf16.msra.mxu0 0
      %449 = vmatprep.subr.bf16.mxu0 0
      %450 = vmatpush1.bf16.msra.mxu0 0
      %451 = vmatprep.subr.bf16.mxu0 0
      %452 = vmatpush1.bf16.msra.mxu0 0
      %453 = vmatprep.subr.bf16.mxu0 0
      %454 = vmatpush1.bf16.msra.mxu0 0
      %455 = vmatprep.subr.bf16.mxu0 0
      %456 = vmatpush1.bf16.msra.mxu0 0
      %457 = vmatprep.subr.bf16.mxu0 0
      %458 = vmatpush1.bf16.msra.mxu0 0
      %459 = vmatprep.subr.bf16.mxu0 0
      %460 = vmatpush1.bf16.msra.mxu0 0
      %461 = vmatprep.subr.bf16.mxu0 0
      %462 = vmatpush1.bf16.msra.mxu0 %v445
      %463 = vmatprep.subr.bf16.mxu0 0
      %464 = vmatpush2.bf16.msra.mxu0 0
      %465 = vmatprep.subr.bf16.mxu0 0
      %466 = vmatpush2.bf16.msra.mxu0 0
      %467 = vmatprep.subr.bf16.mxu0 0
      %468 = vmatpush2.bf16.msra.mxu0 0
      %469 = vmatprep.subr.bf16.mxu0 0
      %470 = vmatpush2.bf16.msra.mxu0 0
      %471 = vmatprep.subr.bf16.mxu0 0
      %472 = vmatpush2.bf16.msra.mxu0 0
      %473 = vmatprep.subr.bf16.mxu0 0
      %474 = vmatpush2.bf16.msra.mxu0 0
      %475 = vmatprep.subr.bf16.mxu0 0
      %476 = vmatpush2.bf16.msra.mxu0 0
      %477 = vmatprep.subr.bf16.mxu0 0
      %478 = vmatpush2.bf16.msra.mxu0 0
      %479 = vmatprep.mubr.bf16.mxu0 0
      %480 = vmatmul.mubr.bf16.gmra.mxu0 %v441
      %v481 = vpop.f32.mrf.mxu0
      %v482 = vadd.f32 0.0, %v481
      %v483 = vpop.f32.mrf.mxu0
      %v484 = vpop.f32.mrf.mxu0
      %v485 = vpop.f32.mrf.mxu0
      %486 = vdwg.mxu0
      %v488 = vsel %vm439, %v427, 0
      %v491 = vsel %vm443, %v428, 0
      %493 = vmatprep.subr.bf16.mxu0 0
      %494 = vmatpush1.bf16.msra.mxu0 0
      %495 = vmatprep.subr.bf16.mxu0 0
      %496 = vmatpush1.bf16.msra.mxu0 0
      %497 = vmatprep.subr.bf16.mxu0 0
      %498 = vmatpush1.bf16.msra.mxu0 0
      %499 = vmatprep.subr.bf16.mxu0 0
      %500 = vmatpush1.bf16.msra.mxu0 0
      %501 = vmatprep.subr.bf16.mxu0 0
      %502 = vmatpush1.bf16.msra.mxu0 0
      %503 = vmatprep.subr.bf16.mxu0 0
      %504 = vmatpush1.bf16.msra.mxu0 0
      %505 = vmatprep.subr.bf16.mxu0 0
      %506 = vmatpush1.bf16.msra.mxu0 0
      %507 = vmatprep.subr.bf16.mxu0 0
      %508 = vmatpush1.bf16.msra.mxu0 %v491
      %509 = vmatprep.subr.bf16.mxu0 0
      %510 = vmatpush2.bf16.msra.mxu0 0
      %511 = vmatprep.subr.bf16.mxu0 0
      %512 = vmatpush2.bf16.msra.mxu0 0
      %513 = vmatprep.subr.bf16.mxu0 0
      %514 = vmatpush2.bf16.msra.mxu0 0
      %515 = vmatprep.subr.bf16.mxu0 0
      %516 = vmatpush2.bf16.msra.mxu0 0
      %517 = vmatprep.subr.bf16.mxu0 0
      %518 = vmatpush2.bf16.msra.mxu0 0
      %519 = vmatprep.subr.bf16.mxu0 0
      %520 = vmatpush2.bf16.msra.mxu0 0
      %521 = vmatprep.subr.bf16.mxu0 0
      %522 = vmatpush2.bf16.msra.mxu0 0
      %523 = vmatprep.subr.bf16.mxu0 0
      %524 = vmatpush2.bf16.msra.mxu0 0
      %525 = vmatprep.mubr.bf16.mxu0 0
      %526 = vmatmul.mubr.bf16.gmra.mxu0 %v488
      %v527 = vpop.f32.mrf.mxu0
      %v528 = vadd.f32 %v482, %v527
      %v529 = vpop.f32.mrf.mxu0
      %v530 = vpop.f32.mrf.mxu0
      %v531 = vpop.f32.mrf.mxu0
      %532 = vdwg.mxu0
      %v533 = vld [vmem:[%s387] sm:$0xc]
      %v534 = vld [vmem:[%s387 + $0x4] sm:$0x3]
      %s535 = scalar_lea.vmem %s3, 8
      %v536 = vld [vmem:[%s535] sm:$0xf]
      %v539 = vunpack.c.l.b16 %v533
      %v540 = vunpack.c.l.b16 %v534
      %v541 = vpack.c.b16 %v540, %v539
      %v542 = vrot.slane %v541, 2
      %v544 = vsel %vm439, %v542, 0
      %v547 = vsel %vm443, %v536, 0
      %549 = vmatprep.subr.bf16.mxu0 0
      %550 = vmatpush1.bf16.msra.mxu0 0
      %551 = vmatprep.subr.bf16.mxu0 0
      %552 = vmatpush1.bf16.msra.mxu0 0
      %553 = vmatprep.subr.bf16.mxu0 0
      %554 = vmatpush1.bf16.msra.mxu0 0
      %555 = vmatprep.subr.bf16.mxu0 0
      %556 = vmatpush1.bf16.msra.mxu0 0
      %557 = vmatprep.subr.bf16.mxu0 0
      %558 = vmatpush1.bf16.msra.mxu0 0
      %559 = vmatprep.subr.bf16.mxu0 0
      %560 = vmatpush1.bf16.msra.mxu0 0
      %561 = vmatprep.subr.bf16.mxu0 0
      %562 = vmatpush1.bf16.msra.mxu0 0
      %563 = vmatprep.subr.bf16.mxu0 0
      %564 = vmatpush1.bf16.msra.mxu0 %v547
      %565 = vmatprep.subr.bf16.mxu0 0
      %566 = vmatpush2.bf16.msra.mxu0 0
      %567 = vmatprep.subr.bf16.mxu0 0
      %568 = vmatpush2.bf16.msra.mxu0 0
      %569 = vmatprep.subr.bf16.mxu0 0
      %570 = vmatpush2.bf16.msra.mxu0 0
      %571 = vmatprep.subr.bf16.mxu0 0
      %572 = vmatpush2.bf16.msra.mxu0 0
      %573 = vmatprep.subr.bf16.mxu0 0
      %574 = vmatpush2.bf16.msra.mxu0 0
      %575 = vmatprep.subr.bf16.mxu0 0
      %576 = vmatpush2.bf16.msra.mxu0 0
      %577 = vmatprep.subr.bf16.mxu0 0
      %578 = vmatpush2.bf16.msra.mxu0 0
      %579 = vmatprep.subr.bf16.mxu0 0
      %580 = vmatpush2.bf16.msra.mxu0 0
      %581 = vmatprep.mubr.bf16.mxu0 0
      %582 = vmatmul.mubr.bf16.gmra.mxu0 %v544
      %v583 = vpop.f32.mrf.mxu0
      %v584 = vadd.f32 0.0, %v583
      %v585 = vpop.f32.mrf.mxu0
      %v586 = vpop.f32.mrf.mxu0
      %v587 = vpop.f32.mrf.mxu0
      %588 = vdwg.mxu0
      %v589 = vadd.f32 %v528, %v584
      %v590 = vld [vmem:[%s397] sm:$0xf]
      %s591 = scalar_lea.vmem %s3, 12
      %v592 = vld [vmem:[%s591] sm:$0xf]
      %v594 = vsel %vm439, %v590, 0
      %v597 = vsel %vm443, %v592, 0
      %599 = vmatprep.subr.bf16.mxu0 0
      %600 = vmatpush1.bf16.msra.mxu0 0
      %601 = vmatprep.subr.bf16.mxu0 0
      %602 = vmatpush1.bf16.msra.mxu0 0
      %603 = vmatprep.subr.bf16.mxu0 0
      %604 = vmatpush1.bf16.msra.mxu0 0
      %605 = vmatprep.subr.bf16.mxu0 0
      %606 = vmatpush1.bf16.msra.mxu0 0
      %607 = vmatprep.subr.bf16.mxu0 0
      %608 = vmatpush1.bf16.msra.mxu0 0
      %609 = vmatprep.subr.bf16.mxu0 0
      %610 = vmatpush1.bf16.msra.mxu0 0
      %611 = vmatprep.subr.bf16.mxu0 0
      %612 = vmatpush1.bf16.msra.mxu0 0
      %613 = vmatprep.subr.bf16.mxu0 0
      %614 = vmatpush1.bf16.msra.mxu0 %v597
      %615 = vmatprep.subr.bf16.mxu0 0
      %616 = vmatpush2.bf16.msra.mxu0 0
      %617 = vmatprep.subr.bf16.mxu0 0
      %618 = vmatpush2.bf16.msra.mxu0 0
      %619 = vmatprep.subr.bf16.mxu0 0
      %620 = vmatpush2.bf16.msra.mxu0 0
      %621 = vmatprep.subr.bf16.mxu0 0
      %622 = vmatpush2.bf16.msra.mxu0 0
      %623 = vmatprep.subr.bf16.mxu0 0
      %624 = vmatpush2.bf16.msra.mxu0 0
      %625 = vmatprep.subr.bf16.mxu0 0
      %626 = vmatpush2.bf16.msra.mxu0 0
      %627 = vmatprep.subr.bf16.mxu0 0
      %628 = vmatpush2.bf16.msra.mxu0 0
      %629 = vmatprep.subr.bf16.mxu0 0
      %630 = vmatpush2.bf16.msra.mxu0 0
      %631 = vmatprep.mubr.bf16.mxu0 0
      %632 = vmatmul.mubr.bf16.gmra.mxu0 %v594
      %v633 = vpop.f32.mrf.mxu0
      %v634 = vadd.f32 0.0, %v633
      %v635 = vpop.f32.mrf.mxu0
      %v636 = vpop.f32.mrf.mxu0
      %v637 = vpop.f32.mrf.mxu0
      %638 = vdwg.mxu0
      %v639 = vadd.f32 %v589, %v634
      %v640 = vld [vmem:[%s397] sm:$0xe]
      %v641 = vld [vmem:[%s397 + $0x4] sm:$0x1]
      %s642 = scalar_lea.vmem %s3, 16
      %v643 = vld [vmem:[%s642] sm:$0xf]
      %v646 = vunpack.c.l.b16 %v640
      %v647 = vunpack.c.l.b16 %v641
      %v648 = vpack.c.b16 %v647, %v646
      %v649 = vrot.slane %v648, 1
      %v651 = vsel %vm439, %v649, 0
      %v654 = vsel %vm443, %v643, 0
      %656 = vmatprep.subr.bf16.mxu0 0
      %657 = vmatpush1.bf16.msra.mxu0 0
      %658 = vmatprep.subr.bf16.mxu0 0
      %659 = vmatpush1.bf16.msra.mxu0 0
      %660 = vmatprep.subr.bf16.mxu0 0
      %661 = vmatpush1.bf16.msra.mxu0 0
      %662 = vmatprep.subr.bf16.mxu0 0
      %663 = vmatpush1.bf16.msra.mxu0 0
      %664 = vmatprep.subr.bf16.mxu0 0
      %665 = vmatpush1.bf16.msra.mxu0 0
      %666 = vmatprep.subr.bf16.mxu0 0
      %667 = vmatpush1.bf16.msra.mxu0 0
      %668 = vmatprep.subr.bf16.mxu0 0
      %669 = vmatpush1.bf16.msra.mxu0 0
      %670 = vmatprep.subr.bf16.mxu0 0
      %671 = vmatpush1.bf16.msra.mxu0 %v654
      %672 = vmatprep.subr.bf16.mxu0 0
      %673 = vmatpush2.bf16.msra.mxu0 0
      %674 = vmatprep.subr.bf16.mxu0 0
      %675 = vmatpush2.bf16.msra.mxu0 0
      %676 = vmatprep.subr.bf16.mxu0 0
      %677 = vmatpush2.bf16.msra.mxu0 0
      %678 = vmatprep.subr.bf16.mxu0 0
      %679 = vmatpush2.bf16.msra.mxu0 0
      %680 = vmatprep.subr.bf16.mxu0 0
      %681 = vmatpush2.bf16.msra.mxu0 0
      %682 = vmatprep.subr.bf16.mxu0 0
      %683 = vmatpush2.bf16.msra.mxu0 0
      %684 = vmatprep.subr.bf16.mxu0 0
      %685 = vmatpush2.bf16.msra.mxu0 0
      %686 = vmatprep.subr.bf16.mxu0 0
      %687 = vmatpush2.bf16.msra.mxu0 0
      %688 = vmatprep.mubr.bf16.mxu0 0
      %689 = vmatmul.mubr.bf16.gmra.mxu0 %v651
      %v690 = vpop.f32.mrf.mxu0
      %v691 = vadd.f32 0.0, %v690
      %v692 = vpop.f32.mrf.mxu0
      %v693 = vpop.f32.mrf.mxu0
      %v694 = vpop.f32.mrf.mxu0
      %695 = vdwg.mxu0
      %v696 = vadd.f32 %v639, %v691
      %v697 = vld [vmem:[%s397] sm:$0xc]
      %v698 = vld [vmem:[%s397 + $0x4] sm:$0x3]
      %s699 = scalar_lea.vmem %s3, 20
      %v700 = vld [vmem:[%s699] sm:$0xf]
      %v703 = vunpack.c.l.b16 %v697
      %v704 = vunpack.c.l.b16 %v698
      %v705 = vpack.c.b16 %v704, %v703
      %v706 = vrot.slane %v705, 2
      %v708 = vsel %vm439, %v706, 0
      %v711 = vsel %vm443, %v700, 0
      %713 = vmatprep.subr.bf16.mxu0 0
      %714 = vmatpush1.bf16.msra.mxu0 0
      %715 = vmatprep.subr.bf16.mxu0 0
      %716 = vmatpush1.bf16.msra.mxu0 0
      %717 = vmatprep.subr.bf16.mxu0 0
      %718 = vmatpush1.bf16.msra.mxu0 0
      %719 = vmatprep.subr.bf16.mxu0 0
      %720 = vmatpush1.bf16.msra.mxu0 0
      %721 = vmatprep.subr.bf16.mxu0 0
      %722 = vmatpush1.bf16.msra.mxu0 0
      %723 = vmatprep.subr.bf16.mxu0 0
      %724 = vmatpush1.bf16.msra.mxu0 0
      %725 = vmatprep.subr.bf16.mxu0 0
      %726 = vmatpush1.bf16.msra.mxu0 0
      %727 = vmatprep.subr.bf16.mxu0 0
      %728 = vmatpush1.bf16.msra.mxu0 %v711
      %729 = vmatprep.subr.bf16.mxu0 0
      %730 = vmatpush2.bf16.msra.mxu0 0
      %731 = vmatprep.subr.bf16.mxu0 0
      %732 = vmatpush2.bf16.msra.mxu0 0
      %733 = vmatprep.subr.bf16.mxu0 0
      %734 = vmatpush2.bf16.msra.mxu0 0
      %735 = vmatprep.subr.bf16.mxu0 0
      %736 = vmatpush2.bf16.msra.mxu0 0
      %737 = vmatprep.subr.bf16.mxu0 0
      %738 = vmatpush2.bf16.msra.mxu0 0
      %739 = vmatprep.subr.bf16.mxu0 0
      %740 = vmatpush2.bf16.msra.mxu0 0
      %741 = vmatprep.subr.bf16.mxu0 0
      %742 = vmatpush2.bf16.msra.mxu0 0
      %743 = vmatprep.subr.bf16.mxu0 0
      %744 = vmatpush2.bf16.msra.mxu0 0
      %745 = vmatprep.mubr.bf16.mxu0 0
      %746 = vmatmul.mubr.bf16.gmra.mxu0 %v708
      %v747 = vpop.f32.mrf.mxu0
      %v748 = vadd.f32 0.0, %v747
      %v749 = vpop.f32.mrf.mxu0
      %v750 = vpop.f32.mrf.mxu0
      %v751 = vpop.f32.mrf.mxu0
      %752 = vdwg.mxu0
      %v753 = vadd.f32 %v696, %v748
      %v754 = vld [vmem:[%s408] sm:$0xf]
      %s755 = scalar_lea.vmem %s3, 24
      %v756 = vld [vmem:[%s755] sm:$0xf]
      %v758 = vsel %vm439, %v754, 0
      %v761 = vsel %vm443, %v756, 0
      %763 = vmatprep.subr.bf16.mxu0 0
      %764 = vmatpush1.bf16.msra.mxu0 0
      %765 = vmatprep.subr.bf16.mxu0 0
      %766 = vmatpush1.bf16.msra.mxu0 0
      %767 = vmatprep.subr.bf16.mxu0 0
      %768 = vmatpush1.bf16.msra.mxu0 0
      %769 = vmatprep.subr.bf16.mxu0 0
      %770 = vmatpush1.bf16.msra.mxu0 0
      %771 = vmatprep.subr.bf16.mxu0 0
      %772 = vmatpush1.bf16.msra.mxu0 0
      %773 = vmatprep.subr.bf16.mxu0 0
      %774 = vmatpush1.bf16.msra.mxu0 0
      %775 = vmatprep.subr.bf16.mxu0 0
      %776 = vmatpush1.bf16.msra.mxu0 0
      %777 = vmatprep.subr.bf16.mxu0 0
      %778 = vmatpush1.bf16.msra.mxu0 %v761
      %779 = vmatprep.subr.bf16.mxu0 0
      %780 = vmatpush2.bf16.msra.mxu0 0
      %781 = vmatprep.subr.bf16.mxu0 0
      %782 = vmatpush2.bf16.msra.mxu0 0
      %783 = vmatprep.subr.bf16.mxu0 0
      %784 = vmatpush2.bf16.msra.mxu0 0
      %785 = vmatprep.subr.bf16.mxu0 0
      %786 = vmatpush2.bf16.msra.mxu0 0
      %787 = vmatprep.subr.bf16.mxu0 0
      %788 = vmatpush2.bf16.msra.mxu0 0
      %789 = vmatprep.subr.bf16.mxu0 0
      %790 = vmatpush2.bf16.msra.mxu0 0
      %791 = vmatprep.subr.bf16.mxu0 0
      %792 = vmatpush2.bf16.msra.mxu0 0
      %793 = vmatprep.subr.bf16.mxu0 0
      %794 = vmatpush2.bf16.msra.mxu0 0
      %795 = vmatprep.mubr.bf16.mxu0 0
      %796 = vmatmul.mubr.bf16.gmra.mxu0 %v758
      %v797 = vpop.f32.mrf.mxu0
      %v798 = vadd.f32 0.0, %v797
      %v799 = vpop.f32.mrf.mxu0
      %v800 = vpop.f32.mrf.mxu0
      %v801 = vpop.f32.mrf.mxu0
      %802 = vdwg.mxu0
      %v803 = vadd.f32 %v753, %v798
      %v804 = vld [vmem:[%s408] sm:$0xe]
      %v805 = vld [vmem:[%s408 + $0x4] sm:$0x1]
      %s806 = scalar_lea.vmem %s3, 28
      %v807 = vld [vmem:[%s806] sm:$0xf]
      %v810 = vunpack.c.l.b16 %v804
      %v811 = vunpack.c.l.b16 %v805
      %v812 = vpack.c.b16 %v811, %v810
      %v813 = vrot.slane %v812, 1
      %v815 = vsel %vm439, %v813, 0
      %v818 = vsel %vm443, %v807, 0
      %820 = vmatprep.subr.bf16.mxu0 0
      %821 = vmatpush1.bf16.msra.mxu0 0
      %822 = vmatprep.subr.bf16.mxu0 0
      %823 = vmatpush1.bf16.msra.mxu0 0
      %824 = vmatprep.subr.bf16.mxu0 0
      %825 = vmatpush1.bf16.msra.mxu0 0
      %826 = vmatprep.subr.bf16.mxu0 0
      %827 = vmatpush1.bf16.msra.mxu0 0
      %828 = vmatprep.subr.bf16.mxu0 0
      %829 = vmatpush1.bf16.msra.mxu0 0
      %830 = vmatprep.subr.bf16.mxu0 0
      %831 = vmatpush1.bf16.msra.mxu0 0
      %832 = vmatprep.subr.bf16.mxu0 0
      %833 = vmatpush1.bf16.msra.mxu0 0
      %834 = vmatprep.subr.bf16.mxu0 0
      %835 = vmatpush1.bf16.msra.mxu0 %v818
      %836 = vmatprep.subr.bf16.mxu0 0
      %837 = vmatpush2.bf16.msra.mxu0 0
      %838 = vmatprep.subr.bf16.mxu0 0
      %839 = vmatpush2.bf16.msra.mxu0 0
      %840 = vmatprep.subr.bf16.mxu0 0
      %841 = vmatpush2.bf16.msra.mxu0 0
      %842 = vmatprep.subr.bf16.mxu0 0
      %843 = vmatpush2.bf16.msra.mxu0 0
      %844 = vmatprep.subr.bf16.mxu0 0
      %845 = vmatpush2.bf16.msra.mxu0 0
      %846 = vmatprep.subr.bf16.mxu0 0
      %847 = vmatpush2.bf16.msra.mxu0 0
      %848 = vmatprep.subr.bf16.mxu0 0
      %849 = vmatpush2.bf16.msra.mxu0 0
      %850 = vmatprep.subr.bf16.mxu0 0
      %851 = vmatpush2.bf16.msra.mxu0 0
      %852 = vmatprep.mubr.bf16.mxu0 0
      %853 = vmatmul.mubr.bf16.gmra.mxu0 %v815
      %v854 = vpop.f32.mrf.mxu0
      %v855 = vadd.f32 0.0, %v854
      %v856 = vpop.f32.mrf.mxu0
      %v857 = vpop.f32.mrf.mxu0
      %v858 = vpop.f32.mrf.mxu0
      %859 = vdwg.mxu0
      %v860 = vadd.f32 %v803, %v855
      %v861 = vld [vmem:[%s408] sm:$0xc]
      %v862 = vld [vmem:[%s408 + $0x4] sm:$0x3]
      %s863 = scalar_lea.vmem %s3, 32
      %v864 = vld [vmem:[%s863] sm:$0xf]
      %v867 = vunpack.c.l.b16 %v861
      %v868 = vunpack.c.l.b16 %v862
      %v869 = vpack.c.b16 %v868, %v867
      %v870 = vrot.slane %v869, 2
      %v872 = vsel %vm439, %v870, 0
      %v875 = vsel %vm443, %v864, 0
      %877 = vmatprep.subr.bf16.mxu0 0
      %878 = vmatpush1.bf16.msra.mxu0 0
      %879 = vmatprep.subr.bf16.mxu0 0
      %880 = vmatpush1.bf16.msra.mxu0 0
      %881 = vmatprep.subr.bf16.mxu0 0
      %882 = vmatpush1.bf16.msra.mxu0 0
      %883 = vmatprep.subr.bf16.mxu0 0
      %884 = vmatpush1.bf16.msra.mxu0 0
      %885 = vmatprep.subr.bf16.mxu0 0
      %886 = vmatpush1.bf16.msra.mxu0 0
      %887 = vmatprep.subr.bf16.mxu0 0
      %888 = vmatpush1.bf16.msra.mxu0 0
      %889 = vmatprep.subr.bf16.mxu0 0
      %890 = vmatpush1.bf16.msra.mxu0 0
      %891 = vmatprep.subr.bf16.mxu0 0
      %892 = vmatpush1.bf16.msra.mxu0 %v875
      %893 = vmatprep.subr.bf16.mxu0 0
      %894 = vmatpush2.bf16.msra.mxu0 0
      %895 = vmatprep.subr.bf16.mxu0 0
      %896 = vmatpush2.bf16.msra.mxu0 0
      %897 = vmatprep.subr.bf16.mxu0 0
      %898 = vmatpush2.bf16.msra.mxu0 0
      %899 = vmatprep.subr.bf16.mxu0 0
      %900 = vmatpush2.bf16.msra.mxu0 0
      %901 = vmatprep.subr.bf16.mxu0 0
      %902 = vmatpush2.bf16.msra.mxu0 0
      %903 = vmatprep.subr.bf16.mxu0 0
      %904 = vmatpush2.bf16.msra.mxu0 0
      %905 = vmatprep.subr.bf16.mxu0 0
      %906 = vmatpush2.bf16.msra.mxu0 0
      %907 = vmatprep.subr.bf16.mxu0 0
      %908 = vmatpush2.bf16.msra.mxu0 0
      %909 = vmatprep.mubr.bf16.mxu0 0
      %910 = vmatmul.mubr.bf16.gmra.mxu0 %v872
      %v911 = vpop.f32.mrf.mxu0
      %v912 = vadd.f32 0.0, %v911
      %v913 = vpop.f32.mrf.mxu0
      %v914 = vpop.f32.mrf.mxu0
      %v915 = vpop.f32.mrf.mxu0
      %916 = vdwg.mxu0
      %v917 = vadd.f32 %v860, %v912
      %v918 = vld [vmem:[%s417] sm:$0xf]
      %v919 = vld [vmem:[%s5] sm:$0xf]
      %v921 = vsel %vm439, %v918, 0
      %v924 = vsel %vm443, %v919, 0
      %926 = vmatprep.subr.bf16.mxu0 0
      %927 = vmatpush1.bf16.msra.mxu0 0
      %928 = vmatprep.subr.bf16.mxu0 0
      %929 = vmatpush1.bf16.msra.mxu0 0
      %930 = vmatprep.subr.bf16.mxu0 0
      %931 = vmatpush1.bf16.msra.mxu0 0
      %932 = vmatprep.subr.bf16.mxu0 0
      %933 = vmatpush1.bf16.msra.mxu0 0
      %934 = vmatprep.subr.bf16.mxu0 0
      %935 = vmatpush1.bf16.msra.mxu0 0
      %936 = vmatprep.subr.bf16.mxu0 0
      %937 = vmatpush1.bf16.msra.mxu0 0
      %938 = vmatprep.subr.bf16.mxu0 0
      %939 = vmatpush1.bf16.msra.mxu0 0
      %940 = vmatprep.subr.bf16.mxu0 0
      %941 = vmatpush1.bf16.msra.mxu0 %v924
      %942 = vmatprep.subr.bf16.mxu0 0
      %943 = vmatpush2.bf16.msra.mxu0 0
      %944 = vmatprep.subr.bf16.mxu0 0
      %945 = vmatpush2.bf16.msra.mxu0 0
      %946 = vmatprep.subr.bf16.mxu0 0
      %947 = vmatpush2.bf16.msra.mxu0 0
      %948 = vmatprep.subr.bf16.mxu0 0
      %949 = vmatpush2.bf16.msra.mxu0 0
      %950 = vmatprep.subr.bf16.mxu0 0
      %951 = vmatpush2.bf16.msra.mxu0 0
      %952 = vmatprep.subr.bf16.mxu0 0
      %953 = vmatpush2.bf16.msra.mxu0 0
      %954 = vmatprep.subr.bf16.mxu0 0
      %955 = vmatpush2.bf16.msra.mxu0 0
      %956 = vmatprep.subr.bf16.mxu0 0
      %957 = vmatpush2.bf16.msra.mxu0 0
      %958 = vmatprep.mubr.bf16.mxu0 0
      %959 = vmatmul.mubr.bf16.gmra.mxu0 %v921
      %v960 = vpop.f32.mrf.mxu0
      %v961 = vadd.f32 0.0, %v960
      %v962 = vpop.f32.mrf.mxu0
      %v963 = vpop.f32.mrf.mxu0
      %v964 = vpop.f32.mrf.mxu0
      %965 = vdwg.mxu0
      %v966 = vadd.f32 %v917, %v961
      %v967 = vld [vmem:[%s6] sm:$0x1]
      %v969 = vlaneseq
      %v970 = vshrl.u32 %v969, 7
      %v971 = vsub.s32 0, %v970
      %v972 = vrot.slane %v967, %v971
      %v974 = vadd.f32 %v966, %v972
      %v975 = vmax.f32 %v974, 0.0
      %v976 = vpack.c.bf16 %v975, %v975
      %vm977 = vcmask 125952
      %978 = vst.msk [vmem:[%s425] sm:$0xf] %vm977, %v976
      %p979 = scmp.lt.s32.totalorder %s22, 1
      %s980 = scalar_select %p979, %s22, 1
      %p981 = scmp.lt.s32.totalorder %s23, 3
      %s982 = scalar_select %p981, %s23, 3
      %s983 = smul.addr %s980, 4
      %s984 = sadd.s32 %s982, %s983
      %s985 = smul.addr %s984, 4
      %s986 = scalar_lea.vmem %s7, %s985
      // Predicated region
      $region49: #{enc_forward.13} parent=47 // pred_check
        %p987 = pneg %p229
      $region50: #{enc_forward.13} parent=47 // pred_check_branch
        %989 = sbr.rel (%p987) target = $region52
      $region51: #{enc_forward.13} parent=47 // pred_region
        _
      $region52: #{enc_forward.13} parent=47 // pred_fallthru
        _
    $region48: #{enc_forward.13} parent=5 // pred_fallthru
      _
    %p990 = scmp.le.s32.totalorder 2, %s13
    // Predicated region
    $region53: #{enc_forward.13} parent=5 // pred_check
      %p991 = pneg %p990
    $region54: #{enc_forward.13} parent=5 // pred_check_branch
      %993 = sbr.rel (%p991) target = $region56
    $region55: #{enc_forward.13} parent=5 // pred_region
      %s994 = ssub.s32 %s13, 2
      // Predicated region
      $region57: #{enc_forward.13} parent=55 // pred_check
        %p995 = pneg %p235
      $region58: #{enc_forward.13} parent=55 // pred_check_branch
        %997 = sbr.rel (%p995) target = $region60
      $region59: #{enc_forward.13} parent=55 // pred_region
        %p998 = scmp.lt.s32.totalorder %s24, 1
        %s999 = scalar_select %p998, %s24, 1
        %p1000 = scmp.lt.s32.totalorder %s25, 3
        %s1001 = scalar_select %p1000, %s25, 3
        %s1002 = smul.addr %s999, 4
        %s1003 = sadd.s32 %s1001, %s1002
        %s1004 = smul.addr %s1003, 4
        %s1005 = scalar_lea.vmem %s7, %s1004
      $region60: #{enc_forward.13} parent=55 // pred_fallthru
        _
    $region56: #{enc_forward.13} parent=5 // pred_fallthru
      _
  $region6: #{enc_forward.13} parent=0 // loop_footer
    %s17 = sadd.s32 1, %s13
  $region7: #{enc_forward.13} parent=0 // loop_footer_branch
    %12 = sbr.rel target = $region3
  $region8: #{enc_forward.13} parent=0 // loop_exit
    _

// kernel: enc_forward.15
$region0: #{enc_forward.15}
  #allocation0 [shape = 'u32[]', space=smem, size = 0x4, offset = 0x4, fixed_abs, tag = 'smem constant byte address 0x4 - core index']
  #allocation1 [shape = 'u32[144,128]{1,0:T(1,128)}', space=vmem, size = 0x12000, scoped, tag = 'internal scratch']
  %s0 = inlined_call_operand.vmem [shape: bf16[2,6,12,8], index: 0, kind: input, shape index: {}, may-alias: {0,1,2}]
  %s1 = inlined_call_operand.vmem [shape: bf16[2,6,12,8], index: 1, kind: input, shape index: {}, may-alias: {0,1,2}]
  %s2 = inlined_call_operand.vmem [shape: bf16[2,6,12,8], index: 2, kind: input, shape index: {}, may-alias: {0,1,2}]
  %s3 = inlined_call_operand.vmem [shape: bf16[9,8,16], index: 3, kind: input, shape index: {}]
  %s4 = inlined_call_operand.vmem [shape: bf16[2,4,8,8], index: 4, kind: input, shape index: {}]
  %s5 = inlined_call_operand.vmem [shape: bf16[8,16], index: 5, kind: input, shape index: {}]
  %s6 = inlined_call_operand.vmem [shape: bf16[2,4,8,16], index: 6, kind: input, shape index: {}]
  %s7 = inlined_call_operand.vmem [shape: bf16[16,16], index: 7, kind: input, shape index: {}]
  %s8 = inlined_call_operand.vmem [shape: f32[2,1,16], index: 8, kind: input, shape index: {}]
  %s9 = inlined_call_operand.vmem [shape: bf16[2,4,8,16], index: 9, kind: output, shape index: {}]
  %s10 = sld [smem:[#allocation0]]
  $region69: #{enc_forward.15} parent=0
    _
  %s12 = ssub.s32 1, %s10
  %s13 = scalar_select 0, %s12, %s10
  loop: start=0, step=1, limit=10
  $region2: #{enc_forward.15} parent=0 // loop_pre_header
    _
  $region3: #{enc_forward.15} parent=0 // loop_header
    %s15 = sphi 0, %s19
    %p16 = scmp.ge.s32.totalorder %s15, 10
    %s22 = sphi 0, %s34
    %s23 = sphi 0, %s30
    %s24 = sphi 0, %s22
    %s25 = sphi 0, %s23
    %s26 = sphi 0, %s24
    %s27 = sphi 0, %s25
    %s39 = sphi 0, %s41
    %s42 = sphi 0, %s39
    %s43 = sphi 0, %s42
    %s59 = sphi 0, %s43
    %s69 = sphi 0, %s71
    %s72 = sphi 0, %s69
    %s73 = sphi 0, %s72
    %s89 = sphi 0, %s73
    %s99 = sphi 0, %s101
    %s102 = sphi 0, %s99
    %s103 = sphi 0, %s102
    %s119 = sphi 0, %s103
    %s123 = sphi 0, %s123
    %s125 = sphi 0, %s123
    %s126 = sphi 0, %s125
    %s140 = sphi 0, %s126
    %s148 = sphi 0, %s150
    %s151 = sphi 0, %s148
    %s152 = sphi 0, %s151
    %s168 = sphi 0, %s152
    %s172 = sphi 0, %s172
    %s174 = sphi 0, %s172
    %s175 = sphi 0, %s174
    %s189 = sphi 0, %s175
    %s197 = sphi 0, %s199
    %s200 = sphi 0, %s197
    %s201 = sphi 0, %s200
    %s217 = sphi 0, %s201
    %s221 = sphi 0, %s221
    %s223 = sphi 0, %s221
    %s224 = sphi 0, %s223
    %s238 = sphi 0, %s224
    %s244 = sphi 0, %s246
    %s247 = sphi 0, %s244
    %s248 = sphi 0, %s247
    %s264 = sphi 0, %s248
    %s272 = sphi 0, %s274
    %s275 = sphi 0, %s272
    %s276 = sphi 0, %s275
    %s292 = sphi 0, %s276
  $region4: #{enc_forward.15} parent=0 // loop_header_branch
    %18 = sbr.rel (%p16) target = $region8
  $region5: #{enc_forward.15} parent=0 // loop_body
    %s20 = ssub.s32 %s15, 1
    %s21 = ssub.s32 %s15, 2
    %s28 = sadd.s32 1, %s23
    %p29 = scmp.ge.s32.totalorder %s28, 4
    %s30 = scalar_select %p29, 0, %s28
    %s31 = sadd.s32 1, %s22
    %s32 = scalar_select %p29, %s31, %s22
    %p33 = scmp.ge.s32.totalorder %s32, 2
    %s34 = scalar_select %p33, 0, %s32
    %s35 = ssub.s32 %s22, %s34
    %s36 = ssub.s32 %s23, %s30
    %s37 = sor.u32 %s35, %s36
    %p38 = scmp.eq.s32.totalorder %s37, 0
    %s40 = sadd.s32 %s39, 1
    %s41 = scalar_select %p38, %s39, %s40
    %p44 = pneg %p38
    %p45 = scmp.eq.s32.totalorder %s15, 7
    %p46 = por %p44, %p45
    %p47 = scmp.ne.s32.totalorder %s39, %s42
    %p48 = scmp.eq.s32.totalorder %s15, 0
    %p49 = por %p47, %p48
    %p50 = scmp.ne.s32.totalorder %s39, %s42
    %p51 = scmp.eq.s32.totalorder %s20, 7
    %p52 = por %p50, %p51
    %p53 = scmp.ne.s32.totalorder %s42, %s43
    %p54 = scmp.eq.s32.totalorder %s20, 0
    %p55 = por %p53, %p54
    %p56 = scmp.ne.s32.totalorder %s42, %s43
    %p57 = scmp.eq.s32.totalorder %s21, 7
    %p58 = por %p56, %p57
    %p60 = scmp.ne.s32.totalorder %s43, %s59
    %p61 = scmp.eq.s32.totalorder %s21, 0
    %p62 = por %p60, %p61
    %s63 = sadd.s32 %s23, 1
    %s64 = sadd.s32 %s30, 1
    %s65 = ssub.s32 %s22, %s34
    %s66 = ssub.s32 %s63, %s64
    %s67 = sor.u32 %s65, %s66
    %p68 = scmp.eq.s32.totalorder %s67, 0
    %s70 = sadd.s32 %s69, 1
    %s71 = scalar_select %p68, %s69, %s70
    %p74 = pneg %p68
    %p75 = scmp.eq.s32.totalorder %s15, 7
    %p76 = por %p74, %p75
    %p77 = scmp.ne.s32.totalorder %s69, %s72
    %p78 = scmp.eq.s32.totalorder %s15, 0
    %p79 = por %p77, %p78
    %p80 = scmp.ne.s32.totalorder %s69, %s72
    %p81 = scmp.eq.s32.totalorder %s20, 7
    %p82 = por %p80, %p81
    %p83 = scmp.ne.s32.totalorder %s72, %s73
    %p84 = scmp.eq.s32.totalorder %s20, 0
    %p85 = por %p83, %p84
    %p86 = scmp.ne.s32.totalorder %s72, %s73
    %p87 = scmp.eq.s32.totalorder %s21, 7
    %p88 = por %p86, %p87
    %p90 = scmp.ne.s32.totalorder %s73, %s89
    %p91 = scmp.eq.s32.totalorder %s21, 0
    %p92 = por %p90, %p91
    %s93 = sadd.s32 %s23, 2
    %s94 = sadd.s32 %s30, 2
    %s95 = ssub.s32 %s22, %s34
    %s96 = ssub.s32 %s93, %s94
    %s97 = sor.u32 %s95, %s96
    %p98 = scmp.eq.s32.totalorder %s97, 0
    %s100 = sadd.s32 %s99, 1
    %s101 = scalar_select %p98, %s99, %s100
    %p104 = pneg %p98
    %p105 = scmp.eq.s32.totalorder %s15, 7
    %p106 = por %p104, %p105
    %p107 = scmp.ne.s32.totalorder %s99, %s102
    %p108 = scmp.eq.s32.totalorder %s15, 0
    %p109 = por %p107, %p108
    %p110 = scmp.ne.s32.totalorder %s99, %s102
    %p111 = scmp.eq.s32.totalorder %s20, 7
    %p112 = por %p110, %p111
    %p113 = scmp.ne.s32.totalorder %s102, %s103
    %p114 = scmp.eq.s32.totalorder %s20, 0
    %p115 = por %p113, %p114
    %p116 = scmp.ne.s32.totalorder %s102, %s103
    %p117 = scmp.eq.s32.totalorder %s21, 7
    %p118 = por %p116, %p117
    %p120 = scmp.ne.s32.totalorder %s103, %s119
    %p121 = scmp.eq.s32.totalorder %s21, 0
    %p122 = por %p120, %p121
    %s124 = sadd.s32 %s123, 1
    %p127 = scmp.eq.s32.totalorder %s15, 7
    %p128 = scmp.ne.s32.totalorder %s123, %s125
    %p129 = scmp.eq.s32.totalorder %s15, 0
    %p130 = por %p128, %p129
    %p131 = scmp.ne.s32.totalorder %s123, %s125
    %p132 = scmp.eq.s32.totalorder %s20, 7
    %p133 = por %p131, %p132
    %p134 = scmp.ne.s32.totalorder %s125, %s126
    %p135 = scmp.eq.s32.totalorder %s20, 0
    %p136 = por %p134, %p135
    %p137 = scmp.ne.s32.totalorder %s125, %s126
    %p138 = scmp.eq.s32.totalorder %s21, 7
    %p139 = por %p137, %p138
    %p141 = scmp.ne.s32.totalorder %s126, %s140
    %p142 = scmp.eq.s32.totalorder %s21, 0
    %p143 = por %p141, %p142
    %s144 = ssub.s32 %s22, %s34
    %s145 = ssub.s32 %s23, %s30
    %s146 = sor.u32 %s144, %s145
    %p147 = scmp.eq.s32.totalorder %s146, 0
    %s149 = sadd.s32 %s148, 1
    %s150 = scalar_select %p147, %s148, %s149
    %p153 = pneg %p147
    %p154 = scmp.eq.s32.totalorder %s15, 7
    %p155 = por %p153, %p154
    %p156 = scmp.ne.s32.totalorder %s148, %s151
    %p157 = scmp.eq.s32.totalorder %s15, 0
    %p158 = por %p156, %p157
    %p159 = scmp.ne.s32.totalorder %s148, %s151
    %p160 = scmp.eq.s32.totalorder %s20, 7
    %p161 = por %p159, %p160
    %p162 = scmp.ne.s32.totalorder %s151, %s152
    %p163 = scmp.eq.s32.totalorder %s20, 0
    %p164 = por %p162, %p163
    %p165 = scmp.ne.s32.totalorder %s151, %s152
    %p166 = scmp.eq.s32.totalorder %s21, 7
    %p167 = por %p165, %p166
    %p169 = scmp.ne.s32.totalorder %s152, %s168
    %p170 = scmp.eq.s32.totalorder %s21, 0
    %p171 = por %p169, %p170
    %s173 = sadd.s32 %s172, 1
    %p176 = scmp.eq.s32.totalorder %s15, 7
    %p177 = scmp.ne.s32.totalorder %s172, %s174
    %p178 = scmp.eq.s32.totalorder %s15, 0
    %p179 = por %p177, %p178
    %p180 = scmp.ne.s32.totalorder %s172, %s174
    %p181 = scmp.eq.s32.totalorder %s20, 7
    %p182 = por %p180, %p181
    %p183 = scmp.ne.s32.totalorder %s174, %s175
    %p184 = scmp.eq.s32.totalorder %s20, 0
    %p185 = por %p183, %p184
    %p186 = scmp.ne.s32.totalorder %s174, %s175
    %p187 = scmp.eq.s32.totalorder %s21, 7
    %p188 = por %p186, %p187
    %p190 = scmp.ne.s32.totalorder %s175, %s189
    %p191 = scmp.eq.s32.totalorder %s21, 0
    %p192 = por %p190, %p191
    %s193 = ssub.s32 %s22, %s34
    %s194 = ssub.s32 %s23, %s30
    %s195 = sor.u32 %s193, %s194
    %p196 = scmp.eq.s32.totalorder %s195, 0
    %s198 = sadd.s32 %s197, 1
    %s199 = scalar_select %p196, %s197, %s198
    %p202 = pneg %p196
    %p203 = scmp.eq.s32.totalorder %s15, 7
    %p204 = por %p202, %p203
    %p205 = scmp.ne.s32.totalorder %s197, %s200
    %p206 = scmp.eq.s32.totalorder %s15, 0
    %p207 = por %p205, %p206
    %p208 = scmp.ne.s32.totalorder %s197, %s200
    %p209 = scmp.eq.s32.totalorder %s20, 7
    %p210 = por %p208, %p209
    %p211 = scmp.ne.s32.totalorder %s200, %s201
    %p212 = scmp.eq.s32.totalorder %s20, 0
    %p213 = por %p211, %p212
    %p214 = scmp.ne.s32.totalorder %s200, %s201
    %p215 = scmp.eq.s32.totalorder %s21, 7
    %p216 = por %p214, %p215
    %p218 = scmp.ne.s32.totalorder %s201, %s217
    %p219 = scmp.eq.s32.totalorder %s21, 0
    %p220 = por %p218, %p219
    %s222 = sadd.s32 %s221, 1
    %p225 = scmp.eq.s32.totalorder %s15, 7
    %p226 = scmp.ne.s32.totalorder %s221, %s223
    %p227 = scmp.eq.s32.totalorder %s15, 0
    %p228 = por %p226, %p227
    %p229 = scmp.ne.s32.totalorder %s221, %s223
    %p230 = scmp.eq.s32.totalorder %s20, 7
    %p231 = por %p229, %p230
    %p232 = scmp.ne.s32.totalorder %s223, %s224
    %p233 = scmp.eq.s32.totalorder %s20, 0
    %p234 = por %p232, %p233
    %p235 = scmp.ne.s32.totalorder %s223, %s224
    %p236 = scmp.eq.s32.totalorder %s21, 7
    %p237 = por %p235, %p236
    %p239 = scmp.ne.s32.totalorder %s224, %s238
    %p240 = scmp.eq.s32.totalorder %s21, 0
    %p241 = por %p239, %p240
    %s242 = ssub.s32 %s22, %s34
    %p243 = scmp.eq.s32.totalorder %s242, 0
    %s245 = sadd.s32 %s244, 1
    %s246 = scalar_select %p243, %s244, %s245
    %p249 = pneg %p243
    %p250 = scmp.eq.s32.totalorder %s15, 7
    %p251 = por %p249, %p250
    %p252 = scmp.ne.s32.totalorder %s244, %s247
    %p253 = scmp.eq.s32.totalorder %s15, 0
    %p254 = por %p252, %p253
    %p255 = scmp.ne.s32.totalorder %s244, %s247
    %p256 = scmp.eq.s32.totalorder %s20, 7
    %p257 = por %p255, %p256
    %p258 = scmp.ne.s32.totalorder %s247, %s248
    %p259 = scmp.eq.s32.totalorder %s20, 0
    %p260 = por %p258, %p259
    %p261 = scmp.ne.s32.totalorder %s247, %s248
    %p262 = scmp.eq.s32.totalorder %s21, 7
    %p263 = por %p261, %p262
    %p265 = scmp.ne.s32.totalorder %s248, %s264
    %p266 = scmp.eq.s32.totalorder %s21, 0
    %p267 = por %p265, %p266
    %s268 = ssub.s32 %s22, %s34
    %s269 = ssub.s32 %s23, %s30
    %s270 = sor.u32 %s268, %s269
    %p271 = scmp.eq.s32.totalorder %s270, 0
    %s273 = sadd.s32 %s272, 1
    %s274 = scalar_select %p271, %s272, %s273
    %p277 = pneg %p271
    %p278 = scmp.eq.s32.totalorder %s15, 7
    %p279 = por %p277, %p278
    %p280 = scmp.ne.s32.totalorder %s272, %s275
    %p281 = scmp.eq.s32.totalorder %s15, 0
    %p282 = por %p280, %p281
    %p283 = scmp.ne.s32.totalorder %s272, %s275
    %p284 = scmp.eq.s32.totalorder %s20, 7
    %p285 = por %p283, %p284
    %p286 = scmp.ne.s32.totalorder %s275, %s276
    %p287 = scmp.eq.s32.totalorder %s20, 0
    %p288 = por %p286, %p287
    %p289 = scmp.ne.s32.totalorder %s275, %s276
    %p290 = scmp.eq.s32.totalorder %s21, 7
    %p291 = por %p289, %p290
    %p293 = scmp.ne.s32.totalorder %s276, %s292
    %p294 = scmp.eq.s32.totalorder %s21, 0
    %p295 = por %p293, %p294
    %p296 = scmp.le.s32.totalorder 1, %s15
    %p297 = scmp.lt.s32.totalorder %s15, 9
    %p298 = pnand %p296, %p297
    %p299 = pneg %p298
    // Predicated region
    $region9: #{enc_forward.15} parent=5 // pred_check
      _
    $region10: #{enc_forward.15} parent=5 // pred_check_branch
      %301 = sbr.rel (%p298) target = $region12
    $region11: #{enc_forward.15} parent=5 // pred_region
      %s302 = ssub.s32 %s15, 1
      // Predicated region
      $region13: #{enc_forward.15} parent=11 // pred_check
        %p303 = pneg %p136
      $region14: #{enc_forward.15} parent=11 // pred_check_branch
        %305 = sbr.rel (%p303) target = $region16
      $region15: #{enc_forward.15} parent=11 // pred_region
        _
      $region16: #{enc_forward.15} parent=11 // pred_fallthru
        _
      // Predicated region
      $region17: #{enc_forward.15} parent=11 // pred_check
        %p306 = pneg %p185
      $region18: #{enc_forward.15} parent=11 // pred_check_branch
        %308 = sbr.rel (%p306) target = $region20
      $region19: #{enc_forward.15} parent=11 // pred_region
        _
      $region20: #{enc_forward.15} parent=11 // pred_fallthru
        _
      // Predicated region
      $region21: #{enc_forward.15} parent=11 // pred_check
        %p309 = pneg %p234
      $region22: #{enc_forward.15} parent=11 // pred_check_branch
        %311 = sbr.rel (%p309) target = $region24
      $region23: #{enc_forward.15} parent=11 // pred_region
        _
      $region24: #{enc_forward.15} parent=11 // pred_fallthru
        _
    $region12: #{enc_forward.15} parent=5 // pred_fallthru
      _
    %p312 = scmp.lt.s32.totalorder %s15, 8
    // Predicated region
    $region25: #{enc_forward.15} parent=5 // pred_check
      %p313 = pneg %p312
    $region26: #{enc_forward.15} parent=5 // pred_check_branch
      %315 = sbr.rel (%p313) target = $region28
    $region27: #{enc_forward.15} parent=5 // pred_region
      // Predicated region
      $region29: #{enc_forward.15} parent=27 // pred_check
        %p316 = pneg %p49
      $region30: #{enc_forward.15} parent=27 // pred_check_branch
        %318 = sbr.rel (%p316) target = $region32
      $region31: #{enc_forward.15} parent=27 // pred_region
        %p319 = scmp.lt.s32.totalorder %s22, 1
        %s320 = scalar_select %p319, %s22, 1
        %p321 = scmp.lt.s32.totalorder %s23, 5
        %s322 = scalar_select %p321, %s23, 5
        %s323 = smul.addr %s322, 2
        %s324 = smul.addr %s320, 12
        %s325 = sadd.s32 %s323, %s324
        %s326 = smul.addr %s325, 4
        %s327 = scalar_lea.vmem %s0, %s326
      $region32: #{enc_forward.15} parent=27 // pred_fallthru
        _
      // Predicated region
      $region33: #{enc_forward.15} parent=27 // pred_check
        %p328 = pneg %p79
      $region34: #{enc_forward.15} parent=27 // pred_check_branch
        %330 = sbr.rel (%p328) target = $region36
      $region35: #{enc_forward.15} parent=27 // pred_region
        %s331 = sadd.s32 %s23, 1
        %p332 = scmp.lt.s32.totalorder %s22, 1
        %s333 = scalar_select %p332, %s22, 1
        %p334 = scmp.lt.s32.totalorder %s331, 5
        %s335 = scalar_select %p334, %s331, 5
        %s336 = smul.addr %s335, 2
        %s337 = smul.addr %s333, 12
        %s338 = sadd.s32 %s336, %s337
        %s339 = smul.addr %s338, 4
        %s340 = scalar_lea.vmem %s1, %s339
        %s341 = sadd.s32 %s23, 1
      $region36: #{enc_forward.15} parent=27 // pred_fallthru
        _
      // Predicated region
      $region37: #{enc_forward.15} parent=27 // pred_check
        %p342 = pneg %p109
      $region38: #{enc_forward.15} parent=27 // pred_check_branch
        %344 = sbr.rel (%p342) target = $region40
      $region39: #{enc_forward.15} parent=27 // pred_region
        %s345 = sadd.s32 %s23, 2
        %p346 = scmp.lt.s32.totalorder %s22, 1
        %s347 = scalar_select %p346, %s22, 1
        %p348 = scmp.lt.s32.totalorder %s345, 5
        %s349 = scalar_select %p348, %s345, 5
        %s350 = smul.addr %s349, 2
        %s351 = smul.addr %s347, 12
        %s352 = sadd.s32 %s350, %s351
        %s353 = smul.addr %s352, 4
        %s354 = scalar_lea.vmem %s2, %s353
        %s355 = sadd.s32 %s23, 2
      $region40: #{enc_forward.15} parent=27 // pred_fallthru
        _
      // Predicated region
      $region41: #{enc_forward.15} parent=27 // pred_check
        %p356 = pneg %p158
      $region42: #{enc_forward.15} parent=27 // pred_check_branch
        %358 = sbr.rel (%p356) target = $region44
      $region43: #{enc_forward.15} parent=27 // pred_region
        %p359 = scmp.lt.s32.totalorder %s22, 1
        %s360 = scalar_select %p359, %s22, 1
        %p361 = scmp.lt.s32.totalorder %s23, 3
        %s362 = scalar_select %p361, %s23, 3
        %s363 = smul.addr %s360, 4
        %s364 = sadd.s32 %s362, %s363
        %s365 = smul.addr %s364, 4
        %s366 = scalar_lea.vmem %s4, %s365
      $region44: #{enc_forward.15} parent=27 // pred_fallthru
        _
      // Predicated region
      $region45: #{enc_forward.15} parent=27 // pred_check
        %p367 = pneg %p207
      $region46: #{enc_forward.15} parent=27 // pred_check_branch
        %369 = sbr.rel (%p367) target = $region48
      $region47: #{enc_forward.15} parent=27 // pred_region
        %p370 = scmp.lt.s32.totalorder %s22, 1
        %s371 = scalar_select %p370, %s22, 1
        %p372 = scmp.lt.s32.totalorder %s23, 3
        %s373 = scalar_select %p372, %s23, 3
        %s374 = smul.addr %s371, 4
        %s375 = sadd.s32 %s373, %s374
        %s376 = smul.addr %s375, 4
        %s377 = scalar_lea.vmem %s6, %s376
      $region48: #{enc_forward.15} parent=27 // pred_fallthru
        _
      // Predicated region
      $region49: #{enc_forward.15} parent=27 // pred_check
        %p378 = pneg %p254
      $region50: #{enc_forward.15} parent=27 // pred_check_branch
        %380 = sbr.rel (%p378) target = $region52
      $region51: #{enc_forward.15} parent=27 // pred_region
        %p381 = scmp.lt.s32.totalorder %s22, 1
        %s382 = scalar_select %p381, %s22, 1
        %s383 = scalar_lea.vmem %s8, %s382
      $region52: #{enc_forward.15} parent=27 // pred_fallthru
        _
    $region28: #{enc_forward.15} parent=5 // pred_fallthru
      _
    %p384 = scmp.le.s32.totalorder 1, %s15
    %p385 = scmp.lt.s32.totalorder %s15, 9
    %p386 = pnand %p384, %p385
    %p387 = pneg %p386
    // Predicated region
    $region53: #{enc_forward.15} parent=5 // pred_check
      _
    $region54: #{enc_forward.15} parent=5 // pred_check_branch
      %389 = sbr.rel (%p386) target = $region56
    $region55: #{enc_forward.15} parent=5 // pred_region
      %s390 = ssub.s32 %s15, 1
      %p391 = scmp.lt.s32.totalorder %s24, 1
      %s392 = scalar_select %p391, %s24, 1
      %p393 = scmp.lt.s32.totalorder %s25, 5
      %s394 = scalar_select %p393, %s25, 5
      %s395 = smul.addr %s394, 2
      %s396 = smul.addr %s392, 12
      %s397 = sadd.s32 %s395, %s396
      %s398 = smul.addr %s397, 4
      %s399 = scalar_lea.vmem %s0, %s398
      %p400 = pneg %p55
      %p401 = pneg %p52
      %s402 = sadd.s32 %s25, 1
      %p403 = scmp.lt.s32.totalorder %s24, 1
      %s404 = scalar_select %p403, %s24, 1
      %p405 = scmp.lt.s32.totalorder %s402, 5
      %s406 = scalar_select %p405, %s402, 5
      %s407 = smul.addr %s406, 2
      %s408 = smul.addr %s404, 12
      %s409 = sadd.s32 %s407, %s408
      %s410 = smul.addr %s409, 4
      %s411 = scalar_lea.vmem %s1, %s410
      %p412 = pneg %p85
      %p413 = pneg %p82
      %s414 = sadd.s32 %s25, 2
      %p415 = scmp.lt.s32.totalorder %s24, 1
      %s416 = scalar_select %p415, %s24, 1
      %p417 = scmp.lt.s32.totalorder %s414, 5
      %s418 = scalar_select %p417, %s414, 5
      %s419 = smul.addr %s418, 2
      %s420 = smul.addr %s416, 12
      %s421 = sadd.s32 %s419, %s420
      %s422 = smul.addr %s421, 4
      %s423 = scalar_lea.vmem %s2, %s422
      %p424 = pneg %p115
      %p425 = pneg %p112
      %p426 = pneg %p136
      %p427 = pneg %p133
      %p428 = scmp.lt.s32.totalorder %s24, 1
      %s429 = scalar_select %p428, %s24, 1
      %p430 = scmp.lt.s32.totalorder %s25, 3
      %s431 = scalar_select %p430, %s25, 3
      %s432 = smul.addr %s429, 4
      %s433 = sadd.s32 %s431, %s432
      %s434 = smul.addr %s433, 4
      %s435 = scalar_lea.vmem %s4, %s434
      %p436 = pneg %p164
      %p437 = pneg %p161
      %p438 = pneg %p185
      %p439 = pneg %p182
      %p440 = scmp.lt.s32.totalorder %s24, 1
      %s441 = scalar_select %p440, %s24, 1
      %p442 = scmp.lt.s32.totalorder %s25, 3
      %s443 = scalar_select %p442, %s25, 3
      %s444 = smul.addr %s441, 4
      %s445 = sadd.s32 %s443, %s444
      %s446 = smul.addr %s445, 4
      %s447 = scalar_lea.vmem %s6, %s446
      %p448 = pneg %p213
      %p449 = pneg %p210
      %p450 = pneg %p234
      %p451 = pneg %p231
      %p452 = scmp.lt.s32.totalorder %s24, 1
      %s453 = scalar_select %p452, %s24, 1
      %s454 = scalar_lea.vmem %s8, %s453
      %p455 = pneg %p260
      %p456 = pneg %p257
      %p457 = pneg %p288
      %p458 = pneg %p285
      %p459 = scmp.lt.s32.totalorder %s24, 1
      %s460 = scalar_select %p459, %s24, 1
      %p461 = scmp.lt.s32.totalorder %s25, 3
      %s462 = scalar_select %p461, %s25, 3
      %s463 = smul.addr %s460, 4
      %s464 = sadd.s32 %s462, %s463
      %s465 = smul.addr %s464, 4
      %s466 = scalar_lea.vmem %s9, %s465
      %p467 = scmp.lt.s32.totalorder %s24, 1
      %s468 = scalar_select %p467, %s24, 1
      %p469 = scmp.lt.s32.totalorder %s25, 5
      %s470 = scalar_select %p469, %s25, 5
      %s471 = smul.addr %s470, 2
      %s472 = smul.addr %s468, 12
      %s473 = sadd.s32 %s471, %s472
      %s474 = smul.addr %s473, 4
      %s475 = scalar_lea.vmem %s0, %s474
      %s476 = sadd.s32 %s25, 1
      %p477 = scmp.lt.s32.totalorder %s24, 1
      %s478 = scalar_select %p477, %s24, 1
      %p479 = scmp.lt.s32.totalorder %s476, 5
      %s480 = scalar_select %p479, %s476, 5
      %s481 = smul.addr %s480, 2
      %s482 = smul.addr %s478, 12
      %s483 = sadd.s32 %s481, %s482
      %s484 = smul.addr %s483, 4
      %s485 = scalar_lea.vmem %s1, %s484
      %s486 = sadd.s32 %s25, 1
      %s487 = sadd.s32 %s25, 2
      %p488 = scmp.lt.s32.totalorder %s24, 1
      %s489 = scalar_select %p488, %s24, 1
      %p490 = scmp.lt.s32.totalorder %s487, 5
      %s491 = scalar_select %p490, %s487, 5
      %s492 = smul.addr %s491, 2
      %s493 = smul.addr %s489, 12
      %s494 = sadd.s32 %s492, %s493
      %s495 = smul.addr %s494, 4
      %s496 = scalar_lea.vmem %s2, %s495
      %s497 = sadd.s32 %s25, 2
      %p498 = scmp.lt.s32.totalorder %s24, 1
      %s499 = scalar_select %p498, %s24, 1
      %p500 = scmp.lt.s32.totalorder %s25, 3
      %s501 = scalar_select %p500, %s25, 3
      %s502 = smul.addr %s499, 4
      %s503 = sadd.s32 %s501, %s502
      %s504 = smul.addr %s503, 4
      %s505 = scalar_lea.vmem %s4, %s504
      %p506 = scmp.lt.s32.totalorder %s24, 1
      %s507 = scalar_select %p506, %s24, 1
      %p508 = scmp.lt.s32.totalorder %s25, 3
      %s509 = scalar_select %p508, %s25, 3
      %s510 = smul.addr %s507, 4
      %s511 = sadd.s32 %s509, %s510
      %s512 = smul.addr %s511, 4
      %s513 = scalar_lea.vmem %s6, %s512
      %p514 = scmp.lt.s32.totalorder %s24, 1
      %s515 = scalar_select %p514, %s24, 1
      %s516 = scalar_lea.vmem %s8, %s515
      %p517 = scmp.lt.s32.totalorder %s24, 1
      %s518 = scalar_select %p517, %s24, 1
      %p519 = scmp.lt.s32.totalorder %s25, 3
      %s520 = scalar_select %p519, %s25, 3
      %s521 = smul.addr %s518, 4
      %s522 = sadd.s32 %s520, %s521
      %s523 = smul.addr %s522, 4
      %s524 = scalar_lea.vmem %s9, %s523
      %v526 = vld [vmem:[%s475] sm:$0xf]
      %v527 = vld [vmem:[%s3] sm:$0xf]
      %v528 = vld [vmem:[%s475] sm:$0xe]
      %v529 = vld [vmem:[%s475 + $0x4] sm:$0x1]
      %s530 = scalar_lea.vmem %s3, 4
      %v531 = vld [vmem:[%s530] sm:$0xf]
      %v534 = vunpack.c.l.b16 %v528
      %v535 = vunpack.c.l.b16 %v529
      %v536 = vpack.c.b16 %v535, %v534
      %v537 = vrot.slane %v536, 1
      %vm538 = vcmask 64512
      %v540 = vsel %vm538, %v537, 0
      %vm542 = vcmask 1043456
      %v544 = vsel %vm542, %v531, 0
      %546 = vmatprep.subr.bf16.mxu0 0
      %547 = vmatpush1.bf16.msra.mxu0 0
      %548 = vmatprep.subr.bf16.mxu0 0
      %549 = vmatpush1.bf16.msra.mxu0 0
      %550 = vmatprep.subr.bf16.mxu0 0
      %551 = vmatpush1.bf16.msra.mxu0 0
      %552 = vmatprep.subr.bf16.mxu0 0
      %553 = vmatpush1.bf16.msra.mxu0 0
      %554 = vmatprep.subr.bf16.mxu0 0
      %555 = vmatpush1.bf16.msra.mxu0 0
      %556 = vmatprep.subr.bf16.mxu0 0
      %557 = vmatpush1.bf16.msra.mxu0 0
      %558 = vmatprep.subr.bf16.mxu0 0
      %559 = vmatpush1.bf16.msra.mxu0 0
      %560 = vmatprep.subr.bf16.mxu0 0
      %561 = vmatpush1.bf16.msra.mxu0 %v544
      %562 = vmatprep.subr.bf16.mxu0 0
      %563 = vmatpush2.bf16.msra.mxu0 0
      %564 = vmatprep.subr.bf16.mxu0 0
      %565 = vmatpush2.bf16.msra.mxu0 0
      %566 = vmatprep.subr.bf16.mxu0 0
      %567 = vmatpush2.bf16.msra.mxu0 0
      %568 = vmatprep.subr.bf16.mxu0 0
      %569 = vmatpush2.bf16.msra.mxu0 0
      %570 = vmatprep.subr.bf16.mxu0 0
      %571 = vmatpush2.bf16.msra.mxu0 0
      %572 = vmatprep.subr.bf16.mxu0 0
      %573 = vmatpush2.bf16.msra.mxu0 0
      %574 = vmatprep.subr.bf16.mxu0 0
      %575 = vmatpush2.bf16.msra.mxu0 0
      %576 = vmatprep.subr.bf16.mxu0 0
      %577 = vmatpush2.bf16.msra.mxu0 0
      %578 = vmatprep.mubr.bf16.mxu0 0
      %579 = vmatmul.mubr.bf16.gmra.mxu0 %v540
      %v580 = vpop.f32.mrf.mxu0
      %v581 = vadd.f32 0.0, %v580
      %v582 = vpop.f32.mrf.mxu0
      %v583 = vpop.f32.mrf.mxu0
      %v584 = vpop.f32.mrf.mxu0
      %585 = vdwg.mxu0
      %v587 = vsel %vm538, %v526, 0
      %v590 = vsel %vm542, %v527, 0
      %592 = vmatprep.subr.bf16.mxu0 0
      %593 = vmatpush1.bf16.msra.mxu0 0
      %594 = vmatprep.subr.bf16.mxu0 0
      %595 = vmatpush1.bf16.msra.mxu0 0
      %596 = vmatprep.subr.bf16.mxu0 0
      %597 = vmatpush1.bf16.msra.mxu0 0
      %598 = vmatprep.subr.bf16.mxu0 0
      %599 = vmatpush1.bf16.msra.mxu0 0
      %600 = vmatprep.subr.bf16.mxu0 0
      %601 = vmatpush1.bf16.msra.mxu0 0
      %602 = vmatprep.subr.bf16.mxu0 0
      %603 = vmatpush1.bf16.msra.mxu0 0
      %604 = vmatprep.subr.bf16.mxu0 0
      %605 = vmatpush1.bf16.msra.mxu0 0
      %606 = vmatprep.subr.bf16.mxu0 0
      %607 = vmatpush1.bf16.msra.mxu0 %v590
      %608 = vmatprep.subr.bf16.mxu0 0
      %609 = vmatpush2.bf16.msra.mxu0 0
      %610 = vmatprep.subr.bf16.mxu0 0
      %611 = vmatpush2.bf16.msra.mxu0 0
      %612 = vmatprep.subr.bf16.mxu0 0
      %613 = vmatpush2.bf16.msra.mxu0 0
      %614 = vmatprep.subr.bf16.mxu0 0
      %615 = vmatpush2.bf16.msra.mxu0 0
      %616 = vmatprep.subr.bf16.mxu0 0
      %617 = vmatpush2.bf16.msra.mxu0 0
      %618 = vmatprep.subr.bf16.mxu0 0
      %619 = vmatpush2.bf16.msra.mxu0 0
      %620 = vmatprep.subr.bf16.mxu0 0
      %621 = vmatpush2.bf16.msra.mxu0 0
      %622 = vmatprep.subr.bf16.mxu0 0
      %623 = vmatpush2.bf16.msra.mxu0 0
      %624 = vmatprep.mubr.bf16.mxu0 0
      %625 = vmatmul.mubr.bf16.gmra.mxu0 %v587
      %v626 = vpop.f32.mrf.mxu0
      %v627 = vadd.f32 %v581, %v626
      %v628 = vpop.f32.mrf.mxu0
      %v629 = vpop.f32.mrf.mxu0
      %v630 = vpop.f32.mrf.mxu0
      %631 = vdwg.mxu0
      %v632 = vld [vmem:[%s475] sm:$0xc]
      %v633 = vld [vmem:[%s475 + $0x4] sm:$0x3]
      %s634 = scalar_lea.vmem %s3, 8
      %v635 = vld [vmem:[%s634] sm:$0xf]
      %v638 = vunpack.c.l.b16 %v632
      %v639 = vunpack.c.l.b16 %v633
      %v640 = vpack.c.b16 %v639, %v638
      %v641 = vrot.slane %v640, 2
      %v643 = vsel %vm538, %v641, 0
      %v646 = vsel %vm542, %v635, 0
      %648 = vmatprep.subr.bf16.mxu0 0
      %649 = vmatpush1.bf16.msra.mxu0 0
      %650 = vmatprep.subr.bf16.mxu0 0
      %651 = vmatpush1.bf16.msra.mxu0 0
      %652 = vmatprep.subr.bf16.mxu0 0
      %653 = vmatpush1.bf16.msra.mxu0 0
      %654 = vmatprep.subr.bf16.mxu0 0
      %655 = vmatpush1.bf16.msra.mxu0 0
      %656 = vmatprep.subr.bf16.mxu0 0
      %657 = vmatpush1.bf16.msra.mxu0 0
      %658 = vmatprep.subr.bf16.mxu0 0
      %659 = vmatpush1.bf16.msra.mxu0 0
      %660 = vmatprep.subr.bf16.mxu0 0
      %661 = vmatpush1.bf16.msra.mxu0 0
      %662 = vmatprep.subr.bf16.mxu0 0
      %663 = vmatpush1.bf16.msra.mxu0 %v646
      %664 = vmatprep.subr.bf16.mxu0 0
      %665 = vmatpush2.bf16.msra.mxu0 0
      %666 = vmatprep.subr.bf16.mxu0 0
      %667 = vmatpush2.bf16.msra.mxu0 0
      %668 = vmatprep.subr.bf16.mxu0 0
      %669 = vmatpush2.bf16.msra.mxu0 0
      %670 = vmatprep.subr.bf16.mxu0 0
      %671 = vmatpush2.bf16.msra.mxu0 0
      %672 = vmatprep.subr.bf16.mxu0 0
      %673 = vmatpush2.bf16.msra.mxu0 0
      %674 = vmatprep.subr.bf16.mxu0 0
      %675 = vmatpush2.bf16.msra.mxu0 0
      %676 = vmatprep.subr.bf16.mxu0 0
      %677 = vmatpush2.bf16.msra.mxu0 0
      %678 = vmatprep.subr.bf16.mxu0 0
      %679 = vmatpush2.bf16.msra.mxu0 0
      %680 = vmatprep.mubr.bf16.mxu0 0
      %681 = vmatmul.mubr.bf16.gmra.mxu0 %v643
      %v682 = vpop.f32.mrf.mxu0
      %v683 = vadd.f32 0.0, %v682
      %v684 = vpop.f32.mrf.mxu0
      %v685 = vpop.f32.mrf.mxu0
      %v686 = vpop.f32.mrf.mxu0
      %687 = vdwg.mxu0
      %v688 = vadd.f32 %v627, %v683
      %v689 = vld [vmem:[%s485] sm:$0xf]
      %s690 = scalar_lea.vmem %s3, 12
      %v691 = vld [vmem:[%s690] sm:$0xf]
      %v693 = vsel %vm538, %v689, 0
      %v696 = vsel %vm542, %v691, 0
      %698 = vmatprep.subr.bf16.mxu0 0
      %699 = vmatpush1.bf16.msra.mxu0 0
      %700 = vmatprep.subr.bf16.mxu0 0
      %701 = vmatpush1.bf16.msra.mxu0 0
      %702 = vmatprep.subr.bf16.mxu0 0
      %703 = vmatpush1.bf16.msra.mxu0 0
      %704 = vmatprep.subr.bf16.mxu0 0
      %705 = vmatpush1.bf16.msra.mxu0 0
      %706 = vmatprep.subr.bf16.mxu0 0
      %707 = vmatpush1.bf16.msra.mxu0 0
      %708 = vmatprep.subr.bf16.mxu0 0
      %709 = vmatpush1.bf16.msra.mxu0 0
      %710 = vmatprep.subr.bf16.mxu0 0
      %711 = vmatpush1.bf16.msra.mxu0 0
      %712 = vmatprep.subr.bf16.mxu0 0
      %713 = vmatpush1.bf16.msra.mxu0 %v696
      %714 = vmatprep.subr.bf16.mxu0 0
      %715 = vmatpush2.bf16.msra.mxu0 0
      %716 = vmatprep.subr.bf16.mxu0 0
      %717 = vmatpush2.bf16.msra.mxu0 0
      %718 = vmatprep.subr.bf16.mxu0 0
      %719 = vmatpush2.bf16.msra.mxu0 0
      %720 = vmatprep.subr.bf16.mxu0 0
      %721 = vmatpush2.bf16.msra.mxu0 0
      %722 = vmatprep.subr.bf16.mxu0 0
      %723 = vmatpush2.bf16.msra.mxu0 0
      %724 = vmatprep.subr.bf16.mxu0 0
      %725 = vmatpush2.bf16.msra.mxu0 0
      %726 = vmatprep.subr.bf16.mxu0 0
      %727 = vmatpush2.bf16.msra.mxu0 0
      %728 = vmatprep.subr.bf16.mxu0 0
      %729 = vmatpush2.bf16.msra.mxu0 0
      %730 = vmatprep.mubr.bf16.mxu0 0
      %731 = vmatmul.mubr.bf16.gmra.mxu0 %v693
      %v732 = vpop.f32.mrf.mxu0
      %v733 = vadd.f32 0.0, %v732
      %v734 = vpop.f32.mrf.mxu0
      %v735 = vpop.f32.mrf.mxu0
      %v736 = vpop.f32.mrf.mxu0
      %737 = vdwg.mxu0
      %v738 = vadd.f32 %v688, %v733
      %v739 = vld [vmem:[%s485] sm:$0xe]
      %v740 = vld [vmem:[%s485 + $0x4] sm:$0x1]
      %s741 = scalar_lea.vmem %s3, 16
      %v742 = vld [vmem:[%s741] sm:$0xf]
      %v745 = vunpack.c.l.b16 %v739
      %v746 = vunpack.c.l.b16 %v740
      %v747 = vpack.c.b16 %v746, %v745
      %v748 = vrot.slane %v747, 1
      %v750 = vsel %vm538, %v748, 0
      %v753 = vsel %vm542, %v742, 0
      %755 = vmatprep.subr.bf16.mxu0 0
      %756 = vmatpush1.bf16.msra.mxu0 0
      %757 = vmatprep.subr.bf16.mxu0 0
      %758 = vmatpush1.bf16.msra.mxu0 0
      %759 = vmatprep.subr.bf16.mxu0 0
      %760 = vmatpush1.bf16.msra.mxu0 0
      %761 = vmatprep.subr.bf16.mxu0 0
      %762 = vmatpush1.bf16.msra.mxu0 0
      %763 = vmatprep.subr.bf16.mxu0 0
      %764 = vmatpush1.bf16.msra.mxu0 0
      %765 = vmatprep.subr.bf16.mxu0 0
      %766 = vmatpush1.bf16.msra.mxu0 0
      %767 = vmatprep.subr.bf16.mxu0 0
      %768 = vmatpush1.bf16.msra.mxu0 0
      %769 = vmatprep.subr.bf16.mxu0 0
      %770 = vmatpush1.bf16.msra.mxu0 %v753
      %771 = vmatprep.subr.bf16.mxu0 0
      %772 = vmatpush2.bf16.msra.mxu0 0
      %773 = vmatprep.subr.bf16.mxu0 0
      %774 = vmatpush2.bf16.msra.mxu0 0
      %775 = vmatprep.subr.bf16.mxu0 0
      %776 = vmatpush2.bf16.msra.mxu0 0
      %777 = vmatprep.subr.bf16.mxu0 0
      %778 = vmatpush2.bf16.msra.mxu0 0
      %779 = vmatprep.subr.bf16.mxu0 0
      %780 = vmatpush2.bf16.msra.mxu0 0
      %781 = vmatprep.subr.bf16.mxu0 0
      %782 = vmatpush2.bf16.msra.mxu0 0
      %783 = vmatprep.subr.bf16.mxu0 0
      %784 = vmatpush2.bf16.msra.mxu0 0
      %785 = vmatprep.subr.bf16.mxu0 0
      %786 = vmatpush2.bf16.msra.mxu0 0
      %787 = vmatprep.mubr.bf16.mxu0 0
      %788 = vmatmul.mubr.bf16.gmra.mxu0 %v750
      %v789 = vpop.f32.mrf.mxu0
      %v790 = vadd.f32 0.0, %v789
      %v791 = vpop.f32.mrf.mxu0
      %v792 = vpop.f32.mrf.mxu0
      %v793 = vpop.f32.mrf.mxu0
      %794 = vdwg.mxu0
      %v795 = vadd.f32 %v738, %v790
      %v796 = vld [vmem:[%s485] sm:$0xc]
      %v797 = vld [vmem:[%s485 + $0x4] sm:$0x3]
      %s798 = scalar_lea.vmem %s3, 20
      %v799 = vld [vmem:[%s798] sm:$0xf]
      %v802 = vunpack.c.l.b16 %v796
      %v803 = vunpack.c.l.b16 %v797
      %v804 = vpack.c.b16 %v803, %v802
      %v805 = vrot.slane %v804, 2
      %v807 = vsel %vm538, %v805, 0
      %v810 = vsel %vm542, %v799, 0
      %812 = vmatprep.subr.bf16.mxu0 0
      %813 = vmatpush1.bf16.msra.mxu0 0
      %814 = vmatprep.subr.bf16.mxu0 0
      %815 = vmatpush1.bf16.msra.mxu0 0
      %816 = vmatprep.subr.bf16.mxu0 0
      %817 = vmatpush1.bf16.msra.mxu0 0
      %818 = vmatprep.subr.bf16.mxu0 0
      %819 = vmatpush1.bf16.msra.mxu0 0
      %820 = vmatprep.subr.bf16.mxu0 0
      %821 = vmatpush1.bf16.msra.mxu0 0
      %822 = vmatprep.subr.bf16.mxu0 0
      %823 = vmatpush1.bf16.msra.mxu0 0
      %824 = vmatprep.subr.bf16.mxu0 0
      %825 = vmatpush1.bf16.msra.mxu0 0
      %826 = vmatprep.subr.bf16.mxu0 0
      %827 = vmatpush1.bf16.msra.mxu0 %v810
      %828 = vmatprep.subr.bf16.mxu0 0
      %829 = vmatpush2.bf16.msra.mxu0 0
      %830 = vmatprep.subr.bf16.mxu0 0
      %831 = vmatpush2.bf16.msra.mxu0 0
      %832 = vmatprep.subr.bf16.mxu0 0
      %833 = vmatpush2.bf16.msra.mxu0 0
      %834 = vmatprep.subr.bf16.mxu0 0
      %835 = vmatpush2.bf16.msra.mxu0 0
      %836 = vmatprep.subr.bf16.mxu0 0
      %837 = vmatpush2.bf16.msra.mxu0 0
      %838 = vmatprep.subr.bf16.mxu0 0
      %839 = vmatpush2.bf16.msra.mxu0 0
      %840 = vmatprep.subr.bf16.mxu0 0
      %841 = vmatpush2.bf16.msra.mxu0 0
      %842 = vmatprep.subr.bf16.mxu0 0
      %843 = vmatpush2.bf16.msra.mxu0 0
      %844 = vmatprep.mubr.bf16.mxu0 0
      %845 = vmatmul.mubr.bf16.gmra.mxu0 %v807
      %v846 = vpop.f32.mrf.mxu0
      %v847 = vadd.f32 0.0, %v846
      %v848 = vpop.f32.mrf.mxu0
      %v849 = vpop.f32.mrf.mxu0
      %v850 = vpop.f32.mrf.mxu0
      %851 = vdwg.mxu0
      %v852 = vadd.f32 %v795, %v847
      %v853 = vld [vmem:[%s496] sm:$0xf]
      %s854 = scalar_lea.vmem %s3, 24
      %v855 = vld [vmem:[%s854] sm:$0xf]
      %v857 = vsel %vm538, %v853, 0
      %v860 = vsel %vm542, %v855, 0
      %862 = vmatprep.subr.bf16.mxu0 0
      %863 = vmatpush1.bf16.msra.mxu0 0
      %864 = vmatprep.subr.bf16.mxu0 0
      %865 = vmatpush1.bf16.msra.mxu0 0
      %866 = vmatprep.subr.bf16.mxu0 0
      %867 = vmatpush1.bf16.msra.mxu0 0
      %868 = vmatprep.subr.bf16.mxu0 0
      %869 = vmatpush1.bf16.msra.mxu0 0
      %870 = vmatprep.subr.bf16.mxu0 0
      %871 = vmatpush1.bf16.msra.mxu0 0
      %872 = vmatprep.subr.bf16.mxu0 0
      %873 = vmatpush1.bf16.msra.mxu0 0
      %874 = vmatprep.subr.bf16.mxu0 0
      %875 = vmatpush1.bf16.msra.mxu0 0
      %876 = vmatprep.subr.bf16.mxu0 0
      %877 = vmatpush1.bf16.msra.mxu0 %v860
      %878 = vmatprep.subr.bf16.mxu0 0
      %879 = vmatpush2.bf16.msra.mxu0 0
      %880 = vmatprep.subr.bf16.mxu0 0
      %881 = vmatpush2.bf16.msra.mxu0 0
      %882 = vmatprep.subr.bf16.mxu0 0
      %883 = vmatpush2.bf16.msra.mxu0 0
      %884 = vmatprep.subr.bf16.mxu0 0
      %885 = vmatpush2.bf16.msra.mxu0 0
      %886 = vmatprep.subr.bf16.mxu0 0
      %887 = vmatpush2.bf16.msra.mxu0 0
      %888 = vmatprep.subr.bf16.mxu0 0
      %889 = vmatpush2.bf16.msra.mxu0 0
      %890 = vmatprep.subr.bf16.mxu0 0
      %891 = vmatpush2.bf16.msra.mxu0 0
      %892 = vmatprep.subr.bf16.mxu0 0
      %893 = vmatpush2.bf16.msra.mxu0 0
      %894 = vmatprep.mubr.bf16.mxu0 0
      %895 = vmatmul.mubr.bf16.gmra.mxu0 %v857
      %v896 = vpop.f32.mrf.mxu0
      %v897 = vadd.f32 0.0, %v896
      %v898 = vpop.f32.mrf.mxu0
      %v899 = vpop.f32.mrf.mxu0
      %v900 = vpop.f32.mrf.mxu0
      %901 = vdwg.mxu0
      %v902 = vadd.f32 %v852, %v897
      %v903 = vld [vmem:[%s496] sm:$0xe]
      %v904 = vld [vmem:[%s496 + $0x4] sm:$0x1]
      %s905 = scalar_lea.vmem %s3, 28
      %v906 = vld [vmem:[%s905] sm:$0xf]
      %v909 = vunpack.c.l.b16 %v903
      %v910 = vunpack.c.l.b16 %v904
      %v911 = vpack.c.b16 %v910, %v909
      %v912 = vrot.slane %v911, 1
      %v914 = vsel %vm538, %v912, 0
      %v917 = vsel %vm542, %v906, 0
      %919 = vmatprep.subr.bf16.mxu0 0
      %920 = vmatpush1.bf16.msra.mxu0 0
      %921 = vmatprep.subr.bf16.mxu0 0
      %922 = vmatpush1.bf16.msra.mxu0 0
      %923 = vmatprep.subr.bf16.mxu0 0
      %924 = vmatpush1.bf16.msra.mxu0 0
      %925 = vmatprep.subr.bf16.mxu0 0
      %926 = vmatpush1.bf16.msra.mxu0 0
      %927 = vmatprep.subr.bf16.mxu0 0
      %928 = vmatpush1.bf16.msra.mxu0 0
      %929 = vmatprep.subr.bf16.mxu0 0
      %930 = vmatpush1.bf16.msra.mxu0 0
      %931 = vmatprep.subr.bf16.mxu0 0
      %932 = vmatpush1.bf16.msra.mxu0 0
      %933 = vmatprep.subr.bf16.mxu0 0
      %934 = vmatpush1.bf16.msra.mxu0 %v917
      %935 = vmatprep.subr.bf16.mxu0 0
      %936 = vmatpush2.bf16.msra.mxu0 0
      %937 = vmatprep.subr.bf16.mxu0 0
      %938 = vmatpush2.bf16.msra.mxu0 0
      %939 = vmatprep.subr.bf16.mxu0 0
      %940 = vmatpush2.bf16.msra.mxu0 0
      %941 = vmatprep.subr.bf16.mxu0 0
      %942 = vmatpush2.bf16.msra.mxu0 0
      %943 = vmatprep.subr.bf16.mxu0 0
      %944 = vmatpush2.bf16.msra.mxu0 0
      %945 = vmatprep.subr.bf16.mxu0 0
      %946 = vmatpush2.bf16.msra.mxu0 0
      %947 = vmatprep.subr.bf16.mxu0 0
      %948 = vmatpush2.bf16.msra.mxu0 0
      %949 = vmatprep.subr.bf16.mxu0 0
      %950 = vmatpush2.bf16.msra.mxu0 0
      %951 = vmatprep.mubr.bf16.mxu0 0
      %952 = vmatmul.mubr.bf16.gmra.mxu0 %v914
      %v953 = vpop.f32.mrf.mxu0
      %v954 = vadd.f32 0.0, %v953
      %v955 = vpop.f32.mrf.mxu0
      %v956 = vpop.f32.mrf.mxu0
      %v957 = vpop.f32.mrf.mxu0
      %958 = vdwg.mxu0
      %v959 = vadd.f32 %v902, %v954
      %v960 = vld [vmem:[%s496] sm:$0xc]
      %v961 = vld [vmem:[%s496 + $0x4] sm:$0x3]
      %s962 = scalar_lea.vmem %s3, 32
      %v963 = vld [vmem:[%s962] sm:$0xf]
      %v966 = vunpack.c.l.b16 %v960
      %v967 = vunpack.c.l.b16 %v961
      %v968 = vpack.c.b16 %v967, %v966
      %v969 = vrot.slane %v968, 2
      %v971 = vsel %vm538, %v969, 0
      %v974 = vsel %vm542, %v963, 0
      %976 = vmatprep.subr.bf16.mxu0 0
      %977 = vmatpush1.bf16.msra.mxu0 0
      %978 = vmatprep.subr.bf16.mxu0 0
      %979 = vmatpush1.bf16.msra.mxu0 0
      %980 = vmatprep.subr.bf16.mxu0 0
      %981 = vmatpush1.bf16.msra.mxu0 0
      %982 = vmatprep.subr.bf16.mxu0 0
      %983 = vmatpush1.bf16.msra.mxu0 0
      %984 = vmatprep.subr.bf16.mxu0 0
      %985 = vmatpush1.bf16.msra.mxu0 0
      %986 = vmatprep.subr.bf16.mxu0 0
      %987 = vmatpush1.bf16.msra.mxu0 0
      %988 = vmatprep.subr.bf16.mxu0 0
      %989 = vmatpush1.bf16.msra.mxu0 0
      %990 = vmatprep.subr.bf16.mxu0 0
      %991 = vmatpush1.bf16.msra.mxu0 %v974
      %992 = vmatprep.subr.bf16.mxu0 0
      %993 = vmatpush2.bf16.msra.mxu0 0
      %994 = vmatprep.subr.bf16.mxu0 0
      %995 = vmatpush2.bf16.msra.mxu0 0
      %996 = vmatprep.subr.bf16.mxu0 0
      %997 = vmatpush2.bf16.msra.mxu0 0
      %998 = vmatprep.subr.bf16.mxu0 0
      %999 = vmatpush2.bf16.msra.mxu0 0
      %1000 = vmatprep.subr.bf16.mxu0 0
      %1001 = vmatpush2.bf16.msra.mxu0 0
      %1002 = vmatprep.subr.bf16.mxu0 0
      %1003 = vmatpush2.bf16.msra.mxu0 0
      %1004 = vmatprep.subr.bf16.mxu0 0
      %1005 = vmatpush2.bf16.msra.mxu0 0
      %1006 = vmatprep.subr.bf16.mxu0 0
      %1007 = vmatpush2.bf16.msra.mxu0 0
      %1008 = vmatprep.mubr.bf16.mxu0 0
      %1009 = vmatmul.mubr.bf16.gmra.mxu0 %v971
      %v1010 = vpop.f32.mrf.mxu0
      %v1011 = vadd.f32 0.0, %v1010
      %v1012 = vpop.f32.mrf.mxu0
      %v1013 = vpop.f32.mrf.mxu0
      %v1014 = vpop.f32.mrf.mxu0
      %1015 = vdwg.mxu0
      %v1016 = vadd.f32 %v959, %v1011
      %v1017 = vld [vmem:[%s505] sm:$0xf]
      %v1018 = vld [vmem:[%s5] sm:$0xf]
      %v1020 = vsel %vm538, %v1017, 0
      %v1023 = vsel %vm542, %v1018, 0
      %1025 = vmatprep.subr.bf16.mxu0 0
      %1026 = vmatpush1.bf16.msra.mxu0 0
      %1027 = vmatprep.subr.bf16.mxu0 0
      %1028 = vmatpush1.bf16.msra.mxu0 0
      %1029 = vmatprep.subr.bf16.mxu0 0
      %1030 = vmatpush1.bf16.msra.mxu0 0
      %1031 = vmatprep.subr.bf16.mxu0 0
      %1032 = vmatpush1.bf16.msra.mxu0 0
      %1033 = vmatprep.subr.bf16.mxu0 0
      %1034 = vmatpush1.bf16.msra.mxu0 0
      %1035 = vmatprep.subr.bf16.mxu0 0
      %1036 = vmatpush1.bf16.msra.mxu0 0
      %1037 = vmatprep.subr.bf16.mxu0 0
      %1038 = vmatpush1.bf16.msra.mxu0 0
      %1039 = vmatprep.subr.bf16.mxu0 0
      %1040 = vmatpush1.bf16.msra.mxu0 %v1023
      %1041 = vmatprep.subr.bf16.mxu0 0
      %1042 = vmatpush2.bf16.msra.mxu0 0
      %1043 = vmatprep.subr.bf16.mxu0 0
      %1044 = vmatpush2.bf16.msra.mxu0 0
      %1045 = vmatprep.subr.bf16.mxu0 0
      %1046 = vmatpush2.bf16.msra.mxu0 0
      %1047 = vmatprep.subr.bf16.mxu0 0
      %1048 = vmatpush2.bf16.msra.mxu0 0
      %1049 = vmatprep.subr.bf16.mxu0 0
      %1050 = vmatpush2.bf16.msra.mxu0 0
      %1051 = vmatprep.subr.bf16.mxu0 0
      %1052 = vmatpush2.bf16.msra.mxu0 0
      %1053 = vmatprep.subr.bf16.mxu0 0
      %1054 = vmatpush2.bf16.msra.mxu0 0
      %1055 = vmatprep.subr.bf16.mxu0 0
      %1056 = vmatpush2.bf16.msra.mxu0 0
      %1057 = vmatprep.mubr.bf16.mxu0 0
      %1058 = vmatmul.mubr.bf16.gmra.mxu0 %v1020
      %v1059 = vpop.f32.mrf.mxu0
      %v1060 = vadd.f32 0.0, %v1059
      %v1061 = vpop.f32.mrf.mxu0
      %v1062 = vpop.f32.mrf.mxu0
      %v1063 = vpop.f32.mrf.mxu0
      %1064 = vdwg.mxu0
      %v1065 = vadd.f32 %v1016, %v1060
      %v1066 = vld [vmem:[%s513] sm:$0xf]
      %v1067 = vld [vmem:[%s7] sm:$0xf]
      %v1068 = vld [vmem:[%s7 + $0x4] sm:$0xf]
      %v1071 = vunpack.c.l.b16 %v1067
      %v1072 = vunpack.c.l.b16 %v1068
      %v1073 = vpack.c.b16 %v1072, %v1071
      %vm1075 = vcmask 130048
      %v1077 = vsel %vm1075, %v1066, 0
      %1079 = vmatprep.subr.bf16.mxu0 0
      %1080 = vmatpush1.bf16.msra.mxu0 0
      %1081 = vmatprep.subr.bf16.mxu0 0
      %1082 = vmatpush1.bf16.msra.mxu0 0
      %1083 = vmatprep.subr.bf16.mxu0 0
      %1084 = vmatpush1.bf16.msra.mxu0 0
      %1085 = vmatprep.subr.bf16.mxu0 0
      %1086 = vmatpush1.bf16.msra.mxu0 0
      %1087 = vmatprep.subr.bf16.mxu0 0
      %1088 = vmatpush1.bf16.msra.mxu0 0
      %1089 = vmatprep.subr.bf16.mxu0 0
      %1090 = vmatpush1.bf16.msra.mxu0 0
      %1091 = vmatprep.subr.bf16.mxu0 0
      %1092 = vmatpush1.bf16.msra.mxu0 0
      %1093 = vmatprep.subr.bf16.mxu0 0
      %1094 = vmatpush1.bf16.msra.mxu0 %v1073
      %1095 = vmatprep.subr.bf16.mxu0 0
      %1096 = vmatpush2.bf16.msra.mxu0 0
      %1097 = vmatprep.subr.bf16.mxu0 0
      %1098 = vmatpush2.bf16.msra.mxu0 0
      %1099 = vmatprep.subr.bf16.mxu0 0
      %1100 = vmatpush2.bf16.msra.mxu0 0
      %1101 = vmatprep.subr.bf16.mxu0 0
      %1102 = vmatpush2.bf16.msra.mxu0 0
      %1103 = vmatprep.subr.bf16.mxu0 0
      %1104 = vmatpush2.bf16.msra.mxu0 0
      %1105 = vmatprep.subr.bf16.mxu0 0
      %1106 = vmatpush2.bf16.msra.mxu0 0
      %1107 = vmatprep.subr.bf16.mxu0 0
      %1108 = vmatpush2.bf16.msra.mxu0 0
      %1109 = vmatprep.subr.bf16.mxu0 0
      %1110 = vmatpush2.bf16.msra.mxu0 0
      %1111 = vmatprep.mubr.bf16.mxu0 0
      %1112 = vmatmul.mubr.bf16.gmra.mxu0 %v1077
      %v1113 = vpop.f32.mrf.mxu0
      %v1114 = vadd.f32 0.0, %v1113
      %v1115 = vpop.f32.mrf.mxu0
      %v1116 = vpop.f32.mrf.mxu0
      %v1117 = vpop.f32.mrf.mxu0
      %1118 = vdwg.mxu0
      %v1119 = vadd.f32 %v1065, %v1114
      %v1120 = vld [vmem:[%s516] sm:$0x1]
      %v1122 = vlaneseq
      %v1123 = vshrl.u32 %v1122, 7
      %v1124 = vsub.s32 0, %v1123
      %v1125 = vrot.slane %v1120, %v1124
      %v1127 = vadd.f32 %v1119, %v1125
      %v1128 = vmax.f32 %v1127, 0.0
      %v1129 = vpack.c.bf16 %v1128, %v1128
      %vm1130 = vcmask 125952
      %1131 = vst.msk [vmem:[%s524] sm:$0xf] %vm1130, %v1129
      %p1132 = scmp.lt.s32.totalorder %s24, 1
      %s1133 = scalar_select %p1132, %s24, 1
      %p1134 = scmp.lt.s32.totalorder %s25, 3
      %s1135 = scalar_select %p1134, %s25, 3
      %s1136 = smul.addr %s1133, 4
      %s1137 = sadd.s32 %s1135, %s1136
      %s1138 = smul.addr %s1137, 4
      %s1139 = scalar_lea.vmem %s9, %s1138
      // Predicated region
      $region57: #{enc_forward.15} parent=55 // pred_check
        %p1140 = pneg %p285
      $region58: #{enc_forward.15} parent=55 // pred_check_branch
        %1142 = sbr.rel (%p1140) target = $region60
      $region59: #{enc_forward.15} parent=55 // pred_region
        _
      $region60: #{enc_forward.15} parent=55 // pred_fallthru
        _
    $region56: #{enc_forward.15} parent=5 // pred_fallthru
      _
    %p1143 = scmp.le.s32.totalorder 2, %s15
    // Predicated region
    $region61: #{enc_forward.15} parent=5 // pred_check
      %p1144 = pneg %p1143
    $region62: #{enc_forward.15} parent=5 // pred_check_branch
      %1146 = sbr.rel (%p1144) target = $region64
    $region63: #{enc_forward.15} parent=5 // pred_region
      %s1147 = ssub.s32 %s15, 2
      // Predicated region
      $region65: #{enc_forward.15} parent=63 // pred_check
        %p1148 = pneg %p291
      $region66: #{enc_forward.15} parent=63 // pred_check_branch
        %1150 = sbr.rel (%p1148) target = $region68
      $region67: #{enc_forward.15} parent=63 // pred_region
        %p1151 = scmp.lt.s32.totalorder %s26, 1
        %s1152 = scalar_select %p1151, %s26, 1
        %p1153 = scmp.lt.s32.totalorder %s27, 3
        %s1154 = scalar_select %p1153, %s27, 3
        %s1155 = smul.addr %s1152, 4
        %s1156 = sadd.s32 %s1154, %s1155
        %s1157 = smul.addr %s1156, 4
        %s1158 = scalar_lea.vmem %s9, %s1157
      $region68: #{enc_forward.15} parent=63 // pred_fallthru
        _
    $region64: #{enc_forward.15} parent=5 // pred_fallthru
      _
  $region6: #{enc_forward.15} parent=0 // loop_footer
    %s19 = sadd.s32 1, %s15
  $region7: #{enc_forward.15} parent=0 // loop_footer_branch
    %14 = sbr.rel target = $region3
  $region8: #{enc_forward.15} parent=0 // loop_exit
    _

</llo_original>
